<compile_context>
chip_gen: v5e
topology: v5e:2x2
jax: 0.10.0
libtpu: 0.0.40
codegen_flags: <defaults>
</compile_context>

<pallas_src>
import functools

import numpy as np
import jax
import jax.numpy as jnp
from jax.experimental import pallas as pl
from jax.experimental.pallas import tpu as pltpu

_PAD = 128            # lane halo around the flattened spatial axis (>= W+1)
_MAX_BATCH_TILE = 8   # batch rows per grid step (sublane-friendly)


# ----------------------------------------------------------------------------
# Fused Pallas kernel: 4x conv3x3 (VPU) + fc1 + fc2/LayerNorm + fc3 (MXU)
# ----------------------------------------------------------------------------
def _fused_encoder_kernel(
    masks_ref,            # (9, bt*HW) f32 0/1 validity per 3x3 tap (batch-tiled)
    obs_ref,              # (C0, bt*HW) f32 channel-major input, this batch tile
    w1_ref, b1_ref,       # (C1, 9*C0), (C1, 1)
    w2_ref, b2_ref,       # (C2, 9*C1), (C2, 1)
    w3_ref, b3_ref,       # (C3, 9*C2), (C3, 1)
    w4_ref, b4_ref,       # (K , 9*C3), (K , 1)
    fc1w_ref, fc1b_ref,   # (K*HW, Dh), (1, Dh)
    fc2w_ref, fc2b_ref,   # (Dh, Dh),   (1, Dh)
    lng_ref, lnb_ref,     # (1, Dh),    (1, Dh)
    fc3w_ref, fc3b_ref,   # (Dh, De),   (1, De)
    out_ref,              # (bt, De)
    apad_ref,             # VMEM scratch (Cmax, 2*_PAD + bt*HW)
    flat_ref,             # VMEM scratch (bt, K*HW)
    *, H, W, bt, chans):
    HW = H * W
    BHW = bt * HW
    pad = _PAD

    mvals = masks_ref[...]                                 # (9, BHW)
    mrows = [mvals[k:k + 1, :] for k in range(9)]          # 9 x (1, BHW)

    # Halo lanes are read by the shifted windows (then multiplied by a 0 mask),
    # so they must hold finite zeros.  Re-clear every step (parallel-axis safe).
    apad_ref[:, 0:pad] = jnp.zeros_like(apad_ref[:, 0:pad])
    apad_ref[:, pad + BHW:] = jnp.zeros_like(apad_ref[:, pad + BHW:])

    def conv3x3(x, wmat, bias, cin, cout, act):
        # x: (cin, BHW)   wmat: (cout, 9*cin)   bias: (cout, 1)
        apad_ref[0:cin, pad:pad + BHW] = x
        ap = apad_ref[0:cin, :]                            # (cin, 2*pad + BHW)
        acc = jnp.zeros((cout, BHW), jnp.float32)
        for dy in (-1, 0, 1):
            for dx in (-1, 0, 1):
                k = (dy + 1) * 3 + (dx + 1)
                off = dy * W + dx
                # shifted, boundary-masked input window (all cin channels);
                # cross-image reads are exactly the masked-out taps.
                win = ap[:, pad + off:pad + off + BHW] * mrows[k]
                for c in range(cin):
                    wcol = wmat[:, k * cin + c:k * cin + c + 1]   # (cout, 1)
                    acc = acc + wcol * win[c:c + 1, :]            # VPU FMA
        acc = acc + bias
        return jnp.maximum(acc, 0.0) if act == "relu" else jax.nn.sigmoid(acc)

    c0, c1, c2, c3, k_obj = chans
    x = obs_ref[...]
    x = conv3x3(x, w1_ref[...], b1_ref[...], c0, c1, "relu")
    x = conv3x3(x, w2_ref[...], b2_ref[...], c1, c2, "relu")
    x = conv3x3(x, w3_ref[...], b3_ref[...], c2, c3, "relu")
    x = conv3x3(x, w4_ref[...], b4_ref[...], c3, k_obj, "sigmoid")

    # torch flatten order (obj, h, w): feat[b, k*HW + s] = x[k, b*HW + s]
    for k in range(k_obj):
        for b in range(bt):
            flat_ref[b:b + 1, k * HW:(k + 1) * HW] = x[k:k + 1, b * HW:(b + 1) * HW]
    feat = flat_ref[...]                                   # (bt, K*HW)

    # fc1 + relu (MXU, M = bt)
    h = jnp.dot(feat, fc1w_ref[...], preferred_element_type=jnp.float32)
    h = jnp.maximum(h + fc1b_ref[...], 0.0)

    # fc2 + LayerNorm (one-pass variance) + relu
    y = jnp.dot(h, fc2w_ref[...], preferred_element_type=jnp.float32)
    y = y + fc2b_ref[...]
    mean = jnp.mean(y, axis=-1, keepdims=True)
    var = jnp.maximum(jnp.mean(y * y, axis=-1, keepdims=True) - mean * mean, 0.0)
    y = (y - mean) * jax.lax.rsqrt(var + 1e-5)
    y = jnp.maximum(y * lng_ref[...] + lnb_ref[...], 0.0)

    # fc3
    out = jnp.dot(y, fc3w_ref[...], preferred_element_type=jnp.float32)
    out_ref[...] = (out + fc3b_ref[...]).astype(out_ref.dtype)


# ----------------------------------------------------------------------------
# Host-side prep + pallas_call wrapper
# ----------------------------------------------------------------------------
def _shift_masks(H, W, bt):
    """(9, bt*H*W) f32 masks: tap (dy,dx) valid at flat position s = h*W + w."""
    s = np.arange(H * W)
    hh, ww = s // W, s % W
    rows = []
    for dy in (-1, 0, 1):
        for dx in (-1, 0, 1):
            rows.append(((hh + dy >= 0) & (hh + dy < H) &
                         (ww + dx >= 0) & (ww + dx < W)).astype(np.float32))
    m = np.stack(rows, axis=0)                 # (9, HW)
    return jnp.asarray(np.tile(m, (1, bt)))    # (9, bt*HW)


def _conv_mat(w_oihw):
    """(Cout,Cin,3,3) -> (Cout, 9*Cin) with (ky,kx)-major, cin-minor columns."""
    cout, cin = w_oihw.shape[0], w_oihw.shape[1]
    return jnp.transpose(w_oihw, (0, 2, 3, 1)).reshape(cout, 9 * cin).astype(jnp.float32)


def forward(obs_nchw, p):
    B, C, H, W = obs_nchw.shape
    HW = H * W
    assert HW % 128 == 0, "flattened H*W must be a multiple of 128 lanes"
    assert _PAD >= W + 1

    bt = min(B, _MAX_BATCH_TILE)
    Bp = ((B + bt - 1) // bt) * bt             # padded batch (multiple of bt)

    x = obs_nchw.astype(jnp.float32)
    if Bp != B:
        x = jnp.pad(x, ((0, Bp - B), (0, 0), (0, 0), (0, 0)))
    # NCHW -> (channels, batch*H*W); the only XLA glue on the critical path.
    obs_cl = jnp.transpose(x, (1, 0, 2, 3)).reshape(C, Bp * HW)

    masks = _shift_masks(H, W, bt)             # trace-time constant under jit

    w1, b1 = _conv_mat(p["cnn1_w"]), p["cnn1_b"].reshape(-1, 1).astype(jnp.float32)
    w2, b2 = _conv_mat(p["cnn2_w"]), p["cnn2_b"].reshape(-1, 1).astype(jnp.float32)
    w3, b3 = _conv_mat(p["cnn3_w"]), p["cnn3_b"].reshape(-1, 1).astype(jnp.float32)
    w4, b4 = _conv_mat(p["cnn4_w"]), p["cnn4_b"].reshape(-1, 1).astype(jnp.float32)
    chans = (C, p["cnn1_w"].shape[0], p["cnn2_w"].shape[0],
             p["cnn3_w"].shape[0], p["cnn4_w"].shape[0])
    k_obj = chans[4]

    fc1w = p["fc1_w"].astype(jnp.float32)
    fc1b = p["fc1_b"].reshape(1, -1).astype(jnp.float32)
    fc2w = p["fc2_w"].astype(jnp.float32)
    fc2b = p["fc2_b"].reshape(1, -1).astype(jnp.float32)
    lng = p["ln_g"].reshape(1, -1).astype(jnp.float32)
    lnb = p["ln_b"].reshape(1, -1).astype(jnp.float32)
    fc3w = p["fc3_w"].astype(jnp.float32)
    fc3b = p["fc3_b"].reshape(1, -1).astype(jnp.float32)
    d_e = fc3w.shape[1]

    kernel = functools.partial(_fused_encoder_kernel, H=H, W=W, bt=bt, chans=chans)

    def full(arr):
        nd = arr.ndim
        return pl.BlockSpec(arr.shape, lambda b, _nd=nd: (0,) * _nd)

    out2 = pl.pallas_call(
        kernel,
        out_shape=jax.ShapeDtypeStruct((Bp, d_e), jnp.float32),
        grid=(Bp // bt,),
        in_specs=[
            full(masks),
            pl.BlockSpec((C, bt * HW), lambda b: (0, b)),   # this batch tile
            full(w1), full(b1), full(w2), full(b2),
            full(w3), full(b3), full(w4), full(b4),
            full(fc1w), full(fc1b), full(fc2w), full(fc2b),
            full(lng), full(lnb), full(fc3w), full(fc3b),
        ],
        out_specs=pl.BlockSpec((bt, d_e), lambda b: (b, 0)),
        scratch_shapes=[
            pltpu.VMEM((max(chans), 2 * _PAD + bt * HW), jnp.float32),
            pltpu.VMEM((bt, k_obj * HW), jnp.float32),
        ],
        compiler_params=pltpu.CompilerParams(
            dimension_semantics=("parallel",)),
    )(masks, obs_cl, w1, b1, w2, b2, w3, b3, w4, b4,
      fc1w, fc1b, fc2w, fc2b, lng, lnb, fc3w, fc3b)
    return out2[:B]


# ----------------------------------------------------------------------------
# Pure-JAX reference (independent im2col formulation, for correctness check)
# ----------------------------------------------------------------------------
def _ref_conv3x3(x_nhwc, w_oihw, b, act):
    B, H, W, Cin = x_nhwc.shape
    Cout = w_oihw.shape[0]
    xp = jnp.pad(x_nhwc, ((0, 0), (1, 1), (1, 1), (0, 0)))
    cols = [xp[:, ky:ky + H, kx:kx + W, :] for ky in range(3) for kx in range(3)]
    xcol = jnp.concatenate(cols, axis=-1).reshape(B * H * W, 9 * Cin)
    wmat = jnp.transpose(w_oihw, (2, 3, 1, 0)).reshape(9 * Cin, Cout)
    y = xcol @ wmat + b[None, :]
    y = jnp.maximum(y, 0.0) if act == "relu" else jax.nn.sigmoid(y)
    return y.reshape(B, H, W, Cout)


def forward_ref(obs_nchw, p):
    x = jnp.transpose(obs_nchw, (0, 2, 3, 1)).astype(jnp.float32)
    x = _ref_conv3x3(x, p["cnn1_w"], p["cnn1_b"], "relu")
    x = _ref_conv3x3(x, p["cnn2_w"], p["cnn2_b"], "relu")
    x = _ref_conv3x3(x, p["cnn3_w"], p["cnn3_b"], "relu")
    x = _ref_conv3x3(x, p["cnn4_w"], p["cnn4_b"], "sigmoid")
    B, H, W, K = x.shape
    h = jnp.transpose(x, (0, 3, 1, 2)).reshape(B, K * H * W)
    h = jnp.maximum(h @ p["fc1_w"] + p["fc1_b"], 0.0)
    y = h @ p["fc2_w"] + p["fc2_b"]
    mean = jnp.mean(y, axis=-1, keepdims=True)
    var = jnp.mean((y - mean) ** 2, axis=-1, keepdims=True)
    y = (y - mean) * jax.lax.rsqrt(var + 1e-5) * p["ln_g"] + p["ln_b"]
    h = jnp.maximum(y, 0.0)
    return h @ p["fc3_w"] + p["fc3_b"]


# ----------------------------------------------------------------------------
# Deterministic parameter construction + run
# ----------------------------------------------------------------------------
def make_params(key, num_channels, hidden_dim, num_objects, embedding_dim, hw):
    cnn_hid = hidden_dim // 16
    mlp_in = hw * hw * num_objects
    ks = jax.random.split(key, 14)

    def nrm(k, shape, scale=0.1):
        return scale * jax.random.normal(k, shape, dtype=jnp.float32)

    return {
        "cnn1_w": nrm(ks[0], (cnn_hid, num_channels, 3, 3)),
        "cnn1_b": nrm(ks[1], (cnn_hid,)),
        "cnn2_w": nrm(ks[2], (cnn_hid, cnn_hid, 3, 3)),
        "cnn2_b": nrm(ks[3], (cnn_hid,)),
        "cnn3_w": nrm(ks[4], (cnn_hid, cnn_hid, 3, 3)),
        "cnn3_b": nrm(ks[5], (cnn_hid,)),
        "cnn4_w": nrm(ks[6], (num_objects, cnn_hid, 3, 3)),
        "cnn4_b": nrm(ks[7], (num_objects,)),
        "fc1_w": nrm(ks[8], (mlp_in, hidden_dim), 0.02),
        "fc1_b": nrm(ks[9], (hidden_dim,)),
        "fc2_w": nrm(ks[10], (hidden_dim, hidden_dim)),
        "fc2_b": nrm(ks[11], (hidden_dim,)),
        "ln_g": jnp.ones((hidden_dim,), jnp.float32),
        "ln_b": jnp.zeros((hidden_dim,), jnp.float32),
        "fc3_w": nrm(ks[12], (hidden_dim, embedding_dim)),
        "fc3_b": nrm(ks[13], (embedding_dim,)),
    }


if __name__ == "__main__":
    # Module config (small): input_dims=[3,16,16], hidden_dim=64, action_dim=4,
    # num_objects=4, embedding_dim_per_object=8 -> embedding_dim=32, encoder='large'
    B, C, H, W = 2, 3, 16, 16
    hidden_dim = 64
    num_objects = 4
    embedding_dim = 8 * num_objects  # 32

    key = jax.random.PRNGKey(0)
    k_obs, k_par = jax.random.split(key)
    obs = jax.random.uniform(k_obs, (B, C, H, W), dtype=jnp.float32)
    params = make_params(k_par, C, hidden_dim, num_objects, embedding_dim, H)

    out = jax.jit(forward)(obs, params)
    out = jax.block_until_ready(out)
    assert out.shape == (B, embedding_dim), out.shape

    ref = jax.block_until_ready(forward_ref(obs, params))
    assert jnp.allclose(out, ref, atol=1e-3, rtol=1e-3), float(jnp.abs(out - ref).max())

    print("KERNEL_OK")
</pallas_src>

<mosaic_0001>
module attributes {stable_mosaic.version = 11 : i64} {
  func.func @_fused_encoder_kernel(%arg0: i32, %arg1: memref<9x512xf32, #tpu.memory_space<vmem>>, %arg2: memref<3x512xf32, #tpu.memory_space<vmem>>, %arg3: memref<4x27xf32, #tpu.memory_space<vmem>>, %arg4: memref<4x1xf32, #tpu.memory_space<vmem>>, %arg5: memref<4x36xf32, #tpu.memory_space<vmem>>, %arg6: memref<4x1xf32, #tpu.memory_space<vmem>>, %arg7: memref<4x36xf32, #tpu.memory_space<vmem>>, %arg8: memref<4x1xf32, #tpu.memory_space<vmem>>, %arg9: memref<4x36xf32, #tpu.memory_space<vmem>>, %arg10: memref<4x1xf32, #tpu.memory_space<vmem>>, %arg11: memref<1024x64xf32, #tpu.memory_space<vmem>>, %arg12: memref<1x64xf32, #tpu.memory_space<vmem>>, %arg13: memref<64x64xf32, #tpu.memory_space<vmem>>, %arg14: memref<1x64xf32, #tpu.memory_space<vmem>>, %arg15: memref<1x64xf32, #tpu.memory_space<vmem>>, %arg16: memref<1x64xf32, #tpu.memory_space<vmem>>, %arg17: memref<64x32xf32, #tpu.memory_space<vmem>>, %arg18: memref<1x32xf32, #tpu.memory_space<vmem>>, %arg19: memref<2x32xf32, #tpu.memory_space<vmem>>, %arg20: memref<4x768xf32, #tpu.memory_space<vmem>>, %arg21: memref<2x1024xf32, #tpu.memory_space<vmem>>) attributes {dimension_semantics = [#tpu.dimension_semantics<parallel>], iteration_bounds = array<i64: 1>, scalar_prefetch = 0 : i64, scratch_operands = 2 : i64, tpu.core_type = #tpu.core_type<tc>, window_params = [{pipeline_mode = #tpu.pipeline_mode<synchronous>, transform_indices = @transform_0, window_bounds = array<i64: 9, 512>}, {transform_indices = @transform_1, window_bounds = array<i64: 3, 512>}, {pipeline_mode = #tpu.pipeline_mode<synchronous>, transform_indices = @transform_2, window_bounds = array<i64: 4, 27>}, {pipeline_mode = #tpu.pipeline_mode<synchronous>, transform_indices = @transform_3, window_bounds = array<i64: 4, 1>}, {pipeline_mode = #tpu.pipeline_mode<synchronous>, transform_indices = @transform_4, window_bounds = array<i64: 4, 36>}, {pipeline_mode = #tpu.pipeline_mode<synchronous>, transform_indices = @transform_5, window_bounds = array<i64: 4, 1>}, {pipeline_mode = #tpu.pipeline_mode<synchronous>, transform_indices = @transform_6, window_bounds = array<i64: 4, 36>}, {pipeline_mode = #tpu.pipeline_mode<synchronous>, transform_indices = @transform_7, window_bounds = array<i64: 4, 1>}, {pipeline_mode = #tpu.pipeline_mode<synchronous>, transform_indices = @transform_8, window_bounds = array<i64: 4, 36>}, {pipeline_mode = #tpu.pipeline_mode<synchronous>, transform_indices = @transform_9, window_bounds = array<i64: 4, 1>}, {pipeline_mode = #tpu.pipeline_mode<synchronous>, transform_indices = @transform_10, window_bounds = array<i64: 1024, 64>}, {pipeline_mode = #tpu.pipeline_mode<synchronous>, transform_indices = @transform_11, window_bounds = array<i64: 1, 64>}, {pipeline_mode = #tpu.pipeline_mode<synchronous>, transform_indices = @transform_12, window_bounds = array<i64: 64, 64>}, {pipeline_mode = #tpu.pipeline_mode<synchronous>, transform_indices = @transform_13, window_bounds = array<i64: 1, 64>}, {pipeline_mode = #tpu.pipeline_mode<synchronous>, transform_indices = @transform_14, window_bounds = array<i64: 1, 64>}, {pipeline_mode = #tpu.pipeline_mode<synchronous>, transform_indices = @transform_15, window_bounds = array<i64: 1, 64>}, {pipeline_mode = #tpu.pipeline_mode<synchronous>, transform_indices = @transform_16, window_bounds = array<i64: 64, 32>}, {pipeline_mode = #tpu.pipeline_mode<synchronous>, transform_indices = @transform_17, window_bounds = array<i64: 1, 32>}, {transform_indices = @transform_18, window_bounds = array<i64: 2, 32>}]} {
    %c0 = arith.constant 0 : index
    %c0_0 = arith.constant 0 : index
    %0 = vector.load %arg1[%c0, %c0_0] : memref<9x512xf32, #tpu.memory_space<vmem>>, vector<9x512xf32>
    %1 = vector.extract_strided_slice %0 {offsets = [0, 0], sizes = [1, 512], strides = [1, 1]} : vector<9x512xf32> to vector<1x512xf32>
    %2 = vector.extract_strided_slice %0 {offsets = [1, 0], sizes = [1, 512], strides = [1, 1]} : vector<9x512xf32> to vector<1x512xf32>
    %3 = vector.extract_strided_slice %0 {offsets = [2, 0], sizes = [1, 512], strides = [1, 1]} : vector<9x512xf32> to vector<1x512xf32>
    %4 = vector.extract_strided_slice %0 {offsets = [3, 0], sizes = [1, 512], strides = [1, 1]} : vector<9x512xf32> to vector<1x512xf32>
    %5 = vector.extract_strided_slice %0 {offsets = [4, 0], sizes = [1, 512], strides = [1, 1]} : vector<9x512xf32> to vector<1x512xf32>
    %6 = vector.extract_strided_slice %0 {offsets = [5, 0], sizes = [1, 512], strides = [1, 1]} : vector<9x512xf32> to vector<1x512xf32>
    %7 = vector.extract_strided_slice %0 {offsets = [6, 0], sizes = [1, 512], strides = [1, 1]} : vector<9x512xf32> to vector<1x512xf32>
    %8 = vector.extract_strided_slice %0 {offsets = [7, 0], sizes = [1, 512], strides = [1, 1]} : vector<9x512xf32> to vector<1x512xf32>
    %9 = vector.extract_strided_slice %0 {offsets = [8, 0], sizes = [1, 512], strides = [1, 1]} : vector<9x512xf32> to vector<1x512xf32>
    %cst = arith.constant 0.000000e+00 : f32
    %10 = vector.broadcast %cst : f32 to vector<4x128xf32>
    %c0_1 = arith.constant 0 : index
    %c0_2 = arith.constant 0 : index
    %11 = vector.load %arg20[%c0_1, %c0_2] : memref<4x768xf32, #tpu.memory_space<vmem>>, vector<4x128xf32>
    tpu.vector_store %arg20[%c0_1, %c0_2], %10 {strides = array<i32>} : memref<4x768xf32, #tpu.memory_space<vmem>>, vector<4x128xf32>,
    %cst_3 = arith.constant 0.000000e+00 : f32
    %12 = vector.broadcast %cst_3 : f32 to vector<4x128xf32>
    %c0_4 = arith.constant 0 : index
    %c640 = arith.constant 640 : index
    %13 = vector.load %arg20[%c0_4, %c640] : memref<4x768xf32, #tpu.memory_space<vmem>>, vector<4x128xf32>
    tpu.vector_store %arg20[%c0_4, %c640], %12 {strides = array<i32>} : memref<4x768xf32, #tpu.memory_space<vmem>>, vector<4x128xf32>,
    %c0_5 = arith.constant 0 : index
    %c0_6 = arith.constant 0 : index
    %14 = vector.load %arg2[%c0_5, %c0_6] : memref<3x512xf32, #tpu.memory_space<vmem>>, vector<3x512xf32>
    %c0_7 = arith.constant 0 : index
    %c0_8 = arith.constant 0 : index
    %15 = vector.load %arg3[%c0_7, %c0_8] : memref<4x27xf32, #tpu.memory_space<vmem>>, vector<4x27xf32>
    %c0_9 = arith.constant 0 : index
    %c0_10 = arith.constant 0 : index
    %16 = vector.load %arg4[%c0_9, %c0_10] : memref<4x1xf32, #tpu.memory_space<vmem>>, vector<4x1xf32>
    %c0_11 = arith.constant 0 : index
    %c128 = arith.constant 128 : index
    %17 = vector.load %arg20[%c0_11, %c128] : memref<4x768xf32, #tpu.memory_space<vmem>>, vector<3x512xf32>
    tpu.vector_store %arg20[%c0_11, %c128], %14 {strides = array<i32>} : memref<4x768xf32, #tpu.memory_space<vmem>>, vector<3x512xf32>,
    %c0_12 = arith.constant 0 : index
    %c0_13 = arith.constant 0 : index
    %18 = vector.load %arg20[%c0_12, %c0_13] : memref<4x768xf32, #tpu.memory_space<vmem>>, vector<3x768xf32>
    %cst_14 = arith.constant 0.000000e+00 : f32
    %19 = vector.broadcast %cst_14 : f32 to vector<4x512xf32>
    %20 = vector.extract_strided_slice %18 {offsets = [0, 111], sizes = [3, 512], strides = [1, 1]} : vector<3x768xf32> to vector<3x512xf32>
    %21 = vector.broadcast %1 : vector<1x512xf32> to vector<3x512xf32>
    %22 = arith.mulf %20, %21 : vector<3x512xf32>
    %23 = vector.extract_strided_slice %15 {offsets = [0, 0], sizes = [4, 1], strides = [1, 1]} : vector<4x27xf32> to vector<4x1xf32>
    %24 = vector.extract_strided_slice %22 {offsets = [0, 0], sizes = [1, 512], strides = [1, 1]} : vector<3x512xf32> to vector<1x512xf32>
    %25 = vector.broadcast %23 : vector<4x1xf32> to vector<4x512xf32>
    %26 = vector.broadcast %24 : vector<1x512xf32> to vector<4x512xf32>
    %27 = arith.mulf %25, %26 : vector<4x512xf32>
    %28 = arith.addf %19, %27 : vector<4x512xf32>
    %29 = vector.extract_strided_slice %15 {offsets = [0, 1], sizes = [4, 1], strides = [1, 1]} : vector<4x27xf32> to vector<4x1xf32>
    %30 = vector.extract_strided_slice %22 {offsets = [1, 0], sizes = [1, 512], strides = [1, 1]} : vector<3x512xf32> to vector<1x512xf32>
    %31 = vector.broadcast %29 : vector<4x1xf32> to vector<4x512xf32>
    %32 = vector.broadcast %30 : vector<1x512xf32> to vector<4x512xf32>
    %33 = arith.mulf %31, %32 : vector<4x512xf32>
    %34 = arith.addf %28, %33 : vector<4x512xf32>
    %35 = vector.extract_strided_slice %15 {offsets = [0, 2], sizes = [4, 1], strides = [1, 1]} : vector<4x27xf32> to vector<4x1xf32>
    %36 = vector.extract_strided_slice %22 {offsets = [2, 0], sizes = [1, 512], strides = [1, 1]} : vector<3x512xf32> to vector<1x512xf32>
    %37 = vector.broadcast %35 : vector<4x1xf32> to vector<4x512xf32>
    %38 = vector.broadcast %36 : vector<1x512xf32> to vector<4x512xf32>
    %39 = arith.mulf %37, %38 : vector<4x512xf32>
    %40 = arith.addf %34, %39 : vector<4x512xf32>
    %41 = vector.extract_strided_slice %18 {offsets = [0, 112], sizes = [3, 512], strides = [1, 1]} : vector<3x768xf32> to vector<3x512xf32>
    %42 = vector.broadcast %2 : vector<1x512xf32> to vector<3x512xf32>
    %43 = arith.mulf %41, %42 : vector<3x512xf32>
    %44 = vector.extract_strided_slice %15 {offsets = [0, 3], sizes = [4, 1], strides = [1, 1]} : vector<4x27xf32> to vector<4x1xf32>
    %45 = vector.extract_strided_slice %43 {offsets = [0, 0], sizes = [1, 512], strides = [1, 1]} : vector<3x512xf32> to vector<1x512xf32>
    %46 = vector.broadcast %44 : vector<4x1xf32> to vector<4x512xf32>
    %47 = vector.broadcast %45 : vector<1x512xf32> to vector<4x512xf32>
    %48 = arith.mulf %46, %47 : vector<4x512xf32>
    %49 = arith.addf %40, %48 : vector<4x512xf32>
    %50 = vector.extract_strided_slice %15 {offsets = [0, 4], sizes = [4, 1], strides = [1, 1]} : vector<4x27xf32> to vector<4x1xf32>
    %51 = vector.extract_strided_slice %43 {offsets = [1, 0], sizes = [1, 512], strides = [1, 1]} : vector<3x512xf32> to vector<1x512xf32>
    %52 = vector.broadcast %50 : vector<4x1xf32> to vector<4x512xf32>
    %53 = vector.broadcast %51 : vector<1x512xf32> to vector<4x512xf32>
    %54 = arith.mulf %52, %53 : vector<4x512xf32>
    %55 = arith.addf %49, %54 : vector<4x512xf32>
    %56 = vector.extract_strided_slice %15 {offsets = [0, 5], sizes = [4, 1], strides = [1, 1]} : vector<4x27xf32> to vector<4x1xf32>
    %57 = vector.extract_strided_slice %43 {offsets = [2, 0], sizes = [1, 512], strides = [1, 1]} : vector<3x512xf32> to vector<1x512xf32>
    %58 = vector.broadcast %56 : vector<4x1xf32> to vector<4x512xf32>
    %59 = vector.broadcast %57 : vector<1x512xf32> to vector<4x512xf32>
    %60 = arith.mulf %58, %59 : vector<4x512xf32>
    %61 = arith.addf %55, %60 : vector<4x512xf32>
    %62 = vector.extract_strided_slice %18 {offsets = [0, 113], sizes = [3, 512], strides = [1, 1]} : vector<3x768xf32> to vector<3x512xf32>
    %63 = vector.broadcast %3 : vector<1x512xf32> to vector<3x512xf32>
    %64 = arith.mulf %62, %63 : vector<3x512xf32>
    %65 = vector.extract_strided_slice %15 {offsets = [0, 6], sizes = [4, 1], strides = [1, 1]} : vector<4x27xf32> to vector<4x1xf32>
    %66 = vector.extract_strided_slice %64 {offsets = [0, 0], sizes = [1, 512], strides = [1, 1]} : vector<3x512xf32> to vector<1x512xf32>
    %67 = vector.broadcast %65 : vector<4x1xf32> to vector<4x512xf32>
    %68 = vector.broadcast %66 : vector<1x512xf32> to vector<4x512xf32>
    %69 = arith.mulf %67, %68 : vector<4x512xf32>
    %70 = arith.addf %61, %69 : vector<4x512xf32>
    %71 = vector.extract_strided_slice %15 {offsets = [0, 7], sizes = [4, 1], strides = [1, 1]} : vector<4x27xf32> to vector<4x1xf32>
    %72 = vector.extract_strided_slice %64 {offsets = [1, 0], sizes = [1, 512], strides = [1, 1]} : vector<3x512xf32> to vector<1x512xf32>
    %73 = vector.broadcast %71 : vector<4x1xf32> to vector<4x512xf32>
    %74 = vector.broadcast %72 : vector<1x512xf32> to vector<4x512xf32>
    %75 = arith.mulf %73, %74 : vector<4x512xf32>
    %76 = arith.addf %70, %75 : vector<4x512xf32>
    %77 = vector.extract_strided_slice %15 {offsets = [0, 8], sizes = [4, 1], strides = [1, 1]} : vector<4x27xf32> to vector<4x1xf32>
    %78 = vector.extract_strided_slice %64 {offsets = [2, 0], sizes = [1, 512], strides = [1, 1]} : vector<3x512xf32> to vector<1x512xf32>
    %79 = vector.broadcast %77 : vector<4x1xf32> to vector<4x512xf32>
    %80 = vector.broadcast %78 : vector<1x512xf32> to vector<4x512xf32>
    %81 = arith.mulf %79, %80 : vector<4x512xf32>
    %82 = arith.addf %76, %81 : vector<4x512xf32>
    %83 = vector.extract_strided_slice %18 {offsets = [0, 127], sizes = [3, 512], strides = [1, 1]} : vector<3x768xf32> to vector<3x512xf32>
    %84 = vector.broadcast %4 : vector<1x512xf32> to vector<3x512xf32>
    %85 = arith.mulf %83, %84 : vector<3x512xf32>
    %86 = vector.extract_strided_slice %15 {offsets = [0, 9], sizes = [4, 1], strides = [1, 1]} : vector<4x27xf32> to vector<4x1xf32>
    %87 = vector.extract_strided_slice %85 {offsets = [0, 0], sizes = [1, 512], strides = [1, 1]} : vector<3x512xf32> to vector<1x512xf32>
    %88 = vector.broadcast %86 : vector<4x1xf32> to vector<4x512xf32>
    %89 = vector.broadcast %87 : vector<1x512xf32> to vector<4x512xf32>
    %90 = arith.mulf %88, %89 : vector<4x512xf32>
    %91 = arith.addf %82, %90 : vector<4x512xf32>
    %92 = vector.extract_strided_slice %15 {offsets = [0, 10], sizes = [4, 1], strides = [1, 1]} : vector<4x27xf32> to vector<4x1xf32>
    %93 = vector.extract_strided_slice %85 {offsets = [1, 0], sizes = [1, 512], strides = [1, 1]} : vector<3x512xf32> to vector<1x512xf32>
    %94 = vector.broadcast %92 : vector<4x1xf32> to vector<4x512xf32>
    %95 = vector.broadcast %93 : vector<1x512xf32> to vector<4x512xf32>
    %96 = arith.mulf %94, %95 : vector<4x512xf32>
    %97 = arith.addf %91, %96 : vector<4x512xf32>
    %98 = vector.extract_strided_slice %15 {offsets = [0, 11], sizes = [4, 1], strides = [1, 1]} : vector<4x27xf32> to vector<4x1xf32>
    %99 = vector.extract_strided_slice %85 {offsets = [2, 0], sizes = [1, 512], strides = [1, 1]} : vector<3x512xf32> to vector<1x512xf32>
    %100 = vector.broadcast %98 : vector<4x1xf32> to vector<4x512xf32>
    %101 = vector.broadcast %99 : vector<1x512xf32> to vector<4x512xf32>
    %102 = arith.mulf %100, %101 : vector<4x512xf32>
    %103 = arith.addf %97, %102 : vector<4x512xf32>
    %104 = vector.extract_strided_slice %18 {offsets = [0, 128], sizes = [3, 512], strides = [1, 1]} : vector<3x768xf32> to vector<3x512xf32>
    %105 = vector.broadcast %5 : vector<1x512xf32> to vector<3x512xf32>
    %106 = arith.mulf %104, %105 : vector<3x512xf32>
    %107 = vector.extract_strided_slice %15 {offsets = [0, 12], sizes = [4, 1], strides = [1, 1]} : vector<4x27xf32> to vector<4x1xf32>
    %108 = vector.extract_strided_slice %106 {offsets = [0, 0], sizes = [1, 512], strides = [1, 1]} : vector<3x512xf32> to vector<1x512xf32>
    %109 = vector.broadcast %107 : vector<4x1xf32> to vector<4x512xf32>
    %110 = vector.broadcast %108 : vector<1x512xf32> to vector<4x512xf32>
    %111 = arith.mulf %109, %110 : vector<4x512xf32>
    %112 = arith.addf %103, %111 : vector<4x512xf32>
    %113 = vector.extract_strided_slice %15 {offsets = [0, 13], sizes = [4, 1], strides = [1, 1]} : vector<4x27xf32> to vector<4x1xf32>
    %114 = vector.extract_strided_slice %106 {offsets = [1, 0], sizes = [1, 512], strides = [1, 1]} : vector<3x512xf32> to vector<1x512xf32>
    %115 = vector.broadcast %113 : vector<4x1xf32> to vector<4x512xf32>
    %116 = vector.broadcast %114 : vector<1x512xf32> to vector<4x512xf32>
    %117 = arith.mulf %115, %116 : vector<4x512xf32>
    %118 = arith.addf %112, %117 : vector<4x512xf32>
    %119 = vector.extract_strided_slice %15 {offsets = [0, 14], sizes = [4, 1], strides = [1, 1]} : vector<4x27xf32> to vector<4x1xf32>
    %120 = vector.extract_strided_slice %106 {offsets = [2, 0], sizes = [1, 512], strides = [1, 1]} : vector<3x512xf32> to vector<1x512xf32>
    %121 = vector.broadcast %119 : vector<4x1xf32> to vector<4x512xf32>
    %122 = vector.broadcast %120 : vector<1x512xf32> to vector<4x512xf32>
    %123 = arith.mulf %121, %122 : vector<4x512xf32>
    %124 = arith.addf %118, %123 : vector<4x512xf32>
    %125 = vector.extract_strided_slice %18 {offsets = [0, 129], sizes = [3, 512], strides = [1, 1]} : vector<3x768xf32> to vector<3x512xf32>
    %126 = vector.broadcast %6 : vector<1x512xf32> to vector<3x512xf32>
    %127 = arith.mulf %125, %126 : vector<3x512xf32>
    %128 = vector.extract_strided_slice %15 {offsets = [0, 15], sizes = [4, 1], strides = [1, 1]} : vector<4x27xf32> to vector<4x1xf32>
    %129 = vector.extract_strided_slice %127 {offsets = [0, 0], sizes = [1, 512], strides = [1, 1]} : vector<3x512xf32> to vector<1x512xf32>
    %130 = vector.broadcast %128 : vector<4x1xf32> to vector<4x512xf32>
    %131 = vector.broadcast %129 : vector<1x512xf32> to vector<4x512xf32>
    %132 = arith.mulf %130, %131 : vector<4x512xf32>
    %133 = arith.addf %124, %132 : vector<4x512xf32>
    %134 = vector.extract_strided_slice %15 {offsets = [0, 16], sizes = [4, 1], strides = [1, 1]} : vector<4x27xf32> to vector<4x1xf32>
    %135 = vector.extract_strided_slice %127 {offsets = [1, 0], sizes = [1, 512], strides = [1, 1]} : vector<3x512xf32> to vector<1x512xf32>
    %136 = vector.broadcast %134 : vector<4x1xf32> to vector<4x512xf32>
    %137 = vector.broadcast %135 : vector<1x512xf32> to vector<4x512xf32>
    %138 = arith.mulf %136, %137 : vector<4x512xf32>
    %139 = arith.addf %133, %138 : vector<4x512xf32>
    %140 = vector.extract_strided_slice %15 {offsets = [0, 17], sizes = [4, 1], strides = [1, 1]} : vector<4x27xf32> to vector<4x1xf32>
    %141 = vector.extract_strided_slice %127 {offsets = [2, 0], sizes = [1, 512], strides = [1, 1]} : vector<3x512xf32> to vector<1x512xf32>
    %142 = vector.broadcast %140 : vector<4x1xf32> to vector<4x512xf32>
    %143 = vector.broadcast %141 : vector<1x512xf32> to vector<4x512xf32>
    %144 = arith.mulf %142, %143 : vector<4x512xf32>
    %145 = arith.addf %139, %144 : vector<4x512xf32>
    %146 = vector.extract_strided_slice %18 {offsets = [0, 143], sizes = [3, 512], strides = [1, 1]} : vector<3x768xf32> to vector<3x512xf32>
    %147 = vector.broadcast %7 : vector<1x512xf32> to vector<3x512xf32>
    %148 = arith.mulf %146, %147 : vector<3x512xf32>
    %149 = vector.extract_strided_slice %15 {offsets = [0, 18], sizes = [4, 1], strides = [1, 1]} : vector<4x27xf32> to vector<4x1xf32>
    %150 = vector.extract_strided_slice %148 {offsets = [0, 0], sizes = [1, 512], strides = [1, 1]} : vector<3x512xf32> to vector<1x512xf32>
    %151 = vector.broadcast %149 : vector<4x1xf32> to vector<4x512xf32>
    %152 = vector.broadcast %150 : vector<1x512xf32> to vector<4x512xf32>
    %153 = arith.mulf %151, %152 : vector<4x512xf32>
    %154 = arith.addf %145, %153 : vector<4x512xf32>
    %155 = vector.extract_strided_slice %15 {offsets = [0, 19], sizes = [4, 1], strides = [1, 1]} : vector<4x27xf32> to vector<4x1xf32>
    %156 = vector.extract_strided_slice %148 {offsets = [1, 0], sizes = [1, 512], strides = [1, 1]} : vector<3x512xf32> to vector<1x512xf32>
    %157 = vector.broadcast %155 : vector<4x1xf32> to vector<4x512xf32>
    %158 = vector.broadcast %156 : vector<1x512xf32> to vector<4x512xf32>
    %159 = arith.mulf %157, %158 : vector<4x512xf32>
    %160 = arith.addf %154, %159 : vector<4x512xf32>
    %161 = vector.extract_strided_slice %15 {offsets = [0, 20], sizes = [4, 1], strides = [1, 1]} : vector<4x27xf32> to vector<4x1xf32>
    %162 = vector.extract_strided_slice %148 {offsets = [2, 0], sizes = [1, 512], strides = [1, 1]} : vector<3x512xf32> to vector<1x512xf32>
    %163 = vector.broadcast %161 : vector<4x1xf32> to vector<4x512xf32>
    %164 = vector.broadcast %162 : vector<1x512xf32> to vector<4x512xf32>
    %165 = arith.mulf %163, %164 : vector<4x512xf32>
    %166 = arith.addf %160, %165 : vector<4x512xf32>
    %167 = vector.extract_strided_slice %18 {offsets = [0, 144], sizes = [3, 512], strides = [1, 1]} : vector<3x768xf32> to vector<3x512xf32>
    %168 = vector.broadcast %8 : vector<1x512xf32> to vector<3x512xf32>
    %169 = arith.mulf %167, %168 : vector<3x512xf32>
    %170 = vector.extract_strided_slice %15 {offsets = [0, 21], sizes = [4, 1], strides = [1, 1]} : vector<4x27xf32> to vector<4x1xf32>
    %171 = vector.extract_strided_slice %169 {offsets = [0, 0], sizes = [1, 512], strides = [1, 1]} : vector<3x512xf32> to vector<1x512xf32>
    %172 = vector.broadcast %170 : vector<4x1xf32> to vector<4x512xf32>
    %173 = vector.broadcast %171 : vector<1x512xf32> to vector<4x512xf32>
    %174 = arith.mulf %172, %173 : vector<4x512xf32>
    %175 = arith.addf %166, %174 : vector<4x512xf32>
    %176 = vector.extract_strided_slice %15 {offsets = [0, 22], sizes = [4, 1], strides = [1, 1]} : vector<4x27xf32> to vector<4x1xf32>
    %177 = vector.extract_strided_slice %169 {offsets = [1, 0], sizes = [1, 512], strides = [1, 1]} : vector<3x512xf32> to vector<1x512xf32>
    %178 = vector.broadcast %176 : vector<4x1xf32> to vector<4x512xf32>
    %179 = vector.broadcast %177 : vector<1x512xf32> to vector<4x512xf32>
    %180 = arith.mulf %178, %179 : vector<4x512xf32>
    %181 = arith.addf %175, %180 : vector<4x512xf32>
    %182 = vector.extract_strided_slice %15 {offsets = [0, 23], sizes = [4, 1], strides = [1, 1]} : vector<4x27xf32> to vector<4x1xf32>
    %183 = vector.extract_strided_slice %169 {offsets = [2, 0], sizes = [1, 512], strides = [1, 1]} : vector<3x512xf32> to vector<1x512xf32>
    %184 = vector.broadcast %182 : vector<4x1xf32> to vector<4x512xf32>
    %185 = vector.broadcast %183 : vector<1x512xf32> to vector<4x512xf32>
    %186 = arith.mulf %184, %185 : vector<4x512xf32>
    %187 = arith.addf %181, %186 : vector<4x512xf32>
    %188 = vector.extract_strided_slice %18 {offsets = [0, 145], sizes = [3, 512], strides = [1, 1]} : vector<3x768xf32> to vector<3x512xf32>
    %189 = vector.broadcast %9 : vector<1x512xf32> to vector<3x512xf32>
    %190 = arith.mulf %188, %189 : vector<3x512xf32>
    %191 = vector.extract_strided_slice %15 {offsets = [0, 24], sizes = [4, 1], strides = [1, 1]} : vector<4x27xf32> to vector<4x1xf32>
    %192 = vector.extract_strided_slice %190 {offsets = [0, 0], sizes = [1, 512], strides = [1, 1]} : vector<3x512xf32> to vector<1x512xf32>
    %193 = vector.broadcast %191 : vector<4x1xf32> to vector<4x512xf32>
    %194 = vector.broadcast %192 : vector<1x512xf32> to vector<4x512xf32>
    %195 = arith.mulf %193, %194 : vector<4x512xf32>
    %196 = arith.addf %187, %195 : vector<4x512xf32>
    %197 = vector.extract_strided_slice %15 {offsets = [0, 25], sizes = [4, 1], strides = [1, 1]} : vector<4x27xf32> to vector<4x1xf32>
    %198 = vector.extract_strided_slice %190 {offsets = [1, 0], sizes = [1, 512], strides = [1, 1]} : vector<3x512xf32> to vector<1x512xf32>
    %199 = vector.broadcast %197 : vector<4x1xf32> to vector<4x512xf32>
    %200 = vector.broadcast %198 : vector<1x512xf32> to vector<4x512xf32>
    %201 = arith.mulf %199, %200 : vector<4x512xf32>
    %202 = arith.addf %196, %201 : vector<4x512xf32>
    %203 = vector.extract_strided_slice %15 {offsets = [0, 26], sizes = [4, 1], strides = [1, 1]} : vector<4x27xf32> to vector<4x1xf32>
    %204 = vector.extract_strided_slice %190 {offsets = [2, 0], sizes = [1, 512], strides = [1, 1]} : vector<3x512xf32> to vector<1x512xf32>
    %205 = vector.broadcast %203 : vector<4x1xf32> to vector<4x512xf32>
    %206 = vector.broadcast %204 : vector<1x512xf32> to vector<4x512xf32>
    %207 = arith.mulf %205, %206 : vector<4x512xf32>
    %208 = arith.addf %202, %207 : vector<4x512xf32>
    %209 = vector.broadcast %16 : vector<4x1xf32> to vector<4x512xf32>
    %210 = arith.addf %208, %209 : vector<4x512xf32>
    %cst_15 = arith.constant 0.000000e+00 : f32
    %211 = vector.broadcast %cst_15 : f32 to vector<4x512xf32>
    %212 = arith.maximumf %210, %211 : vector<4x512xf32>
    %c0_16 = arith.constant 0 : index
    %c0_17 = arith.constant 0 : index
    %213 = vector.load %arg5[%c0_16, %c0_17] : memref<4x36xf32, #tpu.memory_space<vmem>>, vector<4x36xf32>
    %c0_18 = arith.constant 0 : index
    %c0_19 = arith.constant 0 : index
    %214 = vector.load %arg6[%c0_18, %c0_19] : memref<4x1xf32, #tpu.memory_space<vmem>>, vector<4x1xf32>
    %c0_20 = arith.constant 0 : index
    %c128_21 = arith.constant 128 : index
    %215 = vector.load %arg20[%c0_20, %c128_21] : memref<4x768xf32, #tpu.memory_space<vmem>>, vector<4x512xf32>
    tpu.vector_store %arg20[%c0_20, %c128_21], %212 {strides = array<i32>} : memref<4x768xf32, #tpu.memory_space<vmem>>, vector<4x512xf32>,
    %c0_22 = arith.constant 0 : index
    %c0_23 = arith.constant 0 : index
    %216 = vector.load %arg20[%c0_22, %c0_23] : memref<4x768xf32, #tpu.memory_space<vmem>>, vector<4x768xf32>
    %cst_24 = arith.constant 0.000000e+00 : f32
    %217 = vector.broadcast %cst_24 : f32 to vector<4x512xf32>
    %218 = vector.extract_strided_slice %216 {offsets = [0, 111], sizes = [4, 512], strides = [1, 1]} : vector<4x768xf32> to vector<4x512xf32>
    %219 = vector.broadcast %1 : vector<1x512xf32> to vector<4x512xf32>
    %220 = arith.mulf %218, %219 : vector<4x512xf32>
    %221 = vector.extract_strided_slice %213 {offsets = [0, 0], sizes = [4, 1], strides = [1, 1]} : vector<4x36xf32> to vector<4x1xf32>
    %222 = vector.extract_strided_slice %220 {offsets = [0, 0], sizes = [1, 512], strides = [1, 1]} : vector<4x512xf32> to vector<1x512xf32>
    %223 = vector.broadcast %221 : vector<4x1xf32> to vector<4x512xf32>
    %224 = vector.broadcast %222 : vector<1x512xf32> to vector<4x512xf32>
    %225 = arith.mulf %223, %224 : vector<4x512xf32>
    %226 = arith.addf %217, %225 : vector<4x512xf32>
    %227 = vector.extract_strided_slice %213 {offsets = [0, 1], sizes = [4, 1], strides = [1, 1]} : vector<4x36xf32> to vector<4x1xf32>
    %228 = vector.extract_strided_slice %220 {offsets = [1, 0], sizes = [1, 512], strides = [1, 1]} : vector<4x512xf32> to vector<1x512xf32>
    %229 = vector.broadcast %227 : vector<4x1xf32> to vector<4x512xf32>
    %230 = vector.broadcast %228 : vector<1x512xf32> to vector<4x512xf32>
    %231 = arith.mulf %229, %230 : vector<4x512xf32>
    %232 = arith.addf %226, %231 : vector<4x512xf32>
    %233 = vector.extract_strided_slice %213 {offsets = [0, 2], sizes = [4, 1], strides = [1, 1]} : vector<4x36xf32> to vector<4x1xf32>
    %234 = vector.extract_strided_slice %220 {offsets = [2, 0], sizes = [1, 512], strides = [1, 1]} : vector<4x512xf32> to vector<1x512xf32>
    %235 = vector.broadcast %233 : vector<4x1xf32> to vector<4x512xf32>
    %236 = vector.broadcast %234 : vector<1x512xf32> to vector<4x512xf32>
    %237 = arith.mulf %235, %236 : vector<4x512xf32>
    %238 = arith.addf %232, %237 : vector<4x512xf32>
    %239 = vector.extract_strided_slice %213 {offsets = [0, 3], sizes = [4, 1], strides = [1, 1]} : vector<4x36xf32> to vector<4x1xf32>
    %240 = vector.extract_strided_slice %220 {offsets = [3, 0], sizes = [1, 512], strides = [1, 1]} : vector<4x512xf32> to vector<1x512xf32>
    %241 = vector.broadcast %239 : vector<4x1xf32> to vector<4x512xf32>
    %242 = vector.broadcast %240 : vector<1x512xf32> to vector<4x512xf32>
    %243 = arith.mulf %241, %242 : vector<4x512xf32>
    %244 = arith.addf %238, %243 : vector<4x512xf32>
    %245 = vector.extract_strided_slice %216 {offsets = [0, 112], sizes = [4, 512], strides = [1, 1]} : vector<4x768xf32> to vector<4x512xf32>
    %246 = vector.broadcast %2 : vector<1x512xf32> to vector<4x512xf32>
    %247 = arith.mulf %245, %246 : vector<4x512xf32>
    %248 = vector.extract_strided_slice %213 {offsets = [0, 4], sizes = [4, 1], strides = [1, 1]} : vector<4x36xf32> to vector<4x1xf32>
    %249 = vector.extract_strided_slice %247 {offsets = [0, 0], sizes = [1, 512], strides = [1, 1]} : vector<4x512xf32> to vector<1x512xf32>
    %250 = vector.broadcast %248 : vector<4x1xf32> to vector<4x512xf32>
    %251 = vector.broadcast %249 : vector<1x512xf32> to vector<4x512xf32>
    %252 = arith.mulf %250, %251 : vector<4x512xf32>
    %253 = arith.addf %244, %252 : vector<4x512xf32>
    %254 = vector.extract_strided_slice %213 {offsets = [0, 5], sizes = [4, 1], strides = [1, 1]} : vector<4x36xf32> to vector<4x1xf32>
    %255 = vector.extract_strided_slice %247 {offsets = [1, 0], sizes = [1, 512], strides = [1, 1]} : vector<4x512xf32> to vector<1x512xf32>
    %256 = vector.broadcast %254 : vector<4x1xf32> to vector<4x512xf32>
    %257 = vector.broadcast %255 : vector<1x512xf32> to vector<4x512xf32>
    %258 = arith.mulf %256, %257 : vector<4x512xf32>
    %259 = arith.addf %253, %258 : vector<4x512xf32>
    %260 = vector.extract_strided_slice %213 {offsets = [0, 6], sizes = [4, 1], strides = [1, 1]} : vector<4x36xf32> to vector<4x1xf32>
    %261 = vector.extract_strided_slice %247 {offsets = [2, 0], sizes = [1, 512], strides = [1, 1]} : vector<4x512xf32> to vector<1x512xf32>
    %262 = vector.broadcast %260 : vector<4x1xf32> to vector<4x512xf32>
    %263 = vector.broadcast %261 : vector<1x512xf32> to vector<4x512xf32>
    %264 = arith.mulf %262, %263 : vector<4x512xf32>
    %265 = arith.addf %259, %264 : vector<4x512xf32>
    %266 = vector.extract_strided_slice %213 {offsets = [0, 7], sizes = [4, 1], strides = [1, 1]} : vector<4x36xf32> to vector<4x1xf32>
    %267 = vector.extract_strided_slice %247 {offsets = [3, 0], sizes = [1, 512], strides = [1, 1]} : vector<4x512xf32> to vector<1x512xf32>
    %268 = vector.broadcast %266 : vector<4x1xf32> to vector<4x512xf32>
    %269 = vector.broadcast %267 : vector<1x512xf32> to vector<4x512xf32>
    %270 = arith.mulf %268, %269 : vector<4x512xf32>
    %271 = arith.addf %265, %270 : vector<4x512xf32>
    %272 = vector.extract_strided_slice %216 {offsets = [0, 113], sizes = [4, 512], strides = [1, 1]} : vector<4x768xf32> to vector<4x512xf32>
    %273 = vector.broadcast %3 : vector<1x512xf32> to vector<4x512xf32>
    %274 = arith.mulf %272, %273 : vector<4x512xf32>
    %275 = vector.extract_strided_slice %213 {offsets = [0, 8], sizes = [4, 1], strides = [1, 1]} : vector<4x36xf32> to vector<4x1xf32>
    %276 = vector.extract_strided_slice %274 {offsets = [0, 0], sizes = [1, 512], strides = [1, 1]} : vector<4x512xf32> to vector<1x512xf32>
    %277 = vector.broadcast %275 : vector<4x1xf32> to vector<4x512xf32>
    %278 = vector.broadcast %276 : vector<1x512xf32> to vector<4x512xf32>
    %279 = arith.mulf %277, %278 : vector<4x512xf32>
    %280 = arith.addf %271, %279 : vector<4x512xf32>
    %281 = vector.extract_strided_slice %213 {offsets = [0, 9], sizes = [4, 1], strides = [1, 1]} : vector<4x36xf32> to vector<4x1xf32>
    %282 = vector.extract_strided_slice %274 {offsets = [1, 0], sizes = [1, 512], strides = [1, 1]} : vector<4x512xf32> to vector<1x512xf32>
    %283 = vector.broadcast %281 : vector<4x1xf32> to vector<4x512xf32>
    %284 = vector.broadcast %282 : vector<1x512xf32> to vector<4x512xf32>
    %285 = arith.mulf %283, %284 : vector<4x512xf32>
    %286 = arith.addf %280, %285 : vector<4x512xf32>
    %287 = vector.extract_strided_slice %213 {offsets = [0, 10], sizes = [4, 1], strides = [1, 1]} : vector<4x36xf32> to vector<4x1xf32>
    %288 = vector.extract_strided_slice %274 {offsets = [2, 0], sizes = [1, 512], strides = [1, 1]} : vector<4x512xf32> to vector<1x512xf32>
    %289 = vector.broadcast %287 : vector<4x1xf32> to vector<4x512xf32>
    %290 = vector.broadcast %288 : vector<1x512xf32> to vector<4x512xf32>
    %291 = arith.mulf %289, %290 : vector<4x512xf32>
    %292 = arith.addf %286, %291 : vector<4x512xf32>
    %293 = vector.extract_strided_slice %213 {offsets = [0, 11], sizes = [4, 1], strides = [1, 1]} : vector<4x36xf32> to vector<4x1xf32>
    %294 = vector.extract_strided_slice %274 {offsets = [3, 0], sizes = [1, 512], strides = [1, 1]} : vector<4x512xf32> to vector<1x512xf32>
    %295 = vector.broadcast %293 : vector<4x1xf32> to vector<4x512xf32>
    %296 = vector.broadcast %294 : vector<1x512xf32> to vector<4x512xf32>
    %297 = arith.mulf %295, %296 : vector<4x512xf32>
    %298 = arith.addf %292, %297 : vector<4x512xf32>
    %299 = vector.extract_strided_slice %216 {offsets = [0, 127], sizes = [4, 512], strides = [1, 1]} : vector<4x768xf32> to vector<4x512xf32>
    %300 = vector.broadcast %4 : vector<1x512xf32> to vector<4x512xf32>
    %301 = arith.mulf %299, %300 : vector<4x512xf32>
    %302 = vector.extract_strided_slice %213 {offsets = [0, 12], sizes = [4, 1], strides = [1, 1]} : vector<4x36xf32> to vector<4x1xf32>
    %303 = vector.extract_strided_slice %301 {offsets = [0, 0], sizes = [1, 512], strides = [1, 1]} : vector<4x512xf32> to vector<1x512xf32>
    %304 = vector.broadcast %302 : vector<4x1xf32> to vector<4x512xf32>
    %305 = vector.broadcast %303 : vector<1x512xf32> to vector<4x512xf32>
    %306 = arith.mulf %304, %305 : vector<4x512xf32>
    %307 = arith.addf %298, %306 : vector<4x512xf32>
    %308 = vector.extract_strided_slice %213 {offsets = [0, 13], sizes = [4, 1], strides = [1, 1]} : vector<4x36xf32> to vector<4x1xf32>
    %309 = vector.extract_strided_slice %301 {offsets = [1, 0], sizes = [1, 512], strides = [1, 1]} : vector<4x512xf32> to vector<1x512xf32>
    %310 = vector.broadcast %308 : vector<4x1xf32> to vector<4x512xf32>
    %311 = vector.broadcast %309 : vector<1x512xf32> to vector<4x512xf32>
    %312 = arith.mulf %310, %311 : vector<4x512xf32>
    %313 = arith.addf %307, %312 : vector<4x512xf32>
    %314 = vector.extract_strided_slice %213 {offsets = [0, 14], sizes = [4, 1], strides = [1, 1]} : vector<4x36xf32> to vector<4x1xf32>
    %315 = vector.extract_strided_slice %301 {offsets = [2, 0], sizes = [1, 512], strides = [1, 1]} : vector<4x512xf32> to vector<1x512xf32>
    %316 = vector.broadcast %314 : vector<4x1xf32> to vector<4x512xf32>
    %317 = vector.broadcast %315 : vector<1x512xf32> to vector<4x512xf32>
    %318 = arith.mulf %316, %317 : vector<4x512xf32>
    %319 = arith.addf %313, %318 : vector<4x512xf32>
    %320 = vector.extract_strided_slice %213 {offsets = [0, 15], sizes = [4, 1], strides = [1, 1]} : vector<4x36xf32> to vector<4x1xf32>
    %321 = vector.extract_strided_slice %301 {offsets = [3, 0], sizes = [1, 512], strides = [1, 1]} : vector<4x512xf32> to vector<1x512xf32>
    %322 = vector.broadcast %320 : vector<4x1xf32> to vector<4x512xf32>
    %323 = vector.broadcast %321 : vector<1x512xf32> to vector<4x512xf32>
    %324 = arith.mulf %322, %323 : vector<4x512xf32>
    %325 = arith.addf %319, %324 : vector<4x512xf32>
    %326 = vector.extract_strided_slice %216 {offsets = [0, 128], sizes = [4, 512], strides = [1, 1]} : vector<4x768xf32> to vector<4x512xf32>
    %327 = vector.broadcast %5 : vector<1x512xf32> to vector<4x512xf32>
    %328 = arith.mulf %326, %327 : vector<4x512xf32>
    %329 = vector.extract_strided_slice %213 {offsets = [0, 16], sizes = [4, 1], strides = [1, 1]} : vector<4x36xf32> to vector<4x1xf32>
    %330 = vector.extract_strided_slice %328 {offsets = [0, 0], sizes = [1, 512], strides = [1, 1]} : vector<4x512xf32> to vector<1x512xf32>
    %331 = vector.broadcast %329 : vector<4x1xf32> to vector<4x512xf32>
    %332 = vector.broadcast %330 : vector<1x512xf32> to vector<4x512xf32>
    %333 = arith.mulf %331, %332 : vector<4x512xf32>
    %334 = arith.addf %325, %333 : vector<4x512xf32>
    %335 = vector.extract_strided_slice %213 {offsets = [0, 17], sizes = [4, 1], strides = [1, 1]} : vector<4x36xf32> to vector<4x1xf32>
    %336 = vector.extract_strided_slice %328 {offsets = [1, 0], sizes = [1, 512], strides = [1, 1]} : vector<4x512xf32> to vector<1x512xf32>
    %337 = vector.broadcast %335 : vector<4x1xf32> to vector<4x512xf32>
    %338 = vector.broadcast %336 : vector<1x512xf32> to vector<4x512xf32>
    %339 = arith.mulf %337, %338 : vector<4x512xf32>
    %340 = arith.addf %334, %339 : vector<4x512xf32>
    %341 = vector.extract_strided_slice %213 {offsets = [0, 18], sizes = [4, 1], strides = [1, 1]} : vector<4x36xf32> to vector<4x1xf32>
    %342 = vector.extract_strided_slice %328 {offsets = [2, 0], sizes = [1, 512], strides = [1, 1]} : vector<4x512xf32> to vector<1x512xf32>
    %343 = vector.broadcast %341 : vector<4x1xf32> to vector<4x512xf32>
    %344 = vector.broadcast %342 : vector<1x512xf32> to vector<4x512xf32>
    %345 = arith.mulf %343, %344 : vector<4x512xf32>
    %346 = arith.addf %340, %345 : vector<4x512xf32>
    %347 = vector.extract_strided_slice %213 {offsets = [0, 19], sizes = [4, 1], strides = [1, 1]} : vector<4x36xf32> to vector<4x1xf32>
    %348 = vector.extract_strided_slice %328 {offsets = [3, 0], sizes = [1, 512], strides = [1, 1]} : vector<4x512xf32> to vector<1x512xf32>
    %349 = vector.broadcast %347 : vector<4x1xf32> to vector<4x512xf32>
    %350 = vector.broadcast %348 : vector<1x512xf32> to vector<4x512xf32>
    %351 = arith.mulf %349, %350 : vector<4x512xf32>
    %352 = arith.addf %346, %351 : vector<4x512xf32>
    %353 = vector.extract_strided_slice %216 {offsets = [0, 129], sizes = [4, 512], strides = [1, 1]} : vector<4x768xf32> to vector<4x512xf32>
    %354 = vector.broadcast %6 : vector<1x512xf32> to vector<4x512xf32>
    %355 = arith.mulf %353, %354 : vector<4x512xf32>
    %356 = vector.extract_strided_slice %213 {offsets = [0, 20], sizes = [4, 1], strides = [1, 1]} : vector<4x36xf32> to vector<4x1xf32>
    %357 = vector.extract_strided_slice %355 {offsets = [0, 0], sizes = [1, 512], strides = [1, 1]} : vector<4x512xf32> to vector<1x512xf32>
    %358 = vector.broadcast %356 : vector<4x1xf32> to vector<4x512xf32>
    %359 = vector.broadcast %357 : vector<1x512xf32> to vector<4x512xf32>
    %360 = arith.mulf %358, %359 : vector<4x512xf32>
    %361 = arith.addf %352, %360 : vector<4x512xf32>
    %362 = vector.extract_strided_slice %213 {offsets = [0, 21], sizes = [4, 1], strides = [1, 1]} : vector<4x36xf32> to vector<4x1xf32>
    %363 = vector.extract_strided_slice %355 {offsets = [1, 0], sizes = [1, 512], strides = [1, 1]} : vector<4x512xf32> to vector<1x512xf32>
    %364 = vector.broadcast %362 : vector<4x1xf32> to vector<4x512xf32>
    %365 = vector.broadcast %363 : vector<1x512xf32> to vector<4x512xf32>
    %366 = arith.mulf %364, %365 : vector<4x512xf32>
    %367 = arith.addf %361, %366 : vector<4x512xf32>
    %368 = vector.extract_strided_slice %213 {offsets = [0, 22], sizes = [4, 1], strides = [1, 1]} : vector<4x36xf32> to vector<4x1xf32>
    %369 = vector.extract_strided_slice %355 {offsets = [2, 0], sizes = [1, 512], strides = [1, 1]} : vector<4x512xf32> to vector<1x512xf32>
    %370 = vector.broadcast %368 : vector<4x1xf32> to vector<4x512xf32>
    %371 = vector.broadcast %369 : vector<1x512xf32> to vector<4x512xf32>
    %372 = arith.mulf %370, %371 : vector<4x512xf32>
    %373 = arith.addf %367, %372 : vector<4x512xf32>
    %374 = vector.extract_strided_slice %213 {offsets = [0, 23], sizes = [4, 1], strides = [1, 1]} : vector<4x36xf32> to vector<4x1xf32>
    %375 = vector.extract_strided_slice %355 {offsets = [3, 0], sizes = [1, 512], strides = [1, 1]} : vector<4x512xf32> to vector<1x512xf32>
    %376 = vector.broadcast %374 : vector<4x1xf32> to vector<4x512xf32>
    %377 = vector.broadcast %375 : vector<1x512xf32> to vector<4x512xf32>
    %378 = arith.mulf %376, %377 : vector<4x512xf32>
    %379 = arith.addf %373, %378 : vector<4x512xf32>
    %380 = vector.extract_strided_slice %216 {offsets = [0, 143], sizes = [4, 512], strides = [1, 1]} : vector<4x768xf32> to vector<4x512xf32>
    %381 = vector.broadcast %7 : vector<1x512xf32> to vector<4x512xf32>
    %382 = arith.mulf %380, %381 : vector<4x512xf32>
    %383 = vector.extract_strided_slice %213 {offsets = [0, 24], sizes = [4, 1], strides = [1, 1]} : vector<4x36xf32> to vector<4x1xf32>
    %384 = vector.extract_strided_slice %382 {offsets = [0, 0], sizes = [1, 512], strides = [1, 1]} : vector<4x512xf32> to vector<1x512xf32>
    %385 = vector.broadcast %383 : vector<4x1xf32> to vector<4x512xf32>
    %386 = vector.broadcast %384 : vector<1x512xf32> to vector<4x512xf32>
    %387 = arith.mulf %385, %386 : vector<4x512xf32>
    %388 = arith.addf %379, %387 : vector<4x512xf32>
    %389 = vector.extract_strided_slice %213 {offsets = [0, 25], sizes = [4, 1], strides = [1, 1]} : vector<4x36xf32> to vector<4x1xf32>
    %390 = vector.extract_strided_slice %382 {offsets = [1, 0], sizes = [1, 512], strides = [1, 1]} : vector<4x512xf32> to vector<1x512xf32>
    %391 = vector.broadcast %389 : vector<4x1xf32> to vector<4x512xf32>
    %392 = vector.broadcast %390 : vector<1x512xf32> to vector<4x512xf32>
    %393 = arith.mulf %391, %392 : vector<4x512xf32>
    %394 = arith.addf %388, %393 : vector<4x512xf32>
    %395 = vector.extract_strided_slice %213 {offsets = [0, 26], sizes = [4, 1], strides = [1, 1]} : vector<4x36xf32> to vector<4x1xf32>
    %396 = vector.extract_strided_slice %382 {offsets = [2, 0], sizes = [1, 512], strides = [1, 1]} : vector<4x512xf32> to vector<1x512xf32>
    %397 = vector.broadcast %395 : vector<4x1xf32> to vector<4x512xf32>
    %398 = vector.broadcast %396 : vector<1x512xf32> to vector<4x512xf32>
    %399 = arith.mulf %397, %398 : vector<4x512xf32>
    %400 = arith.addf %394, %399 : vector<4x512xf32>
    %401 = vector.extract_strided_slice %213 {offsets = [0, 27], sizes = [4, 1], strides = [1, 1]} : vector<4x36xf32> to vector<4x1xf32>
    %402 = vector.extract_strided_slice %382 {offsets = [3, 0], sizes = [1, 512], strides = [1, 1]} : vector<4x512xf32> to vector<1x512xf32>
    %403 = vector.broadcast %401 : vector<4x1xf32> to vector<4x512xf32>
    %404 = vector.broadcast %402 : vector<1x512xf32> to vector<4x512xf32>
    %405 = arith.mulf %403, %404 : vector<4x512xf32>
    %406 = arith.addf %400, %405 : vector<4x512xf32>
    %407 = vector.extract_strided_slice %216 {offsets = [0, 144], sizes = [4, 512], strides = [1, 1]} : vector<4x768xf32> to vector<4x512xf32>
    %408 = vector.broadcast %8 : vector<1x512xf32> to vector<4x512xf32>
    %409 = arith.mulf %407, %408 : vector<4x512xf32>
    %410 = vector.extract_strided_slice %213 {offsets = [0, 28], sizes = [4, 1], strides = [1, 1]} : vector<4x36xf32> to vector<4x1xf32>
    %411 = vector.extract_strided_slice %409 {offsets = [0, 0], sizes = [1, 512], strides = [1, 1]} : vector<4x512xf32> to vector<1x512xf32>
    %412 = vector.broadcast %410 : vector<4x1xf32> to vector<4x512xf32>
    %413 = vector.broadcast %411 : vector<1x512xf32> to vector<4x512xf32>
    %414 = arith.mulf %412, %413 : vector<4x512xf32>
    %415 = arith.addf %406, %414 : vector<4x512xf32>
    %416 = vector.extract_strided_slice %213 {offsets = [0, 29], sizes = [4, 1], strides = [1, 1]} : vector<4x36xf32> to vector<4x1xf32>
    %417 = vector.extract_strided_slice %409 {offsets = [1, 0], sizes = [1, 512], strides = [1, 1]} : vector<4x512xf32> to vector<1x512xf32>
    %418 = vector.broadcast %416 : vector<4x1xf32> to vector<4x512xf32>
    %419 = vector.broadcast %417 : vector<1x512xf32> to vector<4x512xf32>
    %420 = arith.mulf %418, %419 : vector<4x512xf32>
    %421 = arith.addf %415, %420 : vector<4x512xf32>
    %422 = vector.extract_strided_slice %213 {offsets = [0, 30], sizes = [4, 1], strides = [1, 1]} : vector<4x36xf32> to vector<4x1xf32>
    %423 = vector.extract_strided_slice %409 {offsets = [2, 0], sizes = [1, 512], strides = [1, 1]} : vector<4x512xf32> to vector<1x512xf32>
    %424 = vector.broadcast %422 : vector<4x1xf32> to vector<4x512xf32>
    %425 = vector.broadcast %423 : vector<1x512xf32> to vector<4x512xf32>
    %426 = arith.mulf %424, %425 : vector<4x512xf32>
    %427 = arith.addf %421, %426 : vector<4x512xf32>
    %428 = vector.extract_strided_slice %213 {offsets = [0, 31], sizes = [4, 1], strides = [1, 1]} : vector<4x36xf32> to vector<4x1xf32>
    %429 = vector.extract_strided_slice %409 {offsets = [3, 0], sizes = [1, 512], strides = [1, 1]} : vector<4x512xf32> to vector<1x512xf32>
    %430 = vector.broadcast %428 : vector<4x1xf32> to vector<4x512xf32>
    %431 = vector.broadcast %429 : vector<1x512xf32> to vector<4x512xf32>
    %432 = arith.mulf %430, %431 : vector<4x512xf32>
    %433 = arith.addf %427, %432 : vector<4x512xf32>
    %434 = vector.extract_strided_slice %216 {offsets = [0, 145], sizes = [4, 512], strides = [1, 1]} : vector<4x768xf32> to vector<4x512xf32>
    %435 = vector.broadcast %9 : vector<1x512xf32> to vector<4x512xf32>
    %436 = arith.mulf %434, %435 : vector<4x512xf32>
    %437 = vector.extract_strided_slice %213 {offsets = [0, 32], sizes = [4, 1], strides = [1, 1]} : vector<4x36xf32> to vector<4x1xf32>
    %438 = vector.extract_strided_slice %436 {offsets = [0, 0], sizes = [1, 512], strides = [1, 1]} : vector<4x512xf32> to vector<1x512xf32>
    %439 = vector.broadcast %437 : vector<4x1xf32> to vector<4x512xf32>
    %440 = vector.broadcast %438 : vector<1x512xf32> to vector<4x512xf32>
    %441 = arith.mulf %439, %440 : vector<4x512xf32>
    %442 = arith.addf %433, %441 : vector<4x512xf32>
    %443 = vector.extract_strided_slice %213 {offsets = [0, 33], sizes = [4, 1], strides = [1, 1]} : vector<4x36xf32> to vector<4x1xf32>
    %444 = vector.extract_strided_slice %436 {offsets = [1, 0], sizes = [1, 512], strides = [1, 1]} : vector<4x512xf32> to vector<1x512xf32>
    %445 = vector.broadcast %443 : vector<4x1xf32> to vector<4x512xf32>
    %446 = vector.broadcast %444 : vector<1x512xf32> to vector<4x512xf32>
    %447 = arith.mulf %445, %446 : vector<4x512xf32>
    %448 = arith.addf %442, %447 : vector<4x512xf32>
    %449 = vector.extract_strided_slice %213 {offsets = [0, 34], sizes = [4, 1], strides = [1, 1]} : vector<4x36xf32> to vector<4x1xf32>
    %450 = vector.extract_strided_slice %436 {offsets = [2, 0], sizes = [1, 512], strides = [1, 1]} : vector<4x512xf32> to vector<1x512xf32>
    %451 = vector.broadcast %449 : vector<4x1xf32> to vector<4x512xf32>
    %452 = vector.broadcast %450 : vector<1x512xf32> to vector<4x512xf32>
    %453 = arith.mulf %451, %452 : vector<4x512xf32>
    %454 = arith.addf %448, %453 : vector<4x512xf32>
    %455 = vector.extract_strided_slice %213 {offsets = [0, 35], sizes = [4, 1], strides = [1, 1]} : vector<4x36xf32> to vector<4x1xf32>
    %456 = vector.extract_strided_slice %436 {offsets = [3, 0], sizes = [1, 512], strides = [1, 1]} : vector<4x512xf32> to vector<1x512xf32>
    %457 = vector.broadcast %455 : vector<4x1xf32> to vector<4x512xf32>
    %458 = vector.broadcast %456 : vector<1x512xf32> to vector<4x512xf32>
    %459 = arith.mulf %457, %458 : vector<4x512xf32>
    %460 = arith.addf %454, %459 : vector<4x512xf32>
    %461 = vector.broadcast %214 : vector<4x1xf32> to vector<4x512xf32>
    %462 = arith.addf %460, %461 : vector<4x512xf32>
    %cst_25 = arith.constant 0.000000e+00 : f32
    %463 = vector.broadcast %cst_25 : f32 to vector<4x512xf32>
    %464 = arith.maximumf %462, %463 : vector<4x512xf32>
    %c0_26 = arith.constant 0 : index
    %c0_27 = arith.constant 0 : index
    %465 = vector.load %arg7[%c0_26, %c0_27] : memref<4x36xf32, #tpu.memory_space<vmem>>, vector<4x36xf32>
    %c0_28 = arith.constant 0 : index
    %c0_29 = arith.constant 0 : index
    %466 = vector.load %arg8[%c0_28, %c0_29] : memref<4x1xf32, #tpu.memory_space<vmem>>, vector<4x1xf32>
    %c0_30 = arith.constant 0 : index
    %c128_31 = arith.constant 128 : index
    %467 = vector.load %arg20[%c0_30, %c128_31] : memref<4x768xf32, #tpu.memory_space<vmem>>, vector<4x512xf32>
    tpu.vector_store %arg20[%c0_30, %c128_31], %464 {strides = array<i32>} : memref<4x768xf32, #tpu.memory_space<vmem>>, vector<4x512xf32>,
    %c0_32 = arith.constant 0 : index
    %c0_33 = arith.constant 0 : index
    %468 = vector.load %arg20[%c0_32, %c0_33] : memref<4x768xf32, #tpu.memory_space<vmem>>, vector<4x768xf32>
    %cst_34 = arith.constant 0.000000e+00 : f32
    %469 = vector.broadcast %cst_34 : f32 to vector<4x512xf32>
    %470 = vector.extract_strided_slice %468 {offsets = [0, 111], sizes = [4, 512], strides = [1, 1]} : vector<4x768xf32> to vector<4x512xf32>
    %471 = vector.broadcast %1 : vector<1x512xf32> to vector<4x512xf32>
    %472 = arith.mulf %470, %471 : vector<4x512xf32>
    %473 = vector.extract_strided_slice %465 {offsets = [0, 0], sizes = [4, 1], strides = [1, 1]} : vector<4x36xf32> to vector<4x1xf32>
    %474 = vector.extract_strided_slice %472 {offsets = [0, 0], sizes = [1, 512], strides = [1, 1]} : vector<4x512xf32> to vector<1x512xf32>
    %475 = vector.broadcast %473 : vector<4x1xf32> to vector<4x512xf32>
    %476 = vector.broadcast %474 : vector<1x512xf32> to vector<4x512xf32>
    %477 = arith.mulf %475, %476 : vector<4x512xf32>
    %478 = arith.addf %469, %477 : vector<4x512xf32>
    %479 = vector.extract_strided_slice %465 {offsets = [0, 1], sizes = [4, 1], strides = [1, 1]} : vector<4x36xf32> to vector<4x1xf32>
    %480 = vector.extract_strided_slice %472 {offsets = [1, 0], sizes = [1, 512], strides = [1, 1]} : vector<4x512xf32> to vector<1x512xf32>
    %481 = vector.broadcast %479 : vector<4x1xf32> to vector<4x512xf32>
    %482 = vector.broadcast %480 : vector<1x512xf32> to vector<4x512xf32>
    %483 = arith.mulf %481, %482 : vector<4x512xf32>
    %484 = arith.addf %478, %483 : vector<4x512xf32>
    %485 = vector.extract_strided_slice %465 {offsets = [0, 2], sizes = [4, 1], strides = [1, 1]} : vector<4x36xf32> to vector<4x1xf32>
    %486 = vector.extract_strided_slice %472 {offsets = [2, 0], sizes = [1, 512], strides = [1, 1]} : vector<4x512xf32> to vector<1x512xf32>
    %487 = vector.broadcast %485 : vector<4x1xf32> to vector<4x512xf32>
    %488 = vector.broadcast %486 : vector<1x512xf32> to vector<4x512xf32>
    %489 = arith.mulf %487, %488 : vector<4x512xf32>
    %490 = arith.addf %484, %489 : vector<4x512xf32>
    %491 = vector.extract_strided_slice %465 {offsets = [0, 3], sizes = [4, 1], strides = [1, 1]} : vector<4x36xf32> to vector<4x1xf32>
    %492 = vector.extract_strided_slice %472 {offsets = [3, 0], sizes = [1, 512], strides = [1, 1]} : vector<4x512xf32> to vector<1x512xf32>
    %493 = vector.broadcast %491 : vector<4x1xf32> to vector<4x512xf32>
    %494 = vector.broadcast %492 : vector<1x512xf32> to vector<4x512xf32>
    %495 = arith.mulf %493, %494 : vector<4x512xf32>
    %496 = arith.addf %490, %495 : vector<4x512xf32>
    %497 = vector.extract_strided_slice %468 {offsets = [0, 112], sizes = [4, 512], strides = [1, 1]} : vector<4x768xf32> to vector<4x512xf32>
    %498 = vector.broadcast %2 : vector<1x512xf32> to vector<4x512xf32>
    %499 = arith.mulf %497, %498 : vector<4x512xf32>
    %500 = vector.extract_strided_slice %465 {offsets = [0, 4], sizes = [4, 1], strides = [1, 1]} : vector<4x36xf32> to vector<4x1xf32>
    %501 = vector.extract_strided_slice %499 {offsets = [0, 0], sizes = [1, 512], strides = [1, 1]} : vector<4x512xf32> to vector<1x512xf32>
    %502 = vector.broadcast %500 : vector<4x1xf32> to vector<4x512xf32>
    %503 = vector.broadcast %501 : vector<1x512xf32> to vector<4x512xf32>
    %504 = arith.mulf %502, %503 : vector<4x512xf32>
    %505 = arith.addf %496, %504 : vector<4x512xf32>
    %506 = vector.extract_strided_slice %465 {offsets = [0, 5], sizes = [4, 1], strides = [1, 1]} : vector<4x36xf32> to vector<4x1xf32>
    %507 = vector.extract_strided_slice %499 {offsets = [1, 0], sizes = [1, 512], strides = [1, 1]} : vector<4x512xf32> to vector<1x512xf32>
    %508 = vector.broadcast %506 : vector<4x1xf32> to vector<4x512xf32>
    %509 = vector.broadcast %507 : vector<1x512xf32> to vector<4x512xf32>
    %510 = arith.mulf %508, %509 : vector<4x512xf32>
    %511 = arith.addf %505, %510 : vector<4x512xf32>
    %512 = vector.extract_strided_slice %465 {offsets = [0, 6], sizes = [4, 1], strides = [1, 1]} : vector<4x36xf32> to vector<4x1xf32>
    %513 = vector.extract_strided_slice %499 {offsets = [2, 0], sizes = [1, 512], strides = [1, 1]} : vector<4x512xf32> to vector<1x512xf32>
    %514 = vector.broadcast %512 : vector<4x1xf32> to vector<4x512xf32>
    %515 = vector.broadcast %513 : vector<1x512xf32> to vector<4x512xf32>
    %516 = arith.mulf %514, %515 : vector<4x512xf32>
    %517 = arith.addf %511, %516 : vector<4x512xf32>
    %518 = vector.extract_strided_slice %465 {offsets = [0, 7], sizes = [4, 1], strides = [1, 1]} : vector<4x36xf32> to vector<4x1xf32>
    %519 = vector.extract_strided_slice %499 {offsets = [3, 0], sizes = [1, 512], strides = [1, 1]} : vector<4x512xf32> to vector<1x512xf32>
    %520 = vector.broadcast %518 : vector<4x1xf32> to vector<4x512xf32>
    %521 = vector.broadcast %519 : vector<1x512xf32> to vector<4x512xf32>
    %522 = arith.mulf %520, %521 : vector<4x512xf32>
    %523 = arith.addf %517, %522 : vector<4x512xf32>
    %524 = vector.extract_strided_slice %468 {offsets = [0, 113], sizes = [4, 512], strides = [1, 1]} : vector<4x768xf32> to vector<4x512xf32>
    %525 = vector.broadcast %3 : vector<1x512xf32> to vector<4x512xf32>
    %526 = arith.mulf %524, %525 : vector<4x512xf32>
    %527 = vector.extract_strided_slice %465 {offsets = [0, 8], sizes = [4, 1], strides = [1, 1]} : vector<4x36xf32> to vector<4x1xf32>
    %528 = vector.extract_strided_slice %526 {offsets = [0, 0], sizes = [1, 512], strides = [1, 1]} : vector<4x512xf32> to vector<1x512xf32>
    %529 = vector.broadcast %527 : vector<4x1xf32> to vector<4x512xf32>
    %530 = vector.broadcast %528 : vector<1x512xf32> to vector<4x512xf32>
    %531 = arith.mulf %529, %530 : vector<4x512xf32>
    %532 = arith.addf %523, %531 : vector<4x512xf32>
    %533 = vector.extract_strided_slice %465 {offsets = [0, 9], sizes = [4, 1], strides = [1, 1]} : vector<4x36xf32> to vector<4x1xf32>
    %534 = vector.extract_strided_slice %526 {offsets = [1, 0], sizes = [1, 512], strides = [1, 1]} : vector<4x512xf32> to vector<1x512xf32>
    %535 = vector.broadcast %533 : vector<4x1xf32> to vector<4x512xf32>
    %536 = vector.broadcast %534 : vector<1x512xf32> to vector<4x512xf32>
    %537 = arith.mulf %535, %536 : vector<4x512xf32>
    %538 = arith.addf %532, %537 : vector<4x512xf32>
    %539 = vector.extract_strided_slice %465 {offsets = [0, 10], sizes = [4, 1], strides = [1, 1]} : vector<4x36xf32> to vector<4x1xf32>
    %540 = vector.extract_strided_slice %526 {offsets = [2, 0], sizes = [1, 512], strides = [1, 1]} : vector<4x512xf32> to vector<1x512xf32>
    %541 = vector.broadcast %539 : vector<4x1xf32> to vector<4x512xf32>
    %542 = vector.broadcast %540 : vector<1x512xf32> to vector<4x512xf32>
    %543 = arith.mulf %541, %542 : vector<4x512xf32>
    %544 = arith.addf %538, %543 : vector<4x512xf32>
    %545 = vector.extract_strided_slice %465 {offsets = [0, 11], sizes = [4, 1], strides = [1, 1]} : vector<4x36xf32> to vector<4x1xf32>
    %546 = vector.extract_strided_slice %526 {offsets = [3, 0], sizes = [1, 512], strides = [1, 1]} : vector<4x512xf32> to vector<1x512xf32>
    %547 = vector.broadcast %545 : vector<4x1xf32> to vector<4x512xf32>
    %548 = vector.broadcast %546 : vector<1x512xf32> to vector<4x512xf32>
    %549 = arith.mulf %547, %548 : vector<4x512xf32>
    %550 = arith.addf %544, %549 : vector<4x512xf32>
    %551 = vector.extract_strided_slice %468 {offsets = [0, 127], sizes = [4, 512], strides = [1, 1]} : vector<4x768xf32> to vector<4x512xf32>
    %552 = vector.broadcast %4 : vector<1x512xf32> to vector<4x512xf32>
    %553 = arith.mulf %551, %552 : vector<4x512xf32>
    %554 = vector.extract_strided_slice %465 {offsets = [0, 12], sizes = [4, 1], strides = [1, 1]} : vector<4x36xf32> to vector<4x1xf32>
    %555 = vector.extract_strided_slice %553 {offsets = [0, 0], sizes = [1, 512], strides = [1, 1]} : vector<4x512xf32> to vector<1x512xf32>
    %556 = vector.broadcast %554 : vector<4x1xf32> to vector<4x512xf32>
    %557 = vector.broadcast %555 : vector<1x512xf32> to vector<4x512xf32>
    %558 = arith.mulf %556, %557 : vector<4x512xf32>
    %559 = arith.addf %550, %558 : vector<4x512xf32>
    %560 = vector.extract_strided_slice %465 {offsets = [0, 13], sizes = [4, 1], strides = [1, 1]} : vector<4x36xf32> to vector<4x1xf32>
    %561 = vector.extract_strided_slice %553 {offsets = [1, 0], sizes = [1, 512], strides = [1, 1]} : vector<4x512xf32> to vector<1x512xf32>
    %562 = vector.broadcast %560 : vector<4x1xf32> to vector<4x512xf32>
    %563 = vector.broadcast %561 : vector<1x512xf32> to vector<4x512xf32>
    %564 = arith.mulf %562, %563 : vector<4x512xf32>
    %565 = arith.addf %559, %564 : vector<4x512xf32>
    %566 = vector.extract_strided_slice %465 {offsets = [0, 14], sizes = [4, 1], strides = [1, 1]} : vector<4x36xf32> to vector<4x1xf32>
    %567 = vector.extract_strided_slice %553 {offsets = [2, 0], sizes = [1, 512], strides = [1, 1]} : vector<4x512xf32> to vector<1x512xf32>
    %568 = vector.broadcast %566 : vector<4x1xf32> to vector<4x512xf32>
    %569 = vector.broadcast %567 : vector<1x512xf32> to vector<4x512xf32>
    %570 = arith.mulf %568, %569 : vector<4x512xf32>
    %571 = arith.addf %565, %570 : vector<4x512xf32>
    %572 = vector.extract_strided_slice %465 {offsets = [0, 15], sizes = [4, 1], strides = [1, 1]} : vector<4x36xf32> to vector<4x1xf32>
    %573 = vector.extract_strided_slice %553 {offsets = [3, 0], sizes = [1, 512], strides = [1, 1]} : vector<4x512xf32> to vector<1x512xf32>
    %574 = vector.broadcast %572 : vector<4x1xf32> to vector<4x512xf32>
    %575 = vector.broadcast %573 : vector<1x512xf32> to vector<4x512xf32>
    %576 = arith.mulf %574, %575 : vector<4x512xf32>
    %577 = arith.addf %571, %576 : vector<4x512xf32>
    %578 = vector.extract_strided_slice %468 {offsets = [0, 128], sizes = [4, 512], strides = [1, 1]} : vector<4x768xf32> to vector<4x512xf32>
    %579 = vector.broadcast %5 : vector<1x512xf32> to vector<4x512xf32>
    %580 = arith.mulf %578, %579 : vector<4x512xf32>
    %581 = vector.extract_strided_slice %465 {offsets = [0, 16], sizes = [4, 1], strides = [1, 1]} : vector<4x36xf32> to vector<4x1xf32>
    %582 = vector.extract_strided_slice %580 {offsets = [0, 0], sizes = [1, 512], strides = [1, 1]} : vector<4x512xf32> to vector<1x512xf32>
    %583 = vector.broadcast %581 : vector<4x1xf32> to vector<4x512xf32>
    %584 = vector.broadcast %582 : vector<1x512xf32> to vector<4x512xf32>
    %585 = arith.mulf %583, %584 : vector<4x512xf32>
    %586 = arith.addf %577, %585 : vector<4x512xf32>
    %587 = vector.extract_strided_slice %465 {offsets = [0, 17], sizes = [4, 1], strides = [1, 1]} : vector<4x36xf32> to vector<4x1xf32>
    %588 = vector.extract_strided_slice %580 {offsets = [1, 0], sizes = [1, 512], strides = [1, 1]} : vector<4x512xf32> to vector<1x512xf32>
    %589 = vector.broadcast %587 : vector<4x1xf32> to vector<4x512xf32>
    %590 = vector.broadcast %588 : vector<1x512xf32> to vector<4x512xf32>
    %591 = arith.mulf %589, %590 : vector<4x512xf32>
    %592 = arith.addf %586, %591 : vector<4x512xf32>
    %593 = vector.extract_strided_slice %465 {offsets = [0, 18], sizes = [4, 1], strides = [1, 1]} : vector<4x36xf32> to vector<4x1xf32>
    %594 = vector.extract_strided_slice %580 {offsets = [2, 0], sizes = [1, 512], strides = [1, 1]} : vector<4x512xf32> to vector<1x512xf32>
    %595 = vector.broadcast %593 : vector<4x1xf32> to vector<4x512xf32>
    %596 = vector.broadcast %594 : vector<1x512xf32> to vector<4x512xf32>
    %597 = arith.mulf %595, %596 : vector<4x512xf32>
    %598 = arith.addf %592, %597 : vector<4x512xf32>
    %599 = vector.extract_strided_slice %465 {offsets = [0, 19], sizes = [4, 1], strides = [1, 1]} : vector<4x36xf32> to vector<4x1xf32>
    %600 = vector.extract_strided_slice %580 {offsets = [3, 0], sizes = [1, 512], strides = [1, 1]} : vector<4x512xf32> to vector<1x512xf32>
    %601 = vector.broadcast %599 : vector<4x1xf32> to vector<4x512xf32>
    %602 = vector.broadcast %600 : vector<1x512xf32> to vector<4x512xf32>
    %603 = arith.mulf %601, %602 : vector<4x512xf32>
    %604 = arith.addf %598, %603 : vector<4x512xf32>
    %605 = vector.extract_strided_slice %468 {offsets = [0, 129], sizes = [4, 512], strides = [1, 1]} : vector<4x768xf32> to vector<4x512xf32>
    %606 = vector.broadcast %6 : vector<1x512xf32> to vector<4x512xf32>
    %607 = arith.mulf %605, %606 : vector<4x512xf32>
    %608 = vector.extract_strided_slice %465 {offsets = [0, 20], sizes = [4, 1], strides = [1, 1]} : vector<4x36xf32> to vector<4x1xf32>
    %609 = vector.extract_strided_slice %607 {offsets = [0, 0], sizes = [1, 512], strides = [1, 1]} : vector<4x512xf32> to vector<1x512xf32>
    %610 = vector.broadcast %608 : vector<4x1xf32> to vector<4x512xf32>
    %611 = vector.broadcast %609 : vector<1x512xf32> to vector<4x512xf32>
    %612 = arith.mulf %610, %611 : vector<4x512xf32>
    %613 = arith.addf %604, %612 : vector<4x512xf32>
    %614 = vector.extract_strided_slice %465 {offsets = [0, 21], sizes = [4, 1], strides = [1, 1]} : vector<4x36xf32> to vector<4x1xf32>
    %615 = vector.extract_strided_slice %607 {offsets = [1, 0], sizes = [1, 512], strides = [1, 1]} : vector<4x512xf32> to vector<1x512xf32>
    %616 = vector.broadcast %614 : vector<4x1xf32> to vector<4x512xf32>
    %617 = vector.broadcast %615 : vector<1x512xf32> to vector<4x512xf32>
    %618 = arith.mulf %616, %617 : vector<4x512xf32>
    %619 = arith.addf %613, %618 : vector<4x512xf32>
    %620 = vector.extract_strided_slice %465 {offsets = [0, 22], sizes = [4, 1], strides = [1, 1]} : vector<4x36xf32> to vector<4x1xf32>
    %621 = vector.extract_strided_slice %607 {offsets = [2, 0], sizes = [1, 512], strides = [1, 1]} : vector<4x512xf32> to vector<1x512xf32>
    %622 = vector.broadcast %620 : vector<4x1xf32> to vector<4x512xf32>
    %623 = vector.broadcast %621 : vector<1x512xf32> to vector<4x512xf32>
    %624 = arith.mulf %622, %623 : vector<4x512xf32>
    %625 = arith.addf %619, %624 : vector<4x512xf32>
    %626 = vector.extract_strided_slice %465 {offsets = [0, 23], sizes = [4, 1], strides = [1, 1]} : vector<4x36xf32> to vector<4x1xf32>
    %627 = vector.extract_strided_slice %607 {offsets = [3, 0], sizes = [1, 512], strides = [1, 1]} : vector<4x512xf32> to vector<1x512xf32>
    %628 = vector.broadcast %626 : vector<4x1xf32> to vector<4x512xf32>
    %629 = vector.broadcast %627 : vector<1x512xf32> to vector<4x512xf32>
    %630 = arith.mulf %628, %629 : vector<4x512xf32>
    %631 = arith.addf %625, %630 : vector<4x512xf32>
    %632 = vector.extract_strided_slice %468 {offsets = [0, 143], sizes = [4, 512], strides = [1, 1]} : vector<4x768xf32> to vector<4x512xf32>
    %633 = vector.broadcast %7 : vector<1x512xf32> to vector<4x512xf32>
    %634 = arith.mulf %632, %633 : vector<4x512xf32>
    %635 = vector.extract_strided_slice %465 {offsets = [0, 24], sizes = [4, 1], strides = [1, 1]} : vector<4x36xf32> to vector<4x1xf32>
    %636 = vector.extract_strided_slice %634 {offsets = [0, 0], sizes = [1, 512], strides = [1, 1]} : vector<4x512xf32> to vector<1x512xf32>
    %637 = vector.broadcast %635 : vector<4x1xf32> to vector<4x512xf32>
    %638 = vector.broadcast %636 : vector<1x512xf32> to vector<4x512xf32>
    %639 = arith.mulf %637, %638 : vector<4x512xf32>
    %640 = arith.addf %631, %639 : vector<4x512xf32>
    %641 = vector.extract_strided_slice %465 {offsets = [0, 25], sizes = [4, 1], strides = [1, 1]} : vector<4x36xf32> to vector<4x1xf32>
    %642 = vector.extract_strided_slice %634 {offsets = [1, 0], sizes = [1, 512], strides = [1, 1]} : vector<4x512xf32> to vector<1x512xf32>
    %643 = vector.broadcast %641 : vector<4x1xf32> to vector<4x512xf32>
    %644 = vector.broadcast %642 : vector<1x512xf32> to vector<4x512xf32>
    %645 = arith.mulf %643, %644 : vector<4x512xf32>
    %646 = arith.addf %640, %645 : vector<4x512xf32>
    %647 = vector.extract_strided_slice %465 {offsets = [0, 26], sizes = [4, 1], strides = [1, 1]} : vector<4x36xf32> to vector<4x1xf32>
    %648 = vector.extract_strided_slice %634 {offsets = [2, 0], sizes = [1, 512], strides = [1, 1]} : vector<4x512xf32> to vector<1x512xf32>
    %649 = vector.broadcast %647 : vector<4x1xf32> to vector<4x512xf32>
    %650 = vector.broadcast %648 : vector<1x512xf32> to vector<4x512xf32>
    %651 = arith.mulf %649, %650 : vector<4x512xf32>
    %652 = arith.addf %646, %651 : vector<4x512xf32>
    %653 = vector.extract_strided_slice %465 {offsets = [0, 27], sizes = [4, 1], strides = [1, 1]} : vector<4x36xf32> to vector<4x1xf32>
    %654 = vector.extract_strided_slice %634 {offsets = [3, 0], sizes = [1, 512], strides = [1, 1]} : vector<4x512xf32> to vector<1x512xf32>
    %655 = vector.broadcast %653 : vector<4x1xf32> to vector<4x512xf32>
    %656 = vector.broadcast %654 : vector<1x512xf32> to vector<4x512xf32>
    %657 = arith.mulf %655, %656 : vector<4x512xf32>
    %658 = arith.addf %652, %657 : vector<4x512xf32>
    %659 = vector.extract_strided_slice %468 {offsets = [0, 144], sizes = [4, 512], strides = [1, 1]} : vector<4x768xf32> to vector<4x512xf32>
    %660 = vector.broadcast %8 : vector<1x512xf32> to vector<4x512xf32>
    %661 = arith.mulf %659, %660 : vector<4x512xf32>
    %662 = vector.extract_strided_slice %465 {offsets = [0, 28], sizes = [4, 1], strides = [1, 1]} : vector<4x36xf32> to vector<4x1xf32>
    %663 = vector.extract_strided_slice %661 {offsets = [0, 0], sizes = [1, 512], strides = [1, 1]} : vector<4x512xf32> to vector<1x512xf32>
    %664 = vector.broadcast %662 : vector<4x1xf32> to vector<4x512xf32>
    %665 = vector.broadcast %663 : vector<1x512xf32> to vector<4x512xf32>
    %666 = arith.mulf %664, %665 : vector<4x512xf32>
    %667 = arith.addf %658, %666 : vector<4x512xf32>
    %668 = vector.extract_strided_slice %465 {offsets = [0, 29], sizes = [4, 1], strides = [1, 1]} : vector<4x36xf32> to vector<4x1xf32>
    %669 = vector.extract_strided_slice %661 {offsets = [1, 0], sizes = [1, 512], strides = [1, 1]} : vector<4x512xf32> to vector<1x512xf32>
    %670 = vector.broadcast %668 : vector<4x1xf32> to vector<4x512xf32>
    %671 = vector.broadcast %669 : vector<1x512xf32> to vector<4x512xf32>
    %672 = arith.mulf %670, %671 : vector<4x512xf32>
    %673 = arith.addf %667, %672 : vector<4x512xf32>
    %674 = vector.extract_strided_slice %465 {offsets = [0, 30], sizes = [4, 1], strides = [1, 1]} : vector<4x36xf32> to vector<4x1xf32>
    %675 = vector.extract_strided_slice %661 {offsets = [2, 0], sizes = [1, 512], strides = [1, 1]} : vector<4x512xf32> to vector<1x512xf32>
    %676 = vector.broadcast %674 : vector<4x1xf32> to vector<4x512xf32>
    %677 = vector.broadcast %675 : vector<1x512xf32> to vector<4x512xf32>
    %678 = arith.mulf %676, %677 : vector<4x512xf32>
    %679 = arith.addf %673, %678 : vector<4x512xf32>
    %680 = vector.extract_strided_slice %465 {offsets = [0, 31], sizes = [4, 1], strides = [1, 1]} : vector<4x36xf32> to vector<4x1xf32>
    %681 = vector.extract_strided_slice %661 {offsets = [3, 0], sizes = [1, 512], strides = [1, 1]} : vector<4x512xf32> to vector<1x512xf32>
    %682 = vector.broadcast %680 : vector<4x1xf32> to vector<4x512xf32>
    %683 = vector.broadcast %681 : vector<1x512xf32> to vector<4x512xf32>
    %684 = arith.mulf %682, %683 : vector<4x512xf32>
    %685 = arith.addf %679, %684 : vector<4x512xf32>
    %686 = vector.extract_strided_slice %468 {offsets = [0, 145], sizes = [4, 512], strides = [1, 1]} : vector<4x768xf32> to vector<4x512xf32>
    %687 = vector.broadcast %9 : vector<1x512xf32> to vector<4x512xf32>
    %688 = arith.mulf %686, %687 : vector<4x512xf32>
    %689 = vector.extract_strided_slice %465 {offsets = [0, 32], sizes = [4, 1], strides = [1, 1]} : vector<4x36xf32> to vector<4x1xf32>
    %690 = vector.extract_strided_slice %688 {offsets = [0, 0], sizes = [1, 512], strides = [1, 1]} : vector<4x512xf32> to vector<1x512xf32>
    %691 = vector.broadcast %689 : vector<4x1xf32> to vector<4x512xf32>
    %692 = vector.broadcast %690 : vector<1x512xf32> to vector<4x512xf32>
    %693 = arith.mulf %691, %692 : vector<4x512xf32>
    %694 = arith.addf %685, %693 : vector<4x512xf32>
    %695 = vector.extract_strided_slice %465 {offsets = [0, 33], sizes = [4, 1], strides = [1, 1]} : vector<4x36xf32> to vector<4x1xf32>
    %696 = vector.extract_strided_slice %688 {offsets = [1, 0], sizes = [1, 512], strides = [1, 1]} : vector<4x512xf32> to vector<1x512xf32>
    %697 = vector.broadcast %695 : vector<4x1xf32> to vector<4x512xf32>
    %698 = vector.broadcast %696 : vector<1x512xf32> to vector<4x512xf32>
    %699 = arith.mulf %697, %698 : vector<4x512xf32>
    %700 = arith.addf %694, %699 : vector<4x512xf32>
    %701 = vector.extract_strided_slice %465 {offsets = [0, 34], sizes = [4, 1], strides = [1, 1]} : vector<4x36xf32> to vector<4x1xf32>
    %702 = vector.extract_strided_slice %688 {offsets = [2, 0], sizes = [1, 512], strides = [1, 1]} : vector<4x512xf32> to vector<1x512xf32>
    %703 = vector.broadcast %701 : vector<4x1xf32> to vector<4x512xf32>
    %704 = vector.broadcast %702 : vector<1x512xf32> to vector<4x512xf32>
    %705 = arith.mulf %703, %704 : vector<4x512xf32>
    %706 = arith.addf %700, %705 : vector<4x512xf32>
    %707 = vector.extract_strided_slice %465 {offsets = [0, 35], sizes = [4, 1], strides = [1, 1]} : vector<4x36xf32> to vector<4x1xf32>
    %708 = vector.extract_strided_slice %688 {offsets = [3, 0], sizes = [1, 512], strides = [1, 1]} : vector<4x512xf32> to vector<1x512xf32>
    %709 = vector.broadcast %707 : vector<4x1xf32> to vector<4x512xf32>
    %710 = vector.broadcast %708 : vector<1x512xf32> to vector<4x512xf32>
    %711 = arith.mulf %709, %710 : vector<4x512xf32>
    %712 = arith.addf %706, %711 : vector<4x512xf32>
    %713 = vector.broadcast %466 : vector<4x1xf32> to vector<4x512xf32>
    %714 = arith.addf %712, %713 : vector<4x512xf32>
    %cst_35 = arith.constant 0.000000e+00 : f32
    %715 = vector.broadcast %cst_35 : f32 to vector<4x512xf32>
    %716 = arith.maximumf %714, %715 : vector<4x512xf32>
    %c0_36 = arith.constant 0 : index
    %c0_37 = arith.constant 0 : index
    %717 = vector.load %arg9[%c0_36, %c0_37] : memref<4x36xf32, #tpu.memory_space<vmem>>, vector<4x36xf32>
    %c0_38 = arith.constant 0 : index
    %c0_39 = arith.constant 0 : index
    %718 = vector.load %arg10[%c0_38, %c0_39] : memref<4x1xf32, #tpu.memory_space<vmem>>, vector<4x1xf32>
    %c0_40 = arith.constant 0 : index
    %c128_41 = arith.constant 128 : index
    %719 = vector.load %arg20[%c0_40, %c128_41] : memref<4x768xf32, #tpu.memory_space<vmem>>, vector<4x512xf32>
    tpu.vector_store %arg20[%c0_40, %c128_41], %716 {strides = array<i32>} : memref<4x768xf32, #tpu.memory_space<vmem>>, vector<4x512xf32>,
    %c0_42 = arith.constant 0 : index
    %c0_43 = arith.constant 0 : index
    %720 = vector.load %arg20[%c0_42, %c0_43] : memref<4x768xf32, #tpu.memory_space<vmem>>, vector<4x768xf32>
    %cst_44 = arith.constant 0.000000e+00 : f32
    %721 = vector.broadcast %cst_44 : f32 to vector<4x512xf32>
    %722 = vector.extract_strided_slice %720 {offsets = [0, 111], sizes = [4, 512], strides = [1, 1]} : vector<4x768xf32> to vector<4x512xf32>
    %723 = vector.broadcast %1 : vector<1x512xf32> to vector<4x512xf32>
    %724 = arith.mulf %722, %723 : vector<4x512xf32>
    %725 = vector.extract_strided_slice %717 {offsets = [0, 0], sizes = [4, 1], strides = [1, 1]} : vector<4x36xf32> to vector<4x1xf32>
    %726 = vector.extract_strided_slice %724 {offsets = [0, 0], sizes = [1, 512], strides = [1, 1]} : vector<4x512xf32> to vector<1x512xf32>
    %727 = vector.broadcast %725 : vector<4x1xf32> to vector<4x512xf32>
    %728 = vector.broadcast %726 : vector<1x512xf32> to vector<4x512xf32>
    %729 = arith.mulf %727, %728 : vector<4x512xf32>
    %730 = arith.addf %721, %729 : vector<4x512xf32>
    %731 = vector.extract_strided_slice %717 {offsets = [0, 1], sizes = [4, 1], strides = [1, 1]} : vector<4x36xf32> to vector<4x1xf32>
    %732 = vector.extract_strided_slice %724 {offsets = [1, 0], sizes = [1, 512], strides = [1, 1]} : vector<4x512xf32> to vector<1x512xf32>
    %733 = vector.broadcast %731 : vector<4x1xf32> to vector<4x512xf32>
    %734 = vector.broadcast %732 : vector<1x512xf32> to vector<4x512xf32>
    %735 = arith.mulf %733, %734 : vector<4x512xf32>
    %736 = arith.addf %730, %735 : vector<4x512xf32>
    %737 = vector.extract_strided_slice %717 {offsets = [0, 2], sizes = [4, 1], strides = [1, 1]} : vector<4x36xf32> to vector<4x1xf32>
    %738 = vector.extract_strided_slice %724 {offsets = [2, 0], sizes = [1, 512], strides = [1, 1]} : vector<4x512xf32> to vector<1x512xf32>
    %739 = vector.broadcast %737 : vector<4x1xf32> to vector<4x512xf32>
    %740 = vector.broadcast %738 : vector<1x512xf32> to vector<4x512xf32>
    %741 = arith.mulf %739, %740 : vector<4x512xf32>
    %742 = arith.addf %736, %741 : vector<4x512xf32>
    %743 = vector.extract_strided_slice %717 {offsets = [0, 3], sizes = [4, 1], strides = [1, 1]} : vector<4x36xf32> to vector<4x1xf32>
    %744 = vector.extract_strided_slice %724 {offsets = [3, 0], sizes = [1, 512], strides = [1, 1]} : vector<4x512xf32> to vector<1x512xf32>
    %745 = vector.broadcast %743 : vector<4x1xf32> to vector<4x512xf32>
    %746 = vector.broadcast %744 : vector<1x512xf32> to vector<4x512xf32>
    %747 = arith.mulf %745, %746 : vector<4x512xf32>
    %748 = arith.addf %742, %747 : vector<4x512xf32>
    %749 = vector.extract_strided_slice %720 {offsets = [0, 112], sizes = [4, 512], strides = [1, 1]} : vector<4x768xf32> to vector<4x512xf32>
    %750 = vector.broadcast %2 : vector<1x512xf32> to vector<4x512xf32>
    %751 = arith.mulf %749, %750 : vector<4x512xf32>
    %752 = vector.extract_strided_slice %717 {offsets = [0, 4], sizes = [4, 1], strides = [1, 1]} : vector<4x36xf32> to vector<4x1xf32>
    %753 = vector.extract_strided_slice %751 {offsets = [0, 0], sizes = [1, 512], strides = [1, 1]} : vector<4x512xf32> to vector<1x512xf32>
    %754 = vector.broadcast %752 : vector<4x1xf32> to vector<4x512xf32>
    %755 = vector.broadcast %753 : vector<1x512xf32> to vector<4x512xf32>
    %756 = arith.mulf %754, %755 : vector<4x512xf32>
    %757 = arith.addf %748, %756 : vector<4x512xf32>
    %758 = vector.extract_strided_slice %717 {offsets = [0, 5], sizes = [4, 1], strides = [1, 1]} : vector<4x36xf32> to vector<4x1xf32>
    %759 = vector.extract_strided_slice %751 {offsets = [1, 0], sizes = [1, 512], strides = [1, 1]} : vector<4x512xf32> to vector<1x512xf32>
    %760 = vector.broadcast %758 : vector<4x1xf32> to vector<4x512xf32>
    %761 = vector.broadcast %759 : vector<1x512xf32> to vector<4x512xf32>
    %762 = arith.mulf %760, %761 : vector<4x512xf32>
    %763 = arith.addf %757, %762 : vector<4x512xf32>
    %764 = vector.extract_strided_slice %717 {offsets = [0, 6], sizes = [4, 1], strides = [1, 1]} : vector<4x36xf32> to vector<4x1xf32>
    %765 = vector.extract_strided_slice %751 {offsets = [2, 0], sizes = [1, 512], strides = [1, 1]} : vector<4x512xf32> to vector<1x512xf32>
    %766 = vector.broadcast %764 : vector<4x1xf32> to vector<4x512xf32>
    %767 = vector.broadcast %765 : vector<1x512xf32> to vector<4x512xf32>
    %768 = arith.mulf %766, %767 : vector<4x512xf32>
    %769 = arith.addf %763, %768 : vector<4x512xf32>
    %770 = vector.extract_strided_slice %717 {offsets = [0, 7], sizes = [4, 1], strides = [1, 1]} : vector<4x36xf32> to vector<4x1xf32>
    %771 = vector.extract_strided_slice %751 {offsets = [3, 0], sizes = [1, 512], strides = [1, 1]} : vector<4x512xf32> to vector<1x512xf32>
    %772 = vector.broadcast %770 : vector<4x1xf32> to vector<4x512xf32>
    %773 = vector.broadcast %771 : vector<1x512xf32> to vector<4x512xf32>
    %774 = arith.mulf %772, %773 : vector<4x512xf32>
    %775 = arith.addf %769, %774 : vector<4x512xf32>
    %776 = vector.extract_strided_slice %720 {offsets = [0, 113], sizes = [4, 512], strides = [1, 1]} : vector<4x768xf32> to vector<4x512xf32>
    %777 = vector.broadcast %3 : vector<1x512xf32> to vector<4x512xf32>
    %778 = arith.mulf %776, %777 : vector<4x512xf32>
    %779 = vector.extract_strided_slice %717 {offsets = [0, 8], sizes = [4, 1], strides = [1, 1]} : vector<4x36xf32> to vector<4x1xf32>
    %780 = vector.extract_strided_slice %778 {offsets = [0, 0], sizes = [1, 512], strides = [1, 1]} : vector<4x512xf32> to vector<1x512xf32>
    %781 = vector.broadcast %779 : vector<4x1xf32> to vector<4x512xf32>
    %782 = vector.broadcast %780 : vector<1x512xf32> to vector<4x512xf32>
    %783 = arith.mulf %781, %782 : vector<4x512xf32>
    %784 = arith.addf %775, %783 : vector<4x512xf32>
    %785 = vector.extract_strided_slice %717 {offsets = [0, 9], sizes = [4, 1], strides = [1, 1]} : vector<4x36xf32> to vector<4x1xf32>
    %786 = vector.extract_strided_slice %778 {offsets = [1, 0], sizes = [1, 512], strides = [1, 1]} : vector<4x512xf32> to vector<1x512xf32>
    %787 = vector.broadcast %785 : vector<4x1xf32> to vector<4x512xf32>
    %788 = vector.broadcast %786 : vector<1x512xf32> to vector<4x512xf32>
    %789 = arith.mulf %787, %788 : vector<4x512xf32>
    %790 = arith.addf %784, %789 : vector<4x512xf32>
    %791 = vector.extract_strided_slice %717 {offsets = [0, 10], sizes = [4, 1], strides = [1, 1]} : vector<4x36xf32> to vector<4x1xf32>
    %792 = vector.extract_strided_slice %778 {offsets = [2, 0], sizes = [1, 512], strides = [1, 1]} : vector<4x512xf32> to vector<1x512xf32>
    %793 = vector.broadcast %791 : vector<4x1xf32> to vector<4x512xf32>
    %794 = vector.broadcast %792 : vector<1x512xf32> to vector<4x512xf32>
    %795 = arith.mulf %793, %794 : vector<4x512xf32>
    %796 = arith.addf %790, %795 : vector<4x512xf32>
    %797 = vector.extract_strided_slice %717 {offsets = [0, 11], sizes = [4, 1], strides = [1, 1]} : vector<4x36xf32> to vector<4x1xf32>
    %798 = vector.extract_strided_slice %778 {offsets = [3, 0], sizes = [1, 512], strides = [1, 1]} : vector<4x512xf32> to vector<1x512xf32>
    %799 = vector.broadcast %797 : vector<4x1xf32> to vector<4x512xf32>
    %800 = vector.broadcast %798 : vector<1x512xf32> to vector<4x512xf32>
    %801 = arith.mulf %799, %800 : vector<4x512xf32>
    %802 = arith.addf %796, %801 : vector<4x512xf32>
    %803 = vector.extract_strided_slice %720 {offsets = [0, 127], sizes = [4, 512], strides = [1, 1]} : vector<4x768xf32> to vector<4x512xf32>
    %804 = vector.broadcast %4 : vector<1x512xf32> to vector<4x512xf32>
    %805 = arith.mulf %803, %804 : vector<4x512xf32>
    %806 = vector.extract_strided_slice %717 {offsets = [0, 12], sizes = [4, 1], strides = [1, 1]} : vector<4x36xf32> to vector<4x1xf32>
    %807 = vector.extract_strided_slice %805 {offsets = [0, 0], sizes = [1, 512], strides = [1, 1]} : vector<4x512xf32> to vector<1x512xf32>
    %808 = vector.broadcast %806 : vector<4x1xf32> to vector<4x512xf32>
    %809 = vector.broadcast %807 : vector<1x512xf32> to vector<4x512xf32>
    %810 = arith.mulf %808, %809 : vector<4x512xf32>
    %811 = arith.addf %802, %810 : vector<4x512xf32>
    %812 = vector.extract_strided_slice %717 {offsets = [0, 13], sizes = [4, 1], strides = [1, 1]} : vector<4x36xf32> to vector<4x1xf32>
    %813 = vector.extract_strided_slice %805 {offsets = [1, 0], sizes = [1, 512], strides = [1, 1]} : vector<4x512xf32> to vector<1x512xf32>
    %814 = vector.broadcast %812 : vector<4x1xf32> to vector<4x512xf32>
    %815 = vector.broadcast %813 : vector<1x512xf32> to vector<4x512xf32>
    %816 = arith.mulf %814, %815 : vector<4x512xf32>
    %817 = arith.addf %811, %816 : vector<4x512xf32>
    %818 = vector.extract_strided_slice %717 {offsets = [0, 14], sizes = [4, 1], strides = [1, 1]} : vector<4x36xf32> to vector<4x1xf32>
    %819 = vector.extract_strided_slice %805 {offsets = [2, 0], sizes = [1, 512], strides = [1, 1]} : vector<4x512xf32> to vector<1x512xf32>
    %820 = vector.broadcast %818 : vector<4x1xf32> to vector<4x512xf32>
    %821 = vector.broadcast %819 : vector<1x512xf32> to vector<4x512xf32>
    %822 = arith.mulf %820, %821 : vector<4x512xf32>
    %823 = arith.addf %817, %822 : vector<4x512xf32>
    %824 = vector.extract_strided_slice %717 {offsets = [0, 15], sizes = [4, 1], strides = [1, 1]} : vector<4x36xf32> to vector<4x1xf32>
    %825 = vector.extract_strided_slice %805 {offsets = [3, 0], sizes = [1, 512], strides = [1, 1]} : vector<4x512xf32> to vector<1x512xf32>
    %826 = vector.broadcast %824 : vector<4x1xf32> to vector<4x512xf32>
    %827 = vector.broadcast %825 : vector<1x512xf32> to vector<4x512xf32>
    %828 = arith.mulf %826, %827 : vector<4x512xf32>
    %829 = arith.addf %823, %828 : vector<4x512xf32>
    %830 = vector.extract_strided_slice %720 {offsets = [0, 128], sizes = [4, 512], strides = [1, 1]} : vector<4x768xf32> to vector<4x512xf32>
    %831 = vector.broadcast %5 : vector<1x512xf32> to vector<4x512xf32>
    %832 = arith.mulf %830, %831 : vector<4x512xf32>
    %833 = vector.extract_strided_slice %717 {offsets = [0, 16], sizes = [4, 1], strides = [1, 1]} : vector<4x36xf32> to vector<4x1xf32>
    %834 = vector.extract_strided_slice %832 {offsets = [0, 0], sizes = [1, 512], strides = [1, 1]} : vector<4x512xf32> to vector<1x512xf32>
    %835 = vector.broadcast %833 : vector<4x1xf32> to vector<4x512xf32>
    %836 = vector.broadcast %834 : vector<1x512xf32> to vector<4x512xf32>
    %837 = arith.mulf %835, %836 : vector<4x512xf32>
    %838 = arith.addf %829, %837 : vector<4x512xf32>
    %839 = vector.extract_strided_slice %717 {offsets = [0, 17], sizes = [4, 1], strides = [1, 1]} : vector<4x36xf32> to vector<4x1xf32>
    %840 = vector.extract_strided_slice %832 {offsets = [1, 0], sizes = [1, 512], strides = [1, 1]} : vector<4x512xf32> to vector<1x512xf32>
    %841 = vector.broadcast %839 : vector<4x1xf32> to vector<4x512xf32>
    %842 = vector.broadcast %840 : vector<1x512xf32> to vector<4x512xf32>
    %843 = arith.mulf %841, %842 : vector<4x512xf32>
    %844 = arith.addf %838, %843 : vector<4x512xf32>
    %845 = vector.extract_strided_slice %717 {offsets = [0, 18], sizes = [4, 1], strides = [1, 1]} : vector<4x36xf32> to vector<4x1xf32>
    %846 = vector.extract_strided_slice %832 {offsets = [2, 0], sizes = [1, 512], strides = [1, 1]} : vector<4x512xf32> to vector<1x512xf32>
    %847 = vector.broadcast %845 : vector<4x1xf32> to vector<4x512xf32>
    %848 = vector.broadcast %846 : vector<1x512xf32> to vector<4x512xf32>
    %849 = arith.mulf %847, %848 : vector<4x512xf32>
    %850 = arith.addf %844, %849 : vector<4x512xf32>
    %851 = vector.extract_strided_slice %717 {offsets = [0, 19], sizes = [4, 1], strides = [1, 1]} : vector<4x36xf32> to vector<4x1xf32>
    %852 = vector.extract_strided_slice %832 {offsets = [3, 0], sizes = [1, 512], strides = [1, 1]} : vector<4x512xf32> to vector<1x512xf32>
    %853 = vector.broadcast %851 : vector<4x1xf32> to vector<4x512xf32>
    %854 = vector.broadcast %852 : vector<1x512xf32> to vector<4x512xf32>
    %855 = arith.mulf %853, %854 : vector<4x512xf32>
    %856 = arith.addf %850, %855 : vector<4x512xf32>
    %857 = vector.extract_strided_slice %720 {offsets = [0, 129], sizes = [4, 512], strides = [1, 1]} : vector<4x768xf32> to vector<4x512xf32>
    %858 = vector.broadcast %6 : vector<1x512xf32> to vector<4x512xf32>
    %859 = arith.mulf %857, %858 : vector<4x512xf32>
    %860 = vector.extract_strided_slice %717 {offsets = [0, 20], sizes = [4, 1], strides = [1, 1]} : vector<4x36xf32> to vector<4x1xf32>
    %861 = vector.extract_strided_slice %859 {offsets = [0, 0], sizes = [1, 512], strides = [1, 1]} : vector<4x512xf32> to vector<1x512xf32>
    %862 = vector.broadcast %860 : vector<4x1xf32> to vector<4x512xf32>
    %863 = vector.broadcast %861 : vector<1x512xf32> to vector<4x512xf32>
    %864 = arith.mulf %862, %863 : vector<4x512xf32>
    %865 = arith.addf %856, %864 : vector<4x512xf32>
    %866 = vector.extract_strided_slice %717 {offsets = [0, 21], sizes = [4, 1], strides = [1, 1]} : vector<4x36xf32> to vector<4x1xf32>
    %867 = vector.extract_strided_slice %859 {offsets = [1, 0], sizes = [1, 512], strides = [1, 1]} : vector<4x512xf32> to vector<1x512xf32>
    %868 = vector.broadcast %866 : vector<4x1xf32> to vector<4x512xf32>
    %869 = vector.broadcast %867 : vector<1x512xf32> to vector<4x512xf32>
    %870 = arith.mulf %868, %869 : vector<4x512xf32>
    %871 = arith.addf %865, %870 : vector<4x512xf32>
    %872 = vector.extract_strided_slice %717 {offsets = [0, 22], sizes = [4, 1], strides = [1, 1]} : vector<4x36xf32> to vector<4x1xf32>
    %873 = vector.extract_strided_slice %859 {offsets = [2, 0], sizes = [1, 512], strides = [1, 1]} : vector<4x512xf32> to vector<1x512xf32>
    %874 = vector.broadcast %872 : vector<4x1xf32> to vector<4x512xf32>
    %875 = vector.broadcast %873 : vector<1x512xf32> to vector<4x512xf32>
    %876 = arith.mulf %874, %875 : vector<4x512xf32>
    %877 = arith.addf %871, %876 : vector<4x512xf32>
    %878 = vector.extract_strided_slice %717 {offsets = [0, 23], sizes = [4, 1], strides = [1, 1]} : vector<4x36xf32> to vector<4x1xf32>
    %879 = vector.extract_strided_slice %859 {offsets = [3, 0], sizes = [1, 512], strides = [1, 1]} : vector<4x512xf32> to vector<1x512xf32>
    %880 = vector.broadcast %878 : vector<4x1xf32> to vector<4x512xf32>
    %881 = vector.broadcast %879 : vector<1x512xf32> to vector<4x512xf32>
    %882 = arith.mulf %880, %881 : vector<4x512xf32>
    %883 = arith.addf %877, %882 : vector<4x512xf32>
    %884 = vector.extract_strided_slice %720 {offsets = [0, 143], sizes = [4, 512], strides = [1, 1]} : vector<4x768xf32> to vector<4x512xf32>
    %885 = vector.broadcast %7 : vector<1x512xf32> to vector<4x512xf32>
    %886 = arith.mulf %884, %885 : vector<4x512xf32>
    %887 = vector.extract_strided_slice %717 {offsets = [0, 24], sizes = [4, 1], strides = [1, 1]} : vector<4x36xf32> to vector<4x1xf32>
    %888 = vector.extract_strided_slice %886 {offsets = [0, 0], sizes = [1, 512], strides = [1, 1]} : vector<4x512xf32> to vector<1x512xf32>
    %889 = vector.broadcast %887 : vector<4x1xf32> to vector<4x512xf32>
    %890 = vector.broadcast %888 : vector<1x512xf32> to vector<4x512xf32>
    %891 = arith.mulf %889, %890 : vector<4x512xf32>
    %892 = arith.addf %883, %891 : vector<4x512xf32>
    %893 = vector.extract_strided_slice %717 {offsets = [0, 25], sizes = [4, 1], strides = [1, 1]} : vector<4x36xf32> to vector<4x1xf32>
    %894 = vector.extract_strided_slice %886 {offsets = [1, 0], sizes = [1, 512], strides = [1, 1]} : vector<4x512xf32> to vector<1x512xf32>
    %895 = vector.broadcast %893 : vector<4x1xf32> to vector<4x512xf32>
    %896 = vector.broadcast %894 : vector<1x512xf32> to vector<4x512xf32>
    %897 = arith.mulf %895, %896 : vector<4x512xf32>
    %898 = arith.addf %892, %897 : vector<4x512xf32>
    %899 = vector.extract_strided_slice %717 {offsets = [0, 26], sizes = [4, 1], strides = [1, 1]} : vector<4x36xf32> to vector<4x1xf32>
    %900 = vector.extract_strided_slice %886 {offsets = [2, 0], sizes = [1, 512], strides = [1, 1]} : vector<4x512xf32> to vector<1x512xf32>
    %901 = vector.broadcast %899 : vector<4x1xf32> to vector<4x512xf32>
    %902 = vector.broadcast %900 : vector<1x512xf32> to vector<4x512xf32>
    %903 = arith.mulf %901, %902 : vector<4x512xf32>
    %904 = arith.addf %898, %903 : vector<4x512xf32>
    %905 = vector.extract_strided_slice %717 {offsets = [0, 27], sizes = [4, 1], strides = [1, 1]} : vector<4x36xf32> to vector<4x1xf32>
    %906 = vector.extract_strided_slice %886 {offsets = [3, 0], sizes = [1, 512], strides = [1, 1]} : vector<4x512xf32> to vector<1x512xf32>
    %907 = vector.broadcast %905 : vector<4x1xf32> to vector<4x512xf32>
    %908 = vector.broadcast %906 : vector<1x512xf32> to vector<4x512xf32>
    %909 = arith.mulf %907, %908 : vector<4x512xf32>
    %910 = arith.addf %904, %909 : vector<4x512xf32>
    %911 = vector.extract_strided_slice %720 {offsets = [0, 144], sizes = [4, 512], strides = [1, 1]} : vector<4x768xf32> to vector<4x512xf32>
    %912 = vector.broadcast %8 : vector<1x512xf32> to vector<4x512xf32>
    %913 = arith.mulf %911, %912 : vector<4x512xf32>
    %914 = vector.extract_strided_slice %717 {offsets = [0, 28], sizes = [4, 1], strides = [1, 1]} : vector<4x36xf32> to vector<4x1xf32>
    %915 = vector.extract_strided_slice %913 {offsets = [0, 0], sizes = [1, 512], strides = [1, 1]} : vector<4x512xf32> to vector<1x512xf32>
    %916 = vector.broadcast %914 : vector<4x1xf32> to vector<4x512xf32>
    %917 = vector.broadcast %915 : vector<1x512xf32> to vector<4x512xf32>
    %918 = arith.mulf %916, %917 : vector<4x512xf32>
    %919 = arith.addf %910, %918 : vector<4x512xf32>
    %920 = vector.extract_strided_slice %717 {offsets = [0, 29], sizes = [4, 1], strides = [1, 1]} : vector<4x36xf32> to vector<4x1xf32>
    %921 = vector.extract_strided_slice %913 {offsets = [1, 0], sizes = [1, 512], strides = [1, 1]} : vector<4x512xf32> to vector<1x512xf32>
    %922 = vector.broadcast %920 : vector<4x1xf32> to vector<4x512xf32>
    %923 = vector.broadcast %921 : vector<1x512xf32> to vector<4x512xf32>
    %924 = arith.mulf %922, %923 : vector<4x512xf32>
    %925 = arith.addf %919, %924 : vector<4x512xf32>
    %926 = vector.extract_strided_slice %717 {offsets = [0, 30], sizes = [4, 1], strides = [1, 1]} : vector<4x36xf32> to vector<4x1xf32>
    %927 = vector.extract_strided_slice %913 {offsets = [2, 0], sizes = [1, 512], strides = [1, 1]} : vector<4x512xf32> to vector<1x512xf32>
    %928 = vector.broadcast %926 : vector<4x1xf32> to vector<4x512xf32>
    %929 = vector.broadcast %927 : vector<1x512xf32> to vector<4x512xf32>
    %930 = arith.mulf %928, %929 : vector<4x512xf32>
    %931 = arith.addf %925, %930 : vector<4x512xf32>
    %932 = vector.extract_strided_slice %717 {offsets = [0, 31], sizes = [4, 1], strides = [1, 1]} : vector<4x36xf32> to vector<4x1xf32>
    %933 = vector.extract_strided_slice %913 {offsets = [3, 0], sizes = [1, 512], strides = [1, 1]} : vector<4x512xf32> to vector<1x512xf32>
    %934 = vector.broadcast %932 : vector<4x1xf32> to vector<4x512xf32>
    %935 = vector.broadcast %933 : vector<1x512xf32> to vector<4x512xf32>
    %936 = arith.mulf %934, %935 : vector<4x512xf32>
    %937 = arith.addf %931, %936 : vector<4x512xf32>
    %938 = vector.extract_strided_slice %720 {offsets = [0, 145], sizes = [4, 512], strides = [1, 1]} : vector<4x768xf32> to vector<4x512xf32>
    %939 = vector.broadcast %9 : vector<1x512xf32> to vector<4x512xf32>
    %940 = arith.mulf %938, %939 : vector<4x512xf32>
    %941 = vector.extract_strided_slice %717 {offsets = [0, 32], sizes = [4, 1], strides = [1, 1]} : vector<4x36xf32> to vector<4x1xf32>
    %942 = vector.extract_strided_slice %940 {offsets = [0, 0], sizes = [1, 512], strides = [1, 1]} : vector<4x512xf32> to vector<1x512xf32>
    %943 = vector.broadcast %941 : vector<4x1xf32> to vector<4x512xf32>
    %944 = vector.broadcast %942 : vector<1x512xf32> to vector<4x512xf32>
    %945 = arith.mulf %943, %944 : vector<4x512xf32>
    %946 = arith.addf %937, %945 : vector<4x512xf32>
    %947 = vector.extract_strided_slice %717 {offsets = [0, 33], sizes = [4, 1], strides = [1, 1]} : vector<4x36xf32> to vector<4x1xf32>
    %948 = vector.extract_strided_slice %940 {offsets = [1, 0], sizes = [1, 512], strides = [1, 1]} : vector<4x512xf32> to vector<1x512xf32>
    %949 = vector.broadcast %947 : vector<4x1xf32> to vector<4x512xf32>
    %950 = vector.broadcast %948 : vector<1x512xf32> to vector<4x512xf32>
    %951 = arith.mulf %949, %950 : vector<4x512xf32>
    %952 = arith.addf %946, %951 : vector<4x512xf32>
    %953 = vector.extract_strided_slice %717 {offsets = [0, 34], sizes = [4, 1], strides = [1, 1]} : vector<4x36xf32> to vector<4x1xf32>
    %954 = vector.extract_strided_slice %940 {offsets = [2, 0], sizes = [1, 512], strides = [1, 1]} : vector<4x512xf32> to vector<1x512xf32>
    %955 = vector.broadcast %953 : vector<4x1xf32> to vector<4x512xf32>
    %956 = vector.broadcast %954 : vector<1x512xf32> to vector<4x512xf32>
    %957 = arith.mulf %955, %956 : vector<4x512xf32>
    %958 = arith.addf %952, %957 : vector<4x512xf32>
    %959 = vector.extract_strided_slice %717 {offsets = [0, 35], sizes = [4, 1], strides = [1, 1]} : vector<4x36xf32> to vector<4x1xf32>
    %960 = vector.extract_strided_slice %940 {offsets = [3, 0], sizes = [1, 512], strides = [1, 1]} : vector<4x512xf32> to vector<1x512xf32>
    %961 = vector.broadcast %959 : vector<4x1xf32> to vector<4x512xf32>
    %962 = vector.broadcast %960 : vector<1x512xf32> to vector<4x512xf32>
    %963 = arith.mulf %961, %962 : vector<4x512xf32>
    %964 = arith.addf %958, %963 : vector<4x512xf32>
    %965 = vector.broadcast %718 : vector<4x1xf32> to vector<4x512xf32>
    %966 = arith.addf %964, %965 : vector<4x512xf32>
    %967 = arith.negf %966 : vector<4x512xf32>
    %968 = math.exp %967 : vector<4x512xf32>
    %cst_45 = arith.constant 1.000000e+00 : f32
    %969 = vector.broadcast %cst_45 : f32 to vector<4x512xf32>
    %970 = arith.addf %969, %968 : vector<4x512xf32>
    %971 = arith.divf %969, %970 : vector<4x512xf32>
    %972 = vector.extract_strided_slice %971 {offsets = [0, 0], sizes = [1, 256], strides = [1, 1]} : vector<4x512xf32> to vector<1x256xf32>
    %c0_46 = arith.constant 0 : index
    %c0_47 = arith.constant 0 : index
    %973 = vector.load %arg21[%c0_46, %c0_47] : memref<2x1024xf32, #tpu.memory_space<vmem>>, vector<1x256xf32>
    tpu.vector_store %arg21[%c0_46, %c0_47], %972 {strides = array<i32>} : memref<2x1024xf32, #tpu.memory_space<vmem>>, vector<1x256xf32>,
    %974 = vector.extract_strided_slice %971 {offsets = [0, 256], sizes = [1, 256], strides = [1, 1]} : vector<4x512xf32> to vector<1x256xf32>
    %c1 = arith.constant 1 : index
    %c0_48 = arith.constant 0 : index
    %975 = vector.load %arg21[%c1, %c0_48] : memref<2x1024xf32, #tpu.memory_space<vmem>>, vector<1x256xf32>
    tpu.vector_store %arg21[%c1, %c0_48], %974 {strides = array<i32>} : memref<2x1024xf32, #tpu.memory_space<vmem>>, vector<1x256xf32>,
    %976 = vector.extract_strided_slice %971 {offsets = [1, 0], sizes = [1, 256], strides = [1, 1]} : vector<4x512xf32> to vector<1x256xf32>
    %c0_49 = arith.constant 0 : index
    %c256 = arith.constant 256 : index
    %977 = vector.load %arg21[%c0_49, %c256] : memref<2x1024xf32, #tpu.memory_space<vmem>>, vector<1x256xf32>
    tpu.vector_store %arg21[%c0_49, %c256], %976 {strides = array<i32>} : memref<2x1024xf32, #tpu.memory_space<vmem>>, vector<1x256xf32>,
    %978 = vector.extract_strided_slice %971 {offsets = [1, 256], sizes = [1, 256], strides = [1, 1]} : vector<4x512xf32> to vector<1x256xf32>
    %c1_50 = arith.constant 1 : index
    %c256_51 = arith.constant 256 : index
    %979 = vector.load %arg21[%c1_50, %c256_51] : memref<2x1024xf32, #tpu.memory_space<vmem>>, vector<1x256xf32>
    tpu.vector_store %arg21[%c1_50, %c256_51], %978 {strides = array<i32>} : memref<2x1024xf32, #tpu.memory_space<vmem>>, vector<1x256xf32>,
    %980 = vector.extract_strided_slice %971 {offsets = [2, 0], sizes = [1, 256], strides = [1, 1]} : vector<4x512xf32> to vector<1x256xf32>
    %c0_52 = arith.constant 0 : index
    %c512 = arith.constant 512 : index
    %981 = vector.load %arg21[%c0_52, %c512] : memref<2x1024xf32, #tpu.memory_space<vmem>>, vector<1x256xf32>
    tpu.vector_store %arg21[%c0_52, %c512], %980 {strides = array<i32>} : memref<2x1024xf32, #tpu.memory_space<vmem>>, vector<1x256xf32>,
    %982 = vector.extract_strided_slice %971 {offsets = [2, 256], sizes = [1, 256], strides = [1, 1]} : vector<4x512xf32> to vector<1x256xf32>
    %c1_53 = arith.constant 1 : index
    %c512_54 = arith.constant 512 : index
    %983 = vector.load %arg21[%c1_53, %c512_54] : memref<2x1024xf32, #tpu.memory_space<vmem>>, vector<1x256xf32>
    tpu.vector_store %arg21[%c1_53, %c512_54], %982 {strides = array<i32>} : memref<2x1024xf32, #tpu.memory_space<vmem>>, vector<1x256xf32>,
    %984 = vector.extract_strided_slice %971 {offsets = [3, 0], sizes = [1, 256], strides = [1, 1]} : vector<4x512xf32> to vector<1x256xf32>
    %c0_55 = arith.constant 0 : index
    %c768 = arith.constant 768 : index
    %985 = vector.load %arg21[%c0_55, %c768] : memref<2x1024xf32, #tpu.memory_space<vmem>>, vector<1x256xf32>
    tpu.vector_store %arg21[%c0_55, %c768], %984 {strides = array<i32>} : memref<2x1024xf32, #tpu.memory_space<vmem>>, vector<1x256xf32>,
    %986 = vector.extract_strided_slice %971 {offsets = [3, 256], sizes = [1, 256], strides = [1, 1]} : vector<4x512xf32> to vector<1x256xf32>
    %c1_56 = arith.constant 1 : index
    %c768_57 = arith.constant 768 : index
    %987 = vector.load %arg21[%c1_56, %c768_57] : memref<2x1024xf32, #tpu.memory_space<vmem>>, vector<1x256xf32>
    tpu.vector_store %arg21[%c1_56, %c768_57], %986 {strides = array<i32>} : memref<2x1024xf32, #tpu.memory_space<vmem>>, vector<1x256xf32>,
    %c0_58 = arith.constant 0 : index
    %c0_59 = arith.constant 0 : index
    %988 = vector.load %arg21[%c0_58, %c0_59] : memref<2x1024xf32, #tpu.memory_space<vmem>>, vector<2x1024xf32>
    %c0_60 = arith.constant 0 : index
    %c0_61 = arith.constant 0 : index
    %989 = vector.load %arg11[%c0_60, %c0_61] : memref<1024x64xf32, #tpu.memory_space<vmem>>, vector<1024x64xf32>
    %cst_62 = arith.constant dense<0.000000e+00> : vector<2x64xf32>
    %990 = tpu.matmul %988, %989, %cst_62 {dimension_numbers = #tpu.dot_dimension_numbers<[1], [0], [0], [1], [0, 0, 1, 1], [], []>} : vector<2x1024xf32>, vector<1024x64xf32>, vector<2x64xf32> -> vector<2x64xf32>
    %c0_63 = arith.constant 0 : index
    %c0_64 = arith.constant 0 : index
    %991 = vector.load %arg12[%c0_63, %c0_64] : memref<1x64xf32, #tpu.memory_space<vmem>>, vector<1x64xf32>
    %992 = vector.broadcast %991 : vector<1x64xf32> to vector<2x64xf32>
    %993 = arith.addf %990, %992 : vector<2x64xf32>
    %cst_65 = arith.constant 0.000000e+00 : f32
    %994 = vector.broadcast %cst_65 : f32 to vector<2x64xf32>
    %995 = arith.maximumf %993, %994 : vector<2x64xf32>
    %c0_66 = arith.constant 0 : index
    %c0_67 = arith.constant 0 : index
    %996 = vector.load %arg13[%c0_66, %c0_67] : memref<64x64xf32, #tpu.memory_space<vmem>>, vector<64x64xf32>
    %cst_68 = arith.constant dense<0.000000e+00> : vector<2x64xf32>
    %997 = tpu.matmul %995, %996, %cst_68 {dimension_numbers = #tpu.dot_dimension_numbers<[1], [0], [0], [1], [0, 0, 1, 1], [], []>} : vector<2x64xf32>, vector<64x64xf32>, vector<2x64xf32> -> vector<2x64xf32>
    %c0_69 = arith.constant 0 : index
    %c0_70 = arith.constant 0 : index
    %998 = vector.load %arg14[%c0_69, %c0_70] : memref<1x64xf32, #tpu.memory_space<vmem>>, vector<1x64xf32>
    %999 = vector.broadcast %998 : vector<1x64xf32> to vector<2x64xf32>
    %1000 = arith.addf %997, %999 : vector<2x64xf32>
    %cst_71 = arith.constant dense<0.000000e+00> : vector<2xf32>
    %1001 = vector.multi_reduction <add>, %1000, %cst_71 [1] : vector<2x64xf32> to vector<2xf32>
    %1002 = vector.shape_cast %1001 : vector<2xf32> to vector<2x1xf32>
    %cst_72 = arith.constant 6.400000e+01 : f32
    %1003 = vector.broadcast %cst_72 : f32 to vector<2x1xf32>
    %1004 = arith.divf %1002, %1003 : vector<2x1xf32>
    %1005 = arith.mulf %1000, %1000 : vector<2x64xf32>
    %cst_73 = arith.constant dense<0.000000e+00> : vector<2xf32>
    %1006 = vector.multi_reduction <add>, %1005, %cst_73 [1] : vector<2x64xf32> to vector<2xf32>
    %1007 = vector.shape_cast %1006 : vector<2xf32> to vector<2x1xf32>
    %cst_74 = arith.constant 6.400000e+01 : f32
    %1008 = vector.broadcast %cst_74 : f32 to vector<2x1xf32>
    %1009 = arith.divf %1007, %1008 : vector<2x1xf32>
    %1010 = arith.mulf %1004, %1004 : vector<2x1xf32>
    %1011 = arith.subf %1009, %1010 : vector<2x1xf32>
    %cst_75 = arith.constant 0.000000e+00 : f32
    %1012 = vector.broadcast %cst_75 : f32 to vector<2x1xf32>
    %1013 = arith.maximumf %1011, %1012 : vector<2x1xf32>
    %1014 = vector.broadcast %1004 : vector<2x1xf32> to vector<2x64xf32>
    %1015 = arith.subf %1000, %1014 : vector<2x64xf32>
    %cst_76 = arith.constant 9.99999974E-6 : f32
    %1016 = vector.broadcast %cst_76 : f32 to vector<2x1xf32>
    %1017 = arith.addf %1013, %1016 : vector<2x1xf32>
    %1018 = math.rsqrt %1017 : vector<2x1xf32>
    %1019 = vector.broadcast %1018 : vector<2x1xf32> to vector<2x64xf32>
    %1020 = arith.mulf %1015, %1019 : vector<2x64xf32>
    %c0_77 = arith.constant 0 : index
    %c0_78 = arith.constant 0 : index
    %1021 = vector.load %arg15[%c0_77, %c0_78] : memref<1x64xf32, #tpu.memory_space<vmem>>, vector<1x64xf32>
    %1022 = vector.broadcast %1021 : vector<1x64xf32> to vector<2x64xf32>
    %1023 = arith.mulf %1020, %1022 : vector<2x64xf32>
    %c0_79 = arith.constant 0 : index
    %c0_80 = arith.constant 0 : index
    %1024 = vector.load %arg16[%c0_79, %c0_80] : memref<1x64xf32, #tpu.memory_space<vmem>>, vector<1x64xf32>
    %1025 = vector.broadcast %1024 : vector<1x64xf32> to vector<2x64xf32>
    %1026 = arith.addf %1023, %1025 : vector<2x64xf32>
    %cst_81 = arith.constant 0.000000e+00 : f32
    %1027 = vector.broadcast %cst_81 : f32 to vector<2x64xf32>
    %1028 = arith.maximumf %1026, %1027 : vector<2x64xf32>
    %c0_82 = arith.constant 0 : index
    %c0_83 = arith.constant 0 : index
    %1029 = vector.load %arg17[%c0_82, %c0_83] : memref<64x32xf32, #tpu.memory_space<vmem>>, vector<64x32xf32>
    %cst_84 = arith.constant dense<0.000000e+00> : vector<2x32xf32>
    %1030 = tpu.matmul %1028, %1029, %cst_84 {dimension_numbers = #tpu.dot_dimension_numbers<[1], [0], [0], [1], [0, 0, 1, 1], [], []>} : vector<2x64xf32>, vector<64x32xf32>, vector<2x32xf32> -> vector<2x32xf32>
    %c0_85 = arith.constant 0 : index
    %c0_86 = arith.constant 0 : index
    %1031 = vector.load %arg18[%c0_85, %c0_86] : memref<1x32xf32, #tpu.memory_space<vmem>>, vector<1x32xf32>
    %1032 = vector.broadcast %1031 : vector<1x32xf32> to vector<2x32xf32>
    %1033 = arith.addf %1030, %1032 : vector<2x32xf32>
    %c0_87 = arith.constant 0 : index
    %c0_88 = arith.constant 0 : index
    %1034 = vector.load %arg19[%c0_87, %c0_88] : memref<2x32xf32, #tpu.memory_space<vmem>>, vector<2x32xf32>
    tpu.vector_store %arg19[%c0_87, %c0_88], %1033 {strides = array<i32>} : memref<2x32xf32, #tpu.memory_space<vmem>>, vector<2x32xf32>,
    return
  }
  func.func @transform_0(%arg0: i32) -> (i32, i32) {
    %c0_i32 = arith.constant 0 : i32
    %c0_i32_0 = arith.constant 0 : i32
    %c0_i32_1 = arith.constant 0 : i32
    return %c0_i32, %c0_i32_0 : i32, i32
  }
  func.func @transform_1(%arg0: i32) -> (i32, i32) {
    %c0_i32 = arith.constant 0 : i32
    %c0_i32_0 = arith.constant 0 : i32
    return %c0_i32, %arg0 : i32, i32
  }
  func.func @transform_2(%arg0: i32) -> (i32, i32) {
    %c0_i32 = arith.constant 0 : i32
    %c0_i32_0 = arith.constant 0 : i32
    %c0_i32_1 = arith.constant 0 : i32
    return %c0_i32, %c0_i32_0 : i32, i32
  }
  func.func @transform_3(%arg0: i32) -> (i32, i32) {
    %c0_i32 = arith.constant 0 : i32
    %c0_i32_0 = arith.constant 0 : i32
    %c0_i32_1 = arith.constant 0 : i32
    return %c0_i32, %c0_i32_0 : i32, i32
  }
  func.func @transform_4(%arg0: i32) -> (i32, i32) {
    %c0_i32 = arith.constant 0 : i32
    %c0_i32_0 = arith.constant 0 : i32
    %c0_i32_1 = arith.constant 0 : i32
    return %c0_i32, %c0_i32_0 : i32, i32
  }
  func.func @transform_5(%arg0: i32) -> (i32, i32) {
    %c0_i32 = arith.constant 0 : i32
    %c0_i32_0 = arith.constant 0 : i32
    %c0_i32_1 = arith.constant 0 : i32
    return %c0_i32, %c0_i32_0 : i32, i32
  }
  func.func @transform_6(%arg0: i32) -> (i32, i32) {
    %c0_i32 = arith.constant 0 : i32
    %c0_i32_0 = arith.constant 0 : i32
    %c0_i32_1 = arith.constant 0 : i32
    return %c0_i32, %c0_i32_0 : i32, i32
  }
  func.func @transform_7(%arg0: i32) -> (i32, i32) {
    %c0_i32 = arith.constant 0 : i32
    %c0_i32_0 = arith.constant 0 : i32
    %c0_i32_1 = arith.constant 0 : i32
    return %c0_i32, %c0_i32_0 : i32, i32
  }
  func.func @transform_8(%arg0: i32) -> (i32, i32) {
    %c0_i32 = arith.constant 0 : i32
    %c0_i32_0 = arith.constant 0 : i32
    %c0_i32_1 = arith.constant 0 : i32
    return %c0_i32, %c0_i32_0 : i32, i32
  }
  func.func @transform_9(%arg0: i32) -> (i32, i32) {
    %c0_i32 = arith.constant 0 : i32
    %c0_i32_0 = arith.constant 0 : i32
    %c0_i32_1 = arith.constant 0 : i32
    return %c0_i32, %c0_i32_0 : i32, i32
  }
  func.func @transform_10(%arg0: i32) -> (i32, i32) {
    %c0_i32 = arith.constant 0 : i32
    %c0_i32_0 = arith.constant 0 : i32
    %c0_i32_1 = arith.constant 0 : i32
    return %c0_i32, %c0_i32_0 : i32, i32
  }
  func.func @transform_11(%arg0: i32) -> (i32, i32) {
    %c0_i32 = arith.constant 0 : i32
    %c0_i32_0 = arith.constant 0 : i32
    %c0_i32_1 = arith.constant 0 : i32
    return %c0_i32, %c0_i32_0 : i32, i32
  }
  func.func @transform_12(%arg0: i32) -> (i32, i32) {
    %c0_i32 = arith.constant 0 : i32
    %c0_i32_0 = arith.constant 0 : i32
    %c0_i32_1 = arith.constant 0 : i32
    return %c0_i32, %c0_i32_0 : i32, i32
  }
  func.func @transform_13(%arg0: i32) -> (i32, i32) {
    %c0_i32 = arith.constant 0 : i32
    %c0_i32_0 = arith.constant 0 : i32
    %c0_i32_1 = arith.constant 0 : i32
    return %c0_i32, %c0_i32_0 : i32, i32
  }
  func.func @transform_14(%arg0: i32) -> (i32, i32) {
    %c0_i32 = arith.constant 0 : i32
    %c0_i32_0 = arith.constant 0 : i32
    %c0_i32_1 = arith.constant 0 : i32
    return %c0_i32, %c0_i32_0 : i32, i32
  }
  func.func @transform_15(%arg0: i32) -> (i32, i32) {
    %c0_i32 = arith.constant 0 : i32
    %c0_i32_0 = arith.constant 0 : i32
    %c0_i32_1 = arith.constant 0 : i32
    return %c0_i32, %c0_i32_0 : i32, i32
  }
  func.func @transform_16(%arg0: i32) -> (i32, i32) {
    %c0_i32 = arith.constant 0 : i32
    %c0_i32_0 = arith.constant 0 : i32
    %c0_i32_1 = arith.constant 0 : i32
    return %c0_i32, %c0_i32_0 : i32, i32
  }
  func.func @transform_17(%arg0: i32) -> (i32, i32) {
    %c0_i32 = arith.constant 0 : i32
    %c0_i32_0 = arith.constant 0 : i32
    %c0_i32_1 = arith.constant 0 : i32
    return %c0_i32, %c0_i32_0 : i32, i32
  }
  func.func @transform_18(%arg0: i32) -> (i32, i32) {
    %c0_i32 = arith.constant 0 : i32
    %c0_i32_0 = arith.constant 0 : i32
    return %arg0, %c0_i32 : i32, i32
  }
}

</mosaic_0001>

<llo_original>
// kernel: forward.1
$region0: #{forward.1}
  #allocation0 [shape = 'u32[]', space=smem, size = 0x4, offset = 0x4, fixed_abs, tag = 'smem constant byte address 0x4 - core index']
  #allocation1 [shape = 'u32[72,128]{1,0:T(1,128)}', space=vmem, size = 0x9000, scoped, tag = 'internal scratch']
  #allocation2 [shape = 'f32[4,768]{1,0:T(4,128)}', space=vmem, size = 0x3000, scoped, tag = 'scratch operand']
  #allocation3 [shape = 'f32[2,1024]{1,0:T(2,128)}', space=vmem, size = 0x2000, scoped, tag = 'scratch operand']
  %s0 = inlined_call_operand.vmem [shape: f32[9,512], index: 0, kind: input, shape index: {}]
  %s1 = inlined_call_operand.vmem [shape: f32[3,512], index: 1, kind: input, shape index: {}]
  %s2 = inlined_call_operand.vmem [shape: f32[4,27], index: 2, kind: input, shape index: {}]
  %s3 = inlined_call_operand.vmem [shape: f32[4,1], index: 3, kind: input, shape index: {}]
  %s4 = inlined_call_operand.vmem [shape: f32[4,36], index: 4, kind: input, shape index: {}]
  %s5 = inlined_call_operand.vmem [shape: f32[4,1], index: 5, kind: input, shape index: {}]
  %s6 = inlined_call_operand.vmem [shape: f32[4,36], index: 6, kind: input, shape index: {}]
  %s7 = inlined_call_operand.vmem [shape: f32[4,1], index: 7, kind: input, shape index: {}]
  %s8 = inlined_call_operand.vmem [shape: f32[4,36], index: 8, kind: input, shape index: {}]
  %s9 = inlined_call_operand.vmem [shape: f32[4,1], index: 9, kind: input, shape index: {}]
  %s10 = inlined_call_operand.vmem [shape: f32[1024,64], index: 10, kind: input, shape index: {}]
  %s11 = inlined_call_operand.vmem [shape: f32[1,64], index: 11, kind: input, shape index: {}]
  %s12 = inlined_call_operand.vmem [shape: f32[64,64], index: 12, kind: input, shape index: {}]
  %s13 = inlined_call_operand.vmem [shape: f32[1,64], index: 13, kind: input, shape index: {}]
  %s14 = inlined_call_operand.vmem [shape: f32[1,64], index: 14, kind: input, shape index: {}]
  %s15 = inlined_call_operand.vmem [shape: f32[1,64], index: 15, kind: input, shape index: {}]
  %s16 = inlined_call_operand.vmem [shape: f32[64,32], index: 16, kind: input, shape index: {}]
  %s17 = inlined_call_operand.vmem [shape: f32[1,32], index: 17, kind: input, shape index: {}]
  %s18 = inlined_call_operand.hbm [shape: f32[2,32], index: 18, kind: output, shape index: {}]
  %s19 = sld [smem:[#allocation0]]
  $region82: #{forward.1} parent=0
    _
  %s21 = ssub.s32 1, %s19
  %s22 = scalar_select 0, %s21, %s19
  $region1: #{forward.1} parent=0
    #allocation4 [shape = 'u8[1024]{0}', space=vmem, size = 0x400, scoped, tag = 'output window, operand 0, single buffered']
    #allocation5 [shape = 's32[1]{0}', space=sflag, size = 0x4, scoped, tag = 'scoped memory for forward.1']
    %23 = vsyncpa [#allocation5], 0
    // Predicated region
    $region2: #{forward.1} parent=1 // pred_check
      _
    $region3: #{forward.1} parent=1 // pred_check_branch
      %25 = sbr.rel (0) target = $region5
    $region4: #{forward.1} parent=1 // pred_region
      _
    $region5: #{forward.1} parent=1 // pred_fallthru
      _
    // Predicated region
    $region6: #{forward.1} parent=1 // pred_check
      _
    $region7: #{forward.1} parent=1 // pred_check_branch
      %27 = sbr.rel (0) target = $region9
    $region8: #{forward.1} parent=1 // pred_region
      _
    $region9: #{forward.1} parent=1 // pred_fallthru
      _
    // Predicated region
    $region10: #{forward.1} parent=1 // pred_check
      _
    $region11: #{forward.1} parent=1 // pred_check_branch
      %29 = sbr.rel (0) target = $region13
    $region12: #{forward.1} parent=1 // pred_region
      _
    $region13: #{forward.1} parent=1 // pred_fallthru
      _
    // Predicated region
    $region14: #{forward.1} parent=1 // pred_check
      _
    $region15: #{forward.1} parent=1 // pred_check_branch
      %31 = sbr.rel (0) target = $region17
    $region16: #{forward.1} parent=1 // pred_region
      _
    $region17: #{forward.1} parent=1 // pred_fallthru
      _
    // Predicated region
    $region18: #{forward.1} parent=1 // pred_check
      _
    $region19: #{forward.1} parent=1 // pred_check_branch
      %33 = sbr.rel (0) target = $region21
    $region20: #{forward.1} parent=1 // pred_region
      _
    $region21: #{forward.1} parent=1 // pred_fallthru
      _
    // Predicated region
    $region22: #{forward.1} parent=1 // pred_check
      _
    $region23: #{forward.1} parent=1 // pred_check_branch
      %35 = sbr.rel (0) target = $region25
    $region24: #{forward.1} parent=1 // pred_region
      _
    $region25: #{forward.1} parent=1 // pred_fallthru
      _
    // Predicated region
    $region26: #{forward.1} parent=1 // pred_check
      _
    $region27: #{forward.1} parent=1 // pred_check_branch
      %37 = sbr.rel (0) target = $region29
    $region28: #{forward.1} parent=1 // pred_region
      _
    $region29: #{forward.1} parent=1 // pred_fallthru
      _
    // Predicated region
    $region30: #{forward.1} parent=1 // pred_check
      _
    $region31: #{forward.1} parent=1 // pred_check_branch
      %39 = sbr.rel (0) target = $region33
    $region32: #{forward.1} parent=1 // pred_region
      _
    $region33: #{forward.1} parent=1 // pred_fallthru
      _
    // Predicated region
    $region34: #{forward.1} parent=1 // pred_check
      _
    $region35: #{forward.1} parent=1 // pred_check_branch
      %41 = sbr.rel (0) target = $region37
    $region36: #{forward.1} parent=1 // pred_region
      _
    $region37: #{forward.1} parent=1 // pred_fallthru
      _
    // Predicated region
    $region38: #{forward.1} parent=1 // pred_check
      _
    $region39: #{forward.1} parent=1 // pred_check_branch
      %43 = sbr.rel (0) target = $region41
    $region40: #{forward.1} parent=1 // pred_region
      _
    $region41: #{forward.1} parent=1 // pred_fallthru
      _
    // Predicated region
    $region42: #{forward.1} parent=1 // pred_check
      _
    $region43: #{forward.1} parent=1 // pred_check_branch
      %45 = sbr.rel (0) target = $region45
    $region44: #{forward.1} parent=1 // pred_region
      _
    $region45: #{forward.1} parent=1 // pred_fallthru
      _
    // Predicated region
    $region46: #{forward.1} parent=1 // pred_check
      _
    $region47: #{forward.1} parent=1 // pred_check_branch
      %47 = sbr.rel (0) target = $region49
    $region48: #{forward.1} parent=1 // pred_region
      _
    $region49: #{forward.1} parent=1 // pred_fallthru
      _
    // Predicated region
    $region50: #{forward.1} parent=1 // pred_check
      _
    $region51: #{forward.1} parent=1 // pred_check_branch
      %49 = sbr.rel (0) target = $region53
    $region52: #{forward.1} parent=1 // pred_region
      _
    $region53: #{forward.1} parent=1 // pred_fallthru
      _
    // Predicated region
    $region54: #{forward.1} parent=1 // pred_check
      _
    $region55: #{forward.1} parent=1 // pred_check_branch
      %51 = sbr.rel (0) target = $region57
    $region56: #{forward.1} parent=1 // pred_region
      _
    $region57: #{forward.1} parent=1 // pred_fallthru
      _
    // Predicated region
    $region58: #{forward.1} parent=1 // pred_check
      _
    $region59: #{forward.1} parent=1 // pred_check_branch
      %53 = sbr.rel (0) target = $region61
    $region60: #{forward.1} parent=1 // pred_region
      _
    $region61: #{forward.1} parent=1 // pred_fallthru
      _
    // Predicated region
    $region62: #{forward.1} parent=1 // pred_check
      _
    $region63: #{forward.1} parent=1 // pred_check_branch
      %55 = sbr.rel (0) target = $region65
    $region64: #{forward.1} parent=1 // pred_region
      _
    $region65: #{forward.1} parent=1 // pred_fallthru
      _
    // Predicated region
    $region66: #{forward.1} parent=1 // pred_check
      _
    $region67: #{forward.1} parent=1 // pred_check_branch
      %57 = sbr.rel (0) target = $region69
    $region68: #{forward.1} parent=1 // pred_region
      _
    $region69: #{forward.1} parent=1 // pred_fallthru
      _
    // Predicated region
    $region70: #{forward.1} parent=1 // pred_check
      _
    $region71: #{forward.1} parent=1 // pred_check_branch
      %59 = sbr.rel (0) target = $region73
    $region72: #{forward.1} parent=1 // pred_region
      _
    $region73: #{forward.1} parent=1 // pred_fallthru
      _
    %v60 = vld [vmem:[%s0] sm:$0xff]
    %v61 = vld [vmem:[%s0 + $0x8] sm:$0xff]
    %v62 = vld [vmem:[%s0 + $0x10] sm:$0xff]
    %v63 = vld [vmem:[%s0 + $0x18] sm:$0xff]
    %v64 = vld [vmem:[%s0 + $0x20] sm:$0x1]
    %v65 = vld [vmem:[%s0 + $0x28] sm:$0x1]
    %v66 = vld [vmem:[%s0 + $0x30] sm:$0x1]
    %v67 = vld [vmem:[%s0 + $0x38] sm:$0x1]
    %68 = vst [vmem:[#allocation2] sm:$0xf] 0.0
    %69 = vst [vmem:[#allocation2 + $0x14] sm:$0xf] 0.0
    %v70 = vld [vmem:[%s1] sm:$0x77]
    %v71 = vld [vmem:[%s1 + $0x8] sm:$0x77]
    %v72 = vld [vmem:[%s2] sm:$0xf]
    %v73 = vld [vmem:[%s3] sm:$0xf]
    %74 = vst [vmem:[#allocation2 + $0x4] sm:$0x77] %v70
    %75 = vst [vmem:[#allocation2 + $0xc] sm:$0x77] %v71
    %v76 = vld [vmem:[#allocation2] sm:$0x77]
    %v77 = vld [vmem:[#allocation2 + $0x8] sm:$0x77]
    %v78 = vld [vmem:[#allocation2 + $0x10] sm:$0x77]
    %v79 = vperm.slane %v60, 0
    %v80 = vperm.slane %v61, 0
    %v81 = vperm.slane %v62, 0
    %v82 = vperm.slane %v63, 0
    %v87 = vrot.slane %v80, 4
    %v88 = vrot.slane %v82, 4
    %vm89 = vcmask 1043456
    %v90 = vsel %vm89, %v79, %v87
    %v91 = vsel %vm89, %v81, %v88
    %92 = vrot.lane.b32.xlu0 %v90, 111
    %v93 = vpop.permute.xlu0 %92
    %94 = vrot.lane.b32.xlu0 %v91, 111
    %v95 = vpop.permute.xlu0 %94
    %v96 = vrot.slane %v93, 4
    %v97 = vrot.slane %v95, 4
    %vm98 = vcmask 908288
    %v99 = vsel %vm98, %v96, %v93
    %v100 = vsel %vm89, %v96, %v97
    %v101 = vsel %vm98, %v100, %v95
    %v105 = vmul.f32 %v76, %v99
    %v106 = vmul.f32 %v77, %v101
    %v107 = vmul.f32 %v78, %v97
    %109 = vset.pattern.permute.xlu0 0
    %110 = vperm.xlu0 %109, %v72
    %v111 = vpop.permute.xlu0 %110
    %v116 = vperm.slane %v105, 0
    %v117 = vperm.slane %v105, 4
    %v118 = vperm.slane %v106, 0
    %v119 = vperm.slane %v106, 4
    %v120 = vperm.slane %v107, 0
    %v126 = vperm.slane %v116, 0
    %v127 = vperm.slane %v117, 0
    %v128 = vperm.slane %v118, 0
    %v129 = vperm.slane %v119, 0
    %v130 = vperm.slane %v120, 0
    %v131 = vmul.f32 %v111, %v126
    %v132 = vmul.f32 %v111, %v127
    %v133 = vmul.f32 %v111, %v128
    %v134 = vmul.f32 %v111, %v129
    %v135 = vmul.f32 %v111, %v130
    %v136 = vadd.f32 %v131, 0.0
    %v137 = vadd.f32 %v132, 0.0
    %v138 = vadd.f32 %v133, 0.0
    %v139 = vadd.f32 %v134, 0.0
    %v140 = vadd.f32 %v135, 0.0
    %141 = vset.pattern.permute.xlu0 1
    %142 = vperm.xlu0 %141, %v72
    %v143 = vpop.permute.xlu0 %142
    %v145 = vperm.slane %v105, 1
    %v146 = vperm.slane %v105, 5
    %v147 = vperm.slane %v106, 1
    %v148 = vperm.slane %v106, 5
    %v149 = vperm.slane %v107, 1
    %v155 = vperm.slane %v145, 1
    %v156 = vperm.slane %v146, 1
    %v157 = vperm.slane %v147, 1
    %v158 = vperm.slane %v148, 1
    %v159 = vperm.slane %v149, 1
    %v160 = vmul.f32 %v143, %v155
    %v161 = vmul.f32 %v143, %v156
    %v162 = vmul.f32 %v143, %v157
    %v163 = vmul.f32 %v143, %v158
    %v164 = vmul.f32 %v143, %v159
    %v165 = vadd.f32 %v136, %v160
    %v166 = vadd.f32 %v137, %v161
    %v167 = vadd.f32 %v138, %v162
    %v168 = vadd.f32 %v139, %v163
    %v169 = vadd.f32 %v140, %v164
    %170 = vset.pattern.permute.xlu0 2
    %171 = vperm.xlu0 %170, %v72
    %v172 = vpop.permute.xlu0 %171
    %v174 = vperm.slane %v105, 2
    %v175 = vperm.slane %v105, 6
    %v176 = vperm.slane %v106, 2
    %v177 = vperm.slane %v106, 6
    %v178 = vperm.slane %v107, 2
    %v184 = vperm.slane %v174, 2
    %v185 = vperm.slane %v175, 2
    %v186 = vperm.slane %v176, 2
    %v187 = vperm.slane %v177, 2
    %v188 = vperm.slane %v178, 2
    %v189 = vmul.f32 %v172, %v184
    %v190 = vmul.f32 %v172, %v185
    %v191 = vmul.f32 %v172, %v186
    %v192 = vmul.f32 %v172, %v187
    %v193 = vmul.f32 %v172, %v188
    %v194 = vadd.f32 %v165, %v189
    %v195 = vadd.f32 %v166, %v190
    %v196 = vadd.f32 %v167, %v191
    %v197 = vadd.f32 %v168, %v192
    %v198 = vadd.f32 %v169, %v193
    %v199 = vperm.slane %v60, 1
    %v200 = vperm.slane %v61, 1
    %v201 = vperm.slane %v62, 1
    %v202 = vperm.slane %v63, 1
    %v207 = vrot.slane %v200, 4
    %v208 = vrot.slane %v202, 4
    %v209 = vsel %vm89, %v199, %v207
    %v210 = vsel %vm89, %v201, %v208
    %211 = vrot.lane.b32.xlu0 %v209, 112
    %v212 = vpop.permute.xlu0 %211
    %213 = vrot.lane.b32.xlu0 %v210, 112
    %v214 = vpop.permute.xlu0 %213
    %v215 = vrot.slane %v212, 4
    %v216 = vrot.slane %v214, 4
    %vm217 = vcmask 916480
    %v218 = vsel %vm217, %v215, %v212
    %v219 = vsel %vm89, %v215, %v216
    %v220 = vsel %vm217, %v219, %v214
    %v224 = vmul.f32 %v76, %v218
    %v225 = vmul.f32 %v77, %v220
    %v226 = vmul.f32 %v78, %v216
    %227 = vset.pattern.permute.xlu0 3
    %228 = vperm.xlu0 %227, %v72
    %v229 = vpop.permute.xlu0 %228
    %v234 = vperm.slane %v224, 0
    %v235 = vperm.slane %v224, 4
    %v236 = vperm.slane %v225, 0
    %v237 = vperm.slane %v225, 4
    %v238 = vperm.slane %v226, 0
    %v244 = vperm.slane %v234, 0
    %v245 = vperm.slane %v235, 0
    %v246 = vperm.slane %v236, 0
    %v247 = vperm.slane %v237, 0
    %v248 = vperm.slane %v238, 0
    %v249 = vmul.f32 %v229, %v244
    %v250 = vmul.f32 %v229, %v245
    %v251 = vmul.f32 %v229, %v246
    %v252 = vmul.f32 %v229, %v247
    %v253 = vmul.f32 %v229, %v248
    %259 = vrot.lane.b32.xlu0 %v249, 127
    %v260 = vpop.permute.xlu0 %259
    %261 = vrot.lane.b32.xlu0 %v250, 127
    %v262 = vpop.permute.xlu0 %261
    %263 = vrot.lane.b32.xlu0 %v251, 127
    %v264 = vpop.permute.xlu0 %263
    %265 = vrot.lane.b32.xlu0 %v252, 127
    %v266 = vpop.permute.xlu0 %265
    %267 = vrot.lane.b32.xlu0 %v253, 127
    %v268 = vpop.permute.xlu0 %267
    %vm269 = vcmask 1039360
    %v270 = vsel %vm269, %v260, %v262
    %v271 = vsel %vm269, %v262, %v264
    %v272 = vsel %vm269, %v264, %v266
    %v273 = vsel %vm269, %v266, %v268
    %v279 = vadd.f32 %v194, %v270
    %v280 = vadd.f32 %v195, %v271
    %v281 = vadd.f32 %v196, %v272
    %v282 = vadd.f32 %v197, %v273
    %v283 = vadd.f32 %v198, %v268
    %284 = vset.pattern.permute.xlu0 4
    %285 = vperm.xlu0 %284, %v72
    %v286 = vpop.permute.xlu0 %285
    %v288 = vperm.slane %v224, 1
    %v289 = vperm.slane %v224, 5
    %v290 = vperm.slane %v225, 1
    %v291 = vperm.slane %v225, 5
    %v292 = vperm.slane %v226, 1
    %v298 = vperm.slane %v288, 1
    %v299 = vperm.slane %v289, 1
    %v300 = vperm.slane %v290, 1
    %v301 = vperm.slane %v291, 1
    %v302 = vperm.slane %v292, 1
    %v303 = vmul.f32 %v286, %v298
    %v304 = vmul.f32 %v286, %v299
    %v305 = vmul.f32 %v286, %v300
    %v306 = vmul.f32 %v286, %v301
    %v307 = vmul.f32 %v286, %v302
    %313 = vrot.lane.b32.xlu0 %v303, 127
    %v314 = vpop.permute.xlu0 %313
    %315 = vrot.lane.b32.xlu0 %v304, 127
    %v316 = vpop.permute.xlu0 %315
    %317 = vrot.lane.b32.xlu0 %v305, 127
    %v318 = vpop.permute.xlu0 %317
    %319 = vrot.lane.b32.xlu0 %v306, 127
    %v320 = vpop.permute.xlu0 %319
    %321 = vrot.lane.b32.xlu0 %v307, 127
    %v322 = vpop.permute.xlu0 %321
    %v323 = vsel %vm269, %v314, %v316
    %v324 = vsel %vm269, %v316, %v318
    %v325 = vsel %vm269, %v318, %v320
    %v326 = vsel %vm269, %v320, %v322
    %v332 = vadd.f32 %v279, %v323
    %v333 = vadd.f32 %v280, %v324
    %v334 = vadd.f32 %v281, %v325
    %v335 = vadd.f32 %v282, %v326
    %v336 = vadd.f32 %v283, %v322
    %337 = vset.pattern.permute.xlu0 5
    %338 = vperm.xlu0 %337, %v72
    %v339 = vpop.permute.xlu0 %338
    %v341 = vperm.slane %v224, 2
    %v342 = vperm.slane %v224, 6
    %v343 = vperm.slane %v225, 2
    %v344 = vperm.slane %v225, 6
    %v345 = vperm.slane %v226, 2
    %v351 = vperm.slane %v341, 2
    %v352 = vperm.slane %v342, 2
    %v353 = vperm.slane %v343, 2
    %v354 = vperm.slane %v344, 2
    %v355 = vperm.slane %v345, 2
    %v356 = vmul.f32 %v339, %v351
    %v357 = vmul.f32 %v339, %v352
    %v358 = vmul.f32 %v339, %v353
    %v359 = vmul.f32 %v339, %v354
    %v360 = vmul.f32 %v339, %v355
    %366 = vrot.lane.b32.xlu0 %v356, 127
    %v367 = vpop.permute.xlu0 %366
    %368 = vrot.lane.b32.xlu0 %v357, 127
    %v369 = vpop.permute.xlu0 %368
    %370 = vrot.lane.b32.xlu0 %v358, 127
    %v371 = vpop.permute.xlu0 %370
    %372 = vrot.lane.b32.xlu0 %v359, 127
    %v373 = vpop.permute.xlu0 %372
    %374 = vrot.lane.b32.xlu0 %v360, 127
    %v375 = vpop.permute.xlu0 %374
    %v376 = vsel %vm269, %v367, %v369
    %v377 = vsel %vm269, %v369, %v371
    %v378 = vsel %vm269, %v371, %v373
    %v379 = vsel %vm269, %v373, %v375
    %v385 = vadd.f32 %v332, %v376
    %v386 = vadd.f32 %v333, %v377
    %v387 = vadd.f32 %v334, %v378
    %v388 = vadd.f32 %v335, %v379
    %v389 = vadd.f32 %v336, %v375
    %v390 = vperm.slane %v60, 2
    %v391 = vperm.slane %v61, 2
    %v392 = vperm.slane %v62, 2
    %v393 = vperm.slane %v63, 2
    %v398 = vrot.slane %v391, 4
    %v399 = vrot.slane %v393, 4
    %v400 = vsel %vm89, %v390, %v398
    %v401 = vsel %vm89, %v392, %v399
    %402 = vrot.lane.b32.xlu0 %v400, 113
    %v403 = vpop.permute.xlu0 %402
    %404 = vrot.lane.b32.xlu0 %v401, 113
    %v405 = vpop.permute.xlu0 %404
    %v406 = vrot.slane %v403, 4
    %v407 = vrot.slane %v405, 4
    %vm408 = vcmask 924672
    %v409 = vsel %vm408, %v406, %v403
    %v410 = vsel %vm89, %v406, %v407
    %v411 = vsel %vm408, %v410, %v405
    %v415 = vmul.f32 %v76, %v409
    %v416 = vmul.f32 %v77, %v411
    %v417 = vmul.f32 %v78, %v407
    %418 = vset.pattern.permute.xlu0 6
    %419 = vperm.xlu0 %418, %v72
    %v420 = vpop.permute.xlu0 %419
    %v425 = vperm.slane %v415, 0
    %v426 = vperm.slane %v415, 4
    %v427 = vperm.slane %v416, 0
    %v428 = vperm.slane %v416, 4
    %v429 = vperm.slane %v417, 0
    %v435 = vperm.slane %v425, 0
    %v436 = vperm.slane %v426, 0
    %v437 = vperm.slane %v427, 0
    %v438 = vperm.slane %v428, 0
    %v439 = vperm.slane %v429, 0
    %v440 = vmul.f32 %v420, %v435
    %v441 = vmul.f32 %v420, %v436
    %v442 = vmul.f32 %v420, %v437
    %v443 = vmul.f32 %v420, %v438
    %v444 = vmul.f32 %v420, %v439
    %450 = vrot.lane.b32.xlu0 %v440, 126
    %v451 = vpop.permute.xlu0 %450
    %452 = vrot.lane.b32.xlu0 %v441, 126
    %v453 = vpop.permute.xlu0 %452
    %454 = vrot.lane.b32.xlu0 %v442, 126
    %v455 = vpop.permute.xlu0 %454
    %456 = vrot.lane.b32.xlu0 %v443, 126
    %v457 = vpop.permute.xlu0 %456
    %458 = vrot.lane.b32.xlu0 %v444, 126
    %v459 = vpop.permute.xlu0 %458
    %vm460 = vcmask 1031168
    %v461 = vsel %vm460, %v451, %v453
    %v462 = vsel %vm460, %v453, %v455
    %v463 = vsel %vm460, %v455, %v457
    %v464 = vsel %vm460, %v457, %v459
    %v470 = vadd.f32 %v385, %v461
    %v471 = vadd.f32 %v386, %v462
    %v472 = vadd.f32 %v387, %v463
    %v473 = vadd.f32 %v388, %v464
    %v474 = vadd.f32 %v389, %v459
    %475 = vset.pattern.permute.xlu0 7
    %476 = vperm.xlu0 %475, %v72
    %v477 = vpop.permute.xlu0 %476
    %v479 = vperm.slane %v415, 1
    %v480 = vperm.slane %v415, 5
    %v481 = vperm.slane %v416, 1
    %v482 = vperm.slane %v416, 5
    %v483 = vperm.slane %v417, 1
    %v489 = vperm.slane %v479, 1
    %v490 = vperm.slane %v480, 1
    %v491 = vperm.slane %v481, 1
    %v492 = vperm.slane %v482, 1
    %v493 = vperm.slane %v483, 1
    %v494 = vmul.f32 %v477, %v489
    %v495 = vmul.f32 %v477, %v490
    %v496 = vmul.f32 %v477, %v491
    %v497 = vmul.f32 %v477, %v492
    %v498 = vmul.f32 %v477, %v493
    %504 = vrot.lane.b32.xlu0 %v494, 126
    %v505 = vpop.permute.xlu0 %504
    %506 = vrot.lane.b32.xlu0 %v495, 126
    %v507 = vpop.permute.xlu0 %506
    %508 = vrot.lane.b32.xlu0 %v496, 126
    %v509 = vpop.permute.xlu0 %508
    %510 = vrot.lane.b32.xlu0 %v497, 126
    %v511 = vpop.permute.xlu0 %510
    %512 = vrot.lane.b32.xlu0 %v498, 126
    %v513 = vpop.permute.xlu0 %512
    %v514 = vsel %vm460, %v505, %v507
    %v515 = vsel %vm460, %v507, %v509
    %v516 = vsel %vm460, %v509, %v511
    %v517 = vsel %vm460, %v511, %v513
    %v523 = vadd.f32 %v470, %v514
    %v524 = vadd.f32 %v471, %v515
    %v525 = vadd.f32 %v472, %v516
    %v526 = vadd.f32 %v473, %v517
    %v527 = vadd.f32 %v474, %v513
    %528 = vset.pattern.permute.xlu0 8
    %529 = vperm.xlu0 %528, %v72
    %v530 = vpop.permute.xlu0 %529
    %v532 = vperm.slane %v415, 2
    %v533 = vperm.slane %v415, 6
    %v534 = vperm.slane %v416, 2
    %v535 = vperm.slane %v416, 6
    %v536 = vperm.slane %v417, 2
    %v542 = vperm.slane %v532, 2
    %v543 = vperm.slane %v533, 2
    %v544 = vperm.slane %v534, 2
    %v545 = vperm.slane %v535, 2
    %v546 = vperm.slane %v536, 2
    %v547 = vmul.f32 %v530, %v542
    %v548 = vmul.f32 %v530, %v543
    %v549 = vmul.f32 %v530, %v544
    %v550 = vmul.f32 %v530, %v545
    %v551 = vmul.f32 %v530, %v546
    %557 = vrot.lane.b32.xlu0 %v547, 126
    %v558 = vpop.permute.xlu0 %557
    %559 = vrot.lane.b32.xlu0 %v548, 126
    %v560 = vpop.permute.xlu0 %559
    %561 = vrot.lane.b32.xlu0 %v549, 126
    %v562 = vpop.permute.xlu0 %561
    %563 = vrot.lane.b32.xlu0 %v550, 126
    %v564 = vpop.permute.xlu0 %563
    %565 = vrot.lane.b32.xlu0 %v551, 126
    %v566 = vpop.permute.xlu0 %565
    %v567 = vsel %vm460, %v558, %v560
    %v568 = vsel %vm460, %v560, %v562
    %v569 = vsel %vm460, %v562, %v564
    %v570 = vsel %vm460, %v564, %v566
    %v576 = vadd.f32 %v523, %v567
    %v577 = vadd.f32 %v524, %v568
    %v578 = vadd.f32 %v525, %v569
    %v579 = vadd.f32 %v526, %v570
    %v580 = vadd.f32 %v527, %v566
    %v581 = vperm.slane %v60, 3
    %v582 = vperm.slane %v61, 3
    %v583 = vperm.slane %v62, 3
    %v584 = vperm.slane %v63, 3
    %v589 = vrot.slane %v582, 4
    %v590 = vrot.slane %v584, 4
    %v591 = vsel %vm89, %v581, %v589
    %v592 = vsel %vm89, %v583, %v590
    %593 = vrot.lane.b32.xlu0 %v591, 127
    %v594 = vpop.permute.xlu0 %593
    %595 = vrot.lane.b32.xlu0 %v592, 127
    %v596 = vpop.permute.xlu0 %595
    %v597 = vrot.slane %v594, 4
    %v598 = vrot.slane %v596, 4
    %v599 = vsel %vm269, %v597, %v594
    %v600 = vsel %vm89, %v597, %v598
    %v601 = vsel %vm269, %v600, %v596
    %v605 = vmul.f32 %v76, %v599
    %v606 = vmul.f32 %v77, %v601
    %v607 = vmul.f32 %v78, %v598
    %608 = vset.pattern.permute.xlu0 9
    %609 = vperm.xlu0 %608, %v72
    %v610 = vpop.permute.xlu0 %609
    %v615 = vperm.slane %v605, 0
    %v616 = vperm.slane %v605, 4
    %v617 = vperm.slane %v606, 0
    %v618 = vperm.slane %v606, 4
    %v619 = vperm.slane %v607, 0
    %v625 = vperm.slane %v615, 0
    %v626 = vperm.slane %v616, 0
    %v627 = vperm.slane %v617, 0
    %v628 = vperm.slane %v618, 0
    %v629 = vperm.slane %v619, 0
    %v630 = vmul.f32 %v610, %v625
    %v631 = vmul.f32 %v610, %v626
    %v632 = vmul.f32 %v610, %v627
    %v633 = vmul.f32 %v610, %v628
    %v634 = vmul.f32 %v610, %v629
    %640 = vrot.lane.b32.xlu0 %v630, 112
    %v641 = vpop.permute.xlu0 %640
    %642 = vrot.lane.b32.xlu0 %v631, 112
    %v643 = vpop.permute.xlu0 %642
    %644 = vrot.lane.b32.xlu0 %v632, 112
    %v645 = vpop.permute.xlu0 %644
    %646 = vrot.lane.b32.xlu0 %v633, 112
    %v647 = vpop.permute.xlu0 %646
    %648 = vrot.lane.b32.xlu0 %v634, 112
    %v649 = vpop.permute.xlu0 %648
    %v650 = vsel %vm217, %v641, %v643
    %v651 = vsel %vm217, %v643, %v645
    %v652 = vsel %vm217, %v645, %v647
    %v653 = vsel %vm217, %v647, %v649
    %v659 = vadd.f32 %v576, %v650
    %v660 = vadd.f32 %v577, %v651
    %v661 = vadd.f32 %v578, %v652
    %v662 = vadd.f32 %v579, %v653
    %v663 = vadd.f32 %v580, %v649
    %664 = vset.pattern.permute.xlu0 10
    %665 = vperm.xlu0 %664, %v72
    %v666 = vpop.permute.xlu0 %665
    %v668 = vperm.slane %v605, 1
    %v669 = vperm.slane %v605, 5
    %v670 = vperm.slane %v606, 1
    %v671 = vperm.slane %v606, 5
    %v672 = vperm.slane %v607, 1
    %v678 = vperm.slane %v668, 1
    %v679 = vperm.slane %v669, 1
    %v680 = vperm.slane %v670, 1
    %v681 = vperm.slane %v671, 1
    %v682 = vperm.slane %v672, 1
    %v683 = vmul.f32 %v666, %v678
    %v684 = vmul.f32 %v666, %v679
    %v685 = vmul.f32 %v666, %v680
    %v686 = vmul.f32 %v666, %v681
    %v687 = vmul.f32 %v666, %v682
    %693 = vrot.lane.b32.xlu0 %v683, 112
    %v694 = vpop.permute.xlu0 %693
    %695 = vrot.lane.b32.xlu0 %v684, 112
    %v696 = vpop.permute.xlu0 %695
    %697 = vrot.lane.b32.xlu0 %v685, 112
    %v698 = vpop.permute.xlu0 %697
    %699 = vrot.lane.b32.xlu0 %v686, 112
    %v700 = vpop.permute.xlu0 %699
    %701 = vrot.lane.b32.xlu0 %v687, 112
    %v702 = vpop.permute.xlu0 %701
    %v703 = vsel %vm217, %v694, %v696
    %v704 = vsel %vm217, %v696, %v698
    %v705 = vsel %vm217, %v698, %v700
    %v706 = vsel %vm217, %v700, %v702
    %v712 = vadd.f32 %v659, %v703
    %v713 = vadd.f32 %v660, %v704
    %v714 = vadd.f32 %v661, %v705
    %v715 = vadd.f32 %v662, %v706
    %v716 = vadd.f32 %v663, %v702
    %717 = vset.pattern.permute.xlu0 11
    %718 = vperm.xlu0 %717, %v72
    %v719 = vpop.permute.xlu0 %718
    %v721 = vperm.slane %v605, 2
    %v722 = vperm.slane %v605, 6
    %v723 = vperm.slane %v606, 2
    %v724 = vperm.slane %v606, 6
    %v725 = vperm.slane %v607, 2
    %v731 = vperm.slane %v721, 2
    %v732 = vperm.slane %v722, 2
    %v733 = vperm.slane %v723, 2
    %v734 = vperm.slane %v724, 2
    %v735 = vperm.slane %v725, 2
    %v736 = vmul.f32 %v719, %v731
    %v737 = vmul.f32 %v719, %v732
    %v738 = vmul.f32 %v719, %v733
    %v739 = vmul.f32 %v719, %v734
    %v740 = vmul.f32 %v719, %v735
    %746 = vrot.lane.b32.xlu0 %v736, 112
    %v747 = vpop.permute.xlu0 %746
    %748 = vrot.lane.b32.xlu0 %v737, 112
    %v749 = vpop.permute.xlu0 %748
    %750 = vrot.lane.b32.xlu0 %v738, 112
    %v751 = vpop.permute.xlu0 %750
    %752 = vrot.lane.b32.xlu0 %v739, 112
    %v753 = vpop.permute.xlu0 %752
    %754 = vrot.lane.b32.xlu0 %v740, 112
    %v755 = vpop.permute.xlu0 %754
    %v756 = vsel %vm217, %v747, %v749
    %v757 = vsel %vm217, %v749, %v751
    %v758 = vsel %vm217, %v751, %v753
    %v759 = vsel %vm217, %v753, %v755
    %v765 = vadd.f32 %v712, %v756
    %v766 = vadd.f32 %v713, %v757
    %v767 = vadd.f32 %v714, %v758
    %v768 = vadd.f32 %v715, %v759
    %v769 = vadd.f32 %v716, %v755
    %v770 = vperm.slane %v60, 4
    %v771 = vperm.slane %v61, 4
    %v772 = vperm.slane %v62, 4
    %v773 = vperm.slane %v63, 4
    %v777 = vrot.slane %v76, 4
    %v778 = vrot.slane %v77, 4
    %v779 = vrot.slane %v78, 4
    %v780 = vsel %vm89, %v777, %v778
    %v781 = vsel %vm89, %v778, %v779
    %v788 = vrot.slane %v771, 4
    %v789 = vrot.slane %v773, 4
    %v790 = vsel %vm89, %v770, %v788
    %v791 = vsel %vm89, %v772, %v789
    %v794 = vmul.f32 %v780, %v790
    %v795 = vmul.f32 %v781, %v791
    %796 = vset.pattern.permute.xlu0 12
    %797 = vperm.xlu0 %796, %v72
    %v798 = vpop.permute.xlu0 %797
    %v802 = vperm.slane %v794, 0
    %v803 = vperm.slane %v794, 4
    %v804 = vperm.slane %v795, 0
    %v805 = vperm.slane %v795, 4
    %v810 = vperm.slane %v802, 0
    %v811 = vperm.slane %v803, 0
    %v812 = vperm.slane %v804, 0
    %v813 = vperm.slane %v805, 0
    %v814 = vmul.f32 %v798, %v810
    %v815 = vmul.f32 %v798, %v811
    %v816 = vmul.f32 %v798, %v812
    %v817 = vmul.f32 %v798, %v813
    %822 = vrot.lane.b32.xlu0 %v814, 111
    %v823 = vpop.permute.xlu0 %822
    %824 = vrot.lane.b32.xlu0 %v815, 111
    %v825 = vpop.permute.xlu0 %824
    %826 = vrot.lane.b32.xlu0 %v816, 111
    %v827 = vpop.permute.xlu0 %826
    %828 = vrot.lane.b32.xlu0 %v817, 111
    %v829 = vpop.permute.xlu0 %828
    %v830 = vsel %vm98, %v823, %v825
    %v831 = vsel %vm98, %v825, %v827
    %v832 = vsel %vm98, %v827, %v829
    %v838 = vadd.f32 %v765, %v823
    %v839 = vadd.f32 %v766, %v830
    %v840 = vadd.f32 %v767, %v831
    %v841 = vadd.f32 %v768, %v832
    %v842 = vadd.f32 %v769, %v829
    %843 = vset.pattern.permute.xlu0 13
    %844 = vperm.xlu0 %843, %v72
    %v845 = vpop.permute.xlu0 %844
    %v847 = vperm.slane %v794, 1
    %v848 = vperm.slane %v794, 5
    %v849 = vperm.slane %v795, 1
    %v850 = vperm.slane %v795, 5
    %v855 = vperm.slane %v847, 1
    %v856 = vperm.slane %v848, 1
    %v857 = vperm.slane %v849, 1
    %v858 = vperm.slane %v850, 1
    %v859 = vmul.f32 %v845, %v855
    %v860 = vmul.f32 %v845, %v856
    %v861 = vmul.f32 %v845, %v857
    %v862 = vmul.f32 %v845, %v858
    %867 = vrot.lane.b32.xlu0 %v859, 111
    %v868 = vpop.permute.xlu0 %867
    %869 = vrot.lane.b32.xlu0 %v860, 111
    %v870 = vpop.permute.xlu0 %869
    %871 = vrot.lane.b32.xlu0 %v861, 111
    %v872 = vpop.permute.xlu0 %871
    %873 = vrot.lane.b32.xlu0 %v862, 111
    %v874 = vpop.permute.xlu0 %873
    %v875 = vsel %vm98, %v868, %v870
    %v876 = vsel %vm98, %v870, %v872
    %v877 = vsel %vm98, %v872, %v874
    %v883 = vadd.f32 %v838, %v868
    %v884 = vadd.f32 %v839, %v875
    %v885 = vadd.f32 %v840, %v876
    %v886 = vadd.f32 %v841, %v877
    %v887 = vadd.f32 %v842, %v874
    %888 = vset.pattern.permute.xlu0 14
    %889 = vperm.xlu0 %888, %v72
    %v890 = vpop.permute.xlu0 %889
    %v892 = vperm.slane %v794, 2
    %v893 = vperm.slane %v794, 6
    %v894 = vperm.slane %v795, 2
    %v895 = vperm.slane %v795, 6
    %v900 = vperm.slane %v892, 2
    %v901 = vperm.slane %v893, 2
    %v902 = vperm.slane %v894, 2
    %v903 = vperm.slane %v895, 2
    %v904 = vmul.f32 %v890, %v900
    %v905 = vmul.f32 %v890, %v901
    %v906 = vmul.f32 %v890, %v902
    %v907 = vmul.f32 %v890, %v903
    %912 = vrot.lane.b32.xlu0 %v904, 111
    %v913 = vpop.permute.xlu0 %912
    %914 = vrot.lane.b32.xlu0 %v905, 111
    %v915 = vpop.permute.xlu0 %914
    %916 = vrot.lane.b32.xlu0 %v906, 111
    %v917 = vpop.permute.xlu0 %916
    %918 = vrot.lane.b32.xlu0 %v907, 111
    %v919 = vpop.permute.xlu0 %918
    %v920 = vsel %vm98, %v913, %v915
    %v921 = vsel %vm98, %v915, %v917
    %v922 = vsel %vm98, %v917, %v919
    %v928 = vadd.f32 %v883, %v913
    %v929 = vadd.f32 %v884, %v920
    %v930 = vadd.f32 %v885, %v921
    %v931 = vadd.f32 %v886, %v922
    %v932 = vadd.f32 %v887, %v919
    %v933 = vperm.slane %v60, 5
    %v934 = vperm.slane %v61, 5
    %v935 = vperm.slane %v62, 5
    %v936 = vperm.slane %v63, 5
    %937 = vrot.lane.b32.xlu0 %v76, 127
    %v938 = vpop.permute.xlu0 %937
    %939 = vrot.lane.b32.xlu0 %v77, 127
    %v940 = vpop.permute.xlu0 %939
    %941 = vrot.lane.b32.xlu0 %v78, 127
    %v942 = vpop.permute.xlu0 %941
    %v943 = vrot.slane %v938, 4
    %v944 = vrot.slane %v940, 4
    %v945 = vrot.slane %v942, 4
    %v946 = vsel %vm89, %v943, %v944
    %v947 = vsel %vm269, %v946, %v940
    %v948 = vsel %vm89, %v944, %v945
    %v949 = vsel %vm269, %v948, %v942
    %v956 = vrot.slane %v934, 4
    %v957 = vrot.slane %v936, 4
    %v958 = vsel %vm89, %v933, %v956
    %v959 = vsel %vm89, %v935, %v957
    %v962 = vmul.f32 %v947, %v958
    %v963 = vmul.f32 %v949, %v959
    %964 = vset.pattern.permute.xlu0 15
    %965 = vperm.xlu0 %964, %v72
    %v966 = vpop.permute.xlu0 %965
    %v970 = vperm.slane %v962, 0
    %v971 = vperm.slane %v962, 4
    %v972 = vperm.slane %v963, 0
    %v973 = vperm.slane %v963, 4
    %v978 = vperm.slane %v970, 0
    %v979 = vperm.slane %v971, 0
    %v980 = vperm.slane %v972, 0
    %v981 = vperm.slane %v973, 0
    %v982 = vmul.f32 %v966, %v978
    %v983 = vmul.f32 %v966, %v979
    %v984 = vmul.f32 %v966, %v980
    %v985 = vmul.f32 %v966, %v981
    %990 = vrot.lane.b32.xlu0 %v982, 111
    %v991 = vpop.permute.xlu0 %990
    %992 = vrot.lane.b32.xlu0 %v983, 111
    %v993 = vpop.permute.xlu0 %992
    %994 = vrot.lane.b32.xlu0 %v984, 111
    %v995 = vpop.permute.xlu0 %994
    %996 = vrot.lane.b32.xlu0 %v985, 111
    %v997 = vpop.permute.xlu0 %996
    %v998 = vsel %vm98, %v991, %v993
    %v999 = vsel %vm98, %v993, %v995
    %v1000 = vsel %vm98, %v995, %v997
    %v1006 = vadd.f32 %v928, %v991
    %v1007 = vadd.f32 %v929, %v998
    %v1008 = vadd.f32 %v930, %v999
    %v1009 = vadd.f32 %v931, %v1000
    %v1010 = vadd.f32 %v932, %v997
    %1011 = vset.pattern.permute.xlu0 16
    %1012 = vperm.xlu0 %1011, %v72
    %v1013 = vpop.permute.xlu0 %1012
    %v1015 = vperm.slane %v962, 1
    %v1016 = vperm.slane %v962, 5
    %v1017 = vperm.slane %v963, 1
    %v1018 = vperm.slane %v963, 5
    %v1023 = vperm.slane %v1015, 1
    %v1024 = vperm.slane %v1016, 1
    %v1025 = vperm.slane %v1017, 1
    %v1026 = vperm.slane %v1018, 1
    %v1027 = vmul.f32 %v1013, %v1023
    %v1028 = vmul.f32 %v1013, %v1024
    %v1029 = vmul.f32 %v1013, %v1025
    %v1030 = vmul.f32 %v1013, %v1026
    %1035 = vrot.lane.b32.xlu0 %v1027, 111
    %v1036 = vpop.permute.xlu0 %1035
    %1037 = vrot.lane.b32.xlu0 %v1028, 111
    %v1038 = vpop.permute.xlu0 %1037
    %1039 = vrot.lane.b32.xlu0 %v1029, 111
    %v1040 = vpop.permute.xlu0 %1039
    %1041 = vrot.lane.b32.xlu0 %v1030, 111
    %v1042 = vpop.permute.xlu0 %1041
    %v1043 = vsel %vm98, %v1036, %v1038
    %v1044 = vsel %vm98, %v1038, %v1040
    %v1045 = vsel %vm98, %v1040, %v1042
    %v1051 = vadd.f32 %v1006, %v1036
    %v1052 = vadd.f32 %v1007, %v1043
    %v1053 = vadd.f32 %v1008, %v1044
    %v1054 = vadd.f32 %v1009, %v1045
    %v1055 = vadd.f32 %v1010, %v1042
    %1056 = vset.pattern.permute.xlu0 17
    %1057 = vperm.xlu0 %1056, %v72
    %v1058 = vpop.permute.xlu0 %1057
    %v1060 = vperm.slane %v962, 2
    %v1061 = vperm.slane %v962, 6
    %v1062 = vperm.slane %v963, 2
    %v1063 = vperm.slane %v963, 6
    %v1068 = vperm.slane %v1060, 2
    %v1069 = vperm.slane %v1061, 2
    %v1070 = vperm.slane %v1062, 2
    %v1071 = vperm.slane %v1063, 2
    %v1072 = vmul.f32 %v1058, %v1068
    %v1073 = vmul.f32 %v1058, %v1069
    %v1074 = vmul.f32 %v1058, %v1070
    %v1075 = vmul.f32 %v1058, %v1071
    %1080 = vrot.lane.b32.xlu0 %v1072, 111
    %v1081 = vpop.permute.xlu0 %1080
    %1082 = vrot.lane.b32.xlu0 %v1073, 111
    %v1083 = vpop.permute.xlu0 %1082
    %1084 = vrot.lane.b32.xlu0 %v1074, 111
    %v1085 = vpop.permute.xlu0 %1084
    %1086 = vrot.lane.b32.xlu0 %v1075, 111
    %v1087 = vpop.permute.xlu0 %1086
    %v1088 = vsel %vm98, %v1081, %v1083
    %v1089 = vsel %vm98, %v1083, %v1085
    %v1090 = vsel %vm98, %v1085, %v1087
    %v1096 = vadd.f32 %v1051, %v1081
    %v1097 = vadd.f32 %v1052, %v1088
    %v1098 = vadd.f32 %v1053, %v1089
    %v1099 = vadd.f32 %v1054, %v1090
    %v1100 = vadd.f32 %v1055, %v1087
    %v1101 = vperm.slane %v60, 6
    %v1102 = vperm.slane %v61, 6
    %v1103 = vperm.slane %v62, 6
    %v1104 = vperm.slane %v63, 6
    %1105 = vrot.lane.b32.xlu0 %v76, 113
    %v1106 = vpop.permute.xlu0 %1105
    %1107 = vrot.lane.b32.xlu0 %v77, 113
    %v1108 = vpop.permute.xlu0 %1107
    %1109 = vrot.lane.b32.xlu0 %v78, 113
    %v1110 = vpop.permute.xlu0 %1109
    %v1111 = vrot.slane %v1106, 4
    %v1112 = vrot.slane %v1108, 4
    %v1113 = vrot.slane %v1110, 4
    %v1114 = vsel %vm89, %v1111, %v1112
    %v1115 = vsel %vm408, %v1114, %v1108
    %v1116 = vsel %vm89, %v1112, %v1113
    %v1117 = vsel %vm408, %v1116, %v1110
    %v1124 = vrot.slane %v1102, 4
    %v1125 = vrot.slane %v1104, 4
    %v1126 = vsel %vm89, %v1101, %v1124
    %v1127 = vsel %vm89, %v1103, %v1125
    %v1130 = vmul.f32 %v1115, %v1126
    %v1131 = vmul.f32 %v1117, %v1127
    %1132 = vset.pattern.permute.xlu0 18
    %1133 = vperm.xlu0 %1132, %v72
    %v1134 = vpop.permute.xlu0 %1133
    %v1138 = vperm.slane %v1130, 0
    %v1139 = vperm.slane %v1130, 4
    %v1140 = vperm.slane %v1131, 0
    %v1141 = vperm.slane %v1131, 4
    %v1146 = vperm.slane %v1138, 0
    %v1147 = vperm.slane %v1139, 0
    %v1148 = vperm.slane %v1140, 0
    %v1149 = vperm.slane %v1141, 0
    %v1150 = vmul.f32 %v1134, %v1146
    %v1151 = vmul.f32 %v1134, %v1147
    %v1152 = vmul.f32 %v1134, %v1148
    %v1153 = vmul.f32 %v1134, %v1149
    %1158 = vrot.lane.b32.xlu0 %v1150, 111
    %v1159 = vpop.permute.xlu0 %1158
    %1160 = vrot.lane.b32.xlu0 %v1151, 111
    %v1161 = vpop.permute.xlu0 %1160
    %1162 = vrot.lane.b32.xlu0 %v1152, 111
    %v1163 = vpop.permute.xlu0 %1162
    %1164 = vrot.lane.b32.xlu0 %v1153, 111
    %v1165 = vpop.permute.xlu0 %1164
    %v1166 = vsel %vm98, %v1159, %v1161
    %v1167 = vsel %vm98, %v1161, %v1163
    %v1168 = vsel %vm98, %v1163, %v1165
    %v1174 = vadd.f32 %v1096, %v1159
    %v1175 = vadd.f32 %v1097, %v1166
    %v1176 = vadd.f32 %v1098, %v1167
    %v1177 = vadd.f32 %v1099, %v1168
    %v1178 = vadd.f32 %v1100, %v1165
    %1179 = vset.pattern.permute.xlu0 19
    %1180 = vperm.xlu0 %1179, %v72
    %v1181 = vpop.permute.xlu0 %1180
    %v1183 = vperm.slane %v1130, 1
    %v1184 = vperm.slane %v1130, 5
    %v1185 = vperm.slane %v1131, 1
    %v1186 = vperm.slane %v1131, 5
    %v1191 = vperm.slane %v1183, 1
    %v1192 = vperm.slane %v1184, 1
    %v1193 = vperm.slane %v1185, 1
    %v1194 = vperm.slane %v1186, 1
    %v1195 = vmul.f32 %v1181, %v1191
    %v1196 = vmul.f32 %v1181, %v1192
    %v1197 = vmul.f32 %v1181, %v1193
    %v1198 = vmul.f32 %v1181, %v1194
    %1203 = vrot.lane.b32.xlu0 %v1195, 111
    %v1204 = vpop.permute.xlu0 %1203
    %1205 = vrot.lane.b32.xlu0 %v1196, 111
    %v1206 = vpop.permute.xlu0 %1205
    %1207 = vrot.lane.b32.xlu0 %v1197, 111
    %v1208 = vpop.permute.xlu0 %1207
    %1209 = vrot.lane.b32.xlu0 %v1198, 111
    %v1210 = vpop.permute.xlu0 %1209
    %v1211 = vsel %vm98, %v1204, %v1206
    %v1212 = vsel %vm98, %v1206, %v1208
    %v1213 = vsel %vm98, %v1208, %v1210
    %v1219 = vadd.f32 %v1174, %v1204
    %v1220 = vadd.f32 %v1175, %v1211
    %v1221 = vadd.f32 %v1176, %v1212
    %v1222 = vadd.f32 %v1177, %v1213
    %v1223 = vadd.f32 %v1178, %v1210
    %1224 = vset.pattern.permute.xlu0 20
    %1225 = vperm.xlu0 %1224, %v72
    %v1226 = vpop.permute.xlu0 %1225
    %v1228 = vperm.slane %v1130, 2
    %v1229 = vperm.slane %v1130, 6
    %v1230 = vperm.slane %v1131, 2
    %v1231 = vperm.slane %v1131, 6
    %v1236 = vperm.slane %v1228, 2
    %v1237 = vperm.slane %v1229, 2
    %v1238 = vperm.slane %v1230, 2
    %v1239 = vperm.slane %v1231, 2
    %v1240 = vmul.f32 %v1226, %v1236
    %v1241 = vmul.f32 %v1226, %v1237
    %v1242 = vmul.f32 %v1226, %v1238
    %v1243 = vmul.f32 %v1226, %v1239
    %1248 = vrot.lane.b32.xlu0 %v1240, 111
    %v1249 = vpop.permute.xlu0 %1248
    %1250 = vrot.lane.b32.xlu0 %v1241, 111
    %v1251 = vpop.permute.xlu0 %1250
    %1252 = vrot.lane.b32.xlu0 %v1242, 111
    %v1253 = vpop.permute.xlu0 %1252
    %1254 = vrot.lane.b32.xlu0 %v1243, 111
    %v1255 = vpop.permute.xlu0 %1254
    %v1256 = vsel %vm98, %v1249, %v1251
    %v1257 = vsel %vm98, %v1251, %v1253
    %v1258 = vsel %vm98, %v1253, %v1255
    %v1264 = vadd.f32 %v1219, %v1249
    %v1265 = vadd.f32 %v1220, %v1256
    %v1266 = vadd.f32 %v1221, %v1257
    %v1267 = vadd.f32 %v1222, %v1258
    %v1268 = vadd.f32 %v1223, %v1255
    %v1269 = vperm.slane %v60, 7
    %v1270 = vperm.slane %v61, 7
    %v1271 = vperm.slane %v62, 7
    %v1272 = vperm.slane %v63, 7
    %1273 = vrot.lane.b32.xlu0 %v76, 112
    %v1274 = vpop.permute.xlu0 %1273
    %1275 = vrot.lane.b32.xlu0 %v77, 112
    %v1276 = vpop.permute.xlu0 %1275
    %1277 = vrot.lane.b32.xlu0 %v78, 112
    %v1278 = vpop.permute.xlu0 %1277
    %v1279 = vrot.slane %v1274, 4
    %v1280 = vrot.slane %v1276, 4
    %v1281 = vrot.slane %v1278, 4
    %v1282 = vsel %vm89, %v1279, %v1280
    %v1283 = vsel %vm217, %v1282, %v1276
    %v1284 = vsel %vm89, %v1280, %v1281
    %v1285 = vsel %vm217, %v1284, %v1278
    %v1292 = vrot.slane %v1270, 4
    %v1293 = vrot.slane %v1272, 4
    %v1294 = vsel %vm89, %v1269, %v1292
    %v1295 = vsel %vm89, %v1271, %v1293
    %v1298 = vmul.f32 %v1283, %v1294
    %v1299 = vmul.f32 %v1285, %v1295
    %1300 = vset.pattern.permute.xlu0 21
    %1301 = vperm.xlu0 %1300, %v72
    %v1302 = vpop.permute.xlu0 %1301
    %v1306 = vperm.slane %v1298, 0
    %v1307 = vperm.slane %v1298, 4
    %v1308 = vperm.slane %v1299, 0
    %v1309 = vperm.slane %v1299, 4
    %v1314 = vperm.slane %v1306, 0
    %v1315 = vperm.slane %v1307, 0
    %v1316 = vperm.slane %v1308, 0
    %v1317 = vperm.slane %v1309, 0
    %v1318 = vmul.f32 %v1302, %v1314
    %v1319 = vmul.f32 %v1302, %v1315
    %v1320 = vmul.f32 %v1302, %v1316
    %v1321 = vmul.f32 %v1302, %v1317
    %1326 = vrot.lane.b32.xlu0 %v1318, 111
    %v1327 = vpop.permute.xlu0 %1326
    %1328 = vrot.lane.b32.xlu0 %v1319, 111
    %v1329 = vpop.permute.xlu0 %1328
    %1330 = vrot.lane.b32.xlu0 %v1320, 111
    %v1331 = vpop.permute.xlu0 %1330
    %1332 = vrot.lane.b32.xlu0 %v1321, 111
    %v1333 = vpop.permute.xlu0 %1332
    %v1334 = vsel %vm98, %v1327, %v1329
    %v1335 = vsel %vm98, %v1329, %v1331
    %v1336 = vsel %vm98, %v1331, %v1333
    %v1342 = vadd.f32 %v1264, %v1327
    %v1343 = vadd.f32 %v1265, %v1334
    %v1344 = vadd.f32 %v1266, %v1335
    %v1345 = vadd.f32 %v1267, %v1336
    %v1346 = vadd.f32 %v1268, %v1333
    %1347 = vset.pattern.permute.xlu0 22
    %1348 = vperm.xlu0 %1347, %v72
    %v1349 = vpop.permute.xlu0 %1348
    %v1351 = vperm.slane %v1298, 1
    %v1352 = vperm.slane %v1298, 5
    %v1353 = vperm.slane %v1299, 1
    %v1354 = vperm.slane %v1299, 5
    %v1359 = vperm.slane %v1351, 1
    %v1360 = vperm.slane %v1352, 1
    %v1361 = vperm.slane %v1353, 1
    %v1362 = vperm.slane %v1354, 1
    %v1363 = vmul.f32 %v1349, %v1359
    %v1364 = vmul.f32 %v1349, %v1360
    %v1365 = vmul.f32 %v1349, %v1361
    %v1366 = vmul.f32 %v1349, %v1362
    %1371 = vrot.lane.b32.xlu0 %v1363, 111
    %v1372 = vpop.permute.xlu0 %1371
    %1373 = vrot.lane.b32.xlu0 %v1364, 111
    %v1374 = vpop.permute.xlu0 %1373
    %1375 = vrot.lane.b32.xlu0 %v1365, 111
    %v1376 = vpop.permute.xlu0 %1375
    %1377 = vrot.lane.b32.xlu0 %v1366, 111
    %v1378 = vpop.permute.xlu0 %1377
    %v1379 = vsel %vm98, %v1372, %v1374
    %v1380 = vsel %vm98, %v1374, %v1376
    %v1381 = vsel %vm98, %v1376, %v1378
    %v1387 = vadd.f32 %v1342, %v1372
    %v1388 = vadd.f32 %v1343, %v1379
    %v1389 = vadd.f32 %v1344, %v1380
    %v1390 = vadd.f32 %v1345, %v1381
    %v1391 = vadd.f32 %v1346, %v1378
    %1392 = vset.pattern.permute.xlu0 23
    %1393 = vperm.xlu0 %1392, %v72
    %v1394 = vpop.permute.xlu0 %1393
    %v1396 = vperm.slane %v1298, 2
    %v1397 = vperm.slane %v1298, 6
    %v1398 = vperm.slane %v1299, 2
    %v1399 = vperm.slane %v1299, 6
    %v1404 = vperm.slane %v1396, 2
    %v1405 = vperm.slane %v1397, 2
    %v1406 = vperm.slane %v1398, 2
    %v1407 = vperm.slane %v1399, 2
    %v1408 = vmul.f32 %v1394, %v1404
    %v1409 = vmul.f32 %v1394, %v1405
    %v1410 = vmul.f32 %v1394, %v1406
    %v1411 = vmul.f32 %v1394, %v1407
    %1416 = vrot.lane.b32.xlu0 %v1408, 111
    %v1417 = vpop.permute.xlu0 %1416
    %1418 = vrot.lane.b32.xlu0 %v1409, 111
    %v1419 = vpop.permute.xlu0 %1418
    %1420 = vrot.lane.b32.xlu0 %v1410, 111
    %v1421 = vpop.permute.xlu0 %1420
    %1422 = vrot.lane.b32.xlu0 %v1411, 111
    %v1423 = vpop.permute.xlu0 %1422
    %v1424 = vsel %vm98, %v1417, %v1419
    %v1425 = vsel %vm98, %v1419, %v1421
    %v1426 = vsel %vm98, %v1421, %v1423
    %v1432 = vadd.f32 %v1387, %v1417
    %v1433 = vadd.f32 %v1388, %v1424
    %v1434 = vadd.f32 %v1389, %v1425
    %v1435 = vadd.f32 %v1390, %v1426
    %v1436 = vadd.f32 %v1391, %v1423
    %v1437 = vperm.slane %v64, 0
    %v1438 = vperm.slane %v65, 0
    %v1439 = vperm.slane %v66, 0
    %v1440 = vperm.slane %v67, 0
    %1441 = vrot.lane.b32.xlu0 %v76, 111
    %v1442 = vpop.permute.xlu0 %1441
    %1443 = vrot.lane.b32.xlu0 %v77, 111
    %v1444 = vpop.permute.xlu0 %1443
    %1445 = vrot.lane.b32.xlu0 %v78, 111
    %v1446 = vpop.permute.xlu0 %1445
    %v1447 = vrot.slane %v1442, 4
    %v1448 = vrot.slane %v1444, 4
    %v1449 = vrot.slane %v1446, 4
    %v1450 = vsel %vm89, %v1447, %v1448
    %v1451 = vsel %vm98, %v1450, %v1444
    %v1452 = vsel %vm89, %v1448, %v1449
    %v1453 = vsel %vm98, %v1452, %v1446
    %v1460 = vrot.slane %v1438, 4
    %v1461 = vrot.slane %v1440, 4
    %v1462 = vsel %vm89, %v1437, %v1460
    %v1463 = vsel %vm89, %v1439, %v1461
    %v1466 = vmul.f32 %v1451, %v1462
    %v1467 = vmul.f32 %v1453, %v1463
    %1468 = vset.pattern.permute.xlu0 24
    %1469 = vperm.xlu0 %1468, %v72
    %v1470 = vpop.permute.xlu0 %1469
    %v1474 = vperm.slane %v1466, 0
    %v1475 = vperm.slane %v1466, 4
    %v1476 = vperm.slane %v1467, 0
    %v1477 = vperm.slane %v1467, 4
    %v1482 = vperm.slane %v1474, 0
    %v1483 = vperm.slane %v1475, 0
    %v1484 = vperm.slane %v1476, 0
    %v1485 = vperm.slane %v1477, 0
    %v1486 = vmul.f32 %v1470, %v1482
    %v1487 = vmul.f32 %v1470, %v1483
    %v1488 = vmul.f32 %v1470, %v1484
    %v1489 = vmul.f32 %v1470, %v1485
    %1494 = vrot.lane.b32.xlu0 %v1486, 111
    %v1495 = vpop.permute.xlu0 %1494
    %1496 = vrot.lane.b32.xlu0 %v1487, 111
    %v1497 = vpop.permute.xlu0 %1496
    %1498 = vrot.lane.b32.xlu0 %v1488, 111
    %v1499 = vpop.permute.xlu0 %1498
    %1500 = vrot.lane.b32.xlu0 %v1489, 111
    %v1501 = vpop.permute.xlu0 %1500
    %v1502 = vsel %vm98, %v1495, %v1497
    %v1503 = vsel %vm98, %v1497, %v1499
    %v1504 = vsel %vm98, %v1499, %v1501
    %v1510 = vadd.f32 %v1432, %v1495
    %v1511 = vadd.f32 %v1433, %v1502
    %v1512 = vadd.f32 %v1434, %v1503
    %v1513 = vadd.f32 %v1435, %v1504
    %v1514 = vadd.f32 %v1436, %v1501
    %1515 = vset.pattern.permute.xlu0 25
    %1516 = vperm.xlu0 %1515, %v72
    %v1517 = vpop.permute.xlu0 %1516
    %v1519 = vperm.slane %v1466, 1
    %v1520 = vperm.slane %v1466, 5
    %v1521 = vperm.slane %v1467, 1
    %v1522 = vperm.slane %v1467, 5
    %v1527 = vperm.slane %v1519, 1
    %v1528 = vperm.slane %v1520, 1
    %v1529 = vperm.slane %v1521, 1
    %v1530 = vperm.slane %v1522, 1
    %v1531 = vmul.f32 %v1517, %v1527
    %v1532 = vmul.f32 %v1517, %v1528
    %v1533 = vmul.f32 %v1517, %v1529
    %v1534 = vmul.f32 %v1517, %v1530
    %1539 = vrot.lane.b32.xlu0 %v1531, 111
    %v1540 = vpop.permute.xlu0 %1539
    %1541 = vrot.lane.b32.xlu0 %v1532, 111
    %v1542 = vpop.permute.xlu0 %1541
    %1543 = vrot.lane.b32.xlu0 %v1533, 111
    %v1544 = vpop.permute.xlu0 %1543
    %1545 = vrot.lane.b32.xlu0 %v1534, 111
    %v1546 = vpop.permute.xlu0 %1545
    %v1547 = vsel %vm98, %v1540, %v1542
    %v1548 = vsel %vm98, %v1542, %v1544
    %v1549 = vsel %vm98, %v1544, %v1546
    %v1555 = vadd.f32 %v1510, %v1540
    %v1556 = vadd.f32 %v1511, %v1547
    %v1557 = vadd.f32 %v1512, %v1548
    %v1558 = vadd.f32 %v1513, %v1549
    %v1559 = vadd.f32 %v1514, %v1546
    %1560 = vset.pattern.permute.xlu0 26
    %1561 = vperm.xlu0 %1560, %v72
    %v1562 = vpop.permute.xlu0 %1561
    %v1564 = vperm.slane %v1466, 2
    %v1565 = vperm.slane %v1466, 6
    %v1566 = vperm.slane %v1467, 2
    %v1567 = vperm.slane %v1467, 6
    %v1572 = vperm.slane %v1564, 2
    %v1573 = vperm.slane %v1565, 2
    %v1574 = vperm.slane %v1566, 2
    %v1575 = vperm.slane %v1567, 2
    %v1576 = vmul.f32 %v1562, %v1572
    %v1577 = vmul.f32 %v1562, %v1573
    %v1578 = vmul.f32 %v1562, %v1574
    %v1579 = vmul.f32 %v1562, %v1575
    %1584 = vrot.lane.b32.xlu0 %v1576, 111
    %v1585 = vpop.permute.xlu0 %1584
    %1586 = vrot.lane.b32.xlu0 %v1577, 111
    %v1587 = vpop.permute.xlu0 %1586
    %1588 = vrot.lane.b32.xlu0 %v1578, 111
    %v1589 = vpop.permute.xlu0 %1588
    %1590 = vrot.lane.b32.xlu0 %v1579, 111
    %v1591 = vpop.permute.xlu0 %1590
    %v1592 = vsel %vm98, %v1585, %v1587
    %v1593 = vsel %vm98, %v1587, %v1589
    %v1594 = vsel %vm98, %v1589, %v1591
    %v1600 = vadd.f32 %v1555, %v1585
    %v1601 = vadd.f32 %v1556, %v1592
    %v1602 = vadd.f32 %v1557, %v1593
    %v1603 = vadd.f32 %v1558, %v1594
    %v1604 = vadd.f32 %v1559, %v1591
    %1606 = vset.pattern.permute.xlu0 0
    %1607 = vperm.xlu0 %1606, %v73
    %v1608 = vpop.permute.xlu0 %1607
    %v1610 = vadd.f32 %v1600, %v1608
    %v1611 = vadd.f32 %v1601, %v1608
    %v1612 = vadd.f32 %v1602, %v1608
    %v1613 = vadd.f32 %v1603, %v1608
    %v1614 = vadd.f32 %v1604, %v1608
    %v1615 = vmax.f32 %v1610, 0.0
    %v1616 = vmax.f32 %v1611, 0.0
    %v1617 = vmax.f32 %v1612, 0.0
    %v1618 = vmax.f32 %v1613, 0.0
    %v1619 = vmax.f32 %v1614, 0.0
    %v1620 = vld [vmem:[%s4] sm:$0xf]
    %v1621 = vld [vmem:[%s5] sm:$0xf]
    %v1627 = vrot.slane %v1616, 4
    %v1628 = vrot.slane %v1618, 4
    %v1629 = vsel %vm89, %v1615, %v1627
    %v1630 = vsel %vm89, %v1617, %v1628
    %1631 = vrot.lane.b32.xlu0 %v1629, 17
    %v1632 = vpop.permute.xlu0 %1631
    %1633 = vrot.lane.b32.xlu0 %v1630, 17
    %v1634 = vpop.permute.xlu0 %1633
    %1635 = vrot.lane.b32.xlu0 %v1619, 17
    %v1636 = vpop.permute.xlu0 %1635
    %v1637 = vrot.slane %v1632, 4
    %v1638 = vrot.slane %v1634, 4
    %v1639 = vrot.slane %v1636, 4
    %v1640 = vsel %vm89, %v1637, %v1638
    %vm1641 = vcmask 138240
    %v1642 = vsel %vm1641, %v1632, %v1640
    %v1643 = vsel %vm89, %v1638, %v1639
    %v1644 = vsel %vm1641, %v1634, %v1643
    %1647 = vst [vmem:[#allocation2 + $0x4] sm:$0xff] %v1642
    %1648 = vst [vmem:[#allocation2 + $0xc] sm:$0xff] %v1644
    %v1649 = vld [vmem:[#allocation2] sm:$0xff]
    %v1650 = vld [vmem:[#allocation2 + $0x8] sm:$0xff]
    %v1651 = vld [vmem:[#allocation2 + $0x10] sm:$0xff]
    %v1652 = vmul.f32 %v1649, %v99
    %v1653 = vmul.f32 %v1650, %v101
    %v1654 = vmul.f32 %v1651, %v97
    %1656 = vset.pattern.permute.xlu0 0
    %1657 = vperm.xlu0 %1656, %v1620
    %v1658 = vpop.permute.xlu0 %1657
    %v1663 = vperm.slane %v1652, 0
    %v1664 = vperm.slane %v1652, 4
    %v1665 = vperm.slane %v1653, 0
    %v1666 = vperm.slane %v1653, 4
    %v1667 = vperm.slane %v1654, 0
    %v1673 = vperm.slane %v1663, 0
    %v1674 = vperm.slane %v1664, 0
    %v1675 = vperm.slane %v1665, 0
    %v1676 = vperm.slane %v1666, 0
    %v1677 = vperm.slane %v1667, 0
    %v1678 = vmul.f32 %v1658, %v1673
    %v1679 = vmul.f32 %v1658, %v1674
    %v1680 = vmul.f32 %v1658, %v1675
    %v1681 = vmul.f32 %v1658, %v1676
    %v1682 = vmul.f32 %v1658, %v1677
    %v1683 = vadd.f32 %v1678, 0.0
    %v1684 = vadd.f32 %v1679, 0.0
    %v1685 = vadd.f32 %v1680, 0.0
    %v1686 = vadd.f32 %v1681, 0.0
    %v1687 = vadd.f32 %v1682, 0.0
    %1688 = vset.pattern.permute.xlu0 1
    %1689 = vperm.xlu0 %1688, %v1620
    %v1690 = vpop.permute.xlu0 %1689
    %v1692 = vperm.slane %v1652, 1
    %v1693 = vperm.slane %v1652, 5
    %v1694 = vperm.slane %v1653, 1
    %v1695 = vperm.slane %v1653, 5
    %v1696 = vperm.slane %v1654, 1
    %v1702 = vperm.slane %v1692, 1
    %v1703 = vperm.slane %v1693, 1
    %v1704 = vperm.slane %v1694, 1
    %v1705 = vperm.slane %v1695, 1
    %v1706 = vperm.slane %v1696, 1
    %v1707 = vmul.f32 %v1690, %v1702
    %v1708 = vmul.f32 %v1690, %v1703
    %v1709 = vmul.f32 %v1690, %v1704
    %v1710 = vmul.f32 %v1690, %v1705
    %v1711 = vmul.f32 %v1690, %v1706
    %v1712 = vadd.f32 %v1683, %v1707
    %v1713 = vadd.f32 %v1684, %v1708
    %v1714 = vadd.f32 %v1685, %v1709
    %v1715 = vadd.f32 %v1686, %v1710
    %v1716 = vadd.f32 %v1687, %v1711
    %1717 = vset.pattern.permute.xlu0 2
    %1718 = vperm.xlu0 %1717, %v1620
    %v1719 = vpop.permute.xlu0 %1718
    %v1721 = vperm.slane %v1652, 2
    %v1722 = vperm.slane %v1652, 6
    %v1723 = vperm.slane %v1653, 2
    %v1724 = vperm.slane %v1653, 6
    %v1725 = vperm.slane %v1654, 2
    %v1731 = vperm.slane %v1721, 2
    %v1732 = vperm.slane %v1722, 2
    %v1733 = vperm.slane %v1723, 2
    %v1734 = vperm.slane %v1724, 2
    %v1735 = vperm.slane %v1725, 2
    %v1736 = vmul.f32 %v1719, %v1731
    %v1737 = vmul.f32 %v1719, %v1732
    %v1738 = vmul.f32 %v1719, %v1733
    %v1739 = vmul.f32 %v1719, %v1734
    %v1740 = vmul.f32 %v1719, %v1735
    %v1741 = vadd.f32 %v1712, %v1736
    %v1742 = vadd.f32 %v1713, %v1737
    %v1743 = vadd.f32 %v1714, %v1738
    %v1744 = vadd.f32 %v1715, %v1739
    %v1745 = vadd.f32 %v1716, %v1740
    %1746 = vset.pattern.permute.xlu0 3
    %1747 = vperm.xlu0 %1746, %v1620
    %v1748 = vpop.permute.xlu0 %1747
    %v1750 = vperm.slane %v1652, 3
    %v1751 = vperm.slane %v1652, 7
    %v1752 = vperm.slane %v1653, 3
    %v1753 = vperm.slane %v1653, 7
    %v1754 = vperm.slane %v1654, 3
    %v1760 = vperm.slane %v1750, 3
    %v1761 = vperm.slane %v1751, 3
    %v1762 = vperm.slane %v1752, 3
    %v1763 = vperm.slane %v1753, 3
    %v1764 = vperm.slane %v1754, 3
    %v1765 = vmul.f32 %v1748, %v1760
    %v1766 = vmul.f32 %v1748, %v1761
    %v1767 = vmul.f32 %v1748, %v1762
    %v1768 = vmul.f32 %v1748, %v1763
    %v1769 = vmul.f32 %v1748, %v1764
    %v1770 = vadd.f32 %v1741, %v1765
    %v1771 = vadd.f32 %v1742, %v1766
    %v1772 = vadd.f32 %v1743, %v1767
    %v1773 = vadd.f32 %v1744, %v1768
    %v1774 = vadd.f32 %v1745, %v1769
    %v1775 = vmul.f32 %v1649, %v218
    %v1776 = vmul.f32 %v1650, %v220
    %v1777 = vmul.f32 %v1651, %v216
    %1778 = vset.pattern.permute.xlu0 4
    %1779 = vperm.xlu0 %1778, %v1620
    %v1780 = vpop.permute.xlu0 %1779
    %v1785 = vperm.slane %v1775, 0
    %v1786 = vperm.slane %v1775, 4
    %v1787 = vperm.slane %v1776, 0
    %v1788 = vperm.slane %v1776, 4
    %v1789 = vperm.slane %v1777, 0
    %v1795 = vperm.slane %v1785, 0
    %v1796 = vperm.slane %v1786, 0
    %v1797 = vperm.slane %v1787, 0
    %v1798 = vperm.slane %v1788, 0
    %v1799 = vperm.slane %v1789, 0
    %v1800 = vmul.f32 %v1780, %v1795
    %v1801 = vmul.f32 %v1780, %v1796
    %v1802 = vmul.f32 %v1780, %v1797
    %v1803 = vmul.f32 %v1780, %v1798
    %v1804 = vmul.f32 %v1780, %v1799
    %1810 = vrot.lane.b32.xlu0 %v1800, 127
    %v1811 = vpop.permute.xlu0 %1810
    %1812 = vrot.lane.b32.xlu0 %v1801, 127
    %v1813 = vpop.permute.xlu0 %1812
    %1814 = vrot.lane.b32.xlu0 %v1802, 127
    %v1815 = vpop.permute.xlu0 %1814
    %1816 = vrot.lane.b32.xlu0 %v1803, 127
    %v1817 = vpop.permute.xlu0 %1816
    %1818 = vrot.lane.b32.xlu0 %v1804, 127
    %v1819 = vpop.permute.xlu0 %1818
    %v1820 = vsel %vm269, %v1811, %v1813
    %v1821 = vsel %vm269, %v1813, %v1815
    %v1822 = vsel %vm269, %v1815, %v1817
    %v1823 = vsel %vm269, %v1817, %v1819
    %v1829 = vadd.f32 %v1770, %v1820
    %v1830 = vadd.f32 %v1771, %v1821
    %v1831 = vadd.f32 %v1772, %v1822
    %v1832 = vadd.f32 %v1773, %v1823
    %v1833 = vadd.f32 %v1774, %v1819
    %1834 = vset.pattern.permute.xlu0 5
    %1835 = vperm.xlu0 %1834, %v1620
    %v1836 = vpop.permute.xlu0 %1835
    %v1838 = vperm.slane %v1775, 1
    %v1839 = vperm.slane %v1775, 5
    %v1840 = vperm.slane %v1776, 1
    %v1841 = vperm.slane %v1776, 5
    %v1842 = vperm.slane %v1777, 1
    %v1848 = vperm.slane %v1838, 1
    %v1849 = vperm.slane %v1839, 1
    %v1850 = vperm.slane %v1840, 1
    %v1851 = vperm.slane %v1841, 1
    %v1852 = vperm.slane %v1842, 1
    %v1853 = vmul.f32 %v1836, %v1848
    %v1854 = vmul.f32 %v1836, %v1849
    %v1855 = vmul.f32 %v1836, %v1850
    %v1856 = vmul.f32 %v1836, %v1851
    %v1857 = vmul.f32 %v1836, %v1852
    %1863 = vrot.lane.b32.xlu0 %v1853, 127
    %v1864 = vpop.permute.xlu0 %1863
    %1865 = vrot.lane.b32.xlu0 %v1854, 127
    %v1866 = vpop.permute.xlu0 %1865
    %1867 = vrot.lane.b32.xlu0 %v1855, 127
    %v1868 = vpop.permute.xlu0 %1867
    %1869 = vrot.lane.b32.xlu0 %v1856, 127
    %v1870 = vpop.permute.xlu0 %1869
    %1871 = vrot.lane.b32.xlu0 %v1857, 127
    %v1872 = vpop.permute.xlu0 %1871
    %v1873 = vsel %vm269, %v1864, %v1866
    %v1874 = vsel %vm269, %v1866, %v1868
    %v1875 = vsel %vm269, %v1868, %v1870
    %v1876 = vsel %vm269, %v1870, %v1872
    %v1882 = vadd.f32 %v1829, %v1873
    %v1883 = vadd.f32 %v1830, %v1874
    %v1884 = vadd.f32 %v1831, %v1875
    %v1885 = vadd.f32 %v1832, %v1876
    %v1886 = vadd.f32 %v1833, %v1872
    %1887 = vset.pattern.permute.xlu0 6
    %1888 = vperm.xlu0 %1887, %v1620
    %v1889 = vpop.permute.xlu0 %1888
    %v1891 = vperm.slane %v1775, 2
    %v1892 = vperm.slane %v1775, 6
    %v1893 = vperm.slane %v1776, 2
    %v1894 = vperm.slane %v1776, 6
    %v1895 = vperm.slane %v1777, 2
    %v1901 = vperm.slane %v1891, 2
    %v1902 = vperm.slane %v1892, 2
    %v1903 = vperm.slane %v1893, 2
    %v1904 = vperm.slane %v1894, 2
    %v1905 = vperm.slane %v1895, 2
    %v1906 = vmul.f32 %v1889, %v1901
    %v1907 = vmul.f32 %v1889, %v1902
    %v1908 = vmul.f32 %v1889, %v1903
    %v1909 = vmul.f32 %v1889, %v1904
    %v1910 = vmul.f32 %v1889, %v1905
    %1916 = vrot.lane.b32.xlu0 %v1906, 127
    %v1917 = vpop.permute.xlu0 %1916
    %1918 = vrot.lane.b32.xlu0 %v1907, 127
    %v1919 = vpop.permute.xlu0 %1918
    %1920 = vrot.lane.b32.xlu0 %v1908, 127
    %v1921 = vpop.permute.xlu0 %1920
    %1922 = vrot.lane.b32.xlu0 %v1909, 127
    %v1923 = vpop.permute.xlu0 %1922
    %1924 = vrot.lane.b32.xlu0 %v1910, 127
    %v1925 = vpop.permute.xlu0 %1924
    %v1926 = vsel %vm269, %v1917, %v1919
    %v1927 = vsel %vm269, %v1919, %v1921
    %v1928 = vsel %vm269, %v1921, %v1923
    %v1929 = vsel %vm269, %v1923, %v1925
    %v1935 = vadd.f32 %v1882, %v1926
    %v1936 = vadd.f32 %v1883, %v1927
    %v1937 = vadd.f32 %v1884, %v1928
    %v1938 = vadd.f32 %v1885, %v1929
    %v1939 = vadd.f32 %v1886, %v1925
    %1940 = vset.pattern.permute.xlu0 7
    %1941 = vperm.xlu0 %1940, %v1620
    %v1942 = vpop.permute.xlu0 %1941
    %v1944 = vperm.slane %v1775, 3
    %v1945 = vperm.slane %v1775, 7
    %v1946 = vperm.slane %v1776, 3
    %v1947 = vperm.slane %v1776, 7
    %v1948 = vperm.slane %v1777, 3
    %v1954 = vperm.slane %v1944, 3
    %v1955 = vperm.slane %v1945, 3
    %v1956 = vperm.slane %v1946, 3
    %v1957 = vperm.slane %v1947, 3
    %v1958 = vperm.slane %v1948, 3
    %v1959 = vmul.f32 %v1942, %v1954
    %v1960 = vmul.f32 %v1942, %v1955
    %v1961 = vmul.f32 %v1942, %v1956
    %v1962 = vmul.f32 %v1942, %v1957
    %v1963 = vmul.f32 %v1942, %v1958
    %1969 = vrot.lane.b32.xlu0 %v1959, 127
    %v1970 = vpop.permute.xlu0 %1969
    %1971 = vrot.lane.b32.xlu0 %v1960, 127
    %v1972 = vpop.permute.xlu0 %1971
    %1973 = vrot.lane.b32.xlu0 %v1961, 127
    %v1974 = vpop.permute.xlu0 %1973
    %1975 = vrot.lane.b32.xlu0 %v1962, 127
    %v1976 = vpop.permute.xlu0 %1975
    %1977 = vrot.lane.b32.xlu0 %v1963, 127
    %v1978 = vpop.permute.xlu0 %1977
    %v1979 = vsel %vm269, %v1970, %v1972
    %v1980 = vsel %vm269, %v1972, %v1974
    %v1981 = vsel %vm269, %v1974, %v1976
    %v1982 = vsel %vm269, %v1976, %v1978
    %v1988 = vadd.f32 %v1935, %v1979
    %v1989 = vadd.f32 %v1936, %v1980
    %v1990 = vadd.f32 %v1937, %v1981
    %v1991 = vadd.f32 %v1938, %v1982
    %v1992 = vadd.f32 %v1939, %v1978
    %v1993 = vmul.f32 %v1649, %v409
    %v1994 = vmul.f32 %v1650, %v411
    %v1995 = vmul.f32 %v1651, %v407
    %1996 = vset.pattern.permute.xlu0 8
    %1997 = vperm.xlu0 %1996, %v1620
    %v1998 = vpop.permute.xlu0 %1997
    %v2003 = vperm.slane %v1993, 0
    %v2004 = vperm.slane %v1993, 4
    %v2005 = vperm.slane %v1994, 0
    %v2006 = vperm.slane %v1994, 4
    %v2007 = vperm.slane %v1995, 0
    %v2013 = vperm.slane %v2003, 0
    %v2014 = vperm.slane %v2004, 0
    %v2015 = vperm.slane %v2005, 0
    %v2016 = vperm.slane %v2006, 0
    %v2017 = vperm.slane %v2007, 0
    %v2018 = vmul.f32 %v1998, %v2013
    %v2019 = vmul.f32 %v1998, %v2014
    %v2020 = vmul.f32 %v1998, %v2015
    %v2021 = vmul.f32 %v1998, %v2016
    %v2022 = vmul.f32 %v1998, %v2017
    %2028 = vrot.lane.b32.xlu0 %v2018, 126
    %v2029 = vpop.permute.xlu0 %2028
    %2030 = vrot.lane.b32.xlu0 %v2019, 126
    %v2031 = vpop.permute.xlu0 %2030
    %2032 = vrot.lane.b32.xlu0 %v2020, 126
    %v2033 = vpop.permute.xlu0 %2032
    %2034 = vrot.lane.b32.xlu0 %v2021, 126
    %v2035 = vpop.permute.xlu0 %2034
    %2036 = vrot.lane.b32.xlu0 %v2022, 126
    %v2037 = vpop.permute.xlu0 %2036
    %v2038 = vsel %vm460, %v2029, %v2031
    %v2039 = vsel %vm460, %v2031, %v2033
    %v2040 = vsel %vm460, %v2033, %v2035
    %v2041 = vsel %vm460, %v2035, %v2037
    %v2047 = vadd.f32 %v1988, %v2038
    %v2048 = vadd.f32 %v1989, %v2039
    %v2049 = vadd.f32 %v1990, %v2040
    %v2050 = vadd.f32 %v1991, %v2041
    %v2051 = vadd.f32 %v1992, %v2037
    %2052 = vset.pattern.permute.xlu0 9
    %2053 = vperm.xlu0 %2052, %v1620
    %v2054 = vpop.permute.xlu0 %2053
    %v2056 = vperm.slane %v1993, 1
    %v2057 = vperm.slane %v1993, 5
    %v2058 = vperm.slane %v1994, 1
    %v2059 = vperm.slane %v1994, 5
    %v2060 = vperm.slane %v1995, 1
    %v2066 = vperm.slane %v2056, 1
    %v2067 = vperm.slane %v2057, 1
    %v2068 = vperm.slane %v2058, 1
    %v2069 = vperm.slane %v2059, 1
    %v2070 = vperm.slane %v2060, 1
    %v2071 = vmul.f32 %v2054, %v2066
    %v2072 = vmul.f32 %v2054, %v2067
    %v2073 = vmul.f32 %v2054, %v2068
    %v2074 = vmul.f32 %v2054, %v2069
    %v2075 = vmul.f32 %v2054, %v2070
    %2081 = vrot.lane.b32.xlu0 %v2071, 126
    %v2082 = vpop.permute.xlu0 %2081
    %2083 = vrot.lane.b32.xlu0 %v2072, 126
    %v2084 = vpop.permute.xlu0 %2083
    %2085 = vrot.lane.b32.xlu0 %v2073, 126
    %v2086 = vpop.permute.xlu0 %2085
    %2087 = vrot.lane.b32.xlu0 %v2074, 126
    %v2088 = vpop.permute.xlu0 %2087
    %2089 = vrot.lane.b32.xlu0 %v2075, 126
    %v2090 = vpop.permute.xlu0 %2089
    %v2091 = vsel %vm460, %v2082, %v2084
    %v2092 = vsel %vm460, %v2084, %v2086
    %v2093 = vsel %vm460, %v2086, %v2088
    %v2094 = vsel %vm460, %v2088, %v2090
    %v2100 = vadd.f32 %v2047, %v2091
    %v2101 = vadd.f32 %v2048, %v2092
    %v2102 = vadd.f32 %v2049, %v2093
    %v2103 = vadd.f32 %v2050, %v2094
    %v2104 = vadd.f32 %v2051, %v2090
    %2105 = vset.pattern.permute.xlu0 10
    %2106 = vperm.xlu0 %2105, %v1620
    %v2107 = vpop.permute.xlu0 %2106
    %v2109 = vperm.slane %v1993, 2
    %v2110 = vperm.slane %v1993, 6
    %v2111 = vperm.slane %v1994, 2
    %v2112 = vperm.slane %v1994, 6
    %v2113 = vperm.slane %v1995, 2
    %v2119 = vperm.slane %v2109, 2
    %v2120 = vperm.slane %v2110, 2
    %v2121 = vperm.slane %v2111, 2
    %v2122 = vperm.slane %v2112, 2
    %v2123 = vperm.slane %v2113, 2
    %v2124 = vmul.f32 %v2107, %v2119
    %v2125 = vmul.f32 %v2107, %v2120
    %v2126 = vmul.f32 %v2107, %v2121
    %v2127 = vmul.f32 %v2107, %v2122
    %v2128 = vmul.f32 %v2107, %v2123
    %2134 = vrot.lane.b32.xlu0 %v2124, 126
    %v2135 = vpop.permute.xlu0 %2134
    %2136 = vrot.lane.b32.xlu0 %v2125, 126
    %v2137 = vpop.permute.xlu0 %2136
    %2138 = vrot.lane.b32.xlu0 %v2126, 126
    %v2139 = vpop.permute.xlu0 %2138
    %2140 = vrot.lane.b32.xlu0 %v2127, 126
    %v2141 = vpop.permute.xlu0 %2140
    %2142 = vrot.lane.b32.xlu0 %v2128, 126
    %v2143 = vpop.permute.xlu0 %2142
    %v2144 = vsel %vm460, %v2135, %v2137
    %v2145 = vsel %vm460, %v2137, %v2139
    %v2146 = vsel %vm460, %v2139, %v2141
    %v2147 = vsel %vm460, %v2141, %v2143
    %v2153 = vadd.f32 %v2100, %v2144
    %v2154 = vadd.f32 %v2101, %v2145
    %v2155 = vadd.f32 %v2102, %v2146
    %v2156 = vadd.f32 %v2103, %v2147
    %v2157 = vadd.f32 %v2104, %v2143
    %2158 = vset.pattern.permute.xlu0 11
    %2159 = vperm.xlu0 %2158, %v1620
    %v2160 = vpop.permute.xlu0 %2159
    %v2162 = vperm.slane %v1993, 3
    %v2163 = vperm.slane %v1993, 7
    %v2164 = vperm.slane %v1994, 3
    %v2165 = vperm.slane %v1994, 7
    %v2166 = vperm.slane %v1995, 3
    %v2172 = vperm.slane %v2162, 3
    %v2173 = vperm.slane %v2163, 3
    %v2174 = vperm.slane %v2164, 3
    %v2175 = vperm.slane %v2165, 3
    %v2176 = vperm.slane %v2166, 3
    %v2177 = vmul.f32 %v2160, %v2172
    %v2178 = vmul.f32 %v2160, %v2173
    %v2179 = vmul.f32 %v2160, %v2174
    %v2180 = vmul.f32 %v2160, %v2175
    %v2181 = vmul.f32 %v2160, %v2176
    %2187 = vrot.lane.b32.xlu0 %v2177, 126
    %v2188 = vpop.permute.xlu0 %2187
    %2189 = vrot.lane.b32.xlu0 %v2178, 126
    %v2190 = vpop.permute.xlu0 %2189
    %2191 = vrot.lane.b32.xlu0 %v2179, 126
    %v2192 = vpop.permute.xlu0 %2191
    %2193 = vrot.lane.b32.xlu0 %v2180, 126
    %v2194 = vpop.permute.xlu0 %2193
    %2195 = vrot.lane.b32.xlu0 %v2181, 126
    %v2196 = vpop.permute.xlu0 %2195
    %v2197 = vsel %vm460, %v2188, %v2190
    %v2198 = vsel %vm460, %v2190, %v2192
    %v2199 = vsel %vm460, %v2192, %v2194
    %v2200 = vsel %vm460, %v2194, %v2196
    %v2206 = vadd.f32 %v2153, %v2197
    %v2207 = vadd.f32 %v2154, %v2198
    %v2208 = vadd.f32 %v2155, %v2199
    %v2209 = vadd.f32 %v2156, %v2200
    %v2210 = vadd.f32 %v2157, %v2196
    %v2211 = vmul.f32 %v1649, %v599
    %v2212 = vmul.f32 %v1650, %v601
    %v2213 = vmul.f32 %v1651, %v598
    %2214 = vset.pattern.permute.xlu0 12
    %2215 = vperm.xlu0 %2214, %v1620
    %v2216 = vpop.permute.xlu0 %2215
    %v2221 = vperm.slane %v2211, 0
    %v2222 = vperm.slane %v2211, 4
    %v2223 = vperm.slane %v2212, 0
    %v2224 = vperm.slane %v2212, 4
    %v2225 = vperm.slane %v2213, 0
    %v2231 = vperm.slane %v2221, 0
    %v2232 = vperm.slane %v2222, 0
    %v2233 = vperm.slane %v2223, 0
    %v2234 = vperm.slane %v2224, 0
    %v2235 = vperm.slane %v2225, 0
    %v2236 = vmul.f32 %v2216, %v2231
    %v2237 = vmul.f32 %v2216, %v2232
    %v2238 = vmul.f32 %v2216, %v2233
    %v2239 = vmul.f32 %v2216, %v2234
    %v2240 = vmul.f32 %v2216, %v2235
    %2246 = vrot.lane.b32.xlu0 %v2236, 112
    %v2247 = vpop.permute.xlu0 %2246
    %2248 = vrot.lane.b32.xlu0 %v2237, 112
    %v2249 = vpop.permute.xlu0 %2248
    %2250 = vrot.lane.b32.xlu0 %v2238, 112
    %v2251 = vpop.permute.xlu0 %2250
    %2252 = vrot.lane.b32.xlu0 %v2239, 112
    %v2253 = vpop.permute.xlu0 %2252
    %2254 = vrot.lane.b32.xlu0 %v2240, 112
    %v2255 = vpop.permute.xlu0 %2254
    %v2256 = vsel %vm217, %v2247, %v2249
    %v2257 = vsel %vm217, %v2249, %v2251
    %v2258 = vsel %vm217, %v2251, %v2253
    %v2259 = vsel %vm217, %v2253, %v2255
    %v2265 = vadd.f32 %v2206, %v2256
    %v2266 = vadd.f32 %v2207, %v2257
    %v2267 = vadd.f32 %v2208, %v2258
    %v2268 = vadd.f32 %v2209, %v2259
    %v2269 = vadd.f32 %v2210, %v2255
    %2270 = vset.pattern.permute.xlu0 13
    %2271 = vperm.xlu0 %2270, %v1620
    %v2272 = vpop.permute.xlu0 %2271
    %v2274 = vperm.slane %v2211, 1
    %v2275 = vperm.slane %v2211, 5
    %v2276 = vperm.slane %v2212, 1
    %v2277 = vperm.slane %v2212, 5
    %v2278 = vperm.slane %v2213, 1
    %v2284 = vperm.slane %v2274, 1
    %v2285 = vperm.slane %v2275, 1
    %v2286 = vperm.slane %v2276, 1
    %v2287 = vperm.slane %v2277, 1
    %v2288 = vperm.slane %v2278, 1
    %v2289 = vmul.f32 %v2272, %v2284
    %v2290 = vmul.f32 %v2272, %v2285
    %v2291 = vmul.f32 %v2272, %v2286
    %v2292 = vmul.f32 %v2272, %v2287
    %v2293 = vmul.f32 %v2272, %v2288
    %2299 = vrot.lane.b32.xlu0 %v2289, 112
    %v2300 = vpop.permute.xlu0 %2299
    %2301 = vrot.lane.b32.xlu0 %v2290, 112
    %v2302 = vpop.permute.xlu0 %2301
    %2303 = vrot.lane.b32.xlu0 %v2291, 112
    %v2304 = vpop.permute.xlu0 %2303
    %2305 = vrot.lane.b32.xlu0 %v2292, 112
    %v2306 = vpop.permute.xlu0 %2305
    %2307 = vrot.lane.b32.xlu0 %v2293, 112
    %v2308 = vpop.permute.xlu0 %2307
    %v2309 = vsel %vm217, %v2300, %v2302
    %v2310 = vsel %vm217, %v2302, %v2304
    %v2311 = vsel %vm217, %v2304, %v2306
    %v2312 = vsel %vm217, %v2306, %v2308
    %v2318 = vadd.f32 %v2265, %v2309
    %v2319 = vadd.f32 %v2266, %v2310
    %v2320 = vadd.f32 %v2267, %v2311
    %v2321 = vadd.f32 %v2268, %v2312
    %v2322 = vadd.f32 %v2269, %v2308
    %2323 = vset.pattern.permute.xlu0 14
    %2324 = vperm.xlu0 %2323, %v1620
    %v2325 = vpop.permute.xlu0 %2324
    %v2327 = vperm.slane %v2211, 2
    %v2328 = vperm.slane %v2211, 6
    %v2329 = vperm.slane %v2212, 2
    %v2330 = vperm.slane %v2212, 6
    %v2331 = vperm.slane %v2213, 2
    %v2337 = vperm.slane %v2327, 2
    %v2338 = vperm.slane %v2328, 2
    %v2339 = vperm.slane %v2329, 2
    %v2340 = vperm.slane %v2330, 2
    %v2341 = vperm.slane %v2331, 2
    %v2342 = vmul.f32 %v2325, %v2337
    %v2343 = vmul.f32 %v2325, %v2338
    %v2344 = vmul.f32 %v2325, %v2339
    %v2345 = vmul.f32 %v2325, %v2340
    %v2346 = vmul.f32 %v2325, %v2341
    %2352 = vrot.lane.b32.xlu0 %v2342, 112
    %v2353 = vpop.permute.xlu0 %2352
    %2354 = vrot.lane.b32.xlu0 %v2343, 112
    %v2355 = vpop.permute.xlu0 %2354
    %2356 = vrot.lane.b32.xlu0 %v2344, 112
    %v2357 = vpop.permute.xlu0 %2356
    %2358 = vrot.lane.b32.xlu0 %v2345, 112
    %v2359 = vpop.permute.xlu0 %2358
    %2360 = vrot.lane.b32.xlu0 %v2346, 112
    %v2361 = vpop.permute.xlu0 %2360
    %v2362 = vsel %vm217, %v2353, %v2355
    %v2363 = vsel %vm217, %v2355, %v2357
    %v2364 = vsel %vm217, %v2357, %v2359
    %v2365 = vsel %vm217, %v2359, %v2361
    %v2371 = vadd.f32 %v2318, %v2362
    %v2372 = vadd.f32 %v2319, %v2363
    %v2373 = vadd.f32 %v2320, %v2364
    %v2374 = vadd.f32 %v2321, %v2365
    %v2375 = vadd.f32 %v2322, %v2361
    %2376 = vset.pattern.permute.xlu0 15
    %2377 = vperm.xlu0 %2376, %v1620
    %v2378 = vpop.permute.xlu0 %2377
    %v2380 = vperm.slane %v2211, 3
    %v2381 = vperm.slane %v2211, 7
    %v2382 = vperm.slane %v2212, 3
    %v2383 = vperm.slane %v2212, 7
    %v2384 = vperm.slane %v2213, 3
    %v2390 = vperm.slane %v2380, 3
    %v2391 = vperm.slane %v2381, 3
    %v2392 = vperm.slane %v2382, 3
    %v2393 = vperm.slane %v2383, 3
    %v2394 = vperm.slane %v2384, 3
    %v2395 = vmul.f32 %v2378, %v2390
    %v2396 = vmul.f32 %v2378, %v2391
    %v2397 = vmul.f32 %v2378, %v2392
    %v2398 = vmul.f32 %v2378, %v2393
    %v2399 = vmul.f32 %v2378, %v2394
    %2405 = vrot.lane.b32.xlu0 %v2395, 112
    %v2406 = vpop.permute.xlu0 %2405
    %2407 = vrot.lane.b32.xlu0 %v2396, 112
    %v2408 = vpop.permute.xlu0 %2407
    %2409 = vrot.lane.b32.xlu0 %v2397, 112
    %v2410 = vpop.permute.xlu0 %2409
    %2411 = vrot.lane.b32.xlu0 %v2398, 112
    %v2412 = vpop.permute.xlu0 %2411
    %2413 = vrot.lane.b32.xlu0 %v2399, 112
    %v2414 = vpop.permute.xlu0 %2413
    %v2415 = vsel %vm217, %v2406, %v2408
    %v2416 = vsel %vm217, %v2408, %v2410
    %v2417 = vsel %vm217, %v2410, %v2412
    %v2418 = vsel %vm217, %v2412, %v2414
    %v2424 = vadd.f32 %v2371, %v2415
    %v2425 = vadd.f32 %v2372, %v2416
    %v2426 = vadd.f32 %v2373, %v2417
    %v2427 = vadd.f32 %v2374, %v2418
    %v2428 = vadd.f32 %v2375, %v2414
    %v2432 = vrot.slane %v1649, 4
    %v2433 = vrot.slane %v1650, 4
    %v2434 = vrot.slane %v1651, 4
    %v2435 = vsel %vm89, %v2432, %v2433
    %v2436 = vsel %vm89, %v2433, %v2434
    %v2439 = vmul.f32 %v2435, %v790
    %v2440 = vmul.f32 %v2436, %v791
    %2441 = vset.pattern.permute.xlu0 16
    %2442 = vperm.xlu0 %2441, %v1620
    %v2443 = vpop.permute.xlu0 %2442
    %v2447 = vperm.slane %v2439, 0
    %v2448 = vperm.slane %v2439, 4
    %v2449 = vperm.slane %v2440, 0
    %v2450 = vperm.slane %v2440, 4
    %v2455 = vperm.slane %v2447, 0
    %v2456 = vperm.slane %v2448, 0
    %v2457 = vperm.slane %v2449, 0
    %v2458 = vperm.slane %v2450, 0
    %v2459 = vmul.f32 %v2443, %v2455
    %v2460 = vmul.f32 %v2443, %v2456
    %v2461 = vmul.f32 %v2443, %v2457
    %v2462 = vmul.f32 %v2443, %v2458
    %2467 = vrot.lane.b32.xlu0 %v2459, 111
    %v2468 = vpop.permute.xlu0 %2467
    %2469 = vrot.lane.b32.xlu0 %v2460, 111
    %v2470 = vpop.permute.xlu0 %2469
    %2471 = vrot.lane.b32.xlu0 %v2461, 111
    %v2472 = vpop.permute.xlu0 %2471
    %2473 = vrot.lane.b32.xlu0 %v2462, 111
    %v2474 = vpop.permute.xlu0 %2473
    %v2475 = vsel %vm98, %v2468, %v2470
    %v2476 = vsel %vm98, %v2470, %v2472
    %v2477 = vsel %vm98, %v2472, %v2474
    %v2483 = vadd.f32 %v2424, %v2468
    %v2484 = vadd.f32 %v2425, %v2475
    %v2485 = vadd.f32 %v2426, %v2476
    %v2486 = vadd.f32 %v2427, %v2477
    %v2487 = vadd.f32 %v2428, %v2474
    %2488 = vset.pattern.permute.xlu0 17
    %2489 = vperm.xlu0 %2488, %v1620
    %v2490 = vpop.permute.xlu0 %2489
    %v2492 = vperm.slane %v2439, 1
    %v2493 = vperm.slane %v2439, 5
    %v2494 = vperm.slane %v2440, 1
    %v2495 = vperm.slane %v2440, 5
    %v2500 = vperm.slane %v2492, 1
    %v2501 = vperm.slane %v2493, 1
    %v2502 = vperm.slane %v2494, 1
    %v2503 = vperm.slane %v2495, 1
    %v2504 = vmul.f32 %v2490, %v2500
    %v2505 = vmul.f32 %v2490, %v2501
    %v2506 = vmul.f32 %v2490, %v2502
    %v2507 = vmul.f32 %v2490, %v2503
    %2512 = vrot.lane.b32.xlu0 %v2504, 111
    %v2513 = vpop.permute.xlu0 %2512
    %2514 = vrot.lane.b32.xlu0 %v2505, 111
    %v2515 = vpop.permute.xlu0 %2514
    %2516 = vrot.lane.b32.xlu0 %v2506, 111
    %v2517 = vpop.permute.xlu0 %2516
    %2518 = vrot.lane.b32.xlu0 %v2507, 111
    %v2519 = vpop.permute.xlu0 %2518
    %v2520 = vsel %vm98, %v2513, %v2515
    %v2521 = vsel %vm98, %v2515, %v2517
    %v2522 = vsel %vm98, %v2517, %v2519
    %v2528 = vadd.f32 %v2483, %v2513
    %v2529 = vadd.f32 %v2484, %v2520
    %v2530 = vadd.f32 %v2485, %v2521
    %v2531 = vadd.f32 %v2486, %v2522
    %v2532 = vadd.f32 %v2487, %v2519
    %2533 = vset.pattern.permute.xlu0 18
    %2534 = vperm.xlu0 %2533, %v1620
    %v2535 = vpop.permute.xlu0 %2534
    %v2537 = vperm.slane %v2439, 2
    %v2538 = vperm.slane %v2439, 6
    %v2539 = vperm.slane %v2440, 2
    %v2540 = vperm.slane %v2440, 6
    %v2545 = vperm.slane %v2537, 2
    %v2546 = vperm.slane %v2538, 2
    %v2547 = vperm.slane %v2539, 2
    %v2548 = vperm.slane %v2540, 2
    %v2549 = vmul.f32 %v2535, %v2545
    %v2550 = vmul.f32 %v2535, %v2546
    %v2551 = vmul.f32 %v2535, %v2547
    %v2552 = vmul.f32 %v2535, %v2548
    %2557 = vrot.lane.b32.xlu0 %v2549, 111
    %v2558 = vpop.permute.xlu0 %2557
    %2559 = vrot.lane.b32.xlu0 %v2550, 111
    %v2560 = vpop.permute.xlu0 %2559
    %2561 = vrot.lane.b32.xlu0 %v2551, 111
    %v2562 = vpop.permute.xlu0 %2561
    %2563 = vrot.lane.b32.xlu0 %v2552, 111
    %v2564 = vpop.permute.xlu0 %2563
    %v2565 = vsel %vm98, %v2558, %v2560
    %v2566 = vsel %vm98, %v2560, %v2562
    %v2567 = vsel %vm98, %v2562, %v2564
    %v2573 = vadd.f32 %v2528, %v2558
    %v2574 = vadd.f32 %v2529, %v2565
    %v2575 = vadd.f32 %v2530, %v2566
    %v2576 = vadd.f32 %v2531, %v2567
    %v2577 = vadd.f32 %v2532, %v2564
    %2578 = vset.pattern.permute.xlu0 19
    %2579 = vperm.xlu0 %2578, %v1620
    %v2580 = vpop.permute.xlu0 %2579
    %v2582 = vperm.slane %v2439, 3
    %v2583 = vperm.slane %v2439, 7
    %v2584 = vperm.slane %v2440, 3
    %v2585 = vperm.slane %v2440, 7
    %v2590 = vperm.slane %v2582, 3
    %v2591 = vperm.slane %v2583, 3
    %v2592 = vperm.slane %v2584, 3
    %v2593 = vperm.slane %v2585, 3
    %v2594 = vmul.f32 %v2580, %v2590
    %v2595 = vmul.f32 %v2580, %v2591
    %v2596 = vmul.f32 %v2580, %v2592
    %v2597 = vmul.f32 %v2580, %v2593
    %2602 = vrot.lane.b32.xlu0 %v2594, 111
    %v2603 = vpop.permute.xlu0 %2602
    %2604 = vrot.lane.b32.xlu0 %v2595, 111
    %v2605 = vpop.permute.xlu0 %2604
    %2606 = vrot.lane.b32.xlu0 %v2596, 111
    %v2607 = vpop.permute.xlu0 %2606
    %2608 = vrot.lane.b32.xlu0 %v2597, 111
    %v2609 = vpop.permute.xlu0 %2608
    %v2610 = vsel %vm98, %v2603, %v2605
    %v2611 = vsel %vm98, %v2605, %v2607
    %v2612 = vsel %vm98, %v2607, %v2609
    %v2618 = vadd.f32 %v2573, %v2603
    %v2619 = vadd.f32 %v2574, %v2610
    %v2620 = vadd.f32 %v2575, %v2611
    %v2621 = vadd.f32 %v2576, %v2612
    %v2622 = vadd.f32 %v2577, %v2609
    %2623 = vrot.lane.b32.xlu0 %v1649, 127
    %v2624 = vpop.permute.xlu0 %2623
    %2625 = vrot.lane.b32.xlu0 %v1650, 127
    %v2626 = vpop.permute.xlu0 %2625
    %2627 = vrot.lane.b32.xlu0 %v1651, 127
    %v2628 = vpop.permute.xlu0 %2627
    %v2629 = vrot.slane %v2624, 4
    %v2630 = vrot.slane %v2626, 4
    %v2631 = vrot.slane %v2628, 4
    %v2632 = vsel %vm89, %v2629, %v2630
    %v2633 = vsel %vm269, %v2632, %v2626
    %v2634 = vsel %vm89, %v2630, %v2631
    %v2635 = vsel %vm269, %v2634, %v2628
    %v2638 = vmul.f32 %v2633, %v958
    %v2639 = vmul.f32 %v2635, %v959
    %2640 = vset.pattern.permute.xlu0 20
    %2641 = vperm.xlu0 %2640, %v1620
    %v2642 = vpop.permute.xlu0 %2641
    %v2646 = vperm.slane %v2638, 0
    %v2647 = vperm.slane %v2638, 4
    %v2648 = vperm.slane %v2639, 0
    %v2649 = vperm.slane %v2639, 4
    %v2654 = vperm.slane %v2646, 0
    %v2655 = vperm.slane %v2647, 0
    %v2656 = vperm.slane %v2648, 0
    %v2657 = vperm.slane %v2649, 0
    %v2658 = vmul.f32 %v2642, %v2654
    %v2659 = vmul.f32 %v2642, %v2655
    %v2660 = vmul.f32 %v2642, %v2656
    %v2661 = vmul.f32 %v2642, %v2657
    %2666 = vrot.lane.b32.xlu0 %v2658, 111
    %v2667 = vpop.permute.xlu0 %2666
    %2668 = vrot.lane.b32.xlu0 %v2659, 111
    %v2669 = vpop.permute.xlu0 %2668
    %2670 = vrot.lane.b32.xlu0 %v2660, 111
    %v2671 = vpop.permute.xlu0 %2670
    %2672 = vrot.lane.b32.xlu0 %v2661, 111
    %v2673 = vpop.permute.xlu0 %2672
    %v2674 = vsel %vm98, %v2667, %v2669
    %v2675 = vsel %vm98, %v2669, %v2671
    %v2676 = vsel %vm98, %v2671, %v2673
    %v2682 = vadd.f32 %v2618, %v2667
    %v2683 = vadd.f32 %v2619, %v2674
    %v2684 = vadd.f32 %v2620, %v2675
    %v2685 = vadd.f32 %v2621, %v2676
    %v2686 = vadd.f32 %v2622, %v2673
    %2687 = vset.pattern.permute.xlu0 21
    %2688 = vperm.xlu0 %2687, %v1620
    %v2689 = vpop.permute.xlu0 %2688
    %v2691 = vperm.slane %v2638, 1
    %v2692 = vperm.slane %v2638, 5
    %v2693 = vperm.slane %v2639, 1
    %v2694 = vperm.slane %v2639, 5
    %v2699 = vperm.slane %v2691, 1
    %v2700 = vperm.slane %v2692, 1
    %v2701 = vperm.slane %v2693, 1
    %v2702 = vperm.slane %v2694, 1
    %v2703 = vmul.f32 %v2689, %v2699
    %v2704 = vmul.f32 %v2689, %v2700
    %v2705 = vmul.f32 %v2689, %v2701
    %v2706 = vmul.f32 %v2689, %v2702
    %2711 = vrot.lane.b32.xlu0 %v2703, 111
    %v2712 = vpop.permute.xlu0 %2711
    %2713 = vrot.lane.b32.xlu0 %v2704, 111
    %v2714 = vpop.permute.xlu0 %2713
    %2715 = vrot.lane.b32.xlu0 %v2705, 111
    %v2716 = vpop.permute.xlu0 %2715
    %2717 = vrot.lane.b32.xlu0 %v2706, 111
    %v2718 = vpop.permute.xlu0 %2717
    %v2719 = vsel %vm98, %v2712, %v2714
    %v2720 = vsel %vm98, %v2714, %v2716
    %v2721 = vsel %vm98, %v2716, %v2718
    %v2727 = vadd.f32 %v2682, %v2712
    %v2728 = vadd.f32 %v2683, %v2719
    %v2729 = vadd.f32 %v2684, %v2720
    %v2730 = vadd.f32 %v2685, %v2721
    %v2731 = vadd.f32 %v2686, %v2718
    %2732 = vset.pattern.permute.xlu0 22
    %2733 = vperm.xlu0 %2732, %v1620
    %v2734 = vpop.permute.xlu0 %2733
    %v2736 = vperm.slane %v2638, 2
    %v2737 = vperm.slane %v2638, 6
    %v2738 = vperm.slane %v2639, 2
    %v2739 = vperm.slane %v2639, 6
    %v2744 = vperm.slane %v2736, 2
    %v2745 = vperm.slane %v2737, 2
    %v2746 = vperm.slane %v2738, 2
    %v2747 = vperm.slane %v2739, 2
    %v2748 = vmul.f32 %v2734, %v2744
    %v2749 = vmul.f32 %v2734, %v2745
    %v2750 = vmul.f32 %v2734, %v2746
    %v2751 = vmul.f32 %v2734, %v2747
    %2756 = vrot.lane.b32.xlu0 %v2748, 111
    %v2757 = vpop.permute.xlu0 %2756
    %2758 = vrot.lane.b32.xlu0 %v2749, 111
    %v2759 = vpop.permute.xlu0 %2758
    %2760 = vrot.lane.b32.xlu0 %v2750, 111
    %v2761 = vpop.permute.xlu0 %2760
    %2762 = vrot.lane.b32.xlu0 %v2751, 111
    %v2763 = vpop.permute.xlu0 %2762
    %v2764 = vsel %vm98, %v2757, %v2759
    %v2765 = vsel %vm98, %v2759, %v2761
    %v2766 = vsel %vm98, %v2761, %v2763
    %v2772 = vadd.f32 %v2727, %v2757
    %v2773 = vadd.f32 %v2728, %v2764
    %v2774 = vadd.f32 %v2729, %v2765
    %v2775 = vadd.f32 %v2730, %v2766
    %v2776 = vadd.f32 %v2731, %v2763
    %2777 = vset.pattern.permute.xlu0 23
    %2778 = vperm.xlu0 %2777, %v1620
    %v2779 = vpop.permute.xlu0 %2778
    %v2781 = vperm.slane %v2638, 3
    %v2782 = vperm.slane %v2638, 7
    %v2783 = vperm.slane %v2639, 3
    %v2784 = vperm.slane %v2639, 7
    %v2789 = vperm.slane %v2781, 3
    %v2790 = vperm.slane %v2782, 3
    %v2791 = vperm.slane %v2783, 3
    %v2792 = vperm.slane %v2784, 3
    %v2793 = vmul.f32 %v2779, %v2789
    %v2794 = vmul.f32 %v2779, %v2790
    %v2795 = vmul.f32 %v2779, %v2791
    %v2796 = vmul.f32 %v2779, %v2792
    %2801 = vrot.lane.b32.xlu0 %v2793, 111
    %v2802 = vpop.permute.xlu0 %2801
    %2803 = vrot.lane.b32.xlu0 %v2794, 111
    %v2804 = vpop.permute.xlu0 %2803
    %2805 = vrot.lane.b32.xlu0 %v2795, 111
    %v2806 = vpop.permute.xlu0 %2805
    %2807 = vrot.lane.b32.xlu0 %v2796, 111
    %v2808 = vpop.permute.xlu0 %2807
    %v2809 = vsel %vm98, %v2802, %v2804
    %v2810 = vsel %vm98, %v2804, %v2806
    %v2811 = vsel %vm98, %v2806, %v2808
    %v2817 = vadd.f32 %v2772, %v2802
    %v2818 = vadd.f32 %v2773, %v2809
    %v2819 = vadd.f32 %v2774, %v2810
    %v2820 = vadd.f32 %v2775, %v2811
    %v2821 = vadd.f32 %v2776, %v2808
    %2822 = vrot.lane.b32.xlu0 %v1649, 113
    %v2823 = vpop.permute.xlu0 %2822
    %2824 = vrot.lane.b32.xlu0 %v1650, 113
    %v2825 = vpop.permute.xlu0 %2824
    %2826 = vrot.lane.b32.xlu0 %v1651, 113
    %v2827 = vpop.permute.xlu0 %2826
    %v2828 = vrot.slane %v2823, 4
    %v2829 = vrot.slane %v2825, 4
    %v2830 = vrot.slane %v2827, 4
    %v2831 = vsel %vm89, %v2828, %v2829
    %v2832 = vsel %vm408, %v2831, %v2825
    %v2833 = vsel %vm89, %v2829, %v2830
    %v2834 = vsel %vm408, %v2833, %v2827
    %v2837 = vmul.f32 %v2832, %v1126
    %v2838 = vmul.f32 %v2834, %v1127
    %2839 = vset.pattern.permute.xlu0 24
    %2840 = vperm.xlu0 %2839, %v1620
    %v2841 = vpop.permute.xlu0 %2840
    %v2845 = vperm.slane %v2837, 0
    %v2846 = vperm.slane %v2837, 4
    %v2847 = vperm.slane %v2838, 0
    %v2848 = vperm.slane %v2838, 4
    %v2853 = vperm.slane %v2845, 0
    %v2854 = vperm.slane %v2846, 0
    %v2855 = vperm.slane %v2847, 0
    %v2856 = vperm.slane %v2848, 0
    %v2857 = vmul.f32 %v2841, %v2853
    %v2858 = vmul.f32 %v2841, %v2854
    %v2859 = vmul.f32 %v2841, %v2855
    %v2860 = vmul.f32 %v2841, %v2856
    %2865 = vrot.lane.b32.xlu0 %v2857, 111
    %v2866 = vpop.permute.xlu0 %2865
    %2867 = vrot.lane.b32.xlu0 %v2858, 111
    %v2868 = vpop.permute.xlu0 %2867
    %2869 = vrot.lane.b32.xlu0 %v2859, 111
    %v2870 = vpop.permute.xlu0 %2869
    %2871 = vrot.lane.b32.xlu0 %v2860, 111
    %v2872 = vpop.permute.xlu0 %2871
    %v2873 = vsel %vm98, %v2866, %v2868
    %v2874 = vsel %vm98, %v2868, %v2870
    %v2875 = vsel %vm98, %v2870, %v2872
    %v2881 = vadd.f32 %v2817, %v2866
    %v2882 = vadd.f32 %v2818, %v2873
    %v2883 = vadd.f32 %v2819, %v2874
    %v2884 = vadd.f32 %v2820, %v2875
    %v2885 = vadd.f32 %v2821, %v2872
    %2886 = vset.pattern.permute.xlu0 25
    %2887 = vperm.xlu0 %2886, %v1620
    %v2888 = vpop.permute.xlu0 %2887
    %v2890 = vperm.slane %v2837, 1
    %v2891 = vperm.slane %v2837, 5
    %v2892 = vperm.slane %v2838, 1
    %v2893 = vperm.slane %v2838, 5
    %v2898 = vperm.slane %v2890, 1
    %v2899 = vperm.slane %v2891, 1
    %v2900 = vperm.slane %v2892, 1
    %v2901 = vperm.slane %v2893, 1
    %v2902 = vmul.f32 %v2888, %v2898
    %v2903 = vmul.f32 %v2888, %v2899
    %v2904 = vmul.f32 %v2888, %v2900
    %v2905 = vmul.f32 %v2888, %v2901
    %2910 = vrot.lane.b32.xlu0 %v2902, 111
    %v2911 = vpop.permute.xlu0 %2910
    %2912 = vrot.lane.b32.xlu0 %v2903, 111
    %v2913 = vpop.permute.xlu0 %2912
    %2914 = vrot.lane.b32.xlu0 %v2904, 111
    %v2915 = vpop.permute.xlu0 %2914
    %2916 = vrot.lane.b32.xlu0 %v2905, 111
    %v2917 = vpop.permute.xlu0 %2916
    %v2918 = vsel %vm98, %v2911, %v2913
    %v2919 = vsel %vm98, %v2913, %v2915
    %v2920 = vsel %vm98, %v2915, %v2917
    %v2926 = vadd.f32 %v2881, %v2911
    %v2927 = vadd.f32 %v2882, %v2918
    %v2928 = vadd.f32 %v2883, %v2919
    %v2929 = vadd.f32 %v2884, %v2920
    %v2930 = vadd.f32 %v2885, %v2917
    %2931 = vset.pattern.permute.xlu0 26
    %2932 = vperm.xlu0 %2931, %v1620
    %v2933 = vpop.permute.xlu0 %2932
    %v2935 = vperm.slane %v2837, 2
    %v2936 = vperm.slane %v2837, 6
    %v2937 = vperm.slane %v2838, 2
    %v2938 = vperm.slane %v2838, 6
    %v2943 = vperm.slane %v2935, 2
    %v2944 = vperm.slane %v2936, 2
    %v2945 = vperm.slane %v2937, 2
    %v2946 = vperm.slane %v2938, 2
    %v2947 = vmul.f32 %v2933, %v2943
    %v2948 = vmul.f32 %v2933, %v2944
    %v2949 = vmul.f32 %v2933, %v2945
    %v2950 = vmul.f32 %v2933, %v2946
    %2955 = vrot.lane.b32.xlu0 %v2947, 111
    %v2956 = vpop.permute.xlu0 %2955
    %2957 = vrot.lane.b32.xlu0 %v2948, 111
    %v2958 = vpop.permute.xlu0 %2957
    %2959 = vrot.lane.b32.xlu0 %v2949, 111
    %v2960 = vpop.permute.xlu0 %2959
    %2961 = vrot.lane.b32.xlu0 %v2950, 111
    %v2962 = vpop.permute.xlu0 %2961
    %v2963 = vsel %vm98, %v2956, %v2958
    %v2964 = vsel %vm98, %v2958, %v2960
    %v2965 = vsel %vm98, %v2960, %v2962
    %v2971 = vadd.f32 %v2926, %v2956
    %v2972 = vadd.f32 %v2927, %v2963
    %v2973 = vadd.f32 %v2928, %v2964
    %v2974 = vadd.f32 %v2929, %v2965
    %v2975 = vadd.f32 %v2930, %v2962
    %2976 = vset.pattern.permute.xlu0 27
    %2977 = vperm.xlu0 %2976, %v1620
    %v2978 = vpop.permute.xlu0 %2977
    %v2980 = vperm.slane %v2837, 3
    %v2981 = vperm.slane %v2837, 7
    %v2982 = vperm.slane %v2838, 3
    %v2983 = vperm.slane %v2838, 7
    %v2988 = vperm.slane %v2980, 3
    %v2989 = vperm.slane %v2981, 3
    %v2990 = vperm.slane %v2982, 3
    %v2991 = vperm.slane %v2983, 3
    %v2992 = vmul.f32 %v2978, %v2988
    %v2993 = vmul.f32 %v2978, %v2989
    %v2994 = vmul.f32 %v2978, %v2990
    %v2995 = vmul.f32 %v2978, %v2991
    %3000 = vrot.lane.b32.xlu0 %v2992, 111
    %v3001 = vpop.permute.xlu0 %3000
    %3002 = vrot.lane.b32.xlu0 %v2993, 111
    %v3003 = vpop.permute.xlu0 %3002
    %3004 = vrot.lane.b32.xlu0 %v2994, 111
    %v3005 = vpop.permute.xlu0 %3004
    %3006 = vrot.lane.b32.xlu0 %v2995, 111
    %v3007 = vpop.permute.xlu0 %3006
    %v3008 = vsel %vm98, %v3001, %v3003
    %v3009 = vsel %vm98, %v3003, %v3005
    %v3010 = vsel %vm98, %v3005, %v3007
    %v3016 = vadd.f32 %v2971, %v3001
    %v3017 = vadd.f32 %v2972, %v3008
    %v3018 = vadd.f32 %v2973, %v3009
    %v3019 = vadd.f32 %v2974, %v3010
    %v3020 = vadd.f32 %v2975, %v3007
    %3021 = vrot.lane.b32.xlu0 %v1649, 112
    %v3022 = vpop.permute.xlu0 %3021
    %3023 = vrot.lane.b32.xlu0 %v1650, 112
    %v3024 = vpop.permute.xlu0 %3023
    %3025 = vrot.lane.b32.xlu0 %v1651, 112
    %v3026 = vpop.permute.xlu0 %3025
    %v3027 = vrot.slane %v3022, 4
    %v3028 = vrot.slane %v3024, 4
    %v3029 = vrot.slane %v3026, 4
    %v3030 = vsel %vm89, %v3027, %v3028
    %v3031 = vsel %vm217, %v3030, %v3024
    %v3032 = vsel %vm89, %v3028, %v3029
    %v3033 = vsel %vm217, %v3032, %v3026
    %v3036 = vmul.f32 %v3031, %v1294
    %v3037 = vmul.f32 %v3033, %v1295
    %3038 = vset.pattern.permute.xlu0 28
    %3039 = vperm.xlu0 %3038, %v1620
    %v3040 = vpop.permute.xlu0 %3039
    %v3044 = vperm.slane %v3036, 0
    %v3045 = vperm.slane %v3036, 4
    %v3046 = vperm.slane %v3037, 0
    %v3047 = vperm.slane %v3037, 4
    %v3052 = vperm.slane %v3044, 0
    %v3053 = vperm.slane %v3045, 0
    %v3054 = vperm.slane %v3046, 0
    %v3055 = vperm.slane %v3047, 0
    %v3056 = vmul.f32 %v3040, %v3052
    %v3057 = vmul.f32 %v3040, %v3053
    %v3058 = vmul.f32 %v3040, %v3054
    %v3059 = vmul.f32 %v3040, %v3055
    %3064 = vrot.lane.b32.xlu0 %v3056, 111
    %v3065 = vpop.permute.xlu0 %3064
    %3066 = vrot.lane.b32.xlu0 %v3057, 111
    %v3067 = vpop.permute.xlu0 %3066
    %3068 = vrot.lane.b32.xlu0 %v3058, 111
    %v3069 = vpop.permute.xlu0 %3068
    %3070 = vrot.lane.b32.xlu0 %v3059, 111
    %v3071 = vpop.permute.xlu0 %3070
    %v3072 = vsel %vm98, %v3065, %v3067
    %v3073 = vsel %vm98, %v3067, %v3069
    %v3074 = vsel %vm98, %v3069, %v3071
    %v3080 = vadd.f32 %v3016, %v3065
    %v3081 = vadd.f32 %v3017, %v3072
    %v3082 = vadd.f32 %v3018, %v3073
    %v3083 = vadd.f32 %v3019, %v3074
    %v3084 = vadd.f32 %v3020, %v3071
    %3085 = vset.pattern.permute.xlu0 29
    %3086 = vperm.xlu0 %3085, %v1620
    %v3087 = vpop.permute.xlu0 %3086
    %v3089 = vperm.slane %v3036, 1
    %v3090 = vperm.slane %v3036, 5
    %v3091 = vperm.slane %v3037, 1
    %v3092 = vperm.slane %v3037, 5
    %v3097 = vperm.slane %v3089, 1
    %v3098 = vperm.slane %v3090, 1
    %v3099 = vperm.slane %v3091, 1
    %v3100 = vperm.slane %v3092, 1
    %v3101 = vmul.f32 %v3087, %v3097
    %v3102 = vmul.f32 %v3087, %v3098
    %v3103 = vmul.f32 %v3087, %v3099
    %v3104 = vmul.f32 %v3087, %v3100
    %3109 = vrot.lane.b32.xlu0 %v3101, 111
    %v3110 = vpop.permute.xlu0 %3109
    %3111 = vrot.lane.b32.xlu0 %v3102, 111
    %v3112 = vpop.permute.xlu0 %3111
    %3113 = vrot.lane.b32.xlu0 %v3103, 111
    %v3114 = vpop.permute.xlu0 %3113
    %3115 = vrot.lane.b32.xlu0 %v3104, 111
    %v3116 = vpop.permute.xlu0 %3115
    %v3117 = vsel %vm98, %v3110, %v3112
    %v3118 = vsel %vm98, %v3112, %v3114
    %v3119 = vsel %vm98, %v3114, %v3116
    %v3125 = vadd.f32 %v3080, %v3110
    %v3126 = vadd.f32 %v3081, %v3117
    %v3127 = vadd.f32 %v3082, %v3118
    %v3128 = vadd.f32 %v3083, %v3119
    %v3129 = vadd.f32 %v3084, %v3116
    %3130 = vset.pattern.permute.xlu0 30
    %3131 = vperm.xlu0 %3130, %v1620
    %v3132 = vpop.permute.xlu0 %3131
    %v3134 = vperm.slane %v3036, 2
    %v3135 = vperm.slane %v3036, 6
    %v3136 = vperm.slane %v3037, 2
    %v3137 = vperm.slane %v3037, 6
    %v3142 = vperm.slane %v3134, 2
    %v3143 = vperm.slane %v3135, 2
    %v3144 = vperm.slane %v3136, 2
    %v3145 = vperm.slane %v3137, 2
    %v3146 = vmul.f32 %v3132, %v3142
    %v3147 = vmul.f32 %v3132, %v3143
    %v3148 = vmul.f32 %v3132, %v3144
    %v3149 = vmul.f32 %v3132, %v3145
    %3154 = vrot.lane.b32.xlu0 %v3146, 111
    %v3155 = vpop.permute.xlu0 %3154
    %3156 = vrot.lane.b32.xlu0 %v3147, 111
    %v3157 = vpop.permute.xlu0 %3156
    %3158 = vrot.lane.b32.xlu0 %v3148, 111
    %v3159 = vpop.permute.xlu0 %3158
    %3160 = vrot.lane.b32.xlu0 %v3149, 111
    %v3161 = vpop.permute.xlu0 %3160
    %v3162 = vsel %vm98, %v3155, %v3157
    %v3163 = vsel %vm98, %v3157, %v3159
    %v3164 = vsel %vm98, %v3159, %v3161
    %v3170 = vadd.f32 %v3125, %v3155
    %v3171 = vadd.f32 %v3126, %v3162
    %v3172 = vadd.f32 %v3127, %v3163
    %v3173 = vadd.f32 %v3128, %v3164
    %v3174 = vadd.f32 %v3129, %v3161
    %3175 = vset.pattern.permute.xlu0 31
    %3176 = vperm.xlu0 %3175, %v1620
    %v3177 = vpop.permute.xlu0 %3176
    %v3179 = vperm.slane %v3036, 3
    %v3180 = vperm.slane %v3036, 7
    %v3181 = vperm.slane %v3037, 3
    %v3182 = vperm.slane %v3037, 7
    %v3187 = vperm.slane %v3179, 3
    %v3188 = vperm.slane %v3180, 3
    %v3189 = vperm.slane %v3181, 3
    %v3190 = vperm.slane %v3182, 3
    %v3191 = vmul.f32 %v3177, %v3187
    %v3192 = vmul.f32 %v3177, %v3188
    %v3193 = vmul.f32 %v3177, %v3189
    %v3194 = vmul.f32 %v3177, %v3190
    %3199 = vrot.lane.b32.xlu0 %v3191, 111
    %v3200 = vpop.permute.xlu0 %3199
    %3201 = vrot.lane.b32.xlu0 %v3192, 111
    %v3202 = vpop.permute.xlu0 %3201
    %3203 = vrot.lane.b32.xlu0 %v3193, 111
    %v3204 = vpop.permute.xlu0 %3203
    %3205 = vrot.lane.b32.xlu0 %v3194, 111
    %v3206 = vpop.permute.xlu0 %3205
    %v3207 = vsel %vm98, %v3200, %v3202
    %v3208 = vsel %vm98, %v3202, %v3204
    %v3209 = vsel %vm98, %v3204, %v3206
    %v3215 = vadd.f32 %v3170, %v3200
    %v3216 = vadd.f32 %v3171, %v3207
    %v3217 = vadd.f32 %v3172, %v3208
    %v3218 = vadd.f32 %v3173, %v3209
    %v3219 = vadd.f32 %v3174, %v3206
    %3220 = vrot.lane.b32.xlu0 %v1649, 111
    %v3221 = vpop.permute.xlu0 %3220
    %3222 = vrot.lane.b32.xlu0 %v1650, 111
    %v3223 = vpop.permute.xlu0 %3222
    %3224 = vrot.lane.b32.xlu0 %v1651, 111
    %v3225 = vpop.permute.xlu0 %3224
    %v3226 = vrot.slane %v3221, 4
    %v3227 = vrot.slane %v3223, 4
    %v3228 = vrot.slane %v3225, 4
    %v3229 = vsel %vm89, %v3226, %v3227
    %v3230 = vsel %vm98, %v3229, %v3223
    %v3231 = vsel %vm89, %v3227, %v3228
    %v3232 = vsel %vm98, %v3231, %v3225
    %v3235 = vmul.f32 %v3230, %v1462
    %v3236 = vmul.f32 %v3232, %v1463
    %3237 = vset.pattern.permute.xlu0 32
    %3238 = vperm.xlu0 %3237, %v1620
    %v3239 = vpop.permute.xlu0 %3238
    %v3243 = vperm.slane %v3235, 0
    %v3244 = vperm.slane %v3235, 4
    %v3245 = vperm.slane %v3236, 0
    %v3246 = vperm.slane %v3236, 4
    %v3251 = vperm.slane %v3243, 0
    %v3252 = vperm.slane %v3244, 0
    %v3253 = vperm.slane %v3245, 0
    %v3254 = vperm.slane %v3246, 0
    %v3255 = vmul.f32 %v3239, %v3251
    %v3256 = vmul.f32 %v3239, %v3252
    %v3257 = vmul.f32 %v3239, %v3253
    %v3258 = vmul.f32 %v3239, %v3254
    %3263 = vrot.lane.b32.xlu0 %v3255, 111
    %v3264 = vpop.permute.xlu0 %3263
    %3265 = vrot.lane.b32.xlu0 %v3256, 111
    %v3266 = vpop.permute.xlu0 %3265
    %3267 = vrot.lane.b32.xlu0 %v3257, 111
    %v3268 = vpop.permute.xlu0 %3267
    %3269 = vrot.lane.b32.xlu0 %v3258, 111
    %v3270 = vpop.permute.xlu0 %3269
    %v3271 = vsel %vm98, %v3264, %v3266
    %v3272 = vsel %vm98, %v3266, %v3268
    %v3273 = vsel %vm98, %v3268, %v3270
    %v3279 = vadd.f32 %v3215, %v3264
    %v3280 = vadd.f32 %v3216, %v3271
    %v3281 = vadd.f32 %v3217, %v3272
    %v3282 = vadd.f32 %v3218, %v3273
    %v3283 = vadd.f32 %v3219, %v3270
    %3284 = vset.pattern.permute.xlu0 33
    %3285 = vperm.xlu0 %3284, %v1620
    %v3286 = vpop.permute.xlu0 %3285
    %v3288 = vperm.slane %v3235, 1
    %v3289 = vperm.slane %v3235, 5
    %v3290 = vperm.slane %v3236, 1
    %v3291 = vperm.slane %v3236, 5
    %v3296 = vperm.slane %v3288, 1
    %v3297 = vperm.slane %v3289, 1
    %v3298 = vperm.slane %v3290, 1
    %v3299 = vperm.slane %v3291, 1
    %v3300 = vmul.f32 %v3286, %v3296
    %v3301 = vmul.f32 %v3286, %v3297
    %v3302 = vmul.f32 %v3286, %v3298
    %v3303 = vmul.f32 %v3286, %v3299
    %3308 = vrot.lane.b32.xlu0 %v3300, 111
    %v3309 = vpop.permute.xlu0 %3308
    %3310 = vrot.lane.b32.xlu0 %v3301, 111
    %v3311 = vpop.permute.xlu0 %3310
    %3312 = vrot.lane.b32.xlu0 %v3302, 111
    %v3313 = vpop.permute.xlu0 %3312
    %3314 = vrot.lane.b32.xlu0 %v3303, 111
    %v3315 = vpop.permute.xlu0 %3314
    %v3316 = vsel %vm98, %v3309, %v3311
    %v3317 = vsel %vm98, %v3311, %v3313
    %v3318 = vsel %vm98, %v3313, %v3315
    %v3324 = vadd.f32 %v3279, %v3309
    %v3325 = vadd.f32 %v3280, %v3316
    %v3326 = vadd.f32 %v3281, %v3317
    %v3327 = vadd.f32 %v3282, %v3318
    %v3328 = vadd.f32 %v3283, %v3315
    %3329 = vset.pattern.permute.xlu0 34
    %3330 = vperm.xlu0 %3329, %v1620
    %v3331 = vpop.permute.xlu0 %3330
    %v3333 = vperm.slane %v3235, 2
    %v3334 = vperm.slane %v3235, 6
    %v3335 = vperm.slane %v3236, 2
    %v3336 = vperm.slane %v3236, 6
    %v3341 = vperm.slane %v3333, 2
    %v3342 = vperm.slane %v3334, 2
    %v3343 = vperm.slane %v3335, 2
    %v3344 = vperm.slane %v3336, 2
    %v3345 = vmul.f32 %v3331, %v3341
    %v3346 = vmul.f32 %v3331, %v3342
    %v3347 = vmul.f32 %v3331, %v3343
    %v3348 = vmul.f32 %v3331, %v3344
    %3353 = vrot.lane.b32.xlu0 %v3345, 111
    %v3354 = vpop.permute.xlu0 %3353
    %3355 = vrot.lane.b32.xlu0 %v3346, 111
    %v3356 = vpop.permute.xlu0 %3355
    %3357 = vrot.lane.b32.xlu0 %v3347, 111
    %v3358 = vpop.permute.xlu0 %3357
    %3359 = vrot.lane.b32.xlu0 %v3348, 111
    %v3360 = vpop.permute.xlu0 %3359
    %v3361 = vsel %vm98, %v3354, %v3356
    %v3362 = vsel %vm98, %v3356, %v3358
    %v3363 = vsel %vm98, %v3358, %v3360
    %v3369 = vadd.f32 %v3324, %v3354
    %v3370 = vadd.f32 %v3325, %v3361
    %v3371 = vadd.f32 %v3326, %v3362
    %v3372 = vadd.f32 %v3327, %v3363
    %v3373 = vadd.f32 %v3328, %v3360
    %3374 = vset.pattern.permute.xlu0 35
    %3375 = vperm.xlu0 %3374, %v1620
    %v3376 = vpop.permute.xlu0 %3375
    %v3378 = vperm.slane %v3235, 3
    %v3379 = vperm.slane %v3235, 7
    %v3380 = vperm.slane %v3236, 3
    %v3381 = vperm.slane %v3236, 7
    %v3386 = vperm.slane %v3378, 3
    %v3387 = vperm.slane %v3379, 3
    %v3388 = vperm.slane %v3380, 3
    %v3389 = vperm.slane %v3381, 3
    %v3390 = vmul.f32 %v3376, %v3386
    %v3391 = vmul.f32 %v3376, %v3387
    %v3392 = vmul.f32 %v3376, %v3388
    %v3393 = vmul.f32 %v3376, %v3389
    %3398 = vrot.lane.b32.xlu0 %v3390, 111
    %v3399 = vpop.permute.xlu0 %3398
    %3400 = vrot.lane.b32.xlu0 %v3391, 111
    %v3401 = vpop.permute.xlu0 %3400
    %3402 = vrot.lane.b32.xlu0 %v3392, 111
    %v3403 = vpop.permute.xlu0 %3402
    %3404 = vrot.lane.b32.xlu0 %v3393, 111
    %v3405 = vpop.permute.xlu0 %3404
    %v3406 = vsel %vm98, %v3399, %v3401
    %v3407 = vsel %vm98, %v3401, %v3403
    %v3408 = vsel %vm98, %v3403, %v3405
    %v3414 = vadd.f32 %v3369, %v3399
    %v3415 = vadd.f32 %v3370, %v3406
    %v3416 = vadd.f32 %v3371, %v3407
    %v3417 = vadd.f32 %v3372, %v3408
    %v3418 = vadd.f32 %v3373, %v3405
    %3420 = vset.pattern.permute.xlu0 0
    %3421 = vperm.xlu0 %3420, %v1621
    %v3422 = vpop.permute.xlu0 %3421
    %v3424 = vadd.f32 %v3414, %v3422
    %v3425 = vadd.f32 %v3415, %v3422
    %v3426 = vadd.f32 %v3416, %v3422
    %v3427 = vadd.f32 %v3417, %v3422
    %v3428 = vadd.f32 %v3418, %v3422
    %v3429 = vmax.f32 %v3424, 0.0
    %v3430 = vmax.f32 %v3425, 0.0
    %v3431 = vmax.f32 %v3426, 0.0
    %v3432 = vmax.f32 %v3427, 0.0
    %v3433 = vmax.f32 %v3428, 0.0
    %v3434 = vld [vmem:[%s6] sm:$0xf]
    %v3435 = vld [vmem:[%s7] sm:$0xf]
    %v3441 = vrot.slane %v3430, 4
    %v3442 = vrot.slane %v3432, 4
    %v3443 = vsel %vm89, %v3429, %v3441
    %v3444 = vsel %vm89, %v3431, %v3442
    %3445 = vrot.lane.b32.xlu0 %v3443, 17
    %v3446 = vpop.permute.xlu0 %3445
    %3447 = vrot.lane.b32.xlu0 %v3444, 17
    %v3448 = vpop.permute.xlu0 %3447
    %3449 = vrot.lane.b32.xlu0 %v3433, 17
    %v3450 = vpop.permute.xlu0 %3449
    %v3451 = vrot.slane %v3446, 4
    %v3452 = vrot.slane %v3448, 4
    %v3453 = vrot.slane %v3450, 4
    %v3454 = vsel %vm89, %v3451, %v3452
    %v3455 = vsel %vm1641, %v3446, %v3454
    %v3456 = vsel %vm89, %v3452, %v3453
    %v3457 = vsel %vm1641, %v3448, %v3456
    %3460 = vst [vmem:[#allocation2 + $0x4] sm:$0xff] %v3455
    %3461 = vst [vmem:[#allocation2 + $0xc] sm:$0xff] %v3457
    %v3462 = vld [vmem:[#allocation2] sm:$0xff]
    %v3463 = vld [vmem:[#allocation2 + $0x8] sm:$0xff]
    %v3464 = vld [vmem:[#allocation2 + $0x10] sm:$0xff]
    %v3465 = vmul.f32 %v3462, %v99
    %v3466 = vmul.f32 %v3463, %v101
    %v3467 = vmul.f32 %v3464, %v97
    %3469 = vset.pattern.permute.xlu0 0
    %3470 = vperm.xlu0 %3469, %v3434
    %v3471 = vpop.permute.xlu0 %3470
    %v3476 = vperm.slane %v3465, 0
    %v3477 = vperm.slane %v3465, 4
    %v3478 = vperm.slane %v3466, 0
    %v3479 = vperm.slane %v3466, 4
    %v3480 = vperm.slane %v3467, 0
    %v3486 = vperm.slane %v3476, 0
    %v3487 = vperm.slane %v3477, 0
    %v3488 = vperm.slane %v3478, 0
    %v3489 = vperm.slane %v3479, 0
    %v3490 = vperm.slane %v3480, 0
    %v3491 = vmul.f32 %v3471, %v3486
    %v3492 = vmul.f32 %v3471, %v3487
    %v3493 = vmul.f32 %v3471, %v3488
    %v3494 = vmul.f32 %v3471, %v3489
    %v3495 = vmul.f32 %v3471, %v3490
    %v3496 = vadd.f32 %v3491, 0.0
    %v3497 = vadd.f32 %v3492, 0.0
    %v3498 = vadd.f32 %v3493, 0.0
    %v3499 = vadd.f32 %v3494, 0.0
    %v3500 = vadd.f32 %v3495, 0.0
    %3501 = vset.pattern.permute.xlu0 1
    %3502 = vperm.xlu0 %3501, %v3434
    %v3503 = vpop.permute.xlu0 %3502
    %v3505 = vperm.slane %v3465, 1
    %v3506 = vperm.slane %v3465, 5
    %v3507 = vperm.slane %v3466, 1
    %v3508 = vperm.slane %v3466, 5
    %v3509 = vperm.slane %v3467, 1
    %v3515 = vperm.slane %v3505, 1
    %v3516 = vperm.slane %v3506, 1
    %v3517 = vperm.slane %v3507, 1
    %v3518 = vperm.slane %v3508, 1
    %v3519 = vperm.slane %v3509, 1
    %v3520 = vmul.f32 %v3503, %v3515
    %v3521 = vmul.f32 %v3503, %v3516
    %v3522 = vmul.f32 %v3503, %v3517
    %v3523 = vmul.f32 %v3503, %v3518
    %v3524 = vmul.f32 %v3503, %v3519
    %v3525 = vadd.f32 %v3496, %v3520
    %v3526 = vadd.f32 %v3497, %v3521
    %v3527 = vadd.f32 %v3498, %v3522
    %v3528 = vadd.f32 %v3499, %v3523
    %v3529 = vadd.f32 %v3500, %v3524
    %3530 = vset.pattern.permute.xlu0 2
    %3531 = vperm.xlu0 %3530, %v3434
    %v3532 = vpop.permute.xlu0 %3531
    %v3534 = vperm.slane %v3465, 2
    %v3535 = vperm.slane %v3465, 6
    %v3536 = vperm.slane %v3466, 2
    %v3537 = vperm.slane %v3466, 6
    %v3538 = vperm.slane %v3467, 2
    %v3544 = vperm.slane %v3534, 2
    %v3545 = vperm.slane %v3535, 2
    %v3546 = vperm.slane %v3536, 2
    %v3547 = vperm.slane %v3537, 2
    %v3548 = vperm.slane %v3538, 2
    %v3549 = vmul.f32 %v3532, %v3544
    %v3550 = vmul.f32 %v3532, %v3545
    %v3551 = vmul.f32 %v3532, %v3546
    %v3552 = vmul.f32 %v3532, %v3547
    %v3553 = vmul.f32 %v3532, %v3548
    %v3554 = vadd.f32 %v3525, %v3549
    %v3555 = vadd.f32 %v3526, %v3550
    %v3556 = vadd.f32 %v3527, %v3551
    %v3557 = vadd.f32 %v3528, %v3552
    %v3558 = vadd.f32 %v3529, %v3553
    %3559 = vset.pattern.permute.xlu0 3
    %3560 = vperm.xlu0 %3559, %v3434
    %v3561 = vpop.permute.xlu0 %3560
    %v3563 = vperm.slane %v3465, 3
    %v3564 = vperm.slane %v3465, 7
    %v3565 = vperm.slane %v3466, 3
    %v3566 = vperm.slane %v3466, 7
    %v3567 = vperm.slane %v3467, 3
    %v3573 = vperm.slane %v3563, 3
    %v3574 = vperm.slane %v3564, 3
    %v3575 = vperm.slane %v3565, 3
    %v3576 = vperm.slane %v3566, 3
    %v3577 = vperm.slane %v3567, 3
    %v3578 = vmul.f32 %v3561, %v3573
    %v3579 = vmul.f32 %v3561, %v3574
    %v3580 = vmul.f32 %v3561, %v3575
    %v3581 = vmul.f32 %v3561, %v3576
    %v3582 = vmul.f32 %v3561, %v3577
    %v3583 = vadd.f32 %v3554, %v3578
    %v3584 = vadd.f32 %v3555, %v3579
    %v3585 = vadd.f32 %v3556, %v3580
    %v3586 = vadd.f32 %v3557, %v3581
    %v3587 = vadd.f32 %v3558, %v3582
    %v3588 = vmul.f32 %v3462, %v218
    %v3589 = vmul.f32 %v3463, %v220
    %v3590 = vmul.f32 %v3464, %v216
    %3591 = vset.pattern.permute.xlu0 4
    %3592 = vperm.xlu0 %3591, %v3434
    %v3593 = vpop.permute.xlu0 %3592
    %v3598 = vperm.slane %v3588, 0
    %v3599 = vperm.slane %v3588, 4
    %v3600 = vperm.slane %v3589, 0
    %v3601 = vperm.slane %v3589, 4
    %v3602 = vperm.slane %v3590, 0
    %v3608 = vperm.slane %v3598, 0
    %v3609 = vperm.slane %v3599, 0
    %v3610 = vperm.slane %v3600, 0
    %v3611 = vperm.slane %v3601, 0
    %v3612 = vperm.slane %v3602, 0
    %v3613 = vmul.f32 %v3593, %v3608
    %v3614 = vmul.f32 %v3593, %v3609
    %v3615 = vmul.f32 %v3593, %v3610
    %v3616 = vmul.f32 %v3593, %v3611
    %v3617 = vmul.f32 %v3593, %v3612
    %3623 = vrot.lane.b32.xlu0 %v3613, 127
    %v3624 = vpop.permute.xlu0 %3623
    %3625 = vrot.lane.b32.xlu0 %v3614, 127
    %v3626 = vpop.permute.xlu0 %3625
    %3627 = vrot.lane.b32.xlu0 %v3615, 127
    %v3628 = vpop.permute.xlu0 %3627
    %3629 = vrot.lane.b32.xlu0 %v3616, 127
    %v3630 = vpop.permute.xlu0 %3629
    %3631 = vrot.lane.b32.xlu0 %v3617, 127
    %v3632 = vpop.permute.xlu0 %3631
    %v3633 = vsel %vm269, %v3624, %v3626
    %v3634 = vsel %vm269, %v3626, %v3628
    %v3635 = vsel %vm269, %v3628, %v3630
    %v3636 = vsel %vm269, %v3630, %v3632
    %v3642 = vadd.f32 %v3583, %v3633
    %v3643 = vadd.f32 %v3584, %v3634
    %v3644 = vadd.f32 %v3585, %v3635
    %v3645 = vadd.f32 %v3586, %v3636
    %v3646 = vadd.f32 %v3587, %v3632
    %3647 = vset.pattern.permute.xlu0 5
    %3648 = vperm.xlu0 %3647, %v3434
    %v3649 = vpop.permute.xlu0 %3648
    %v3651 = vperm.slane %v3588, 1
    %v3652 = vperm.slane %v3588, 5
    %v3653 = vperm.slane %v3589, 1
    %v3654 = vperm.slane %v3589, 5
    %v3655 = vperm.slane %v3590, 1
    %v3661 = vperm.slane %v3651, 1
    %v3662 = vperm.slane %v3652, 1
    %v3663 = vperm.slane %v3653, 1
    %v3664 = vperm.slane %v3654, 1
    %v3665 = vperm.slane %v3655, 1
    %v3666 = vmul.f32 %v3649, %v3661
    %v3667 = vmul.f32 %v3649, %v3662
    %v3668 = vmul.f32 %v3649, %v3663
    %v3669 = vmul.f32 %v3649, %v3664
    %v3670 = vmul.f32 %v3649, %v3665
    %3676 = vrot.lane.b32.xlu0 %v3666, 127
    %v3677 = vpop.permute.xlu0 %3676
    %3678 = vrot.lane.b32.xlu0 %v3667, 127
    %v3679 = vpop.permute.xlu0 %3678
    %3680 = vrot.lane.b32.xlu0 %v3668, 127
    %v3681 = vpop.permute.xlu0 %3680
    %3682 = vrot.lane.b32.xlu0 %v3669, 127
    %v3683 = vpop.permute.xlu0 %3682
    %3684 = vrot.lane.b32.xlu0 %v3670, 127
    %v3685 = vpop.permute.xlu0 %3684
    %v3686 = vsel %vm269, %v3677, %v3679
    %v3687 = vsel %vm269, %v3679, %v3681
    %v3688 = vsel %vm269, %v3681, %v3683
    %v3689 = vsel %vm269, %v3683, %v3685
    %v3695 = vadd.f32 %v3642, %v3686
    %v3696 = vadd.f32 %v3643, %v3687
    %v3697 = vadd.f32 %v3644, %v3688
    %v3698 = vadd.f32 %v3645, %v3689
    %v3699 = vadd.f32 %v3646, %v3685
    %3700 = vset.pattern.permute.xlu0 6
    %3701 = vperm.xlu0 %3700, %v3434
    %v3702 = vpop.permute.xlu0 %3701
    %v3704 = vperm.slane %v3588, 2
    %v3705 = vperm.slane %v3588, 6
    %v3706 = vperm.slane %v3589, 2
    %v3707 = vperm.slane %v3589, 6
    %v3708 = vperm.slane %v3590, 2
    %v3714 = vperm.slane %v3704, 2
    %v3715 = vperm.slane %v3705, 2
    %v3716 = vperm.slane %v3706, 2
    %v3717 = vperm.slane %v3707, 2
    %v3718 = vperm.slane %v3708, 2
    %v3719 = vmul.f32 %v3702, %v3714
    %v3720 = vmul.f32 %v3702, %v3715
    %v3721 = vmul.f32 %v3702, %v3716
    %v3722 = vmul.f32 %v3702, %v3717
    %v3723 = vmul.f32 %v3702, %v3718
    %3729 = vrot.lane.b32.xlu0 %v3719, 127
    %v3730 = vpop.permute.xlu0 %3729
    %3731 = vrot.lane.b32.xlu0 %v3720, 127
    %v3732 = vpop.permute.xlu0 %3731
    %3733 = vrot.lane.b32.xlu0 %v3721, 127
    %v3734 = vpop.permute.xlu0 %3733
    %3735 = vrot.lane.b32.xlu0 %v3722, 127
    %v3736 = vpop.permute.xlu0 %3735
    %3737 = vrot.lane.b32.xlu0 %v3723, 127
    %v3738 = vpop.permute.xlu0 %3737
    %v3739 = vsel %vm269, %v3730, %v3732
    %v3740 = vsel %vm269, %v3732, %v3734
    %v3741 = vsel %vm269, %v3734, %v3736
    %v3742 = vsel %vm269, %v3736, %v3738
    %v3748 = vadd.f32 %v3695, %v3739
    %v3749 = vadd.f32 %v3696, %v3740
    %v3750 = vadd.f32 %v3697, %v3741
    %v3751 = vadd.f32 %v3698, %v3742
    %v3752 = vadd.f32 %v3699, %v3738
    %3753 = vset.pattern.permute.xlu0 7
    %3754 = vperm.xlu0 %3753, %v3434
    %v3755 = vpop.permute.xlu0 %3754
    %v3757 = vperm.slane %v3588, 3
    %v3758 = vperm.slane %v3588, 7
    %v3759 = vperm.slane %v3589, 3
    %v3760 = vperm.slane %v3589, 7
    %v3761 = vperm.slane %v3590, 3
    %v3767 = vperm.slane %v3757, 3
    %v3768 = vperm.slane %v3758, 3
    %v3769 = vperm.slane %v3759, 3
    %v3770 = vperm.slane %v3760, 3
    %v3771 = vperm.slane %v3761, 3
    %v3772 = vmul.f32 %v3755, %v3767
    %v3773 = vmul.f32 %v3755, %v3768
    %v3774 = vmul.f32 %v3755, %v3769
    %v3775 = vmul.f32 %v3755, %v3770
    %v3776 = vmul.f32 %v3755, %v3771
    %3782 = vrot.lane.b32.xlu0 %v3772, 127
    %v3783 = vpop.permute.xlu0 %3782
    %3784 = vrot.lane.b32.xlu0 %v3773, 127
    %v3785 = vpop.permute.xlu0 %3784
    %3786 = vrot.lane.b32.xlu0 %v3774, 127
    %v3787 = vpop.permute.xlu0 %3786
    %3788 = vrot.lane.b32.xlu0 %v3775, 127
    %v3789 = vpop.permute.xlu0 %3788
    %3790 = vrot.lane.b32.xlu0 %v3776, 127
    %v3791 = vpop.permute.xlu0 %3790
    %v3792 = vsel %vm269, %v3783, %v3785
    %v3793 = vsel %vm269, %v3785, %v3787
    %v3794 = vsel %vm269, %v3787, %v3789
    %v3795 = vsel %vm269, %v3789, %v3791
    %v3801 = vadd.f32 %v3748, %v3792
    %v3802 = vadd.f32 %v3749, %v3793
    %v3803 = vadd.f32 %v3750, %v3794
    %v3804 = vadd.f32 %v3751, %v3795
    %v3805 = vadd.f32 %v3752, %v3791
    %v3806 = vmul.f32 %v3462, %v409
    %v3807 = vmul.f32 %v3463, %v411
    %v3808 = vmul.f32 %v3464, %v407
    %3809 = vset.pattern.permute.xlu0 8
    %3810 = vperm.xlu0 %3809, %v3434
    %v3811 = vpop.permute.xlu0 %3810
    %v3816 = vperm.slane %v3806, 0
    %v3817 = vperm.slane %v3806, 4
    %v3818 = vperm.slane %v3807, 0
    %v3819 = vperm.slane %v3807, 4
    %v3820 = vperm.slane %v3808, 0
    %v3826 = vperm.slane %v3816, 0
    %v3827 = vperm.slane %v3817, 0
    %v3828 = vperm.slane %v3818, 0
    %v3829 = vperm.slane %v3819, 0
    %v3830 = vperm.slane %v3820, 0
    %v3831 = vmul.f32 %v3811, %v3826
    %v3832 = vmul.f32 %v3811, %v3827
    %v3833 = vmul.f32 %v3811, %v3828
    %v3834 = vmul.f32 %v3811, %v3829
    %v3835 = vmul.f32 %v3811, %v3830
    %3841 = vrot.lane.b32.xlu0 %v3831, 126
    %v3842 = vpop.permute.xlu0 %3841
    %3843 = vrot.lane.b32.xlu0 %v3832, 126
    %v3844 = vpop.permute.xlu0 %3843
    %3845 = vrot.lane.b32.xlu0 %v3833, 126
    %v3846 = vpop.permute.xlu0 %3845
    %3847 = vrot.lane.b32.xlu0 %v3834, 126
    %v3848 = vpop.permute.xlu0 %3847
    %3849 = vrot.lane.b32.xlu0 %v3835, 126
    %v3850 = vpop.permute.xlu0 %3849
    %v3851 = vsel %vm460, %v3842, %v3844
    %v3852 = vsel %vm460, %v3844, %v3846
    %v3853 = vsel %vm460, %v3846, %v3848
    %v3854 = vsel %vm460, %v3848, %v3850
    %v3860 = vadd.f32 %v3801, %v3851
    %v3861 = vadd.f32 %v3802, %v3852
    %v3862 = vadd.f32 %v3803, %v3853
    %v3863 = vadd.f32 %v3804, %v3854
    %v3864 = vadd.f32 %v3805, %v3850
    %3865 = vset.pattern.permute.xlu0 9
    %3866 = vperm.xlu0 %3865, %v3434
    %v3867 = vpop.permute.xlu0 %3866
    %v3869 = vperm.slane %v3806, 1
    %v3870 = vperm.slane %v3806, 5
    %v3871 = vperm.slane %v3807, 1
    %v3872 = vperm.slane %v3807, 5
    %v3873 = vperm.slane %v3808, 1
    %v3879 = vperm.slane %v3869, 1
    %v3880 = vperm.slane %v3870, 1
    %v3881 = vperm.slane %v3871, 1
    %v3882 = vperm.slane %v3872, 1
    %v3883 = vperm.slane %v3873, 1
    %v3884 = vmul.f32 %v3867, %v3879
    %v3885 = vmul.f32 %v3867, %v3880
    %v3886 = vmul.f32 %v3867, %v3881
    %v3887 = vmul.f32 %v3867, %v3882
    %v3888 = vmul.f32 %v3867, %v3883
    %3894 = vrot.lane.b32.xlu0 %v3884, 126
    %v3895 = vpop.permute.xlu0 %3894
    %3896 = vrot.lane.b32.xlu0 %v3885, 126
    %v3897 = vpop.permute.xlu0 %3896
    %3898 = vrot.lane.b32.xlu0 %v3886, 126
    %v3899 = vpop.permute.xlu0 %3898
    %3900 = vrot.lane.b32.xlu0 %v3887, 126
    %v3901 = vpop.permute.xlu0 %3900
    %3902 = vrot.lane.b32.xlu0 %v3888, 126
    %v3903 = vpop.permute.xlu0 %3902
    %v3904 = vsel %vm460, %v3895, %v3897
    %v3905 = vsel %vm460, %v3897, %v3899
    %v3906 = vsel %vm460, %v3899, %v3901
    %v3907 = vsel %vm460, %v3901, %v3903
    %v3913 = vadd.f32 %v3860, %v3904
    %v3914 = vadd.f32 %v3861, %v3905
    %v3915 = vadd.f32 %v3862, %v3906
    %v3916 = vadd.f32 %v3863, %v3907
    %v3917 = vadd.f32 %v3864, %v3903
    %3918 = vset.pattern.permute.xlu0 10
    %3919 = vperm.xlu0 %3918, %v3434
    %v3920 = vpop.permute.xlu0 %3919
    %v3922 = vperm.slane %v3806, 2
    %v3923 = vperm.slane %v3806, 6
    %v3924 = vperm.slane %v3807, 2
    %v3925 = vperm.slane %v3807, 6
    %v3926 = vperm.slane %v3808, 2
    %v3932 = vperm.slane %v3922, 2
    %v3933 = vperm.slane %v3923, 2
    %v3934 = vperm.slane %v3924, 2
    %v3935 = vperm.slane %v3925, 2
    %v3936 = vperm.slane %v3926, 2
    %v3937 = vmul.f32 %v3920, %v3932
    %v3938 = vmul.f32 %v3920, %v3933
    %v3939 = vmul.f32 %v3920, %v3934
    %v3940 = vmul.f32 %v3920, %v3935
    %v3941 = vmul.f32 %v3920, %v3936
    %3947 = vrot.lane.b32.xlu0 %v3937, 126
    %v3948 = vpop.permute.xlu0 %3947
    %3949 = vrot.lane.b32.xlu0 %v3938, 126
    %v3950 = vpop.permute.xlu0 %3949
    %3951 = vrot.lane.b32.xlu0 %v3939, 126
    %v3952 = vpop.permute.xlu0 %3951
    %3953 = vrot.lane.b32.xlu0 %v3940, 126
    %v3954 = vpop.permute.xlu0 %3953
    %3955 = vrot.lane.b32.xlu0 %v3941, 126
    %v3956 = vpop.permute.xlu0 %3955
    %v3957 = vsel %vm460, %v3948, %v3950
    %v3958 = vsel %vm460, %v3950, %v3952
    %v3959 = vsel %vm460, %v3952, %v3954
    %v3960 = vsel %vm460, %v3954, %v3956
    %v3966 = vadd.f32 %v3913, %v3957
    %v3967 = vadd.f32 %v3914, %v3958
    %v3968 = vadd.f32 %v3915, %v3959
    %v3969 = vadd.f32 %v3916, %v3960
    %v3970 = vadd.f32 %v3917, %v3956
    %3971 = vset.pattern.permute.xlu0 11
    %3972 = vperm.xlu0 %3971, %v3434
    %v3973 = vpop.permute.xlu0 %3972
    %v3975 = vperm.slane %v3806, 3
    %v3976 = vperm.slane %v3806, 7
    %v3977 = vperm.slane %v3807, 3
    %v3978 = vperm.slane %v3807, 7
    %v3979 = vperm.slane %v3808, 3
    %v3985 = vperm.slane %v3975, 3
    %v3986 = vperm.slane %v3976, 3
    %v3987 = vperm.slane %v3977, 3
    %v3988 = vperm.slane %v3978, 3
    %v3989 = vperm.slane %v3979, 3
    %v3990 = vmul.f32 %v3973, %v3985
    %v3991 = vmul.f32 %v3973, %v3986
    %v3992 = vmul.f32 %v3973, %v3987
    %v3993 = vmul.f32 %v3973, %v3988
    %v3994 = vmul.f32 %v3973, %v3989
    %4000 = vrot.lane.b32.xlu0 %v3990, 126
    %v4001 = vpop.permute.xlu0 %4000
    %4002 = vrot.lane.b32.xlu0 %v3991, 126
    %v4003 = vpop.permute.xlu0 %4002
    %4004 = vrot.lane.b32.xlu0 %v3992, 126
    %v4005 = vpop.permute.xlu0 %4004
    %4006 = vrot.lane.b32.xlu0 %v3993, 126
    %v4007 = vpop.permute.xlu0 %4006
    %4008 = vrot.lane.b32.xlu0 %v3994, 126
    %v4009 = vpop.permute.xlu0 %4008
    %v4010 = vsel %vm460, %v4001, %v4003
    %v4011 = vsel %vm460, %v4003, %v4005
    %v4012 = vsel %vm460, %v4005, %v4007
    %v4013 = vsel %vm460, %v4007, %v4009
    %v4019 = vadd.f32 %v3966, %v4010
    %v4020 = vadd.f32 %v3967, %v4011
    %v4021 = vadd.f32 %v3968, %v4012
    %v4022 = vadd.f32 %v3969, %v4013
    %v4023 = vadd.f32 %v3970, %v4009
    %v4024 = vmul.f32 %v3462, %v599
    %v4025 = vmul.f32 %v3463, %v601
    %v4026 = vmul.f32 %v3464, %v598
    %4027 = vset.pattern.permute.xlu0 12
    %4028 = vperm.xlu0 %4027, %v3434
    %v4029 = vpop.permute.xlu0 %4028
    %v4034 = vperm.slane %v4024, 0
    %v4035 = vperm.slane %v4024, 4
    %v4036 = vperm.slane %v4025, 0
    %v4037 = vperm.slane %v4025, 4
    %v4038 = vperm.slane %v4026, 0
    %v4044 = vperm.slane %v4034, 0
    %v4045 = vperm.slane %v4035, 0
    %v4046 = vperm.slane %v4036, 0
    %v4047 = vperm.slane %v4037, 0
    %v4048 = vperm.slane %v4038, 0
    %v4049 = vmul.f32 %v4029, %v4044
    %v4050 = vmul.f32 %v4029, %v4045
    %v4051 = vmul.f32 %v4029, %v4046
    %v4052 = vmul.f32 %v4029, %v4047
    %v4053 = vmul.f32 %v4029, %v4048
    %4059 = vrot.lane.b32.xlu0 %v4049, 112
    %v4060 = vpop.permute.xlu0 %4059
    %4061 = vrot.lane.b32.xlu0 %v4050, 112
    %v4062 = vpop.permute.xlu0 %4061
    %4063 = vrot.lane.b32.xlu0 %v4051, 112
    %v4064 = vpop.permute.xlu0 %4063
    %4065 = vrot.lane.b32.xlu0 %v4052, 112
    %v4066 = vpop.permute.xlu0 %4065
    %4067 = vrot.lane.b32.xlu0 %v4053, 112
    %v4068 = vpop.permute.xlu0 %4067
    %v4069 = vsel %vm217, %v4060, %v4062
    %v4070 = vsel %vm217, %v4062, %v4064
    %v4071 = vsel %vm217, %v4064, %v4066
    %v4072 = vsel %vm217, %v4066, %v4068
    %v4078 = vadd.f32 %v4019, %v4069
    %v4079 = vadd.f32 %v4020, %v4070
    %v4080 = vadd.f32 %v4021, %v4071
    %v4081 = vadd.f32 %v4022, %v4072
    %v4082 = vadd.f32 %v4023, %v4068
    %4083 = vset.pattern.permute.xlu0 13
    %4084 = vperm.xlu0 %4083, %v3434
    %v4085 = vpop.permute.xlu0 %4084
    %v4087 = vperm.slane %v4024, 1
    %v4088 = vperm.slane %v4024, 5
    %v4089 = vperm.slane %v4025, 1
    %v4090 = vperm.slane %v4025, 5
    %v4091 = vperm.slane %v4026, 1
    %v4097 = vperm.slane %v4087, 1
    %v4098 = vperm.slane %v4088, 1
    %v4099 = vperm.slane %v4089, 1
    %v4100 = vperm.slane %v4090, 1
    %v4101 = vperm.slane %v4091, 1
    %v4102 = vmul.f32 %v4085, %v4097
    %v4103 = vmul.f32 %v4085, %v4098
    %v4104 = vmul.f32 %v4085, %v4099
    %v4105 = vmul.f32 %v4085, %v4100
    %v4106 = vmul.f32 %v4085, %v4101
    %4112 = vrot.lane.b32.xlu0 %v4102, 112
    %v4113 = vpop.permute.xlu0 %4112
    %4114 = vrot.lane.b32.xlu0 %v4103, 112
    %v4115 = vpop.permute.xlu0 %4114
    %4116 = vrot.lane.b32.xlu0 %v4104, 112
    %v4117 = vpop.permute.xlu0 %4116
    %4118 = vrot.lane.b32.xlu0 %v4105, 112
    %v4119 = vpop.permute.xlu0 %4118
    %4120 = vrot.lane.b32.xlu0 %v4106, 112
    %v4121 = vpop.permute.xlu0 %4120
    %v4122 = vsel %vm217, %v4113, %v4115
    %v4123 = vsel %vm217, %v4115, %v4117
    %v4124 = vsel %vm217, %v4117, %v4119
    %v4125 = vsel %vm217, %v4119, %v4121
    %v4131 = vadd.f32 %v4078, %v4122
    %v4132 = vadd.f32 %v4079, %v4123
    %v4133 = vadd.f32 %v4080, %v4124
    %v4134 = vadd.f32 %v4081, %v4125
    %v4135 = vadd.f32 %v4082, %v4121
    %4136 = vset.pattern.permute.xlu0 14
    %4137 = vperm.xlu0 %4136, %v3434
    %v4138 = vpop.permute.xlu0 %4137
    %v4140 = vperm.slane %v4024, 2
    %v4141 = vperm.slane %v4024, 6
    %v4142 = vperm.slane %v4025, 2
    %v4143 = vperm.slane %v4025, 6
    %v4144 = vperm.slane %v4026, 2
    %v4150 = vperm.slane %v4140, 2
    %v4151 = vperm.slane %v4141, 2
    %v4152 = vperm.slane %v4142, 2
    %v4153 = vperm.slane %v4143, 2
    %v4154 = vperm.slane %v4144, 2
    %v4155 = vmul.f32 %v4138, %v4150
    %v4156 = vmul.f32 %v4138, %v4151
    %v4157 = vmul.f32 %v4138, %v4152
    %v4158 = vmul.f32 %v4138, %v4153
    %v4159 = vmul.f32 %v4138, %v4154
    %4165 = vrot.lane.b32.xlu0 %v4155, 112
    %v4166 = vpop.permute.xlu0 %4165
    %4167 = vrot.lane.b32.xlu0 %v4156, 112
    %v4168 = vpop.permute.xlu0 %4167
    %4169 = vrot.lane.b32.xlu0 %v4157, 112
    %v4170 = vpop.permute.xlu0 %4169
    %4171 = vrot.lane.b32.xlu0 %v4158, 112
    %v4172 = vpop.permute.xlu0 %4171
    %4173 = vrot.lane.b32.xlu0 %v4159, 112
    %v4174 = vpop.permute.xlu0 %4173
    %v4175 = vsel %vm217, %v4166, %v4168
    %v4176 = vsel %vm217, %v4168, %v4170
    %v4177 = vsel %vm217, %v4170, %v4172
    %v4178 = vsel %vm217, %v4172, %v4174
    %v4184 = vadd.f32 %v4131, %v4175
    %v4185 = vadd.f32 %v4132, %v4176
    %v4186 = vadd.f32 %v4133, %v4177
    %v4187 = vadd.f32 %v4134, %v4178
    %v4188 = vadd.f32 %v4135, %v4174
    %4189 = vset.pattern.permute.xlu0 15
    %4190 = vperm.xlu0 %4189, %v3434
    %v4191 = vpop.permute.xlu0 %4190
    %v4193 = vperm.slane %v4024, 3
    %v4194 = vperm.slane %v4024, 7
    %v4195 = vperm.slane %v4025, 3
    %v4196 = vperm.slane %v4025, 7
    %v4197 = vperm.slane %v4026, 3
    %v4203 = vperm.slane %v4193, 3
    %v4204 = vperm.slane %v4194, 3
    %v4205 = vperm.slane %v4195, 3
    %v4206 = vperm.slane %v4196, 3
    %v4207 = vperm.slane %v4197, 3
    %v4208 = vmul.f32 %v4191, %v4203
    %v4209 = vmul.f32 %v4191, %v4204
    %v4210 = vmul.f32 %v4191, %v4205
    %v4211 = vmul.f32 %v4191, %v4206
    %v4212 = vmul.f32 %v4191, %v4207
    %4218 = vrot.lane.b32.xlu0 %v4208, 112
    %v4219 = vpop.permute.xlu0 %4218
    %4220 = vrot.lane.b32.xlu0 %v4209, 112
    %v4221 = vpop.permute.xlu0 %4220
    %4222 = vrot.lane.b32.xlu0 %v4210, 112
    %v4223 = vpop.permute.xlu0 %4222
    %4224 = vrot.lane.b32.xlu0 %v4211, 112
    %v4225 = vpop.permute.xlu0 %4224
    %4226 = vrot.lane.b32.xlu0 %v4212, 112
    %v4227 = vpop.permute.xlu0 %4226
    %v4228 = vsel %vm217, %v4219, %v4221
    %v4229 = vsel %vm217, %v4221, %v4223
    %v4230 = vsel %vm217, %v4223, %v4225
    %v4231 = vsel %vm217, %v4225, %v4227
    %v4237 = vadd.f32 %v4184, %v4228
    %v4238 = vadd.f32 %v4185, %v4229
    %v4239 = vadd.f32 %v4186, %v4230
    %v4240 = vadd.f32 %v4187, %v4231
    %v4241 = vadd.f32 %v4188, %v4227
    %v4245 = vrot.slane %v3462, 4
    %v4246 = vrot.slane %v3463, 4
    %v4247 = vrot.slane %v3464, 4
    %v4248 = vsel %vm89, %v4245, %v4246
    %v4249 = vsel %vm89, %v4246, %v4247
    %v4252 = vmul.f32 %v4248, %v790
    %v4253 = vmul.f32 %v4249, %v791
    %4254 = vset.pattern.permute.xlu0 16
    %4255 = vperm.xlu0 %4254, %v3434
    %v4256 = vpop.permute.xlu0 %4255
    %v4260 = vperm.slane %v4252, 0
    %v4261 = vperm.slane %v4252, 4
    %v4262 = vperm.slane %v4253, 0
    %v4263 = vperm.slane %v4253, 4
    %v4268 = vperm.slane %v4260, 0
    %v4269 = vperm.slane %v4261, 0
    %v4270 = vperm.slane %v4262, 0
    %v4271 = vperm.slane %v4263, 0
    %v4272 = vmul.f32 %v4256, %v4268
    %v4273 = vmul.f32 %v4256, %v4269
    %v4274 = vmul.f32 %v4256, %v4270
    %v4275 = vmul.f32 %v4256, %v4271
    %4280 = vrot.lane.b32.xlu0 %v4272, 111
    %v4281 = vpop.permute.xlu0 %4280
    %4282 = vrot.lane.b32.xlu0 %v4273, 111
    %v4283 = vpop.permute.xlu0 %4282
    %4284 = vrot.lane.b32.xlu0 %v4274, 111
    %v4285 = vpop.permute.xlu0 %4284
    %4286 = vrot.lane.b32.xlu0 %v4275, 111
    %v4287 = vpop.permute.xlu0 %4286
    %v4288 = vsel %vm98, %v4281, %v4283
    %v4289 = vsel %vm98, %v4283, %v4285
    %v4290 = vsel %vm98, %v4285, %v4287
    %v4296 = vadd.f32 %v4237, %v4281
    %v4297 = vadd.f32 %v4238, %v4288
    %v4298 = vadd.f32 %v4239, %v4289
    %v4299 = vadd.f32 %v4240, %v4290
    %v4300 = vadd.f32 %v4241, %v4287
    %4301 = vset.pattern.permute.xlu0 17
    %4302 = vperm.xlu0 %4301, %v3434
    %v4303 = vpop.permute.xlu0 %4302
    %v4305 = vperm.slane %v4252, 1
    %v4306 = vperm.slane %v4252, 5
    %v4307 = vperm.slane %v4253, 1
    %v4308 = vperm.slane %v4253, 5
    %v4313 = vperm.slane %v4305, 1
    %v4314 = vperm.slane %v4306, 1
    %v4315 = vperm.slane %v4307, 1
    %v4316 = vperm.slane %v4308, 1
    %v4317 = vmul.f32 %v4303, %v4313
    %v4318 = vmul.f32 %v4303, %v4314
    %v4319 = vmul.f32 %v4303, %v4315
    %v4320 = vmul.f32 %v4303, %v4316
    %4325 = vrot.lane.b32.xlu0 %v4317, 111
    %v4326 = vpop.permute.xlu0 %4325
    %4327 = vrot.lane.b32.xlu0 %v4318, 111
    %v4328 = vpop.permute.xlu0 %4327
    %4329 = vrot.lane.b32.xlu0 %v4319, 111
    %v4330 = vpop.permute.xlu0 %4329
    %4331 = vrot.lane.b32.xlu0 %v4320, 111
    %v4332 = vpop.permute.xlu0 %4331
    %v4333 = vsel %vm98, %v4326, %v4328
    %v4334 = vsel %vm98, %v4328, %v4330
    %v4335 = vsel %vm98, %v4330, %v4332
    %v4341 = vadd.f32 %v4296, %v4326
    %v4342 = vadd.f32 %v4297, %v4333
    %v4343 = vadd.f32 %v4298, %v4334
    %v4344 = vadd.f32 %v4299, %v4335
    %v4345 = vadd.f32 %v4300, %v4332
    %4346 = vset.pattern.permute.xlu0 18
    %4347 = vperm.xlu0 %4346, %v3434
    %v4348 = vpop.permute.xlu0 %4347
    %v4350 = vperm.slane %v4252, 2
    %v4351 = vperm.slane %v4252, 6
    %v4352 = vperm.slane %v4253, 2
    %v4353 = vperm.slane %v4253, 6
    %v4358 = vperm.slane %v4350, 2
    %v4359 = vperm.slane %v4351, 2
    %v4360 = vperm.slane %v4352, 2
    %v4361 = vperm.slane %v4353, 2
    %v4362 = vmul.f32 %v4348, %v4358
    %v4363 = vmul.f32 %v4348, %v4359
    %v4364 = vmul.f32 %v4348, %v4360
    %v4365 = vmul.f32 %v4348, %v4361
    %4370 = vrot.lane.b32.xlu0 %v4362, 111
    %v4371 = vpop.permute.xlu0 %4370
    %4372 = vrot.lane.b32.xlu0 %v4363, 111
    %v4373 = vpop.permute.xlu0 %4372
    %4374 = vrot.lane.b32.xlu0 %v4364, 111
    %v4375 = vpop.permute.xlu0 %4374
    %4376 = vrot.lane.b32.xlu0 %v4365, 111
    %v4377 = vpop.permute.xlu0 %4376
    %v4378 = vsel %vm98, %v4371, %v4373
    %v4379 = vsel %vm98, %v4373, %v4375
    %v4380 = vsel %vm98, %v4375, %v4377
    %v4386 = vadd.f32 %v4341, %v4371
    %v4387 = vadd.f32 %v4342, %v4378
    %v4388 = vadd.f32 %v4343, %v4379
    %v4389 = vadd.f32 %v4344, %v4380
    %v4390 = vadd.f32 %v4345, %v4377
    %4391 = vset.pattern.permute.xlu0 19
    %4392 = vperm.xlu0 %4391, %v3434
    %v4393 = vpop.permute.xlu0 %4392
    %v4395 = vperm.slane %v4252, 3
    %v4396 = vperm.slane %v4252, 7
    %v4397 = vperm.slane %v4253, 3
    %v4398 = vperm.slane %v4253, 7
    %v4403 = vperm.slane %v4395, 3
    %v4404 = vperm.slane %v4396, 3
    %v4405 = vperm.slane %v4397, 3
    %v4406 = vperm.slane %v4398, 3
    %v4407 = vmul.f32 %v4393, %v4403
    %v4408 = vmul.f32 %v4393, %v4404
    %v4409 = vmul.f32 %v4393, %v4405
    %v4410 = vmul.f32 %v4393, %v4406
    %4415 = vrot.lane.b32.xlu0 %v4407, 111
    %v4416 = vpop.permute.xlu0 %4415
    %4417 = vrot.lane.b32.xlu0 %v4408, 111
    %v4418 = vpop.permute.xlu0 %4417
    %4419 = vrot.lane.b32.xlu0 %v4409, 111
    %v4420 = vpop.permute.xlu0 %4419
    %4421 = vrot.lane.b32.xlu0 %v4410, 111
    %v4422 = vpop.permute.xlu0 %4421
    %v4423 = vsel %vm98, %v4416, %v4418
    %v4424 = vsel %vm98, %v4418, %v4420
    %v4425 = vsel %vm98, %v4420, %v4422
    %v4431 = vadd.f32 %v4386, %v4416
    %v4432 = vadd.f32 %v4387, %v4423
    %v4433 = vadd.f32 %v4388, %v4424
    %v4434 = vadd.f32 %v4389, %v4425
    %v4435 = vadd.f32 %v4390, %v4422
    %4436 = vrot.lane.b32.xlu0 %v3462, 127
    %v4437 = vpop.permute.xlu0 %4436
    %4438 = vrot.lane.b32.xlu0 %v3463, 127
    %v4439 = vpop.permute.xlu0 %4438
    %4440 = vrot.lane.b32.xlu0 %v3464, 127
    %v4441 = vpop.permute.xlu0 %4440
    %v4442 = vrot.slane %v4437, 4
    %v4443 = vrot.slane %v4439, 4
    %v4444 = vrot.slane %v4441, 4
    %v4445 = vsel %vm89, %v4442, %v4443
    %v4446 = vsel %vm269, %v4445, %v4439
    %v4447 = vsel %vm89, %v4443, %v4444
    %v4448 = vsel %vm269, %v4447, %v4441
    %v4451 = vmul.f32 %v4446, %v958
    %v4452 = vmul.f32 %v4448, %v959
    %4453 = vset.pattern.permute.xlu0 20
    %4454 = vperm.xlu0 %4453, %v3434
    %v4455 = vpop.permute.xlu0 %4454
    %v4459 = vperm.slane %v4451, 0
    %v4460 = vperm.slane %v4451, 4
    %v4461 = vperm.slane %v4452, 0
    %v4462 = vperm.slane %v4452, 4
    %v4467 = vperm.slane %v4459, 0
    %v4468 = vperm.slane %v4460, 0
    %v4469 = vperm.slane %v4461, 0
    %v4470 = vperm.slane %v4462, 0
    %v4471 = vmul.f32 %v4455, %v4467
    %v4472 = vmul.f32 %v4455, %v4468
    %v4473 = vmul.f32 %v4455, %v4469
    %v4474 = vmul.f32 %v4455, %v4470
    %4479 = vrot.lane.b32.xlu0 %v4471, 111
    %v4480 = vpop.permute.xlu0 %4479
    %4481 = vrot.lane.b32.xlu0 %v4472, 111
    %v4482 = vpop.permute.xlu0 %4481
    %4483 = vrot.lane.b32.xlu0 %v4473, 111
    %v4484 = vpop.permute.xlu0 %4483
    %4485 = vrot.lane.b32.xlu0 %v4474, 111
    %v4486 = vpop.permute.xlu0 %4485
    %v4487 = vsel %vm98, %v4480, %v4482
    %v4488 = vsel %vm98, %v4482, %v4484
    %v4489 = vsel %vm98, %v4484, %v4486
    %v4495 = vadd.f32 %v4431, %v4480
    %v4496 = vadd.f32 %v4432, %v4487
    %v4497 = vadd.f32 %v4433, %v4488
    %v4498 = vadd.f32 %v4434, %v4489
    %v4499 = vadd.f32 %v4435, %v4486
    %4500 = vset.pattern.permute.xlu0 21
    %4501 = vperm.xlu0 %4500, %v3434
    %v4502 = vpop.permute.xlu0 %4501
    %v4504 = vperm.slane %v4451, 1
    %v4505 = vperm.slane %v4451, 5
    %v4506 = vperm.slane %v4452, 1
    %v4507 = vperm.slane %v4452, 5
    %v4512 = vperm.slane %v4504, 1
    %v4513 = vperm.slane %v4505, 1
    %v4514 = vperm.slane %v4506, 1
    %v4515 = vperm.slane %v4507, 1
    %v4516 = vmul.f32 %v4502, %v4512
    %v4517 = vmul.f32 %v4502, %v4513
    %v4518 = vmul.f32 %v4502, %v4514
    %v4519 = vmul.f32 %v4502, %v4515
    %4524 = vrot.lane.b32.xlu0 %v4516, 111
    %v4525 = vpop.permute.xlu0 %4524
    %4526 = vrot.lane.b32.xlu0 %v4517, 111
    %v4527 = vpop.permute.xlu0 %4526
    %4528 = vrot.lane.b32.xlu0 %v4518, 111
    %v4529 = vpop.permute.xlu0 %4528
    %4530 = vrot.lane.b32.xlu0 %v4519, 111
    %v4531 = vpop.permute.xlu0 %4530
    %v4532 = vsel %vm98, %v4525, %v4527
    %v4533 = vsel %vm98, %v4527, %v4529
    %v4534 = vsel %vm98, %v4529, %v4531
    %v4540 = vadd.f32 %v4495, %v4525
    %v4541 = vadd.f32 %v4496, %v4532
    %v4542 = vadd.f32 %v4497, %v4533
    %v4543 = vadd.f32 %v4498, %v4534
    %v4544 = vadd.f32 %v4499, %v4531
    %4545 = vset.pattern.permute.xlu0 22
    %4546 = vperm.xlu0 %4545, %v3434
    %v4547 = vpop.permute.xlu0 %4546
    %v4549 = vperm.slane %v4451, 2
    %v4550 = vperm.slane %v4451, 6
    %v4551 = vperm.slane %v4452, 2
    %v4552 = vperm.slane %v4452, 6
    %v4557 = vperm.slane %v4549, 2
    %v4558 = vperm.slane %v4550, 2
    %v4559 = vperm.slane %v4551, 2
    %v4560 = vperm.slane %v4552, 2
    %v4561 = vmul.f32 %v4547, %v4557
    %v4562 = vmul.f32 %v4547, %v4558
    %v4563 = vmul.f32 %v4547, %v4559
    %v4564 = vmul.f32 %v4547, %v4560
    %4569 = vrot.lane.b32.xlu0 %v4561, 111
    %v4570 = vpop.permute.xlu0 %4569
    %4571 = vrot.lane.b32.xlu0 %v4562, 111
    %v4572 = vpop.permute.xlu0 %4571
    %4573 = vrot.lane.b32.xlu0 %v4563, 111
    %v4574 = vpop.permute.xlu0 %4573
    %4575 = vrot.lane.b32.xlu0 %v4564, 111
    %v4576 = vpop.permute.xlu0 %4575
    %v4577 = vsel %vm98, %v4570, %v4572
    %v4578 = vsel %vm98, %v4572, %v4574
    %v4579 = vsel %vm98, %v4574, %v4576
    %v4585 = vadd.f32 %v4540, %v4570
    %v4586 = vadd.f32 %v4541, %v4577
    %v4587 = vadd.f32 %v4542, %v4578
    %v4588 = vadd.f32 %v4543, %v4579
    %v4589 = vadd.f32 %v4544, %v4576
    %4590 = vset.pattern.permute.xlu0 23
    %4591 = vperm.xlu0 %4590, %v3434
    %v4592 = vpop.permute.xlu0 %4591
    %v4594 = vperm.slane %v4451, 3
    %v4595 = vperm.slane %v4451, 7
    %v4596 = vperm.slane %v4452, 3
    %v4597 = vperm.slane %v4452, 7
    %v4602 = vperm.slane %v4594, 3
    %v4603 = vperm.slane %v4595, 3
    %v4604 = vperm.slane %v4596, 3
    %v4605 = vperm.slane %v4597, 3
    %v4606 = vmul.f32 %v4592, %v4602
    %v4607 = vmul.f32 %v4592, %v4603
    %v4608 = vmul.f32 %v4592, %v4604
    %v4609 = vmul.f32 %v4592, %v4605
    %4614 = vrot.lane.b32.xlu0 %v4606, 111
    %v4615 = vpop.permute.xlu0 %4614
    %4616 = vrot.lane.b32.xlu0 %v4607, 111
    %v4617 = vpop.permute.xlu0 %4616
    %4618 = vrot.lane.b32.xlu0 %v4608, 111
    %v4619 = vpop.permute.xlu0 %4618
    %4620 = vrot.lane.b32.xlu0 %v4609, 111
    %v4621 = vpop.permute.xlu0 %4620
    %v4622 = vsel %vm98, %v4615, %v4617
    %v4623 = vsel %vm98, %v4617, %v4619
    %v4624 = vsel %vm98, %v4619, %v4621
    %v4630 = vadd.f32 %v4585, %v4615
    %v4631 = vadd.f32 %v4586, %v4622
    %v4632 = vadd.f32 %v4587, %v4623
    %v4633 = vadd.f32 %v4588, %v4624
    %v4634 = vadd.f32 %v4589, %v4621
    %4635 = vrot.lane.b32.xlu0 %v3462, 113
    %v4636 = vpop.permute.xlu0 %4635
    %4637 = vrot.lane.b32.xlu0 %v3463, 113
    %v4638 = vpop.permute.xlu0 %4637
    %4639 = vrot.lane.b32.xlu0 %v3464, 113
    %v4640 = vpop.permute.xlu0 %4639
    %v4641 = vrot.slane %v4636, 4
    %v4642 = vrot.slane %v4638, 4
    %v4643 = vrot.slane %v4640, 4
    %v4644 = vsel %vm89, %v4641, %v4642
    %v4645 = vsel %vm408, %v4644, %v4638
    %v4646 = vsel %vm89, %v4642, %v4643
    %v4647 = vsel %vm408, %v4646, %v4640
    %v4650 = vmul.f32 %v4645, %v1126
    %v4651 = vmul.f32 %v4647, %v1127
    %4652 = vset.pattern.permute.xlu0 24
    %4653 = vperm.xlu0 %4652, %v3434
    %v4654 = vpop.permute.xlu0 %4653
    %v4658 = vperm.slane %v4650, 0
    %v4659 = vperm.slane %v4650, 4
    %v4660 = vperm.slane %v4651, 0
    %v4661 = vperm.slane %v4651, 4
    %v4666 = vperm.slane %v4658, 0
    %v4667 = vperm.slane %v4659, 0
    %v4668 = vperm.slane %v4660, 0
    %v4669 = vperm.slane %v4661, 0
    %v4670 = vmul.f32 %v4654, %v4666
    %v4671 = vmul.f32 %v4654, %v4667
    %v4672 = vmul.f32 %v4654, %v4668
    %v4673 = vmul.f32 %v4654, %v4669
    %4678 = vrot.lane.b32.xlu0 %v4670, 111
    %v4679 = vpop.permute.xlu0 %4678
    %4680 = vrot.lane.b32.xlu0 %v4671, 111
    %v4681 = vpop.permute.xlu0 %4680
    %4682 = vrot.lane.b32.xlu0 %v4672, 111
    %v4683 = vpop.permute.xlu0 %4682
    %4684 = vrot.lane.b32.xlu0 %v4673, 111
    %v4685 = vpop.permute.xlu0 %4684
    %v4686 = vsel %vm98, %v4679, %v4681
    %v4687 = vsel %vm98, %v4681, %v4683
    %v4688 = vsel %vm98, %v4683, %v4685
    %v4694 = vadd.f32 %v4630, %v4679
    %v4695 = vadd.f32 %v4631, %v4686
    %v4696 = vadd.f32 %v4632, %v4687
    %v4697 = vadd.f32 %v4633, %v4688
    %v4698 = vadd.f32 %v4634, %v4685
    %4699 = vset.pattern.permute.xlu0 25
    %4700 = vperm.xlu0 %4699, %v3434
    %v4701 = vpop.permute.xlu0 %4700
    %v4703 = vperm.slane %v4650, 1
    %v4704 = vperm.slane %v4650, 5
    %v4705 = vperm.slane %v4651, 1
    %v4706 = vperm.slane %v4651, 5
    %v4711 = vperm.slane %v4703, 1
    %v4712 = vperm.slane %v4704, 1
    %v4713 = vperm.slane %v4705, 1
    %v4714 = vperm.slane %v4706, 1
    %v4715 = vmul.f32 %v4701, %v4711
    %v4716 = vmul.f32 %v4701, %v4712
    %v4717 = vmul.f32 %v4701, %v4713
    %v4718 = vmul.f32 %v4701, %v4714
    %4723 = vrot.lane.b32.xlu0 %v4715, 111
    %v4724 = vpop.permute.xlu0 %4723
    %4725 = vrot.lane.b32.xlu0 %v4716, 111
    %v4726 = vpop.permute.xlu0 %4725
    %4727 = vrot.lane.b32.xlu0 %v4717, 111
    %v4728 = vpop.permute.xlu0 %4727
    %4729 = vrot.lane.b32.xlu0 %v4718, 111
    %v4730 = vpop.permute.xlu0 %4729
    %v4731 = vsel %vm98, %v4724, %v4726
    %v4732 = vsel %vm98, %v4726, %v4728
    %v4733 = vsel %vm98, %v4728, %v4730
    %v4739 = vadd.f32 %v4694, %v4724
    %v4740 = vadd.f32 %v4695, %v4731
    %v4741 = vadd.f32 %v4696, %v4732
    %v4742 = vadd.f32 %v4697, %v4733
    %v4743 = vadd.f32 %v4698, %v4730
    %4744 = vset.pattern.permute.xlu0 26
    %4745 = vperm.xlu0 %4744, %v3434
    %v4746 = vpop.permute.xlu0 %4745
    %v4748 = vperm.slane %v4650, 2
    %v4749 = vperm.slane %v4650, 6
    %v4750 = vperm.slane %v4651, 2
    %v4751 = vperm.slane %v4651, 6
    %v4756 = vperm.slane %v4748, 2
    %v4757 = vperm.slane %v4749, 2
    %v4758 = vperm.slane %v4750, 2
    %v4759 = vperm.slane %v4751, 2
    %v4760 = vmul.f32 %v4746, %v4756
    %v4761 = vmul.f32 %v4746, %v4757
    %v4762 = vmul.f32 %v4746, %v4758
    %v4763 = vmul.f32 %v4746, %v4759
    %4768 = vrot.lane.b32.xlu0 %v4760, 111
    %v4769 = vpop.permute.xlu0 %4768
    %4770 = vrot.lane.b32.xlu0 %v4761, 111
    %v4771 = vpop.permute.xlu0 %4770
    %4772 = vrot.lane.b32.xlu0 %v4762, 111
    %v4773 = vpop.permute.xlu0 %4772
    %4774 = vrot.lane.b32.xlu0 %v4763, 111
    %v4775 = vpop.permute.xlu0 %4774
    %v4776 = vsel %vm98, %v4769, %v4771
    %v4777 = vsel %vm98, %v4771, %v4773
    %v4778 = vsel %vm98, %v4773, %v4775
    %v4784 = vadd.f32 %v4739, %v4769
    %v4785 = vadd.f32 %v4740, %v4776
    %v4786 = vadd.f32 %v4741, %v4777
    %v4787 = vadd.f32 %v4742, %v4778
    %v4788 = vadd.f32 %v4743, %v4775
    %4789 = vset.pattern.permute.xlu0 27
    %4790 = vperm.xlu0 %4789, %v3434
    %v4791 = vpop.permute.xlu0 %4790
    %v4793 = vperm.slane %v4650, 3
    %v4794 = vperm.slane %v4650, 7
    %v4795 = vperm.slane %v4651, 3
    %v4796 = vperm.slane %v4651, 7
    %v4801 = vperm.slane %v4793, 3
    %v4802 = vperm.slane %v4794, 3
    %v4803 = vperm.slane %v4795, 3
    %v4804 = vperm.slane %v4796, 3
    %v4805 = vmul.f32 %v4791, %v4801
    %v4806 = vmul.f32 %v4791, %v4802
    %v4807 = vmul.f32 %v4791, %v4803
    %v4808 = vmul.f32 %v4791, %v4804
    %4813 = vrot.lane.b32.xlu0 %v4805, 111
    %v4814 = vpop.permute.xlu0 %4813
    %4815 = vrot.lane.b32.xlu0 %v4806, 111
    %v4816 = vpop.permute.xlu0 %4815
    %4817 = vrot.lane.b32.xlu0 %v4807, 111
    %v4818 = vpop.permute.xlu0 %4817
    %4819 = vrot.lane.b32.xlu0 %v4808, 111
    %v4820 = vpop.permute.xlu0 %4819
    %v4821 = vsel %vm98, %v4814, %v4816
    %v4822 = vsel %vm98, %v4816, %v4818
    %v4823 = vsel %vm98, %v4818, %v4820
    %v4829 = vadd.f32 %v4784, %v4814
    %v4830 = vadd.f32 %v4785, %v4821
    %v4831 = vadd.f32 %v4786, %v4822
    %v4832 = vadd.f32 %v4787, %v4823
    %v4833 = vadd.f32 %v4788, %v4820
    %4834 = vrot.lane.b32.xlu0 %v3462, 112
    %v4835 = vpop.permute.xlu0 %4834
    %4836 = vrot.lane.b32.xlu0 %v3463, 112
    %v4837 = vpop.permute.xlu0 %4836
    %4838 = vrot.lane.b32.xlu0 %v3464, 112
    %v4839 = vpop.permute.xlu0 %4838
    %v4840 = vrot.slane %v4835, 4
    %v4841 = vrot.slane %v4837, 4
    %v4842 = vrot.slane %v4839, 4
    %v4843 = vsel %vm89, %v4840, %v4841
    %v4844 = vsel %vm217, %v4843, %v4837
    %v4845 = vsel %vm89, %v4841, %v4842
    %v4846 = vsel %vm217, %v4845, %v4839
    %v4849 = vmul.f32 %v4844, %v1294
    %v4850 = vmul.f32 %v4846, %v1295
    %4851 = vset.pattern.permute.xlu0 28
    %4852 = vperm.xlu0 %4851, %v3434
    %v4853 = vpop.permute.xlu0 %4852
    %v4857 = vperm.slane %v4849, 0
    %v4858 = vperm.slane %v4849, 4
    %v4859 = vperm.slane %v4850, 0
    %v4860 = vperm.slane %v4850, 4
    %v4865 = vperm.slane %v4857, 0
    %v4866 = vperm.slane %v4858, 0
    %v4867 = vperm.slane %v4859, 0
    %v4868 = vperm.slane %v4860, 0
    %v4869 = vmul.f32 %v4853, %v4865
    %v4870 = vmul.f32 %v4853, %v4866
    %v4871 = vmul.f32 %v4853, %v4867
    %v4872 = vmul.f32 %v4853, %v4868
    %4877 = vrot.lane.b32.xlu0 %v4869, 111
    %v4878 = vpop.permute.xlu0 %4877
    %4879 = vrot.lane.b32.xlu0 %v4870, 111
    %v4880 = vpop.permute.xlu0 %4879
    %4881 = vrot.lane.b32.xlu0 %v4871, 111
    %v4882 = vpop.permute.xlu0 %4881
    %4883 = vrot.lane.b32.xlu0 %v4872, 111
    %v4884 = vpop.permute.xlu0 %4883
    %v4885 = vsel %vm98, %v4878, %v4880
    %v4886 = vsel %vm98, %v4880, %v4882
    %v4887 = vsel %vm98, %v4882, %v4884
    %v4893 = vadd.f32 %v4829, %v4878
    %v4894 = vadd.f32 %v4830, %v4885
    %v4895 = vadd.f32 %v4831, %v4886
    %v4896 = vadd.f32 %v4832, %v4887
    %v4897 = vadd.f32 %v4833, %v4884
    %4898 = vset.pattern.permute.xlu0 29
    %4899 = vperm.xlu0 %4898, %v3434
    %v4900 = vpop.permute.xlu0 %4899
    %v4902 = vperm.slane %v4849, 1
    %v4903 = vperm.slane %v4849, 5
    %v4904 = vperm.slane %v4850, 1
    %v4905 = vperm.slane %v4850, 5
    %v4910 = vperm.slane %v4902, 1
    %v4911 = vperm.slane %v4903, 1
    %v4912 = vperm.slane %v4904, 1
    %v4913 = vperm.slane %v4905, 1
    %v4914 = vmul.f32 %v4900, %v4910
    %v4915 = vmul.f32 %v4900, %v4911
    %v4916 = vmul.f32 %v4900, %v4912
    %v4917 = vmul.f32 %v4900, %v4913
    %4922 = vrot.lane.b32.xlu0 %v4914, 111
    %v4923 = vpop.permute.xlu0 %4922
    %4924 = vrot.lane.b32.xlu0 %v4915, 111
    %v4925 = vpop.permute.xlu0 %4924
    %4926 = vrot.lane.b32.xlu0 %v4916, 111
    %v4927 = vpop.permute.xlu0 %4926
    %4928 = vrot.lane.b32.xlu0 %v4917, 111
    %v4929 = vpop.permute.xlu0 %4928
    %v4930 = vsel %vm98, %v4923, %v4925
    %v4931 = vsel %vm98, %v4925, %v4927
    %v4932 = vsel %vm98, %v4927, %v4929
    %v4938 = vadd.f32 %v4893, %v4923
    %v4939 = vadd.f32 %v4894, %v4930
    %v4940 = vadd.f32 %v4895, %v4931
    %v4941 = vadd.f32 %v4896, %v4932
    %v4942 = vadd.f32 %v4897, %v4929
    %4943 = vset.pattern.permute.xlu0 30
    %4944 = vperm.xlu0 %4943, %v3434
    %v4945 = vpop.permute.xlu0 %4944
    %v4947 = vperm.slane %v4849, 2
    %v4948 = vperm.slane %v4849, 6
    %v4949 = vperm.slane %v4850, 2
    %v4950 = vperm.slane %v4850, 6
    %v4955 = vperm.slane %v4947, 2
    %v4956 = vperm.slane %v4948, 2
    %v4957 = vperm.slane %v4949, 2
    %v4958 = vperm.slane %v4950, 2
    %v4959 = vmul.f32 %v4945, %v4955
    %v4960 = vmul.f32 %v4945, %v4956
    %v4961 = vmul.f32 %v4945, %v4957
    %v4962 = vmul.f32 %v4945, %v4958
    %4967 = vrot.lane.b32.xlu0 %v4959, 111
    %v4968 = vpop.permute.xlu0 %4967
    %4969 = vrot.lane.b32.xlu0 %v4960, 111
    %v4970 = vpop.permute.xlu0 %4969
    %4971 = vrot.lane.b32.xlu0 %v4961, 111
    %v4972 = vpop.permute.xlu0 %4971
    %4973 = vrot.lane.b32.xlu0 %v4962, 111
    %v4974 = vpop.permute.xlu0 %4973
    %v4975 = vsel %vm98, %v4968, %v4970
    %v4976 = vsel %vm98, %v4970, %v4972
    %v4977 = vsel %vm98, %v4972, %v4974
    %v4983 = vadd.f32 %v4938, %v4968
    %v4984 = vadd.f32 %v4939, %v4975
    %v4985 = vadd.f32 %v4940, %v4976
    %v4986 = vadd.f32 %v4941, %v4977
    %v4987 = vadd.f32 %v4942, %v4974
    %4988 = vset.pattern.permute.xlu0 31
    %4989 = vperm.xlu0 %4988, %v3434
    %v4990 = vpop.permute.xlu0 %4989
    %v4992 = vperm.slane %v4849, 3
    %v4993 = vperm.slane %v4849, 7
    %v4994 = vperm.slane %v4850, 3
    %v4995 = vperm.slane %v4850, 7
    %v5000 = vperm.slane %v4992, 3
    %v5001 = vperm.slane %v4993, 3
    %v5002 = vperm.slane %v4994, 3
    %v5003 = vperm.slane %v4995, 3
    %v5004 = vmul.f32 %v4990, %v5000
    %v5005 = vmul.f32 %v4990, %v5001
    %v5006 = vmul.f32 %v4990, %v5002
    %v5007 = vmul.f32 %v4990, %v5003
    %5012 = vrot.lane.b32.xlu0 %v5004, 111
    %v5013 = vpop.permute.xlu0 %5012
    %5014 = vrot.lane.b32.xlu0 %v5005, 111
    %v5015 = vpop.permute.xlu0 %5014
    %5016 = vrot.lane.b32.xlu0 %v5006, 111
    %v5017 = vpop.permute.xlu0 %5016
    %5018 = vrot.lane.b32.xlu0 %v5007, 111
    %v5019 = vpop.permute.xlu0 %5018
    %v5020 = vsel %vm98, %v5013, %v5015
    %v5021 = vsel %vm98, %v5015, %v5017
    %v5022 = vsel %vm98, %v5017, %v5019
    %v5028 = vadd.f32 %v4983, %v5013
    %v5029 = vadd.f32 %v4984, %v5020
    %v5030 = vadd.f32 %v4985, %v5021
    %v5031 = vadd.f32 %v4986, %v5022
    %v5032 = vadd.f32 %v4987, %v5019
    %5033 = vrot.lane.b32.xlu0 %v3462, 111
    %v5034 = vpop.permute.xlu0 %5033
    %5035 = vrot.lane.b32.xlu0 %v3463, 111
    %v5036 = vpop.permute.xlu0 %5035
    %5037 = vrot.lane.b32.xlu0 %v3464, 111
    %v5038 = vpop.permute.xlu0 %5037
    %v5039 = vrot.slane %v5034, 4
    %v5040 = vrot.slane %v5036, 4
    %v5041 = vrot.slane %v5038, 4
    %v5042 = vsel %vm89, %v5039, %v5040
    %v5043 = vsel %vm98, %v5042, %v5036
    %v5044 = vsel %vm89, %v5040, %v5041
    %v5045 = vsel %vm98, %v5044, %v5038
    %v5048 = vmul.f32 %v5043, %v1462
    %v5049 = vmul.f32 %v5045, %v1463
    %5050 = vset.pattern.permute.xlu0 32
    %5051 = vperm.xlu0 %5050, %v3434
    %v5052 = vpop.permute.xlu0 %5051
    %v5056 = vperm.slane %v5048, 0
    %v5057 = vperm.slane %v5048, 4
    %v5058 = vperm.slane %v5049, 0
    %v5059 = vperm.slane %v5049, 4
    %v5064 = vperm.slane %v5056, 0
    %v5065 = vperm.slane %v5057, 0
    %v5066 = vperm.slane %v5058, 0
    %v5067 = vperm.slane %v5059, 0
    %v5068 = vmul.f32 %v5052, %v5064
    %v5069 = vmul.f32 %v5052, %v5065
    %v5070 = vmul.f32 %v5052, %v5066
    %v5071 = vmul.f32 %v5052, %v5067
    %5076 = vrot.lane.b32.xlu0 %v5068, 111
    %v5077 = vpop.permute.xlu0 %5076
    %5078 = vrot.lane.b32.xlu0 %v5069, 111
    %v5079 = vpop.permute.xlu0 %5078
    %5080 = vrot.lane.b32.xlu0 %v5070, 111
    %v5081 = vpop.permute.xlu0 %5080
    %5082 = vrot.lane.b32.xlu0 %v5071, 111
    %v5083 = vpop.permute.xlu0 %5082
    %v5084 = vsel %vm98, %v5077, %v5079
    %v5085 = vsel %vm98, %v5079, %v5081
    %v5086 = vsel %vm98, %v5081, %v5083
    %v5092 = vadd.f32 %v5028, %v5077
    %v5093 = vadd.f32 %v5029, %v5084
    %v5094 = vadd.f32 %v5030, %v5085
    %v5095 = vadd.f32 %v5031, %v5086
    %v5096 = vadd.f32 %v5032, %v5083
    %5097 = vset.pattern.permute.xlu0 33
    %5098 = vperm.xlu0 %5097, %v3434
    %v5099 = vpop.permute.xlu0 %5098
    %v5101 = vperm.slane %v5048, 1
    %v5102 = vperm.slane %v5048, 5
    %v5103 = vperm.slane %v5049, 1
    %v5104 = vperm.slane %v5049, 5
    %v5109 = vperm.slane %v5101, 1
    %v5110 = vperm.slane %v5102, 1
    %v5111 = vperm.slane %v5103, 1
    %v5112 = vperm.slane %v5104, 1
    %v5113 = vmul.f32 %v5099, %v5109
    %v5114 = vmul.f32 %v5099, %v5110
    %v5115 = vmul.f32 %v5099, %v5111
    %v5116 = vmul.f32 %v5099, %v5112
    %5121 = vrot.lane.b32.xlu0 %v5113, 111
    %v5122 = vpop.permute.xlu0 %5121
    %5123 = vrot.lane.b32.xlu0 %v5114, 111
    %v5124 = vpop.permute.xlu0 %5123
    %5125 = vrot.lane.b32.xlu0 %v5115, 111
    %v5126 = vpop.permute.xlu0 %5125
    %5127 = vrot.lane.b32.xlu0 %v5116, 111
    %v5128 = vpop.permute.xlu0 %5127
    %v5129 = vsel %vm98, %v5122, %v5124
    %v5130 = vsel %vm98, %v5124, %v5126
    %v5131 = vsel %vm98, %v5126, %v5128
    %v5137 = vadd.f32 %v5092, %v5122
    %v5138 = vadd.f32 %v5093, %v5129
    %v5139 = vadd.f32 %v5094, %v5130
    %v5140 = vadd.f32 %v5095, %v5131
    %v5141 = vadd.f32 %v5096, %v5128
    %5142 = vset.pattern.permute.xlu0 34
    %5143 = vperm.xlu0 %5142, %v3434
    %v5144 = vpop.permute.xlu0 %5143
    %v5146 = vperm.slane %v5048, 2
    %v5147 = vperm.slane %v5048, 6
    %v5148 = vperm.slane %v5049, 2
    %v5149 = vperm.slane %v5049, 6
    %v5154 = vperm.slane %v5146, 2
    %v5155 = vperm.slane %v5147, 2
    %v5156 = vperm.slane %v5148, 2
    %v5157 = vperm.slane %v5149, 2
    %v5158 = vmul.f32 %v5144, %v5154
    %v5159 = vmul.f32 %v5144, %v5155
    %v5160 = vmul.f32 %v5144, %v5156
    %v5161 = vmul.f32 %v5144, %v5157
    %5166 = vrot.lane.b32.xlu0 %v5158, 111
    %v5167 = vpop.permute.xlu0 %5166
    %5168 = vrot.lane.b32.xlu0 %v5159, 111
    %v5169 = vpop.permute.xlu0 %5168
    %5170 = vrot.lane.b32.xlu0 %v5160, 111
    %v5171 = vpop.permute.xlu0 %5170
    %5172 = vrot.lane.b32.xlu0 %v5161, 111
    %v5173 = vpop.permute.xlu0 %5172
    %v5174 = vsel %vm98, %v5167, %v5169
    %v5175 = vsel %vm98, %v5169, %v5171
    %v5176 = vsel %vm98, %v5171, %v5173
    %v5182 = vadd.f32 %v5137, %v5167
    %v5183 = vadd.f32 %v5138, %v5174
    %v5184 = vadd.f32 %v5139, %v5175
    %v5185 = vadd.f32 %v5140, %v5176
    %v5186 = vadd.f32 %v5141, %v5173
    %5187 = vset.pattern.permute.xlu0 35
    %5188 = vperm.xlu0 %5187, %v3434
    %v5189 = vpop.permute.xlu0 %5188
    %v5191 = vperm.slane %v5048, 3
    %v5192 = vperm.slane %v5048, 7
    %v5193 = vperm.slane %v5049, 3
    %v5194 = vperm.slane %v5049, 7
    %v5199 = vperm.slane %v5191, 3
    %v5200 = vperm.slane %v5192, 3
    %v5201 = vperm.slane %v5193, 3
    %v5202 = vperm.slane %v5194, 3
    %v5203 = vmul.f32 %v5189, %v5199
    %v5204 = vmul.f32 %v5189, %v5200
    %v5205 = vmul.f32 %v5189, %v5201
    %v5206 = vmul.f32 %v5189, %v5202
    %5211 = vrot.lane.b32.xlu0 %v5203, 111
    %v5212 = vpop.permute.xlu0 %5211
    %5213 = vrot.lane.b32.xlu0 %v5204, 111
    %v5214 = vpop.permute.xlu0 %5213
    %5215 = vrot.lane.b32.xlu0 %v5205, 111
    %v5216 = vpop.permute.xlu0 %5215
    %5217 = vrot.lane.b32.xlu0 %v5206, 111
    %v5218 = vpop.permute.xlu0 %5217
    %v5219 = vsel %vm98, %v5212, %v5214
    %v5220 = vsel %vm98, %v5214, %v5216
    %v5221 = vsel %vm98, %v5216, %v5218
    %v5227 = vadd.f32 %v5182, %v5212
    %v5228 = vadd.f32 %v5183, %v5219
    %v5229 = vadd.f32 %v5184, %v5220
    %v5230 = vadd.f32 %v5185, %v5221
    %v5231 = vadd.f32 %v5186, %v5218
    %5233 = vset.pattern.permute.xlu0 0
    %5234 = vperm.xlu0 %5233, %v3435
    %v5235 = vpop.permute.xlu0 %5234
    %v5237 = vadd.f32 %v5227, %v5235
    %v5238 = vadd.f32 %v5228, %v5235
    %v5239 = vadd.f32 %v5229, %v5235
    %v5240 = vadd.f32 %v5230, %v5235
    %v5241 = vadd.f32 %v5231, %v5235
    %v5242 = vmax.f32 %v5237, 0.0
    %v5243 = vmax.f32 %v5238, 0.0
    %v5244 = vmax.f32 %v5239, 0.0
    %v5245 = vmax.f32 %v5240, 0.0
    %v5246 = vmax.f32 %v5241, 0.0
    %v5247 = vld [vmem:[%s8] sm:$0xf]
    %v5248 = vld [vmem:[%s9] sm:$0xf]
    %v5254 = vrot.slane %v5243, 4
    %v5255 = vrot.slane %v5245, 4
    %v5256 = vsel %vm89, %v5242, %v5254
    %v5257 = vsel %vm89, %v5244, %v5255
    %5258 = vrot.lane.b32.xlu0 %v5256, 17
    %v5259 = vpop.permute.xlu0 %5258
    %5260 = vrot.lane.b32.xlu0 %v5257, 17
    %v5261 = vpop.permute.xlu0 %5260
    %5262 = vrot.lane.b32.xlu0 %v5246, 17
    %v5263 = vpop.permute.xlu0 %5262
    %v5264 = vrot.slane %v5259, 4
    %v5265 = vrot.slane %v5261, 4
    %v5266 = vrot.slane %v5263, 4
    %v5267 = vsel %vm89, %v5264, %v5265
    %v5268 = vsel %vm1641, %v5259, %v5267
    %v5269 = vsel %vm89, %v5265, %v5266
    %v5270 = vsel %vm1641, %v5261, %v5269
    %5273 = vst [vmem:[#allocation2 + $0x4] sm:$0xff] %v5268
    %5274 = vst [vmem:[#allocation2 + $0xc] sm:$0xff] %v5270
    %v5275 = vld [vmem:[#allocation2] sm:$0xff]
    %v5276 = vld [vmem:[#allocation2 + $0x8] sm:$0xff]
    %v5277 = vld [vmem:[#allocation2 + $0x10] sm:$0xff]
    %v5278 = vmul.f32 %v5275, %v99
    %v5279 = vmul.f32 %v5276, %v101
    %v5280 = vmul.f32 %v5277, %v97
    %5282 = vset.pattern.permute.xlu0 0
    %5283 = vperm.xlu0 %5282, %v5247
    %v5284 = vpop.permute.xlu0 %5283
    %v5289 = vperm.slane %v5278, 0
    %v5290 = vperm.slane %v5278, 4
    %v5291 = vperm.slane %v5279, 0
    %v5292 = vperm.slane %v5279, 4
    %v5293 = vperm.slane %v5280, 0
    %v5299 = vperm.slane %v5289, 0
    %v5300 = vperm.slane %v5290, 0
    %v5301 = vperm.slane %v5291, 0
    %v5302 = vperm.slane %v5292, 0
    %v5303 = vperm.slane %v5293, 0
    %v5304 = vmul.f32 %v5284, %v5299
    %v5305 = vmul.f32 %v5284, %v5300
    %v5306 = vmul.f32 %v5284, %v5301
    %v5307 = vmul.f32 %v5284, %v5302
    %v5308 = vmul.f32 %v5284, %v5303
    %v5309 = vadd.f32 %v5304, 0.0
    %v5310 = vadd.f32 %v5305, 0.0
    %v5311 = vadd.f32 %v5306, 0.0
    %v5312 = vadd.f32 %v5307, 0.0
    %v5313 = vadd.f32 %v5308, 0.0
    %5314 = vset.pattern.permute.xlu0 1
    %5315 = vperm.xlu0 %5314, %v5247
    %v5316 = vpop.permute.xlu0 %5315
    %v5318 = vperm.slane %v5278, 1
    %v5319 = vperm.slane %v5278, 5
    %v5320 = vperm.slane %v5279, 1
    %v5321 = vperm.slane %v5279, 5
    %v5322 = vperm.slane %v5280, 1
    %v5328 = vperm.slane %v5318, 1
    %v5329 = vperm.slane %v5319, 1
    %v5330 = vperm.slane %v5320, 1
    %v5331 = vperm.slane %v5321, 1
    %v5332 = vperm.slane %v5322, 1
    %v5333 = vmul.f32 %v5316, %v5328
    %v5334 = vmul.f32 %v5316, %v5329
    %v5335 = vmul.f32 %v5316, %v5330
    %v5336 = vmul.f32 %v5316, %v5331
    %v5337 = vmul.f32 %v5316, %v5332
    %v5338 = vadd.f32 %v5309, %v5333
    %v5339 = vadd.f32 %v5310, %v5334
    %v5340 = vadd.f32 %v5311, %v5335
    %v5341 = vadd.f32 %v5312, %v5336
    %v5342 = vadd.f32 %v5313, %v5337
    %5343 = vset.pattern.permute.xlu0 2
    %5344 = vperm.xlu0 %5343, %v5247
    %v5345 = vpop.permute.xlu0 %5344
    %v5347 = vperm.slane %v5278, 2
    %v5348 = vperm.slane %v5278, 6
    %v5349 = vperm.slane %v5279, 2
    %v5350 = vperm.slane %v5279, 6
    %v5351 = vperm.slane %v5280, 2
    %v5357 = vperm.slane %v5347, 2
    %v5358 = vperm.slane %v5348, 2
    %v5359 = vperm.slane %v5349, 2
    %v5360 = vperm.slane %v5350, 2
    %v5361 = vperm.slane %v5351, 2
    %v5362 = vmul.f32 %v5345, %v5357
    %v5363 = vmul.f32 %v5345, %v5358
    %v5364 = vmul.f32 %v5345, %v5359
    %v5365 = vmul.f32 %v5345, %v5360
    %v5366 = vmul.f32 %v5345, %v5361
    %v5367 = vadd.f32 %v5338, %v5362
    %v5368 = vadd.f32 %v5339, %v5363
    %v5369 = vadd.f32 %v5340, %v5364
    %v5370 = vadd.f32 %v5341, %v5365
    %v5371 = vadd.f32 %v5342, %v5366
    %5372 = vset.pattern.permute.xlu0 3
    %5373 = vperm.xlu0 %5372, %v5247
    %v5374 = vpop.permute.xlu0 %5373
    %v5376 = vperm.slane %v5278, 3
    %v5377 = vperm.slane %v5278, 7
    %v5378 = vperm.slane %v5279, 3
    %v5379 = vperm.slane %v5279, 7
    %v5380 = vperm.slane %v5280, 3
    %v5386 = vperm.slane %v5376, 3
    %v5387 = vperm.slane %v5377, 3
    %v5388 = vperm.slane %v5378, 3
    %v5389 = vperm.slane %v5379, 3
    %v5390 = vperm.slane %v5380, 3
    %v5391 = vmul.f32 %v5374, %v5386
    %v5392 = vmul.f32 %v5374, %v5387
    %v5393 = vmul.f32 %v5374, %v5388
    %v5394 = vmul.f32 %v5374, %v5389
    %v5395 = vmul.f32 %v5374, %v5390
    %v5396 = vadd.f32 %v5367, %v5391
    %v5397 = vadd.f32 %v5368, %v5392
    %v5398 = vadd.f32 %v5369, %v5393
    %v5399 = vadd.f32 %v5370, %v5394
    %v5400 = vadd.f32 %v5371, %v5395
    %v5401 = vmul.f32 %v5275, %v218
    %v5402 = vmul.f32 %v5276, %v220
    %v5403 = vmul.f32 %v5277, %v216
    %5404 = vset.pattern.permute.xlu0 4
    %5405 = vperm.xlu0 %5404, %v5247
    %v5406 = vpop.permute.xlu0 %5405
    %v5411 = vperm.slane %v5401, 0
    %v5412 = vperm.slane %v5401, 4
    %v5413 = vperm.slane %v5402, 0
    %v5414 = vperm.slane %v5402, 4
    %v5415 = vperm.slane %v5403, 0
    %v5421 = vperm.slane %v5411, 0
    %v5422 = vperm.slane %v5412, 0
    %v5423 = vperm.slane %v5413, 0
    %v5424 = vperm.slane %v5414, 0
    %v5425 = vperm.slane %v5415, 0
    %v5426 = vmul.f32 %v5406, %v5421
    %v5427 = vmul.f32 %v5406, %v5422
    %v5428 = vmul.f32 %v5406, %v5423
    %v5429 = vmul.f32 %v5406, %v5424
    %v5430 = vmul.f32 %v5406, %v5425
    %5436 = vrot.lane.b32.xlu0 %v5426, 127
    %v5437 = vpop.permute.xlu0 %5436
    %5438 = vrot.lane.b32.xlu0 %v5427, 127
    %v5439 = vpop.permute.xlu0 %5438
    %5440 = vrot.lane.b32.xlu0 %v5428, 127
    %v5441 = vpop.permute.xlu0 %5440
    %5442 = vrot.lane.b32.xlu0 %v5429, 127
    %v5443 = vpop.permute.xlu0 %5442
    %5444 = vrot.lane.b32.xlu0 %v5430, 127
    %v5445 = vpop.permute.xlu0 %5444
    %v5446 = vsel %vm269, %v5437, %v5439
    %v5447 = vsel %vm269, %v5439, %v5441
    %v5448 = vsel %vm269, %v5441, %v5443
    %v5449 = vsel %vm269, %v5443, %v5445
    %v5455 = vadd.f32 %v5396, %v5446
    %v5456 = vadd.f32 %v5397, %v5447
    %v5457 = vadd.f32 %v5398, %v5448
    %v5458 = vadd.f32 %v5399, %v5449
    %v5459 = vadd.f32 %v5400, %v5445
    %5460 = vset.pattern.permute.xlu0 5
    %5461 = vperm.xlu0 %5460, %v5247
    %v5462 = vpop.permute.xlu0 %5461
    %v5464 = vperm.slane %v5401, 1
    %v5465 = vperm.slane %v5401, 5
    %v5466 = vperm.slane %v5402, 1
    %v5467 = vperm.slane %v5402, 5
    %v5468 = vperm.slane %v5403, 1
    %v5474 = vperm.slane %v5464, 1
    %v5475 = vperm.slane %v5465, 1
    %v5476 = vperm.slane %v5466, 1
    %v5477 = vperm.slane %v5467, 1
    %v5478 = vperm.slane %v5468, 1
    %v5479 = vmul.f32 %v5462, %v5474
    %v5480 = vmul.f32 %v5462, %v5475
    %v5481 = vmul.f32 %v5462, %v5476
    %v5482 = vmul.f32 %v5462, %v5477
    %v5483 = vmul.f32 %v5462, %v5478
    %5489 = vrot.lane.b32.xlu0 %v5479, 127
    %v5490 = vpop.permute.xlu0 %5489
    %5491 = vrot.lane.b32.xlu0 %v5480, 127
    %v5492 = vpop.permute.xlu0 %5491
    %5493 = vrot.lane.b32.xlu0 %v5481, 127
    %v5494 = vpop.permute.xlu0 %5493
    %5495 = vrot.lane.b32.xlu0 %v5482, 127
    %v5496 = vpop.permute.xlu0 %5495
    %5497 = vrot.lane.b32.xlu0 %v5483, 127
    %v5498 = vpop.permute.xlu0 %5497
    %v5499 = vsel %vm269, %v5490, %v5492
    %v5500 = vsel %vm269, %v5492, %v5494
    %v5501 = vsel %vm269, %v5494, %v5496
    %v5502 = vsel %vm269, %v5496, %v5498
    %v5508 = vadd.f32 %v5455, %v5499
    %v5509 = vadd.f32 %v5456, %v5500
    %v5510 = vadd.f32 %v5457, %v5501
    %v5511 = vadd.f32 %v5458, %v5502
    %v5512 = vadd.f32 %v5459, %v5498
    %5513 = vset.pattern.permute.xlu0 6
    %5514 = vperm.xlu0 %5513, %v5247
    %v5515 = vpop.permute.xlu0 %5514
    %v5517 = vperm.slane %v5401, 2
    %v5518 = vperm.slane %v5401, 6
    %v5519 = vperm.slane %v5402, 2
    %v5520 = vperm.slane %v5402, 6
    %v5521 = vperm.slane %v5403, 2
    %v5527 = vperm.slane %v5517, 2
    %v5528 = vperm.slane %v5518, 2
    %v5529 = vperm.slane %v5519, 2
    %v5530 = vperm.slane %v5520, 2
    %v5531 = vperm.slane %v5521, 2
    %v5532 = vmul.f32 %v5515, %v5527
    %v5533 = vmul.f32 %v5515, %v5528
    %v5534 = vmul.f32 %v5515, %v5529
    %v5535 = vmul.f32 %v5515, %v5530
    %v5536 = vmul.f32 %v5515, %v5531
    %5542 = vrot.lane.b32.xlu0 %v5532, 127
    %v5543 = vpop.permute.xlu0 %5542
    %5544 = vrot.lane.b32.xlu0 %v5533, 127
    %v5545 = vpop.permute.xlu0 %5544
    %5546 = vrot.lane.b32.xlu0 %v5534, 127
    %v5547 = vpop.permute.xlu0 %5546
    %5548 = vrot.lane.b32.xlu0 %v5535, 127
    %v5549 = vpop.permute.xlu0 %5548
    %5550 = vrot.lane.b32.xlu0 %v5536, 127
    %v5551 = vpop.permute.xlu0 %5550
    %v5552 = vsel %vm269, %v5543, %v5545
    %v5553 = vsel %vm269, %v5545, %v5547
    %v5554 = vsel %vm269, %v5547, %v5549
    %v5555 = vsel %vm269, %v5549, %v5551
    %v5561 = vadd.f32 %v5508, %v5552
    %v5562 = vadd.f32 %v5509, %v5553
    %v5563 = vadd.f32 %v5510, %v5554
    %v5564 = vadd.f32 %v5511, %v5555
    %v5565 = vadd.f32 %v5512, %v5551
    %5566 = vset.pattern.permute.xlu0 7
    %5567 = vperm.xlu0 %5566, %v5247
    %v5568 = vpop.permute.xlu0 %5567
    %v5570 = vperm.slane %v5401, 3
    %v5571 = vperm.slane %v5401, 7
    %v5572 = vperm.slane %v5402, 3
    %v5573 = vperm.slane %v5402, 7
    %v5574 = vperm.slane %v5403, 3
    %v5580 = vperm.slane %v5570, 3
    %v5581 = vperm.slane %v5571, 3
    %v5582 = vperm.slane %v5572, 3
    %v5583 = vperm.slane %v5573, 3
    %v5584 = vperm.slane %v5574, 3
    %v5585 = vmul.f32 %v5568, %v5580
    %v5586 = vmul.f32 %v5568, %v5581
    %v5587 = vmul.f32 %v5568, %v5582
    %v5588 = vmul.f32 %v5568, %v5583
    %v5589 = vmul.f32 %v5568, %v5584
    %5595 = vrot.lane.b32.xlu0 %v5585, 127
    %v5596 = vpop.permute.xlu0 %5595
    %5597 = vrot.lane.b32.xlu0 %v5586, 127
    %v5598 = vpop.permute.xlu0 %5597
    %5599 = vrot.lane.b32.xlu0 %v5587, 127
    %v5600 = vpop.permute.xlu0 %5599
    %5601 = vrot.lane.b32.xlu0 %v5588, 127
    %v5602 = vpop.permute.xlu0 %5601
    %5603 = vrot.lane.b32.xlu0 %v5589, 127
    %v5604 = vpop.permute.xlu0 %5603
    %v5605 = vsel %vm269, %v5596, %v5598
    %v5606 = vsel %vm269, %v5598, %v5600
    %v5607 = vsel %vm269, %v5600, %v5602
    %v5608 = vsel %vm269, %v5602, %v5604
    %v5614 = vadd.f32 %v5561, %v5605
    %v5615 = vadd.f32 %v5562, %v5606
    %v5616 = vadd.f32 %v5563, %v5607
    %v5617 = vadd.f32 %v5564, %v5608
    %v5618 = vadd.f32 %v5565, %v5604
    %v5619 = vmul.f32 %v5275, %v409
    %v5620 = vmul.f32 %v5276, %v411
    %v5621 = vmul.f32 %v5277, %v407
    %5622 = vset.pattern.permute.xlu0 8
    %5623 = vperm.xlu0 %5622, %v5247
    %v5624 = vpop.permute.xlu0 %5623
    %v5629 = vperm.slane %v5619, 0
    %v5630 = vperm.slane %v5619, 4
    %v5631 = vperm.slane %v5620, 0
    %v5632 = vperm.slane %v5620, 4
    %v5633 = vperm.slane %v5621, 0
    %v5639 = vperm.slane %v5629, 0
    %v5640 = vperm.slane %v5630, 0
    %v5641 = vperm.slane %v5631, 0
    %v5642 = vperm.slane %v5632, 0
    %v5643 = vperm.slane %v5633, 0
    %v5644 = vmul.f32 %v5624, %v5639
    %v5645 = vmul.f32 %v5624, %v5640
    %v5646 = vmul.f32 %v5624, %v5641
    %v5647 = vmul.f32 %v5624, %v5642
    %v5648 = vmul.f32 %v5624, %v5643
    %5654 = vrot.lane.b32.xlu0 %v5644, 126
    %v5655 = vpop.permute.xlu0 %5654
    %5656 = vrot.lane.b32.xlu0 %v5645, 126
    %v5657 = vpop.permute.xlu0 %5656
    %5658 = vrot.lane.b32.xlu0 %v5646, 126
    %v5659 = vpop.permute.xlu0 %5658
    %5660 = vrot.lane.b32.xlu0 %v5647, 126
    %v5661 = vpop.permute.xlu0 %5660
    %5662 = vrot.lane.b32.xlu0 %v5648, 126
    %v5663 = vpop.permute.xlu0 %5662
    %v5664 = vsel %vm460, %v5655, %v5657
    %v5665 = vsel %vm460, %v5657, %v5659
    %v5666 = vsel %vm460, %v5659, %v5661
    %v5667 = vsel %vm460, %v5661, %v5663
    %v5673 = vadd.f32 %v5614, %v5664
    %v5674 = vadd.f32 %v5615, %v5665
    %v5675 = vadd.f32 %v5616, %v5666
    %v5676 = vadd.f32 %v5617, %v5667
    %v5677 = vadd.f32 %v5618, %v5663
    %5678 = vset.pattern.permute.xlu0 9
    %5679 = vperm.xlu0 %5678, %v5247
    %v5680 = vpop.permute.xlu0 %5679
    %v5682 = vperm.slane %v5619, 1
    %v5683 = vperm.slane %v5619, 5
    %v5684 = vperm.slane %v5620, 1
    %v5685 = vperm.slane %v5620, 5
    %v5686 = vperm.slane %v5621, 1
    %v5692 = vperm.slane %v5682, 1
    %v5693 = vperm.slane %v5683, 1
    %v5694 = vperm.slane %v5684, 1
    %v5695 = vperm.slane %v5685, 1
    %v5696 = vperm.slane %v5686, 1
    %v5697 = vmul.f32 %v5680, %v5692
    %v5698 = vmul.f32 %v5680, %v5693
    %v5699 = vmul.f32 %v5680, %v5694
    %v5700 = vmul.f32 %v5680, %v5695
    %v5701 = vmul.f32 %v5680, %v5696
    %5707 = vrot.lane.b32.xlu0 %v5697, 126
    %v5708 = vpop.permute.xlu0 %5707
    %5709 = vrot.lane.b32.xlu0 %v5698, 126
    %v5710 = vpop.permute.xlu0 %5709
    %5711 = vrot.lane.b32.xlu0 %v5699, 126
    %v5712 = vpop.permute.xlu0 %5711
    %5713 = vrot.lane.b32.xlu0 %v5700, 126
    %v5714 = vpop.permute.xlu0 %5713
    %5715 = vrot.lane.b32.xlu0 %v5701, 126
    %v5716 = vpop.permute.xlu0 %5715
    %v5717 = vsel %vm460, %v5708, %v5710
    %v5718 = vsel %vm460, %v5710, %v5712
    %v5719 = vsel %vm460, %v5712, %v5714
    %v5720 = vsel %vm460, %v5714, %v5716
    %v5726 = vadd.f32 %v5673, %v5717
    %v5727 = vadd.f32 %v5674, %v5718
    %v5728 = vadd.f32 %v5675, %v5719
    %v5729 = vadd.f32 %v5676, %v5720
    %v5730 = vadd.f32 %v5677, %v5716
    %5731 = vset.pattern.permute.xlu0 10
    %5732 = vperm.xlu0 %5731, %v5247
    %v5733 = vpop.permute.xlu0 %5732
    %v5735 = vperm.slane %v5619, 2
    %v5736 = vperm.slane %v5619, 6
    %v5737 = vperm.slane %v5620, 2
    %v5738 = vperm.slane %v5620, 6
    %v5739 = vperm.slane %v5621, 2
    %v5745 = vperm.slane %v5735, 2
    %v5746 = vperm.slane %v5736, 2
    %v5747 = vperm.slane %v5737, 2
    %v5748 = vperm.slane %v5738, 2
    %v5749 = vperm.slane %v5739, 2
    %v5750 = vmul.f32 %v5733, %v5745
    %v5751 = vmul.f32 %v5733, %v5746
    %v5752 = vmul.f32 %v5733, %v5747
    %v5753 = vmul.f32 %v5733, %v5748
    %v5754 = vmul.f32 %v5733, %v5749
    %5760 = vrot.lane.b32.xlu0 %v5750, 126
    %v5761 = vpop.permute.xlu0 %5760
    %5762 = vrot.lane.b32.xlu0 %v5751, 126
    %v5763 = vpop.permute.xlu0 %5762
    %5764 = vrot.lane.b32.xlu0 %v5752, 126
    %v5765 = vpop.permute.xlu0 %5764
    %5766 = vrot.lane.b32.xlu0 %v5753, 126
    %v5767 = vpop.permute.xlu0 %5766
    %5768 = vrot.lane.b32.xlu0 %v5754, 126
    %v5769 = vpop.permute.xlu0 %5768
    %v5770 = vsel %vm460, %v5761, %v5763
    %v5771 = vsel %vm460, %v5763, %v5765
    %v5772 = vsel %vm460, %v5765, %v5767
    %v5773 = vsel %vm460, %v5767, %v5769
    %v5779 = vadd.f32 %v5726, %v5770
    %v5780 = vadd.f32 %v5727, %v5771
    %v5781 = vadd.f32 %v5728, %v5772
    %v5782 = vadd.f32 %v5729, %v5773
    %v5783 = vadd.f32 %v5730, %v5769
    %5784 = vset.pattern.permute.xlu0 11
    %5785 = vperm.xlu0 %5784, %v5247
    %v5786 = vpop.permute.xlu0 %5785
    %v5788 = vperm.slane %v5619, 3
    %v5789 = vperm.slane %v5619, 7
    %v5790 = vperm.slane %v5620, 3
    %v5791 = vperm.slane %v5620, 7
    %v5792 = vperm.slane %v5621, 3
    %v5798 = vperm.slane %v5788, 3
    %v5799 = vperm.slane %v5789, 3
    %v5800 = vperm.slane %v5790, 3
    %v5801 = vperm.slane %v5791, 3
    %v5802 = vperm.slane %v5792, 3
    %v5803 = vmul.f32 %v5786, %v5798
    %v5804 = vmul.f32 %v5786, %v5799
    %v5805 = vmul.f32 %v5786, %v5800
    %v5806 = vmul.f32 %v5786, %v5801
    %v5807 = vmul.f32 %v5786, %v5802
    %5813 = vrot.lane.b32.xlu0 %v5803, 126
    %v5814 = vpop.permute.xlu0 %5813
    %5815 = vrot.lane.b32.xlu0 %v5804, 126
    %v5816 = vpop.permute.xlu0 %5815
    %5817 = vrot.lane.b32.xlu0 %v5805, 126
    %v5818 = vpop.permute.xlu0 %5817
    %5819 = vrot.lane.b32.xlu0 %v5806, 126
    %v5820 = vpop.permute.xlu0 %5819
    %5821 = vrot.lane.b32.xlu0 %v5807, 126
    %v5822 = vpop.permute.xlu0 %5821
    %v5823 = vsel %vm460, %v5814, %v5816
    %v5824 = vsel %vm460, %v5816, %v5818
    %v5825 = vsel %vm460, %v5818, %v5820
    %v5826 = vsel %vm460, %v5820, %v5822
    %v5832 = vadd.f32 %v5779, %v5823
    %v5833 = vadd.f32 %v5780, %v5824
    %v5834 = vadd.f32 %v5781, %v5825
    %v5835 = vadd.f32 %v5782, %v5826
    %v5836 = vadd.f32 %v5783, %v5822
    %v5837 = vmul.f32 %v5275, %v599
    %v5838 = vmul.f32 %v5276, %v601
    %v5839 = vmul.f32 %v5277, %v598
    %5840 = vset.pattern.permute.xlu0 12
    %5841 = vperm.xlu0 %5840, %v5247
    %v5842 = vpop.permute.xlu0 %5841
    %v5847 = vperm.slane %v5837, 0
    %v5848 = vperm.slane %v5837, 4
    %v5849 = vperm.slane %v5838, 0
    %v5850 = vperm.slane %v5838, 4
    %v5851 = vperm.slane %v5839, 0
    %v5857 = vperm.slane %v5847, 0
    %v5858 = vperm.slane %v5848, 0
    %v5859 = vperm.slane %v5849, 0
    %v5860 = vperm.slane %v5850, 0
    %v5861 = vperm.slane %v5851, 0
    %v5862 = vmul.f32 %v5842, %v5857
    %v5863 = vmul.f32 %v5842, %v5858
    %v5864 = vmul.f32 %v5842, %v5859
    %v5865 = vmul.f32 %v5842, %v5860
    %v5866 = vmul.f32 %v5842, %v5861
    %5872 = vrot.lane.b32.xlu0 %v5862, 112
    %v5873 = vpop.permute.xlu0 %5872
    %5874 = vrot.lane.b32.xlu0 %v5863, 112
    %v5875 = vpop.permute.xlu0 %5874
    %5876 = vrot.lane.b32.xlu0 %v5864, 112
    %v5877 = vpop.permute.xlu0 %5876
    %5878 = vrot.lane.b32.xlu0 %v5865, 112
    %v5879 = vpop.permute.xlu0 %5878
    %5880 = vrot.lane.b32.xlu0 %v5866, 112
    %v5881 = vpop.permute.xlu0 %5880
    %v5882 = vsel %vm217, %v5873, %v5875
    %v5883 = vsel %vm217, %v5875, %v5877
    %v5884 = vsel %vm217, %v5877, %v5879
    %v5885 = vsel %vm217, %v5879, %v5881
    %v5891 = vadd.f32 %v5832, %v5882
    %v5892 = vadd.f32 %v5833, %v5883
    %v5893 = vadd.f32 %v5834, %v5884
    %v5894 = vadd.f32 %v5835, %v5885
    %v5895 = vadd.f32 %v5836, %v5881
    %5896 = vset.pattern.permute.xlu0 13
    %5897 = vperm.xlu0 %5896, %v5247
    %v5898 = vpop.permute.xlu0 %5897
    %v5900 = vperm.slane %v5837, 1
    %v5901 = vperm.slane %v5837, 5
    %v5902 = vperm.slane %v5838, 1
    %v5903 = vperm.slane %v5838, 5
    %v5904 = vperm.slane %v5839, 1
    %v5910 = vperm.slane %v5900, 1
    %v5911 = vperm.slane %v5901, 1
    %v5912 = vperm.slane %v5902, 1
    %v5913 = vperm.slane %v5903, 1
    %v5914 = vperm.slane %v5904, 1
    %v5915 = vmul.f32 %v5898, %v5910
    %v5916 = vmul.f32 %v5898, %v5911
    %v5917 = vmul.f32 %v5898, %v5912
    %v5918 = vmul.f32 %v5898, %v5913
    %v5919 = vmul.f32 %v5898, %v5914
    %5925 = vrot.lane.b32.xlu0 %v5915, 112
    %v5926 = vpop.permute.xlu0 %5925
    %5927 = vrot.lane.b32.xlu0 %v5916, 112
    %v5928 = vpop.permute.xlu0 %5927
    %5929 = vrot.lane.b32.xlu0 %v5917, 112
    %v5930 = vpop.permute.xlu0 %5929
    %5931 = vrot.lane.b32.xlu0 %v5918, 112
    %v5932 = vpop.permute.xlu0 %5931
    %5933 = vrot.lane.b32.xlu0 %v5919, 112
    %v5934 = vpop.permute.xlu0 %5933
    %v5935 = vsel %vm217, %v5926, %v5928
    %v5936 = vsel %vm217, %v5928, %v5930
    %v5937 = vsel %vm217, %v5930, %v5932
    %v5938 = vsel %vm217, %v5932, %v5934
    %v5944 = vadd.f32 %v5891, %v5935
    %v5945 = vadd.f32 %v5892, %v5936
    %v5946 = vadd.f32 %v5893, %v5937
    %v5947 = vadd.f32 %v5894, %v5938
    %v5948 = vadd.f32 %v5895, %v5934
    %5949 = vset.pattern.permute.xlu0 14
    %5950 = vperm.xlu0 %5949, %v5247
    %v5951 = vpop.permute.xlu0 %5950
    %v5953 = vperm.slane %v5837, 2
    %v5954 = vperm.slane %v5837, 6
    %v5955 = vperm.slane %v5838, 2
    %v5956 = vperm.slane %v5838, 6
    %v5957 = vperm.slane %v5839, 2
    %v5963 = vperm.slane %v5953, 2
    %v5964 = vperm.slane %v5954, 2
    %v5965 = vperm.slane %v5955, 2
    %v5966 = vperm.slane %v5956, 2
    %v5967 = vperm.slane %v5957, 2
    %v5968 = vmul.f32 %v5951, %v5963
    %v5969 = vmul.f32 %v5951, %v5964
    %v5970 = vmul.f32 %v5951, %v5965
    %v5971 = vmul.f32 %v5951, %v5966
    %v5972 = vmul.f32 %v5951, %v5967
    %5978 = vrot.lane.b32.xlu0 %v5968, 112
    %v5979 = vpop.permute.xlu0 %5978
    %5980 = vrot.lane.b32.xlu0 %v5969, 112
    %v5981 = vpop.permute.xlu0 %5980
    %5982 = vrot.lane.b32.xlu0 %v5970, 112
    %v5983 = vpop.permute.xlu0 %5982
    %5984 = vrot.lane.b32.xlu0 %v5971, 112
    %v5985 = vpop.permute.xlu0 %5984
    %5986 = vrot.lane.b32.xlu0 %v5972, 112
    %v5987 = vpop.permute.xlu0 %5986
    %v5988 = vsel %vm217, %v5979, %v5981
    %v5989 = vsel %vm217, %v5981, %v5983
    %v5990 = vsel %vm217, %v5983, %v5985
    %v5991 = vsel %vm217, %v5985, %v5987
    %v5997 = vadd.f32 %v5944, %v5988
    %v5998 = vadd.f32 %v5945, %v5989
    %v5999 = vadd.f32 %v5946, %v5990
    %v6000 = vadd.f32 %v5947, %v5991
    %v6001 = vadd.f32 %v5948, %v5987
    %6002 = vset.pattern.permute.xlu0 15
    %6003 = vperm.xlu0 %6002, %v5247
    %v6004 = vpop.permute.xlu0 %6003
    %v6006 = vperm.slane %v5837, 3
    %v6007 = vperm.slane %v5837, 7
    %v6008 = vperm.slane %v5838, 3
    %v6009 = vperm.slane %v5838, 7
    %v6010 = vperm.slane %v5839, 3
    %v6016 = vperm.slane %v6006, 3
    %v6017 = vperm.slane %v6007, 3
    %v6018 = vperm.slane %v6008, 3
    %v6019 = vperm.slane %v6009, 3
    %v6020 = vperm.slane %v6010, 3
    %v6021 = vmul.f32 %v6004, %v6016
    %v6022 = vmul.f32 %v6004, %v6017
    %v6023 = vmul.f32 %v6004, %v6018
    %v6024 = vmul.f32 %v6004, %v6019
    %v6025 = vmul.f32 %v6004, %v6020
    %6031 = vrot.lane.b32.xlu0 %v6021, 112
    %v6032 = vpop.permute.xlu0 %6031
    %6033 = vrot.lane.b32.xlu0 %v6022, 112
    %v6034 = vpop.permute.xlu0 %6033
    %6035 = vrot.lane.b32.xlu0 %v6023, 112
    %v6036 = vpop.permute.xlu0 %6035
    %6037 = vrot.lane.b32.xlu0 %v6024, 112
    %v6038 = vpop.permute.xlu0 %6037
    %6039 = vrot.lane.b32.xlu0 %v6025, 112
    %v6040 = vpop.permute.xlu0 %6039
    %v6041 = vsel %vm217, %v6032, %v6034
    %v6042 = vsel %vm217, %v6034, %v6036
    %v6043 = vsel %vm217, %v6036, %v6038
    %v6044 = vsel %vm217, %v6038, %v6040
    %v6050 = vadd.f32 %v5997, %v6041
    %v6051 = vadd.f32 %v5998, %v6042
    %v6052 = vadd.f32 %v5999, %v6043
    %v6053 = vadd.f32 %v6000, %v6044
    %v6054 = vadd.f32 %v6001, %v6040
    %v6058 = vrot.slane %v5275, 4
    %v6059 = vrot.slane %v5276, 4
    %v6060 = vrot.slane %v5277, 4
    %v6061 = vsel %vm89, %v6058, %v6059
    %v6062 = vsel %vm89, %v6059, %v6060
    %v6065 = vmul.f32 %v6061, %v790
    %v6066 = vmul.f32 %v6062, %v791
    %6067 = vset.pattern.permute.xlu0 16
    %6068 = vperm.xlu0 %6067, %v5247
    %v6069 = vpop.permute.xlu0 %6068
    %v6073 = vperm.slane %v6065, 0
    %v6074 = vperm.slane %v6065, 4
    %v6075 = vperm.slane %v6066, 0
    %v6076 = vperm.slane %v6066, 4
    %v6081 = vperm.slane %v6073, 0
    %v6082 = vperm.slane %v6074, 0
    %v6083 = vperm.slane %v6075, 0
    %v6084 = vperm.slane %v6076, 0
    %v6085 = vmul.f32 %v6069, %v6081
    %v6086 = vmul.f32 %v6069, %v6082
    %v6087 = vmul.f32 %v6069, %v6083
    %v6088 = vmul.f32 %v6069, %v6084
    %6093 = vrot.lane.b32.xlu0 %v6085, 111
    %v6094 = vpop.permute.xlu0 %6093
    %6095 = vrot.lane.b32.xlu0 %v6086, 111
    %v6096 = vpop.permute.xlu0 %6095
    %6097 = vrot.lane.b32.xlu0 %v6087, 111
    %v6098 = vpop.permute.xlu0 %6097
    %6099 = vrot.lane.b32.xlu0 %v6088, 111
    %v6100 = vpop.permute.xlu0 %6099
    %v6101 = vsel %vm98, %v6094, %v6096
    %v6102 = vsel %vm98, %v6096, %v6098
    %v6103 = vsel %vm98, %v6098, %v6100
    %v6109 = vadd.f32 %v6050, %v6094
    %v6110 = vadd.f32 %v6051, %v6101
    %v6111 = vadd.f32 %v6052, %v6102
    %v6112 = vadd.f32 %v6053, %v6103
    %v6113 = vadd.f32 %v6054, %v6100
    %6114 = vset.pattern.permute.xlu0 17
    %6115 = vperm.xlu0 %6114, %v5247
    %v6116 = vpop.permute.xlu0 %6115
    %v6118 = vperm.slane %v6065, 1
    %v6119 = vperm.slane %v6065, 5
    %v6120 = vperm.slane %v6066, 1
    %v6121 = vperm.slane %v6066, 5
    %v6126 = vperm.slane %v6118, 1
    %v6127 = vperm.slane %v6119, 1
    %v6128 = vperm.slane %v6120, 1
    %v6129 = vperm.slane %v6121, 1
    %v6130 = vmul.f32 %v6116, %v6126
    %v6131 = vmul.f32 %v6116, %v6127
    %v6132 = vmul.f32 %v6116, %v6128
    %v6133 = vmul.f32 %v6116, %v6129
    %6138 = vrot.lane.b32.xlu0 %v6130, 111
    %v6139 = vpop.permute.xlu0 %6138
    %6140 = vrot.lane.b32.xlu0 %v6131, 111
    %v6141 = vpop.permute.xlu0 %6140
    %6142 = vrot.lane.b32.xlu0 %v6132, 111
    %v6143 = vpop.permute.xlu0 %6142
    %6144 = vrot.lane.b32.xlu0 %v6133, 111
    %v6145 = vpop.permute.xlu0 %6144
    %v6146 = vsel %vm98, %v6139, %v6141
    %v6147 = vsel %vm98, %v6141, %v6143
    %v6148 = vsel %vm98, %v6143, %v6145
    %v6154 = vadd.f32 %v6109, %v6139
    %v6155 = vadd.f32 %v6110, %v6146
    %v6156 = vadd.f32 %v6111, %v6147
    %v6157 = vadd.f32 %v6112, %v6148
    %v6158 = vadd.f32 %v6113, %v6145
    %6159 = vset.pattern.permute.xlu0 18
    %6160 = vperm.xlu0 %6159, %v5247
    %v6161 = vpop.permute.xlu0 %6160
    %v6163 = vperm.slane %v6065, 2
    %v6164 = vperm.slane %v6065, 6
    %v6165 = vperm.slane %v6066, 2
    %v6166 = vperm.slane %v6066, 6
    %v6171 = vperm.slane %v6163, 2
    %v6172 = vperm.slane %v6164, 2
    %v6173 = vperm.slane %v6165, 2
    %v6174 = vperm.slane %v6166, 2
    %v6175 = vmul.f32 %v6161, %v6171
    %v6176 = vmul.f32 %v6161, %v6172
    %v6177 = vmul.f32 %v6161, %v6173
    %v6178 = vmul.f32 %v6161, %v6174
    %6183 = vrot.lane.b32.xlu0 %v6175, 111
    %v6184 = vpop.permute.xlu0 %6183
    %6185 = vrot.lane.b32.xlu0 %v6176, 111
    %v6186 = vpop.permute.xlu0 %6185
    %6187 = vrot.lane.b32.xlu0 %v6177, 111
    %v6188 = vpop.permute.xlu0 %6187
    %6189 = vrot.lane.b32.xlu0 %v6178, 111
    %v6190 = vpop.permute.xlu0 %6189
    %v6191 = vsel %vm98, %v6184, %v6186
    %v6192 = vsel %vm98, %v6186, %v6188
    %v6193 = vsel %vm98, %v6188, %v6190
    %v6199 = vadd.f32 %v6154, %v6184
    %v6200 = vadd.f32 %v6155, %v6191
    %v6201 = vadd.f32 %v6156, %v6192
    %v6202 = vadd.f32 %v6157, %v6193
    %v6203 = vadd.f32 %v6158, %v6190
    %6204 = vset.pattern.permute.xlu0 19
    %6205 = vperm.xlu0 %6204, %v5247
    %v6206 = vpop.permute.xlu0 %6205
    %v6208 = vperm.slane %v6065, 3
    %v6209 = vperm.slane %v6065, 7
    %v6210 = vperm.slane %v6066, 3
    %v6211 = vperm.slane %v6066, 7
    %v6216 = vperm.slane %v6208, 3
    %v6217 = vperm.slane %v6209, 3
    %v6218 = vperm.slane %v6210, 3
    %v6219 = vperm.slane %v6211, 3
    %v6220 = vmul.f32 %v6206, %v6216
    %v6221 = vmul.f32 %v6206, %v6217
    %v6222 = vmul.f32 %v6206, %v6218
    %v6223 = vmul.f32 %v6206, %v6219
    %6228 = vrot.lane.b32.xlu0 %v6220, 111
    %v6229 = vpop.permute.xlu0 %6228
    %6230 = vrot.lane.b32.xlu0 %v6221, 111
    %v6231 = vpop.permute.xlu0 %6230
    %6232 = vrot.lane.b32.xlu0 %v6222, 111
    %v6233 = vpop.permute.xlu0 %6232
    %6234 = vrot.lane.b32.xlu0 %v6223, 111
    %v6235 = vpop.permute.xlu0 %6234
    %v6236 = vsel %vm98, %v6229, %v6231
    %v6237 = vsel %vm98, %v6231, %v6233
    %v6238 = vsel %vm98, %v6233, %v6235
    %v6244 = vadd.f32 %v6199, %v6229
    %v6245 = vadd.f32 %v6200, %v6236
    %v6246 = vadd.f32 %v6201, %v6237
    %v6247 = vadd.f32 %v6202, %v6238
    %v6248 = vadd.f32 %v6203, %v6235
    %6249 = vrot.lane.b32.xlu0 %v5275, 127
    %v6250 = vpop.permute.xlu0 %6249
    %6251 = vrot.lane.b32.xlu0 %v5276, 127
    %v6252 = vpop.permute.xlu0 %6251
    %6253 = vrot.lane.b32.xlu0 %v5277, 127
    %v6254 = vpop.permute.xlu0 %6253
    %v6255 = vrot.slane %v6250, 4
    %v6256 = vrot.slane %v6252, 4
    %v6257 = vrot.slane %v6254, 4
    %v6258 = vsel %vm89, %v6255, %v6256
    %v6259 = vsel %vm269, %v6258, %v6252
    %v6260 = vsel %vm89, %v6256, %v6257
    %v6261 = vsel %vm269, %v6260, %v6254
    %v6264 = vmul.f32 %v6259, %v958
    %v6265 = vmul.f32 %v6261, %v959
    %6266 = vset.pattern.permute.xlu0 20
    %6267 = vperm.xlu0 %6266, %v5247
    %v6268 = vpop.permute.xlu0 %6267
    %v6272 = vperm.slane %v6264, 0
    %v6273 = vperm.slane %v6264, 4
    %v6274 = vperm.slane %v6265, 0
    %v6275 = vperm.slane %v6265, 4
    %v6280 = vperm.slane %v6272, 0
    %v6281 = vperm.slane %v6273, 0
    %v6282 = vperm.slane %v6274, 0
    %v6283 = vperm.slane %v6275, 0
    %v6284 = vmul.f32 %v6268, %v6280
    %v6285 = vmul.f32 %v6268, %v6281
    %v6286 = vmul.f32 %v6268, %v6282
    %v6287 = vmul.f32 %v6268, %v6283
    %6292 = vrot.lane.b32.xlu0 %v6284, 111
    %v6293 = vpop.permute.xlu0 %6292
    %6294 = vrot.lane.b32.xlu0 %v6285, 111
    %v6295 = vpop.permute.xlu0 %6294
    %6296 = vrot.lane.b32.xlu0 %v6286, 111
    %v6297 = vpop.permute.xlu0 %6296
    %6298 = vrot.lane.b32.xlu0 %v6287, 111
    %v6299 = vpop.permute.xlu0 %6298
    %v6300 = vsel %vm98, %v6293, %v6295
    %v6301 = vsel %vm98, %v6295, %v6297
    %v6302 = vsel %vm98, %v6297, %v6299
    %v6308 = vadd.f32 %v6244, %v6293
    %v6309 = vadd.f32 %v6245, %v6300
    %v6310 = vadd.f32 %v6246, %v6301
    %v6311 = vadd.f32 %v6247, %v6302
    %v6312 = vadd.f32 %v6248, %v6299
    %6313 = vset.pattern.permute.xlu0 21
    %6314 = vperm.xlu0 %6313, %v5247
    %v6315 = vpop.permute.xlu0 %6314
    %v6317 = vperm.slane %v6264, 1
    %v6318 = vperm.slane %v6264, 5
    %v6319 = vperm.slane %v6265, 1
    %v6320 = vperm.slane %v6265, 5
    %v6325 = vperm.slane %v6317, 1
    %v6326 = vperm.slane %v6318, 1
    %v6327 = vperm.slane %v6319, 1
    %v6328 = vperm.slane %v6320, 1
    %v6329 = vmul.f32 %v6315, %v6325
    %v6330 = vmul.f32 %v6315, %v6326
    %v6331 = vmul.f32 %v6315, %v6327
    %v6332 = vmul.f32 %v6315, %v6328
    %6337 = vrot.lane.b32.xlu0 %v6329, 111
    %v6338 = vpop.permute.xlu0 %6337
    %6339 = vrot.lane.b32.xlu0 %v6330, 111
    %v6340 = vpop.permute.xlu0 %6339
    %6341 = vrot.lane.b32.xlu0 %v6331, 111
    %v6342 = vpop.permute.xlu0 %6341
    %6343 = vrot.lane.b32.xlu0 %v6332, 111
    %v6344 = vpop.permute.xlu0 %6343
    %v6345 = vsel %vm98, %v6338, %v6340
    %v6346 = vsel %vm98, %v6340, %v6342
    %v6347 = vsel %vm98, %v6342, %v6344
    %v6353 = vadd.f32 %v6308, %v6338
    %v6354 = vadd.f32 %v6309, %v6345
    %v6355 = vadd.f32 %v6310, %v6346
    %v6356 = vadd.f32 %v6311, %v6347
    %v6357 = vadd.f32 %v6312, %v6344
    %6358 = vset.pattern.permute.xlu0 22
    %6359 = vperm.xlu0 %6358, %v5247
    %v6360 = vpop.permute.xlu0 %6359
    %v6362 = vperm.slane %v6264, 2
    %v6363 = vperm.slane %v6264, 6
    %v6364 = vperm.slane %v6265, 2
    %v6365 = vperm.slane %v6265, 6
    %v6370 = vperm.slane %v6362, 2
    %v6371 = vperm.slane %v6363, 2
    %v6372 = vperm.slane %v6364, 2
    %v6373 = vperm.slane %v6365, 2
    %v6374 = vmul.f32 %v6360, %v6370
    %v6375 = vmul.f32 %v6360, %v6371
    %v6376 = vmul.f32 %v6360, %v6372
    %v6377 = vmul.f32 %v6360, %v6373
    %6382 = vrot.lane.b32.xlu0 %v6374, 111
    %v6383 = vpop.permute.xlu0 %6382
    %6384 = vrot.lane.b32.xlu0 %v6375, 111
    %v6385 = vpop.permute.xlu0 %6384
    %6386 = vrot.lane.b32.xlu0 %v6376, 111
    %v6387 = vpop.permute.xlu0 %6386
    %6388 = vrot.lane.b32.xlu0 %v6377, 111
    %v6389 = vpop.permute.xlu0 %6388
    %v6390 = vsel %vm98, %v6383, %v6385
    %v6391 = vsel %vm98, %v6385, %v6387
    %v6392 = vsel %vm98, %v6387, %v6389
    %v6398 = vadd.f32 %v6353, %v6383
    %v6399 = vadd.f32 %v6354, %v6390
    %v6400 = vadd.f32 %v6355, %v6391
    %v6401 = vadd.f32 %v6356, %v6392
    %v6402 = vadd.f32 %v6357, %v6389
    %6403 = vset.pattern.permute.xlu0 23
    %6404 = vperm.xlu0 %6403, %v5247
    %v6405 = vpop.permute.xlu0 %6404
    %v6407 = vperm.slane %v6264, 3
    %v6408 = vperm.slane %v6264, 7
    %v6409 = vperm.slane %v6265, 3
    %v6410 = vperm.slane %v6265, 7
    %v6415 = vperm.slane %v6407, 3
    %v6416 = vperm.slane %v6408, 3
    %v6417 = vperm.slane %v6409, 3
    %v6418 = vperm.slane %v6410, 3
    %v6419 = vmul.f32 %v6405, %v6415
    %v6420 = vmul.f32 %v6405, %v6416
    %v6421 = vmul.f32 %v6405, %v6417
    %v6422 = vmul.f32 %v6405, %v6418
    %6427 = vrot.lane.b32.xlu0 %v6419, 111
    %v6428 = vpop.permute.xlu0 %6427
    %6429 = vrot.lane.b32.xlu0 %v6420, 111
    %v6430 = vpop.permute.xlu0 %6429
    %6431 = vrot.lane.b32.xlu0 %v6421, 111
    %v6432 = vpop.permute.xlu0 %6431
    %6433 = vrot.lane.b32.xlu0 %v6422, 111
    %v6434 = vpop.permute.xlu0 %6433
    %v6435 = vsel %vm98, %v6428, %v6430
    %v6436 = vsel %vm98, %v6430, %v6432
    %v6437 = vsel %vm98, %v6432, %v6434
    %v6443 = vadd.f32 %v6398, %v6428
    %v6444 = vadd.f32 %v6399, %v6435
    %v6445 = vadd.f32 %v6400, %v6436
    %v6446 = vadd.f32 %v6401, %v6437
    %v6447 = vadd.f32 %v6402, %v6434
    %6448 = vrot.lane.b32.xlu0 %v5275, 113
    %v6449 = vpop.permute.xlu0 %6448
    %6450 = vrot.lane.b32.xlu0 %v5276, 113
    %v6451 = vpop.permute.xlu0 %6450
    %6452 = vrot.lane.b32.xlu0 %v5277, 113
    %v6453 = vpop.permute.xlu0 %6452
    %v6454 = vrot.slane %v6449, 4
    %v6455 = vrot.slane %v6451, 4
    %v6456 = vrot.slane %v6453, 4
    %v6457 = vsel %vm89, %v6454, %v6455
    %v6458 = vsel %vm408, %v6457, %v6451
    %v6459 = vsel %vm89, %v6455, %v6456
    %v6460 = vsel %vm408, %v6459, %v6453
    %v6463 = vmul.f32 %v6458, %v1126
    %v6464 = vmul.f32 %v6460, %v1127
    %6465 = vset.pattern.permute.xlu0 24
    %6466 = vperm.xlu0 %6465, %v5247
    %v6467 = vpop.permute.xlu0 %6466
    %v6471 = vperm.slane %v6463, 0
    %v6472 = vperm.slane %v6463, 4
    %v6473 = vperm.slane %v6464, 0
    %v6474 = vperm.slane %v6464, 4
    %v6479 = vperm.slane %v6471, 0
    %v6480 = vperm.slane %v6472, 0
    %v6481 = vperm.slane %v6473, 0
    %v6482 = vperm.slane %v6474, 0
    %v6483 = vmul.f32 %v6467, %v6479
    %v6484 = vmul.f32 %v6467, %v6480
    %v6485 = vmul.f32 %v6467, %v6481
    %v6486 = vmul.f32 %v6467, %v6482
    %6491 = vrot.lane.b32.xlu0 %v6483, 111
    %v6492 = vpop.permute.xlu0 %6491
    %6493 = vrot.lane.b32.xlu0 %v6484, 111
    %v6494 = vpop.permute.xlu0 %6493
    %6495 = vrot.lane.b32.xlu0 %v6485, 111
    %v6496 = vpop.permute.xlu0 %6495
    %6497 = vrot.lane.b32.xlu0 %v6486, 111
    %v6498 = vpop.permute.xlu0 %6497
    %v6499 = vsel %vm98, %v6492, %v6494
    %v6500 = vsel %vm98, %v6494, %v6496
    %v6501 = vsel %vm98, %v6496, %v6498
    %v6507 = vadd.f32 %v6443, %v6492
    %v6508 = vadd.f32 %v6444, %v6499
    %v6509 = vadd.f32 %v6445, %v6500
    %v6510 = vadd.f32 %v6446, %v6501
    %v6511 = vadd.f32 %v6447, %v6498
    %6512 = vset.pattern.permute.xlu0 25
    %6513 = vperm.xlu0 %6512, %v5247
    %v6514 = vpop.permute.xlu0 %6513
    %v6516 = vperm.slane %v6463, 1
    %v6517 = vperm.slane %v6463, 5
    %v6518 = vperm.slane %v6464, 1
    %v6519 = vperm.slane %v6464, 5
    %v6524 = vperm.slane %v6516, 1
    %v6525 = vperm.slane %v6517, 1
    %v6526 = vperm.slane %v6518, 1
    %v6527 = vperm.slane %v6519, 1
    %v6528 = vmul.f32 %v6514, %v6524
    %v6529 = vmul.f32 %v6514, %v6525
    %v6530 = vmul.f32 %v6514, %v6526
    %v6531 = vmul.f32 %v6514, %v6527
    %6536 = vrot.lane.b32.xlu0 %v6528, 111
    %v6537 = vpop.permute.xlu0 %6536
    %6538 = vrot.lane.b32.xlu0 %v6529, 111
    %v6539 = vpop.permute.xlu0 %6538
    %6540 = vrot.lane.b32.xlu0 %v6530, 111
    %v6541 = vpop.permute.xlu0 %6540
    %6542 = vrot.lane.b32.xlu0 %v6531, 111
    %v6543 = vpop.permute.xlu0 %6542
    %v6544 = vsel %vm98, %v6537, %v6539
    %v6545 = vsel %vm98, %v6539, %v6541
    %v6546 = vsel %vm98, %v6541, %v6543
    %v6552 = vadd.f32 %v6507, %v6537
    %v6553 = vadd.f32 %v6508, %v6544
    %v6554 = vadd.f32 %v6509, %v6545
    %v6555 = vadd.f32 %v6510, %v6546
    %v6556 = vadd.f32 %v6511, %v6543
    %6557 = vset.pattern.permute.xlu0 26
    %6558 = vperm.xlu0 %6557, %v5247
    %v6559 = vpop.permute.xlu0 %6558
    %v6561 = vperm.slane %v6463, 2
    %v6562 = vperm.slane %v6463, 6
    %v6563 = vperm.slane %v6464, 2
    %v6564 = vperm.slane %v6464, 6
    %v6569 = vperm.slane %v6561, 2
    %v6570 = vperm.slane %v6562, 2
    %v6571 = vperm.slane %v6563, 2
    %v6572 = vperm.slane %v6564, 2
    %v6573 = vmul.f32 %v6559, %v6569
    %v6574 = vmul.f32 %v6559, %v6570
    %v6575 = vmul.f32 %v6559, %v6571
    %v6576 = vmul.f32 %v6559, %v6572
    %6581 = vrot.lane.b32.xlu0 %v6573, 111
    %v6582 = vpop.permute.xlu0 %6581
    %6583 = vrot.lane.b32.xlu0 %v6574, 111
    %v6584 = vpop.permute.xlu0 %6583
    %6585 = vrot.lane.b32.xlu0 %v6575, 111
    %v6586 = vpop.permute.xlu0 %6585
    %6587 = vrot.lane.b32.xlu0 %v6576, 111
    %v6588 = vpop.permute.xlu0 %6587
    %v6589 = vsel %vm98, %v6582, %v6584
    %v6590 = vsel %vm98, %v6584, %v6586
    %v6591 = vsel %vm98, %v6586, %v6588
    %v6597 = vadd.f32 %v6552, %v6582
    %v6598 = vadd.f32 %v6553, %v6589
    %v6599 = vadd.f32 %v6554, %v6590
    %v6600 = vadd.f32 %v6555, %v6591
    %v6601 = vadd.f32 %v6556, %v6588
    %6602 = vset.pattern.permute.xlu0 27
    %6603 = vperm.xlu0 %6602, %v5247
    %v6604 = vpop.permute.xlu0 %6603
    %v6606 = vperm.slane %v6463, 3
    %v6607 = vperm.slane %v6463, 7
    %v6608 = vperm.slane %v6464, 3
    %v6609 = vperm.slane %v6464, 7
    %v6614 = vperm.slane %v6606, 3
    %v6615 = vperm.slane %v6607, 3
    %v6616 = vperm.slane %v6608, 3
    %v6617 = vperm.slane %v6609, 3
    %v6618 = vmul.f32 %v6604, %v6614
    %v6619 = vmul.f32 %v6604, %v6615
    %v6620 = vmul.f32 %v6604, %v6616
    %v6621 = vmul.f32 %v6604, %v6617
    %6626 = vrot.lane.b32.xlu0 %v6618, 111
    %v6627 = vpop.permute.xlu0 %6626
    %6628 = vrot.lane.b32.xlu0 %v6619, 111
    %v6629 = vpop.permute.xlu0 %6628
    %6630 = vrot.lane.b32.xlu0 %v6620, 111
    %v6631 = vpop.permute.xlu0 %6630
    %6632 = vrot.lane.b32.xlu0 %v6621, 111
    %v6633 = vpop.permute.xlu0 %6632
    %v6634 = vsel %vm98, %v6627, %v6629
    %v6635 = vsel %vm98, %v6629, %v6631
    %v6636 = vsel %vm98, %v6631, %v6633
    %v6642 = vadd.f32 %v6597, %v6627
    %v6643 = vadd.f32 %v6598, %v6634
    %v6644 = vadd.f32 %v6599, %v6635
    %v6645 = vadd.f32 %v6600, %v6636
    %v6646 = vadd.f32 %v6601, %v6633
    %6647 = vrot.lane.b32.xlu0 %v5275, 112
    %v6648 = vpop.permute.xlu0 %6647
    %6649 = vrot.lane.b32.xlu0 %v5276, 112
    %v6650 = vpop.permute.xlu0 %6649
    %6651 = vrot.lane.b32.xlu0 %v5277, 112
    %v6652 = vpop.permute.xlu0 %6651
    %v6653 = vrot.slane %v6648, 4
    %v6654 = vrot.slane %v6650, 4
    %v6655 = vrot.slane %v6652, 4
    %v6656 = vsel %vm89, %v6653, %v6654
    %v6657 = vsel %vm217, %v6656, %v6650
    %v6658 = vsel %vm89, %v6654, %v6655
    %v6659 = vsel %vm217, %v6658, %v6652
    %v6662 = vmul.f32 %v6657, %v1294
    %v6663 = vmul.f32 %v6659, %v1295
    %6664 = vset.pattern.permute.xlu0 28
    %6665 = vperm.xlu0 %6664, %v5247
    %v6666 = vpop.permute.xlu0 %6665
    %v6670 = vperm.slane %v6662, 0
    %v6671 = vperm.slane %v6662, 4
    %v6672 = vperm.slane %v6663, 0
    %v6673 = vperm.slane %v6663, 4
    %v6678 = vperm.slane %v6670, 0
    %v6679 = vperm.slane %v6671, 0
    %v6680 = vperm.slane %v6672, 0
    %v6681 = vperm.slane %v6673, 0
    %v6682 = vmul.f32 %v6666, %v6678
    %v6683 = vmul.f32 %v6666, %v6679
    %v6684 = vmul.f32 %v6666, %v6680
    %v6685 = vmul.f32 %v6666, %v6681
    %6690 = vrot.lane.b32.xlu0 %v6682, 111
    %v6691 = vpop.permute.xlu0 %6690
    %6692 = vrot.lane.b32.xlu0 %v6683, 111
    %v6693 = vpop.permute.xlu0 %6692
    %6694 = vrot.lane.b32.xlu0 %v6684, 111
    %v6695 = vpop.permute.xlu0 %6694
    %6696 = vrot.lane.b32.xlu0 %v6685, 111
    %v6697 = vpop.permute.xlu0 %6696
    %v6698 = vsel %vm98, %v6691, %v6693
    %v6699 = vsel %vm98, %v6693, %v6695
    %v6700 = vsel %vm98, %v6695, %v6697
    %v6706 = vadd.f32 %v6642, %v6691
    %v6707 = vadd.f32 %v6643, %v6698
    %v6708 = vadd.f32 %v6644, %v6699
    %v6709 = vadd.f32 %v6645, %v6700
    %v6710 = vadd.f32 %v6646, %v6697
    %6711 = vset.pattern.permute.xlu0 29
    %6712 = vperm.xlu0 %6711, %v5247
    %v6713 = vpop.permute.xlu0 %6712
    %v6715 = vperm.slane %v6662, 1
    %v6716 = vperm.slane %v6662, 5
    %v6717 = vperm.slane %v6663, 1
    %v6718 = vperm.slane %v6663, 5
    %v6723 = vperm.slane %v6715, 1
    %v6724 = vperm.slane %v6716, 1
    %v6725 = vperm.slane %v6717, 1
    %v6726 = vperm.slane %v6718, 1
    %v6727 = vmul.f32 %v6713, %v6723
    %v6728 = vmul.f32 %v6713, %v6724
    %v6729 = vmul.f32 %v6713, %v6725
    %v6730 = vmul.f32 %v6713, %v6726
    %6735 = vrot.lane.b32.xlu0 %v6727, 111
    %v6736 = vpop.permute.xlu0 %6735
    %6737 = vrot.lane.b32.xlu0 %v6728, 111
    %v6738 = vpop.permute.xlu0 %6737
    %6739 = vrot.lane.b32.xlu0 %v6729, 111
    %v6740 = vpop.permute.xlu0 %6739
    %6741 = vrot.lane.b32.xlu0 %v6730, 111
    %v6742 = vpop.permute.xlu0 %6741
    %v6743 = vsel %vm98, %v6736, %v6738
    %v6744 = vsel %vm98, %v6738, %v6740
    %v6745 = vsel %vm98, %v6740, %v6742
    %v6751 = vadd.f32 %v6706, %v6736
    %v6752 = vadd.f32 %v6707, %v6743
    %v6753 = vadd.f32 %v6708, %v6744
    %v6754 = vadd.f32 %v6709, %v6745
    %v6755 = vadd.f32 %v6710, %v6742
    %6756 = vset.pattern.permute.xlu0 30
    %6757 = vperm.xlu0 %6756, %v5247
    %v6758 = vpop.permute.xlu0 %6757
    %v6760 = vperm.slane %v6662, 2
    %v6761 = vperm.slane %v6662, 6
    %v6762 = vperm.slane %v6663, 2
    %v6763 = vperm.slane %v6663, 6
    %v6768 = vperm.slane %v6760, 2
    %v6769 = vperm.slane %v6761, 2
    %v6770 = vperm.slane %v6762, 2
    %v6771 = vperm.slane %v6763, 2
    %v6772 = vmul.f32 %v6758, %v6768
    %v6773 = vmul.f32 %v6758, %v6769
    %v6774 = vmul.f32 %v6758, %v6770
    %v6775 = vmul.f32 %v6758, %v6771
    %6780 = vrot.lane.b32.xlu0 %v6772, 111
    %v6781 = vpop.permute.xlu0 %6780
    %6782 = vrot.lane.b32.xlu0 %v6773, 111
    %v6783 = vpop.permute.xlu0 %6782
    %6784 = vrot.lane.b32.xlu0 %v6774, 111
    %v6785 = vpop.permute.xlu0 %6784
    %6786 = vrot.lane.b32.xlu0 %v6775, 111
    %v6787 = vpop.permute.xlu0 %6786
    %v6788 = vsel %vm98, %v6781, %v6783
    %v6789 = vsel %vm98, %v6783, %v6785
    %v6790 = vsel %vm98, %v6785, %v6787
    %v6796 = vadd.f32 %v6751, %v6781
    %v6797 = vadd.f32 %v6752, %v6788
    %v6798 = vadd.f32 %v6753, %v6789
    %v6799 = vadd.f32 %v6754, %v6790
    %v6800 = vadd.f32 %v6755, %v6787
    %6801 = vset.pattern.permute.xlu0 31
    %6802 = vperm.xlu0 %6801, %v5247
    %v6803 = vpop.permute.xlu0 %6802
    %v6805 = vperm.slane %v6662, 3
    %v6806 = vperm.slane %v6662, 7
    %v6807 = vperm.slane %v6663, 3
    %v6808 = vperm.slane %v6663, 7
    %v6813 = vperm.slane %v6805, 3
    %v6814 = vperm.slane %v6806, 3
    %v6815 = vperm.slane %v6807, 3
    %v6816 = vperm.slane %v6808, 3
    %v6817 = vmul.f32 %v6803, %v6813
    %v6818 = vmul.f32 %v6803, %v6814
    %v6819 = vmul.f32 %v6803, %v6815
    %v6820 = vmul.f32 %v6803, %v6816
    %6825 = vrot.lane.b32.xlu0 %v6817, 111
    %v6826 = vpop.permute.xlu0 %6825
    %6827 = vrot.lane.b32.xlu0 %v6818, 111
    %v6828 = vpop.permute.xlu0 %6827
    %6829 = vrot.lane.b32.xlu0 %v6819, 111
    %v6830 = vpop.permute.xlu0 %6829
    %6831 = vrot.lane.b32.xlu0 %v6820, 111
    %v6832 = vpop.permute.xlu0 %6831
    %v6833 = vsel %vm98, %v6826, %v6828
    %v6834 = vsel %vm98, %v6828, %v6830
    %v6835 = vsel %vm98, %v6830, %v6832
    %v6841 = vadd.f32 %v6796, %v6826
    %v6842 = vadd.f32 %v6797, %v6833
    %v6843 = vadd.f32 %v6798, %v6834
    %v6844 = vadd.f32 %v6799, %v6835
    %v6845 = vadd.f32 %v6800, %v6832
    %6846 = vrot.lane.b32.xlu0 %v5275, 111
    %v6847 = vpop.permute.xlu0 %6846
    %6848 = vrot.lane.b32.xlu0 %v5276, 111
    %v6849 = vpop.permute.xlu0 %6848
    %6850 = vrot.lane.b32.xlu0 %v5277, 111
    %v6851 = vpop.permute.xlu0 %6850
    %v6852 = vrot.slane %v6847, 4
    %v6853 = vrot.slane %v6849, 4
    %v6854 = vrot.slane %v6851, 4
    %v6855 = vsel %vm89, %v6852, %v6853
    %v6856 = vsel %vm98, %v6855, %v6849
    %v6857 = vsel %vm89, %v6853, %v6854
    %v6858 = vsel %vm98, %v6857, %v6851
    %v6861 = vmul.f32 %v6856, %v1462
    %v6862 = vmul.f32 %v6858, %v1463
    %6863 = vset.pattern.permute.xlu0 32
    %6864 = vperm.xlu0 %6863, %v5247
    %v6865 = vpop.permute.xlu0 %6864
    %v6869 = vperm.slane %v6861, 0
    %v6870 = vperm.slane %v6861, 4
    %v6871 = vperm.slane %v6862, 0
    %v6872 = vperm.slane %v6862, 4
    %v6877 = vperm.slane %v6869, 0
    %v6878 = vperm.slane %v6870, 0
    %v6879 = vperm.slane %v6871, 0
    %v6880 = vperm.slane %v6872, 0
    %v6881 = vmul.f32 %v6865, %v6877
    %v6882 = vmul.f32 %v6865, %v6878
    %v6883 = vmul.f32 %v6865, %v6879
    %v6884 = vmul.f32 %v6865, %v6880
    %6889 = vrot.lane.b32.xlu0 %v6881, 111
    %v6890 = vpop.permute.xlu0 %6889
    %6891 = vrot.lane.b32.xlu0 %v6882, 111
    %v6892 = vpop.permute.xlu0 %6891
    %6893 = vrot.lane.b32.xlu0 %v6883, 111
    %v6894 = vpop.permute.xlu0 %6893
    %6895 = vrot.lane.b32.xlu0 %v6884, 111
    %v6896 = vpop.permute.xlu0 %6895
    %v6897 = vsel %vm98, %v6890, %v6892
    %v6898 = vsel %vm98, %v6892, %v6894
    %v6899 = vsel %vm98, %v6894, %v6896
    %v6905 = vadd.f32 %v6841, %v6890
    %v6906 = vadd.f32 %v6842, %v6897
    %v6907 = vadd.f32 %v6843, %v6898
    %v6908 = vadd.f32 %v6844, %v6899
    %v6909 = vadd.f32 %v6845, %v6896
    %6910 = vset.pattern.permute.xlu0 33
    %6911 = vperm.xlu0 %6910, %v5247
    %v6912 = vpop.permute.xlu0 %6911
    %v6914 = vperm.slane %v6861, 1
    %v6915 = vperm.slane %v6861, 5
    %v6916 = vperm.slane %v6862, 1
    %v6917 = vperm.slane %v6862, 5
    %v6922 = vperm.slane %v6914, 1
    %v6923 = vperm.slane %v6915, 1
    %v6924 = vperm.slane %v6916, 1
    %v6925 = vperm.slane %v6917, 1
    %v6926 = vmul.f32 %v6912, %v6922
    %v6927 = vmul.f32 %v6912, %v6923
    %v6928 = vmul.f32 %v6912, %v6924
    %v6929 = vmul.f32 %v6912, %v6925
    %6934 = vrot.lane.b32.xlu0 %v6926, 111
    %v6935 = vpop.permute.xlu0 %6934
    %6936 = vrot.lane.b32.xlu0 %v6927, 111
    %v6937 = vpop.permute.xlu0 %6936
    %6938 = vrot.lane.b32.xlu0 %v6928, 111
    %v6939 = vpop.permute.xlu0 %6938
    %6940 = vrot.lane.b32.xlu0 %v6929, 111
    %v6941 = vpop.permute.xlu0 %6940
    %v6942 = vsel %vm98, %v6935, %v6937
    %v6943 = vsel %vm98, %v6937, %v6939
    %v6944 = vsel %vm98, %v6939, %v6941
    %v6950 = vadd.f32 %v6905, %v6935
    %v6951 = vadd.f32 %v6906, %v6942
    %v6952 = vadd.f32 %v6907, %v6943
    %v6953 = vadd.f32 %v6908, %v6944
    %v6954 = vadd.f32 %v6909, %v6941
    %6955 = vset.pattern.permute.xlu0 34
    %6956 = vperm.xlu0 %6955, %v5247
    %v6957 = vpop.permute.xlu0 %6956
    %v6959 = vperm.slane %v6861, 2
    %v6960 = vperm.slane %v6861, 6
    %v6961 = vperm.slane %v6862, 2
    %v6962 = vperm.slane %v6862, 6
    %v6967 = vperm.slane %v6959, 2
    %v6968 = vperm.slane %v6960, 2
    %v6969 = vperm.slane %v6961, 2
    %v6970 = vperm.slane %v6962, 2
    %v6971 = vmul.f32 %v6957, %v6967
    %v6972 = vmul.f32 %v6957, %v6968
    %v6973 = vmul.f32 %v6957, %v6969
    %v6974 = vmul.f32 %v6957, %v6970
    %6979 = vrot.lane.b32.xlu0 %v6971, 111
    %v6980 = vpop.permute.xlu0 %6979
    %6981 = vrot.lane.b32.xlu0 %v6972, 111
    %v6982 = vpop.permute.xlu0 %6981
    %6983 = vrot.lane.b32.xlu0 %v6973, 111
    %v6984 = vpop.permute.xlu0 %6983
    %6985 = vrot.lane.b32.xlu0 %v6974, 111
    %v6986 = vpop.permute.xlu0 %6985
    %v6987 = vsel %vm98, %v6980, %v6982
    %v6988 = vsel %vm98, %v6982, %v6984
    %v6989 = vsel %vm98, %v6984, %v6986
    %v6995 = vadd.f32 %v6950, %v6980
    %v6996 = vadd.f32 %v6951, %v6987
    %v6997 = vadd.f32 %v6952, %v6988
    %v6998 = vadd.f32 %v6953, %v6989
    %v6999 = vadd.f32 %v6954, %v6986
    %7000 = vset.pattern.permute.xlu0 35
    %7001 = vperm.xlu0 %7000, %v5247
    %v7002 = vpop.permute.xlu0 %7001
    %v7004 = vperm.slane %v6861, 3
    %v7005 = vperm.slane %v6861, 7
    %v7006 = vperm.slane %v6862, 3
    %v7007 = vperm.slane %v6862, 7
    %v7012 = vperm.slane %v7004, 3
    %v7013 = vperm.slane %v7005, 3
    %v7014 = vperm.slane %v7006, 3
    %v7015 = vperm.slane %v7007, 3
    %v7016 = vmul.f32 %v7002, %v7012
    %v7017 = vmul.f32 %v7002, %v7013
    %v7018 = vmul.f32 %v7002, %v7014
    %v7019 = vmul.f32 %v7002, %v7015
    %7024 = vrot.lane.b32.xlu0 %v7016, 111
    %v7025 = vpop.permute.xlu0 %7024
    %7026 = vrot.lane.b32.xlu0 %v7017, 111
    %v7027 = vpop.permute.xlu0 %7026
    %7028 = vrot.lane.b32.xlu0 %v7018, 111
    %v7029 = vpop.permute.xlu0 %7028
    %7030 = vrot.lane.b32.xlu0 %v7019, 111
    %v7031 = vpop.permute.xlu0 %7030
    %v7032 = vsel %vm98, %v7025, %v7027
    %v7033 = vsel %vm98, %v7027, %v7029
    %v7034 = vsel %vm98, %v7029, %v7031
    %v7040 = vadd.f32 %v6995, %v7025
    %v7041 = vadd.f32 %v6996, %v7032
    %v7042 = vadd.f32 %v6997, %v7033
    %v7043 = vadd.f32 %v6998, %v7034
    %v7044 = vadd.f32 %v6999, %v7031
    %7046 = vset.pattern.permute.xlu0 0
    %7047 = vperm.xlu0 %7046, %v5248
    %v7048 = vpop.permute.xlu0 %7047
    %v7050 = vadd.f32 %v7040, %v7048
    %v7051 = vadd.f32 %v7041, %v7048
    %v7052 = vadd.f32 %v7042, %v7048
    %v7053 = vadd.f32 %v7043, %v7048
    %v7054 = vadd.f32 %v7044, %v7048
    %v7055 = vxor.u32 %v7050, 2147483648
    %v7056 = vxor.u32 %v7051, 2147483648
    %v7057 = vxor.u32 %v7052, 2147483648
    %v7058 = vxor.u32 %v7053, 2147483648
    %v7059 = vxor.u32 %v7054, 2147483648
    %v7060 = vmul.f32 %v7055, 1.442695
    %v7061 = vpow.pop %v7060
    %v7062 = vmul.f32 %v7056, 1.442695
    %v7063 = vpow.pop %v7062
    %v7064 = vmul.f32 %v7057, 1.442695
    %v7065 = vpow.pop %v7064
    %v7066 = vmul.f32 %v7058, 1.442695
    %v7067 = vpow.pop %v7066
    %v7068 = vmul.f32 %v7059, 1.442695
    %v7069 = vpow.pop %v7068
    %v7070 = vadd.f32 %v7061, 1.0
    %v7071 = vadd.f32 %v7063, 1.0
    %v7072 = vadd.f32 %v7065, 1.0
    %v7073 = vadd.f32 %v7067, 1.0
    %v7074 = vadd.f32 %v7069, 1.0
    %v7075 = vrcp.pop %v7070
    %v7076 = vmul.f32 %v7070, %v7075
    %v7077 = vsub.f32 1.0, %v7076
    %v7078 = vmul.f32 %v7075, %v7077
    %v7079 = vadd.f32 %v7075, %v7078
    %vm7080 = vweird.f32 %v7070
    %vm7081 = vweird.f32 %v7075
    %vm7082 = vmor %vm7080, %vm7081
    %v7083 = vsel %vm7082, %v7075, %v7079
    %v7084 = vand.u32 2147483647, %v7070
    %vm7085 = vcmp.eq.f32.partialorder %v7084, 8.507059e+37
    %v7086 = vand.u32 %v7070, 2147483648
    %v7087 = vor.u32 1.1754944e-38, %v7086
    %v7088 = vsel %vm7085, %v7087, %v7083
    %v7089 = vmul.f32 1.0, %v7088
    %v7090 = vrcp.pop %v7071
    %v7091 = vmul.f32 %v7071, %v7090
    %v7092 = vsub.f32 1.0, %v7091
    %v7093 = vmul.f32 %v7090, %v7092
    %v7094 = vadd.f32 %v7090, %v7093
    %vm7095 = vweird.f32 %v7071
    %vm7096 = vweird.f32 %v7090
    %vm7097 = vmor %vm7095, %vm7096
    %v7098 = vsel %vm7097, %v7090, %v7094
    %v7099 = vand.u32 2147483647, %v7071
    %vm7100 = vcmp.eq.f32.partialorder %v7099, 8.507059e+37
    %v7101 = vand.u32 %v7071, 2147483648
    %v7102 = vor.u32 1.1754944e-38, %v7101
    %v7103 = vsel %vm7100, %v7102, %v7098
    %v7104 = vmul.f32 1.0, %v7103
    %v7105 = vrcp.pop %v7072
    %v7106 = vmul.f32 %v7072, %v7105
    %v7107 = vsub.f32 1.0, %v7106
    %v7108 = vmul.f32 %v7105, %v7107
    %v7109 = vadd.f32 %v7105, %v7108
    %vm7110 = vweird.f32 %v7072
    %vm7111 = vweird.f32 %v7105
    %vm7112 = vmor %vm7110, %vm7111
    %v7113 = vsel %vm7112, %v7105, %v7109
    %v7114 = vand.u32 2147483647, %v7072
    %vm7115 = vcmp.eq.f32.partialorder %v7114, 8.507059e+37
    %v7116 = vand.u32 %v7072, 2147483648
    %v7117 = vor.u32 1.1754944e-38, %v7116
    %v7118 = vsel %vm7115, %v7117, %v7113
    %v7119 = vmul.f32 1.0, %v7118
    %v7120 = vrcp.pop %v7073
    %v7121 = vmul.f32 %v7073, %v7120
    %v7122 = vsub.f32 1.0, %v7121
    %v7123 = vmul.f32 %v7120, %v7122
    %v7124 = vadd.f32 %v7120, %v7123
    %vm7125 = vweird.f32 %v7073
    %vm7126 = vweird.f32 %v7120
    %vm7127 = vmor %vm7125, %vm7126
    %v7128 = vsel %vm7127, %v7120, %v7124
    %v7129 = vand.u32 2147483647, %v7073
    %vm7130 = vcmp.eq.f32.partialorder %v7129, 8.507059e+37
    %v7131 = vand.u32 %v7073, 2147483648
    %v7132 = vor.u32 1.1754944e-38, %v7131
    %v7133 = vsel %vm7130, %v7132, %v7128
    %v7134 = vmul.f32 1.0, %v7133
    %v7135 = vrcp.pop %v7074
    %v7136 = vmul.f32 %v7074, %v7135
    %v7137 = vsub.f32 1.0, %v7136
    %v7138 = vmul.f32 %v7135, %v7137
    %v7139 = vadd.f32 %v7135, %v7138
    %vm7140 = vweird.f32 %v7074
    %vm7141 = vweird.f32 %v7135
    %vm7142 = vmor %vm7140, %vm7141
    %v7143 = vsel %vm7142, %v7135, %v7139
    %v7144 = vand.u32 2147483647, %v7074
    %vm7145 = vcmp.eq.f32.partialorder %v7144, 8.507059e+37
    %v7146 = vand.u32 %v7074, 2147483648
    %v7147 = vor.u32 1.1754944e-38, %v7146
    %v7148 = vsel %vm7145, %v7147, %v7143
    %v7149 = vmul.f32 1.0, %v7148
    %v7153 = vrot.slane %v7104, 7
    %v7154 = vrot.slane %v7119, 6
    %vm7155 = vcmask 1040384
    %v7156 = vsel %vm7155, %v7089, %v7153
    %vm7157 = vcmask 1041408
    %v7158 = vsel %vm7157, %v7156, %v7154
    %7159 = vrot.lane.b32.xlu0 %v7158, 17
    %v7160 = vpop.permute.xlu0 %7159
    %v7161 = vrot.slane %v7160, 1
    %v7162 = vsel %vm1641, %v7160, %v7161
    %v7164 = vlaneseq
    %vm7165 = vcmp.ge.s32.totalorder %v7164, 0
    %vm7166 = vcmp.lt.s32.totalorder %v7164, 256
    %vm7167 = vmand %vm7165, %vm7166
    %7168 = vst.msk [vmem:[#allocation3] ss:$2 sm:$0x3] %vm7167, %v7162
    %v7171 = vrot.slane %v7134, 7
    %v7172 = vrot.slane %v7149, 6
    %v7173 = vsel %vm7155, %v7119, %v7171
    %v7174 = vsel %vm7157, %v7173, %v7172
    %7175 = vrot.lane.b32.xlu0 %v7174, 17
    %v7176 = vpop.permute.xlu0 %7175
    %v7177 = vrot.slane %v7176, 1
    %v7178 = vsel %vm1641, %v7176, %v7177
    %s7180 = scalar_lea.vmem [#allocation3], 1
    %7181 = vst.msk [vmem:[%s7180] ss:$2 sm:$0x3] %vm7167, %v7178
    %7182 = vst [vmem:[#allocation1] sm:$0xff] %v7089
    %7183 = vst [vmem:[#allocation1 + $0x9] sm:$0xff] %v7104
    %7184 = vst [vmem:[#allocation1 + $0x12] sm:$0xff] %v7119
    %s7185 = scalar_lea.vmem [#allocation1], 1
    %v7186 = vld [vmem:[%s7185] ss:$9 sm:$0xff]
    %7187 = vrot.lane.b32.xlu0 %v7186, 17
    %v7188 = vpop.permute.xlu0 %7187
    %v7189 = vrot.slane %v7188, 1
    %v7190 = vsel %vm1641, %v7188, %v7189
    %s7192 = scalar_lea.vmem [#allocation3], 4
    %7193 = vst.msk [vmem:[%s7192] ss:$2 sm:$0x3] %vm7167, %v7190
    %7194 = vst [vmem:[#allocation1] sm:$0xff] %v7119
    %7195 = vst [vmem:[#allocation1 + $0x9] sm:$0xff] %v7134
    %7196 = vst [vmem:[#allocation1 + $0x12] sm:$0xff] %v7149
    %s7197 = scalar_lea.vmem [#allocation1], 1
    %v7198 = vld [vmem:[%s7197] ss:$9 sm:$0xff]
    %7199 = vrot.lane.b32.xlu0 %v7198, 17
    %v7200 = vpop.permute.xlu0 %7199
    %v7201 = vrot.slane %v7200, 1
    %v7202 = vsel %vm1641, %v7200, %v7201
    %s7204 = scalar_lea.vmem [#allocation3], 5
    %7205 = vst.msk [vmem:[%s7204] ss:$2 sm:$0x3] %vm7167, %v7202
    %7206 = vst [vmem:[#allocation1] sm:$0xff] %v7089
    %7207 = vst [vmem:[#allocation1 + $0x9] sm:$0xff] %v7104
    %7208 = vst [vmem:[#allocation1 + $0x12] sm:$0xff] %v7119
    %s7209 = scalar_lea.vmem [#allocation1], 2
    %v7210 = vld [vmem:[%s7209] ss:$9 sm:$0xff]
    %7211 = vrot.lane.b32.xlu0 %v7210, 17
    %v7212 = vpop.permute.xlu0 %7211
    %v7213 = vrot.slane %v7212, 1
    %v7214 = vsel %vm1641, %v7212, %v7213
    %s7216 = scalar_lea.vmem [#allocation3], 8
    %7217 = vst.msk [vmem:[%s7216] ss:$2 sm:$0x3] %vm7167, %v7214
    %7218 = vst [vmem:[#allocation1] sm:$0xff] %v7119
    %7219 = vst [vmem:[#allocation1 + $0x9] sm:$0xff] %v7134
    %7220 = vst [vmem:[#allocation1 + $0x12] sm:$0xff] %v7149
    %s7221 = scalar_lea.vmem [#allocation1], 2
    %v7222 = vld [vmem:[%s7221] ss:$9 sm:$0xff]
    %7223 = vrot.lane.b32.xlu0 %v7222, 17
    %v7224 = vpop.permute.xlu0 %7223
    %v7225 = vrot.slane %v7224, 1
    %v7226 = vsel %vm1641, %v7224, %v7225
    %s7228 = scalar_lea.vmem [#allocation3], 9
    %7229 = vst.msk [vmem:[%s7228] ss:$2 sm:$0x3] %vm7167, %v7226
    %7230 = vst [vmem:[#allocation1] sm:$0xff] %v7089
    %7231 = vst [vmem:[#allocation1 + $0x9] sm:$0xff] %v7104
    %7232 = vst [vmem:[#allocation1 + $0x12] sm:$0xff] %v7119
    %s7233 = scalar_lea.vmem [#allocation1], 3
    %v7234 = vld [vmem:[%s7233] ss:$9 sm:$0xff]
    %7235 = vrot.lane.b32.xlu0 %v7234, 17
    %v7236 = vpop.permute.xlu0 %7235
    %v7237 = vrot.slane %v7236, 1
    %v7238 = vsel %vm1641, %v7236, %v7237
    %s7240 = scalar_lea.vmem [#allocation3], 12
    %7241 = vst.msk [vmem:[%s7240] ss:$2 sm:$0x3] %vm7167, %v7238
    %7242 = vst [vmem:[#allocation1] sm:$0xff] %v7119
    %7243 = vst [vmem:[#allocation1 + $0x9] sm:$0xff] %v7134
    %7244 = vst [vmem:[#allocation1 + $0x12] sm:$0xff] %v7149
    %s7245 = scalar_lea.vmem [#allocation1], 3
    %v7246 = vld [vmem:[%s7245] ss:$9 sm:$0xff]
    %7247 = vrot.lane.b32.xlu0 %v7246, 17
    %v7248 = vpop.permute.xlu0 %7247
    %v7249 = vrot.slane %v7248, 1
    %v7250 = vsel %vm1641, %v7248, %v7249
    %s7252 = scalar_lea.vmem [#allocation3], 13
    %7253 = vst.msk [vmem:[%s7252] ss:$2 sm:$0x3] %vm7167, %v7250
    %v7254 = vld [vmem:[#allocation3] sm:$0xff]
    %v7255 = vld [vmem:[#allocation3 + $0x8] sm:$0xff]
    %v7256 = vld [vmem:[%s10] sm:$0xff]
    %v7257 = vld [vmem:[%s10 + $0x8] sm:$0xff]
    %v7258 = vld [vmem:[%s10 + $0x10] sm:$0xff]
    %v7259 = vld [vmem:[%s10 + $0x18] sm:$0xff]
    %v7260 = vld [vmem:[%s10 + $0x20] sm:$0xff]
    %v7261 = vld [vmem:[%s10 + $0x28] sm:$0xff]
    %v7262 = vld [vmem:[%s10 + $0x30] sm:$0xff]
    %v7263 = vld [vmem:[%s10 + $0x38] sm:$0xff]
    %v7264 = vld [vmem:[%s10 + $0x40] sm:$0xff]
    %v7265 = vld [vmem:[%s10 + $0x48] sm:$0xff]
    %v7266 = vld [vmem:[%s10 + $0x50] sm:$0xff]
    %v7267 = vld [vmem:[%s10 + $0x58] sm:$0xff]
    %v7268 = vld [vmem:[%s10 + $0x60] sm:$0xff]
    %v7269 = vld [vmem:[%s10 + $0x68] sm:$0xff]
    %v7270 = vld [vmem:[%s10 + $0x70] sm:$0xff]
    %v7271 = vld [vmem:[%s10 + $0x78] sm:$0xff]
    %v7272 = vld [vmem:[%s10 + $0x80] sm:$0xff]
    %v7273 = vld [vmem:[%s10 + $0x88] sm:$0xff]
    %v7274 = vld [vmem:[%s10 + $0x90] sm:$0xff]
    %v7275 = vld [vmem:[%s10 + $0x98] sm:$0xff]
    %v7276 = vld [vmem:[%s10 + $0xa0] sm:$0xff]
    %v7277 = vld [vmem:[%s10 + $0xa8] sm:$0xff]
    %v7278 = vld [vmem:[%s10 + $0xb0] sm:$0xff]
    %v7279 = vld [vmem:[%s10 + $0xb8] sm:$0xff]
    %v7280 = vld [vmem:[%s10 + $0xc0] sm:$0xff]
    %v7281 = vld [vmem:[%s10 + $0xc8] sm:$0xff]
    %v7282 = vld [vmem:[%s10 + $0xd0] sm:$0xff]
    %v7283 = vld [vmem:[%s10 + $0xd8] sm:$0xff]
    %v7284 = vld [vmem:[%s10 + $0xe0] sm:$0xff]
    %v7285 = vld [vmem:[%s10 + $0xe8] sm:$0xff]
    %v7286 = vld [vmem:[%s10 + $0xf0] sm:$0xff]
    %v7287 = vld [vmem:[%s10 + $0xf8] sm:$0xff]
    %v7288 = vld [vmem:[%s10 + $0x100] sm:$0xff]
    %v7289 = vld [vmem:[%s10 + $0x108] sm:$0xff]
    %v7290 = vld [vmem:[%s10 + $0x110] sm:$0xff]
    %v7291 = vld [vmem:[%s10 + $0x118] sm:$0xff]
    %v7292 = vld [vmem:[%s10 + $0x120] sm:$0xff]
    %v7293 = vld [vmem:[%s10 + $0x128] sm:$0xff]
    %v7294 = vld [vmem:[%s10 + $0x130] sm:$0xff]
    %v7295 = vld [vmem:[%s10 + $0x138] sm:$0xff]
    %v7296 = vld [vmem:[%s10 + $0x140] sm:$0xff]
    %v7297 = vld [vmem:[%s10 + $0x148] sm:$0xff]
    %v7298 = vld [vmem:[%s10 + $0x150] sm:$0xff]
    %v7299 = vld [vmem:[%s10 + $0x158] sm:$0xff]
    %v7300 = vld [vmem:[%s10 + $0x160] sm:$0xff]
    %v7301 = vld [vmem:[%s10 + $0x168] sm:$0xff]
    %v7302 = vld [vmem:[%s10 + $0x170] sm:$0xff]
    %v7303 = vld [vmem:[%s10 + $0x178] sm:$0xff]
    %v7304 = vld [vmem:[%s10 + $0x180] sm:$0xff]
    %v7305 = vld [vmem:[%s10 + $0x188] sm:$0xff]
    %v7306 = vld [vmem:[%s10 + $0x190] sm:$0xff]
    %v7307 = vld [vmem:[%s10 + $0x198] sm:$0xff]
    %v7308 = vld [vmem:[%s10 + $0x1a0] sm:$0xff]
    %v7309 = vld [vmem:[%s10 + $0x1a8] sm:$0xff]
    %v7310 = vld [vmem:[%s10 + $0x1b0] sm:$0xff]
    %v7311 = vld [vmem:[%s10 + $0x1b8] sm:$0xff]
    %v7312 = vld [vmem:[%s10 + $0x1c0] sm:$0xff]
    %v7313 = vld [vmem:[%s10 + $0x1c8] sm:$0xff]
    %v7314 = vld [vmem:[%s10 + $0x1d0] sm:$0xff]
    %v7315 = vld [vmem:[%s10 + $0x1d8] sm:$0xff]
    %v7316 = vld [vmem:[%s10 + $0x1e0] sm:$0xff]
    %v7317 = vld [vmem:[%s10 + $0x1e8] sm:$0xff]
    %v7318 = vld [vmem:[%s10 + $0x1f0] sm:$0xff]
    %v7319 = vld [vmem:[%s10 + $0x1f8] sm:$0xff]
    %v7320 = vld [vmem:[%s10 + $0x200] sm:$0xff]
    %v7321 = vld [vmem:[%s10 + $0x208] sm:$0xff]
    %v7322 = vld [vmem:[%s10 + $0x210] sm:$0xff]
    %v7323 = vld [vmem:[%s10 + $0x218] sm:$0xff]
    %v7324 = vld [vmem:[%s10 + $0x220] sm:$0xff]
    %v7325 = vld [vmem:[%s10 + $0x228] sm:$0xff]
    %v7326 = vld [vmem:[%s10 + $0x230] sm:$0xff]
    %v7327 = vld [vmem:[%s10 + $0x238] sm:$0xff]
    %v7328 = vld [vmem:[%s10 + $0x240] sm:$0xff]
    %v7329 = vld [vmem:[%s10 + $0x248] sm:$0xff]
    %v7330 = vld [vmem:[%s10 + $0x250] sm:$0xff]
    %v7331 = vld [vmem:[%s10 + $0x258] sm:$0xff]
    %v7332 = vld [vmem:[%s10 + $0x260] sm:$0xff]
    %v7333 = vld [vmem:[%s10 + $0x268] sm:$0xff]
    %v7334 = vld [vmem:[%s10 + $0x270] sm:$0xff]
    %v7335 = vld [vmem:[%s10 + $0x278] sm:$0xff]
    %v7336 = vld [vmem:[%s10 + $0x280] sm:$0xff]
    %v7337 = vld [vmem:[%s10 + $0x288] sm:$0xff]
    %v7338 = vld [vmem:[%s10 + $0x290] sm:$0xff]
    %v7339 = vld [vmem:[%s10 + $0x298] sm:$0xff]
    %v7340 = vld [vmem:[%s10 + $0x2a0] sm:$0xff]
    %v7341 = vld [vmem:[%s10 + $0x2a8] sm:$0xff]
    %v7342 = vld [vmem:[%s10 + $0x2b0] sm:$0xff]
    %v7343 = vld [vmem:[%s10 + $0x2b8] sm:$0xff]
    %v7344 = vld [vmem:[%s10 + $0x2c0] sm:$0xff]
    %v7345 = vld [vmem:[%s10 + $0x2c8] sm:$0xff]
    %v7346 = vld [vmem:[%s10 + $0x2d0] sm:$0xff]
    %v7347 = vld [vmem:[%s10 + $0x2d8] sm:$0xff]
    %v7348 = vld [vmem:[%s10 + $0x2e0] sm:$0xff]
    %v7349 = vld [vmem:[%s10 + $0x2e8] sm:$0xff]
    %v7350 = vld [vmem:[%s10 + $0x2f0] sm:$0xff]
    %v7351 = vld [vmem:[%s10 + $0x2f8] sm:$0xff]
    %v7352 = vld [vmem:[%s10 + $0x300] sm:$0xff]
    %v7353 = vld [vmem:[%s10 + $0x308] sm:$0xff]
    %v7354 = vld [vmem:[%s10 + $0x310] sm:$0xff]
    %v7355 = vld [vmem:[%s10 + $0x318] sm:$0xff]
    %v7356 = vld [vmem:[%s10 + $0x320] sm:$0xff]
    %v7357 = vld [vmem:[%s10 + $0x328] sm:$0xff]
    %v7358 = vld [vmem:[%s10 + $0x330] sm:$0xff]
    %v7359 = vld [vmem:[%s10 + $0x338] sm:$0xff]
    %v7360 = vld [vmem:[%s10 + $0x340] sm:$0xff]
    %v7361 = vld [vmem:[%s10 + $0x348] sm:$0xff]
    %v7362 = vld [vmem:[%s10 + $0x350] sm:$0xff]
    %v7363 = vld [vmem:[%s10 + $0x358] sm:$0xff]
    %v7364 = vld [vmem:[%s10 + $0x360] sm:$0xff]
    %v7365 = vld [vmem:[%s10 + $0x368] sm:$0xff]
    %v7366 = vld [vmem:[%s10 + $0x370] sm:$0xff]
    %v7367 = vld [vmem:[%s10 + $0x378] sm:$0xff]
    %v7368 = vld [vmem:[%s10 + $0x380] sm:$0xff]
    %v7369 = vld [vmem:[%s10 + $0x388] sm:$0xff]
    %v7370 = vld [vmem:[%s10 + $0x390] sm:$0xff]
    %v7371 = vld [vmem:[%s10 + $0x398] sm:$0xff]
    %v7372 = vld [vmem:[%s10 + $0x3a0] sm:$0xff]
    %v7373 = vld [vmem:[%s10 + $0x3a8] sm:$0xff]
    %v7374 = vld [vmem:[%s10 + $0x3b0] sm:$0xff]
    %v7375 = vld [vmem:[%s10 + $0x3b8] sm:$0xff]
    %v7376 = vld [vmem:[%s10 + $0x3c0] sm:$0xff]
    %v7377 = vld [vmem:[%s10 + $0x3c8] sm:$0xff]
    %v7378 = vld [vmem:[%s10 + $0x3d0] sm:$0xff]
    %v7379 = vld [vmem:[%s10 + $0x3d8] sm:$0xff]
    %v7380 = vld [vmem:[%s10 + $0x3e0] sm:$0xff]
    %v7381 = vld [vmem:[%s10 + $0x3e8] sm:$0xff]
    %v7382 = vld [vmem:[%s10 + $0x3f0] sm:$0xff]
    %v7383 = vld [vmem:[%s10 + $0x3f8] sm:$0xff]
    %v7384 = vld [vmem:[%s11] sm:$0x1]
    %v7386 = vperm.slane %v7384, 0
    %7390 = vst [vmem:[#allocation1] ss:$4 sm:$0xff] %v7254
    %s7391 = scalar_lea.vmem [#allocation1], 32
    %7392 = vst [vmem:[%s7391] ss:$4 sm:$0xff] %v7255
    %v7393 = vld.sshfl [vmem:[#allocation1] sm:$0xff pattern:$0x73625140]
    %v7394 = vld.sshfl [vmem:[#allocation1 + $0x8] sm:$0xff pattern:$0x73625140]
    %v7395 = vld.sshfl [vmem:[#allocation1 + $0x10] sm:$0xff pattern:$0x73625140]
    %v7396 = vld.sshfl [vmem:[#allocation1 + $0x18] sm:$0xff pattern:$0x73625140]
    %v7397 = vld.sshfl [vmem:[#allocation1 + $0x20] sm:$0xff pattern:$0x73625140]
    %v7398 = vld.sshfl [vmem:[#allocation1 + $0x28] sm:$0xff pattern:$0x73625140]
    %v7399 = vld.sshfl [vmem:[#allocation1 + $0x30] sm:$0xff pattern:$0x73625140]
    %v7400 = vld.sshfl [vmem:[#allocation1 + $0x38] sm:$0xff pattern:$0x73625140]
    %7409 = vmatpush.msra.mxu0 %v7271
    %7410 = vmatpush.msra.mxu0 %v7270
    %7411 = vmatpush.msra.mxu0 %v7269
    %7412 = vmatpush.msra.mxu0 %v7268
    %7413 = vmatpush.msra.mxu0 %v7267
    %7414 = vmatpush.msra.mxu0 %v7266
    %7415 = vmatpush.msra.mxu0 %v7265
    %7416 = vmatpush.msra.mxu0 %v7264
    %7417 = vmatpush.msra.mxu0 %v7263
    %7418 = vmatpush.msra.mxu0 %v7262
    %7419 = vmatpush.msra.mxu0 %v7261
    %7420 = vmatpush.msra.mxu0 %v7260
    %7421 = vmatpush.msra.mxu0 %v7259
    %7422 = vmatpush.msra.mxu0 %v7258
    %7423 = vmatpush.msra.mxu0 %v7257
    %7424 = vmatpush.msra.mxu0 %v7256
    %7425 = vmatmul.f32.gmra.mxu0 %v7393
    %v7426 = vpop.f32.mrf.mxu0
    %v7427 = vadd.f32 %v7386, %v7426
    %7428 = vdwg.mxu0
    %7429 = vmatpush.msra.mxu0 %v7287
    %7430 = vmatpush.msra.mxu0 %v7286
    %7431 = vmatpush.msra.mxu0 %v7285
    %7432 = vmatpush.msra.mxu0 %v7284
    %7433 = vmatpush.msra.mxu0 %v7283
    %7434 = vmatpush.msra.mxu0 %v7282
    %7435 = vmatpush.msra.mxu0 %v7281
    %7436 = vmatpush.msra.mxu0 %v7280
    %7437 = vmatpush.msra.mxu0 %v7279
    %7438 = vmatpush.msra.mxu0 %v7278
    %7439 = vmatpush.msra.mxu0 %v7277
    %7440 = vmatpush.msra.mxu0 %v7276
    %7441 = vmatpush.msra.mxu0 %v7275
    %7442 = vmatpush.msra.mxu0 %v7274
    %7443 = vmatpush.msra.mxu0 %v7273
    %7444 = vmatpush.msra.mxu0 %v7272
    %7445 = vmatmul.f32.gmra.mxu0 %v7394
    %v7446 = vpop.f32.mrf.mxu0
    %v7447 = vadd.f32 %v7427, %v7446
    %7448 = vdwg.mxu0
    %7449 = vmatpush.msra.mxu0 %v7303
    %7450 = vmatpush.msra.mxu0 %v7302
    %7451 = vmatpush.msra.mxu0 %v7301
    %7452 = vmatpush.msra.mxu0 %v7300
    %7453 = vmatpush.msra.mxu0 %v7299
    %7454 = vmatpush.msra.mxu0 %v7298
    %7455 = vmatpush.msra.mxu0 %v7297
    %7456 = vmatpush.msra.mxu0 %v7296
    %7457 = vmatpush.msra.mxu0 %v7295
    %7458 = vmatpush.msra.mxu0 %v7294
    %7459 = vmatpush.msra.mxu0 %v7293
    %7460 = vmatpush.msra.mxu0 %v7292
    %7461 = vmatpush.msra.mxu0 %v7291
    %7462 = vmatpush.msra.mxu0 %v7290
    %7463 = vmatpush.msra.mxu0 %v7289
    %7464 = vmatpush.msra.mxu0 %v7288
    %7465 = vmatmul.f32.gmra.mxu0 %v7395
    %v7466 = vpop.f32.mrf.mxu0
    %v7467 = vadd.f32 %v7447, %v7466
    %7468 = vdwg.mxu0
    %7469 = vmatpush.msra.mxu0 %v7319
    %7470 = vmatpush.msra.mxu0 %v7318
    %7471 = vmatpush.msra.mxu0 %v7317
    %7472 = vmatpush.msra.mxu0 %v7316
    %7473 = vmatpush.msra.mxu0 %v7315
    %7474 = vmatpush.msra.mxu0 %v7314
    %7475 = vmatpush.msra.mxu0 %v7313
    %7476 = vmatpush.msra.mxu0 %v7312
    %7477 = vmatpush.msra.mxu0 %v7311
    %7478 = vmatpush.msra.mxu0 %v7310
    %7479 = vmatpush.msra.mxu0 %v7309
    %7480 = vmatpush.msra.mxu0 %v7308
    %7481 = vmatpush.msra.mxu0 %v7307
    %7482 = vmatpush.msra.mxu0 %v7306
    %7483 = vmatpush.msra.mxu0 %v7305
    %7484 = vmatpush.msra.mxu0 %v7304
    %7485 = vmatmul.f32.gmra.mxu0 %v7396
    %v7486 = vpop.f32.mrf.mxu0
    %v7487 = vadd.f32 %v7467, %v7486
    %7488 = vdwg.mxu0
    %7489 = vmatpush.msra.mxu0 %v7335
    %7490 = vmatpush.msra.mxu0 %v7334
    %7491 = vmatpush.msra.mxu0 %v7333
    %7492 = vmatpush.msra.mxu0 %v7332
    %7493 = vmatpush.msra.mxu0 %v7331
    %7494 = vmatpush.msra.mxu0 %v7330
    %7495 = vmatpush.msra.mxu0 %v7329
    %7496 = vmatpush.msra.mxu0 %v7328
    %7497 = vmatpush.msra.mxu0 %v7327
    %7498 = vmatpush.msra.mxu0 %v7326
    %7499 = vmatpush.msra.mxu0 %v7325
    %7500 = vmatpush.msra.mxu0 %v7324
    %7501 = vmatpush.msra.mxu0 %v7323
    %7502 = vmatpush.msra.mxu0 %v7322
    %7503 = vmatpush.msra.mxu0 %v7321
    %7504 = vmatpush.msra.mxu0 %v7320
    %7505 = vmatmul.f32.gmra.mxu0 %v7397
    %v7506 = vpop.f32.mrf.mxu0
    %v7507 = vadd.f32 %v7487, %v7506
    %7508 = vdwg.mxu0
    %7509 = vmatpush.msra.mxu0 %v7351
    %7510 = vmatpush.msra.mxu0 %v7350
    %7511 = vmatpush.msra.mxu0 %v7349
    %7512 = vmatpush.msra.mxu0 %v7348
    %7513 = vmatpush.msra.mxu0 %v7347
    %7514 = vmatpush.msra.mxu0 %v7346
    %7515 = vmatpush.msra.mxu0 %v7345
    %7516 = vmatpush.msra.mxu0 %v7344
    %7517 = vmatpush.msra.mxu0 %v7343
    %7518 = vmatpush.msra.mxu0 %v7342
    %7519 = vmatpush.msra.mxu0 %v7341
    %7520 = vmatpush.msra.mxu0 %v7340
    %7521 = vmatpush.msra.mxu0 %v7339
    %7522 = vmatpush.msra.mxu0 %v7338
    %7523 = vmatpush.msra.mxu0 %v7337
    %7524 = vmatpush.msra.mxu0 %v7336
    %7525 = vmatmul.f32.gmra.mxu0 %v7398
    %v7526 = vpop.f32.mrf.mxu0
    %v7527 = vadd.f32 %v7507, %v7526
    %7528 = vdwg.mxu0
    %7529 = vmatpush.msra.mxu0 %v7367
    %7530 = vmatpush.msra.mxu0 %v7366
    %7531 = vmatpush.msra.mxu0 %v7365
    %7532 = vmatpush.msra.mxu0 %v7364
    %7533 = vmatpush.msra.mxu0 %v7363
    %7534 = vmatpush.msra.mxu0 %v7362
    %7535 = vmatpush.msra.mxu0 %v7361
    %7536 = vmatpush.msra.mxu0 %v7360
    %7537 = vmatpush.msra.mxu0 %v7359
    %7538 = vmatpush.msra.mxu0 %v7358
    %7539 = vmatpush.msra.mxu0 %v7357
    %7540 = vmatpush.msra.mxu0 %v7356
    %7541 = vmatpush.msra.mxu0 %v7355
    %7542 = vmatpush.msra.mxu0 %v7354
    %7543 = vmatpush.msra.mxu0 %v7353
    %7544 = vmatpush.msra.mxu0 %v7352
    %7545 = vmatmul.f32.gmra.mxu0 %v7399
    %v7546 = vpop.f32.mrf.mxu0
    %v7547 = vadd.f32 %v7527, %v7546
    %7548 = vdwg.mxu0
    %7549 = vmatpush.msra.mxu0 %v7383
    %7550 = vmatpush.msra.mxu0 %v7382
    %7551 = vmatpush.msra.mxu0 %v7381
    %7552 = vmatpush.msra.mxu0 %v7380
    %7553 = vmatpush.msra.mxu0 %v7379
    %7554 = vmatpush.msra.mxu0 %v7378
    %7555 = vmatpush.msra.mxu0 %v7377
    %7556 = vmatpush.msra.mxu0 %v7376
    %7557 = vmatpush.msra.mxu0 %v7375
    %7558 = vmatpush.msra.mxu0 %v7374
    %7559 = vmatpush.msra.mxu0 %v7373
    %7560 = vmatpush.msra.mxu0 %v7372
    %7561 = vmatpush.msra.mxu0 %v7371
    %7562 = vmatpush.msra.mxu0 %v7370
    %7563 = vmatpush.msra.mxu0 %v7369
    %7564 = vmatpush.msra.mxu0 %v7368
    %7565 = vmatmul.f32.gmra.mxu0 %v7400
    %v7566 = vpop.f32.mrf.mxu0
    %v7567 = vadd.f32 %v7547, %v7566
    %7568 = vdwg.mxu0
    %v7569 = vmax.f32 %v7567, 0.0
    %v7570 = vld [vmem:[%s12] sm:$0xff]
    %v7571 = vld [vmem:[%s12 + $0x8] sm:$0xff]
    %v7572 = vld [vmem:[%s12 + $0x10] sm:$0xff]
    %v7573 = vld [vmem:[%s12 + $0x18] sm:$0xff]
    %v7574 = vld [vmem:[%s12 + $0x20] sm:$0xff]
    %v7575 = vld [vmem:[%s12 + $0x28] sm:$0xff]
    %v7576 = vld [vmem:[%s12 + $0x30] sm:$0xff]
    %v7577 = vld [vmem:[%s12 + $0x38] sm:$0xff]
    %v7578 = vld [vmem:[%s13] sm:$0x1]
    %v7580 = vperm.slane %v7578, 0
    %vm7582 = vcmask 523264
    %v7584 = vsel %vm7582, %v7569, 0
    %7586 = vmatpush.msra.mxu0 0.0
    %7587 = vmatpush.msra.mxu0 0.0
    %7588 = vmatpush.msra.mxu0 0.0
    %7589 = vmatpush.msra.mxu0 0.0
    %7590 = vmatpush.msra.mxu0 0.0
    %7591 = vmatpush.msra.mxu0 0.0
    %7592 = vmatpush.msra.mxu0 0.0
    %7593 = vmatpush.msra.mxu0 0.0
    %7594 = vmatpush.msra.mxu0 %v7577
    %7595 = vmatpush.msra.mxu0 %v7576
    %7596 = vmatpush.msra.mxu0 %v7575
    %7597 = vmatpush.msra.mxu0 %v7574
    %7598 = vmatpush.msra.mxu0 %v7573
    %7599 = vmatpush.msra.mxu0 %v7572
    %7600 = vmatpush.msra.mxu0 %v7571
    %7601 = vmatpush.msra.mxu0 %v7570
    %7602 = vmatmul.f32.gmra.mxu0 %v7584
    %v7603 = vpop.f32.mrf.mxu0
    %v7604 = vadd.f32 %v7580, %v7603
    %7605 = vdwg.mxu0
    %vm7606 = vcmask 517120
    %v7607 = vsel %vm7606, %v7604, 0.0
    %7608 = vadd.xlane.f32.xlu0 %v7607
    %v7609 = vpop.xlane.xlu0 %7608
    %v7610 = vrcp.pop 64.0
    %v7611 = vmul.f32 64.0, %v7610
    %v7612 = vsub.f32 1.0, %v7611
    %v7613 = vmul.f32 %v7610, %v7612
    %v7614 = vadd.f32 %v7610, %v7613
    %vm7615 = vweird.f32 %v7610
    %v7616 = vsel %vm7615, %v7610, %v7614
    %v7617 = vmul.f32 %v7609, %v7616
    %v7618 = vmul.f32 %v7604, %v7604
    %v7619 = vsel %vm7606, %v7618, 0.0
    %7620 = vadd.xlane.f32.xlu0 %v7619
    %v7621 = vpop.xlane.xlu0 %7620
    %v7622 = vmul.f32 %v7621, %v7616
    %v7623 = vmul.f32 %v7617, %v7617
    %v7624 = vsub.f32 %v7622, %v7623
    %v7625 = vmax.f32 %v7624, 0.0
    %v7626 = vsub.f32 %v7604, %v7617
    %v7627 = vadd.f32 %v7625, 1e-05
    %v7628 = vrsqrt.pop %v7627
    %v7629 = vmul.f32 %v7628, %v7627
    %v7630 = vmul.f32 %v7629, %v7628
    %v7631 = vmul.f32 0.5, %v7630
    %v7632 = vsub.f32 1.5, %v7631
    %v7633 = vmul.f32 %v7628, %v7632
    %vm7634 = vweird.f32 %v7627
    %vm7635 = vweird.f32 %v7628
    %vm7636 = vmor %vm7634, %vm7635
    %v7637 = vsel %vm7636, %v7628, %v7633
    %v7638 = vmul.f32 %v7626, %v7637
    %v7639 = vld [vmem:[%s14] sm:$0x1]
    %v7641 = vperm.slane %v7639, 0
    %v7643 = vmul.f32 %v7638, %v7641
    %v7644 = vld [vmem:[%s15] sm:$0x1]
    %v7646 = vperm.slane %v7644, 0
    %v7648 = vadd.f32 %v7643, %v7646
    %v7649 = vmax.f32 %v7648, 0.0
    %v7650 = vld [vmem:[%s16] sm:$0xff]
    %v7651 = vld [vmem:[%s16 + $0x8] sm:$0xff]
    %v7652 = vld [vmem:[%s16 + $0x10] sm:$0xff]
    %v7653 = vld [vmem:[%s16 + $0x18] sm:$0xff]
    %v7654 = vld [vmem:[%s16 + $0x20] sm:$0xff]
    %v7655 = vld [vmem:[%s16 + $0x28] sm:$0xff]
    %v7656 = vld [vmem:[%s16 + $0x30] sm:$0xff]
    %v7657 = vld [vmem:[%s16 + $0x38] sm:$0xff]
    %v7658 = vld [vmem:[%s17] sm:$0x1]
    %v7660 = vperm.slane %v7658, 0
    %v7663 = vsel %vm7582, %v7649, 0
    %7665 = vmatpush.msra.mxu0 0.0
    %7666 = vmatpush.msra.mxu0 0.0
    %7667 = vmatpush.msra.mxu0 0.0
    %7668 = vmatpush.msra.mxu0 0.0
    %7669 = vmatpush.msra.mxu0 0.0
    %7670 = vmatpush.msra.mxu0 0.0
    %7671 = vmatpush.msra.mxu0 0.0
    %7672 = vmatpush.msra.mxu0 0.0
    %7673 = vmatpush.msra.mxu0 %v7657
    %7674 = vmatpush.msra.mxu0 %v7656
    %7675 = vmatpush.msra.mxu0 %v7655
    %7676 = vmatpush.msra.mxu0 %v7654
    %7677 = vmatpush.msra.mxu0 %v7653
    %7678 = vmatpush.msra.mxu0 %v7652
    %7679 = vmatpush.msra.mxu0 %v7651
    %7680 = vmatpush.msra.mxu0 %v7650
    %7681 = vmatmul.f32.gmra.mxu0 %v7663
    %v7682 = vpop.f32.mrf.mxu0
    %v7683 = vadd.f32 %v7660, %v7682
    %7684 = vdwg.mxu0
    %vm7685 = vcmask 254976
    %7686 = vst.msk [vmem:[#allocation4] sm:$0x3] %vm7685, %v7683
    // Predicated region
    $region74: #{forward.1} parent=1 // pred_check
      _
    $region75: #{forward.1} parent=1 // pred_check_branch
      %7688 = sbr.rel (0) target = $region77
    $region76: #{forward.1} parent=1 // pred_region
      %7690 = vsyncadd [#allocation5], 0
      %s7692 = sshll.u32 [#allocation4], 4
      %s7693 = int_to_ptr.vmem [resolvable:$true] %s7692
      %s7694 = sshll.u32 %s18, 4
      %s7695 = int_to_ptr.hbm [resolvable:$true] %s7694
      %7697 = dma.vmem_to_hbm [thread:$0]  %s7693, 32, %s7695, [#allocation5]
    $region77: #{forward.1} parent=1 // pred_fallthru
      _
    // Predicated region
    $region78: #{forward.1} parent=1 // pred_check
      _
    $region79: #{forward.1} parent=1 // pred_check_branch
      %7699 = sbr.rel (0) target = $region81
    $region80: #{forward.1} parent=1 // pred_region
      %7701 = dma.done [#allocation5], 32
    $region81: #{forward.1} parent=1 // pred_fallthru
      _
    %7702 = vsyncpa [#allocation5], 1

</llo_original>
